<compile_context>
chip_gen: v5e
topology: v5e:2x2
jax: 0.10.0
libtpu: 0.0.40
codegen_flags: <defaults>
</compile_context>

<pallas_src>
import functools

import jax
import jax.numpy as jnp
from jax.experimental import pallas as pl
from jax.experimental.pallas import tpu as pltpu


def _round_up(x, m):
    return ((x + m - 1) // m) * m


# ----------------------------------------------------------------------------
# Pallas kernel 1: fused   out = act(A @ B + bias)   (A, B bf16; f32 accumulate)
# ----------------------------------------------------------------------------
def _matmul_bias_act_kernel(a_ref, b_ref, bias_ref, o_ref, *, act):
    acc = jnp.dot(a_ref[...], b_ref[...], preferred_element_type=jnp.float32)
    acc = acc + bias_ref[...]                      # f32 epilogue (v5e-safe)
    if act == "relu":
        acc = jnp.maximum(acc, 0.0)
    o_ref[...] = acc.astype(o_ref.dtype)           # single store


def matmul_bias_act(a, b_p, bias_p, act="none", out_dtype=jnp.float32):
    """act(a @ b_p + bias_p).

    a:      [M, K]   activations (bf16)
    b_p:    [K, Np]  bf16 weight, pre-transposed/pre-padded (Np % 128 == 0)
    bias_p: [1, Np]  f32 bias, pre-padded
    """
    M, K = a.shape
    Kp, Np = b_p.shape
    assert K == Kp, (K, Kp)
    a = a.astype(jnp.bfloat16)

    # Review item 1/2: one grid step for everything except the largest matmul,
    # which gets exactly 2 "parallel" steps (one per v7x TensorCore).  VMEM
    # never binds at these sizes, so no smaller tiling is ever needed.
    Mp = _round_up(M, 16)                    # bf16 packs 16 sublanes per vreg
    if Mp <= 1024:
        tm = Mp                              # single grid step
    else:
        tm = _round_up((Mp + 1) // 2, 16)    # two parallel steps (v7x dual-TC)
        Mp = 2 * tm
    if Mp != M:
        a = jnp.pad(a, ((0, Mp - M), (0, 0)))

    out = pl.pallas_call(
        functools.partial(_matmul_bias_act_kernel, act=act),
        out_shape=jax.ShapeDtypeStruct((Mp, Np), out_dtype),
        grid=(Mp // tm,),
        in_specs=[
            pl.BlockSpec((tm, Kp), lambda i: (i, 0)),
            pl.BlockSpec((Kp, Np), lambda i: (0, 0)),
            pl.BlockSpec((1, Np), lambda i: (0, 0)),
        ],
        out_specs=pl.BlockSpec((tm, Np), lambda i: (i, 0)),
        compiler_params=pltpu.CompilerParams(
            dimension_semantics=("parallel",),
            vmem_limit_bytes=16 * 1024 * 1024,
        ),
    )(a, b_p, bias_p)
    return out if Mp == M else out[:M]


# ----------------------------------------------------------------------------
# Pallas kernel 2: fused  [mu|logvar] = relu(a @ W5 + b5) @ Whead + bhead
# (last 4x4 valid conv over the 4x4 map == dense layer, fused with both fc heads)
# ----------------------------------------------------------------------------
def _head_kernel(a_ref, w1_ref, b1_ref, w2_ref, b2_ref, o_ref):
    h = jnp.dot(a_ref[...], w1_ref[...], preferred_element_type=jnp.float32)
    h = jnp.maximum(h + b1_ref[...], 0.0)
    o = jnp.dot(h.astype(jnp.bfloat16), w2_ref[...],
                preferred_element_type=jnp.float32)
    o_ref[...] = o + b2_ref[...]


def fused_head(a, w1, b1, w2, b2):
    M, K = a.shape
    Mp = _round_up(M, 16)                    # review item 7: 16, not 8 (bf16 packing)
    a = a.astype(jnp.bfloat16)
    if Mp != M:
        a = jnp.pad(a, ((0, Mp - M), (0, 0)))
    out = pl.pallas_call(
        _head_kernel,
        out_shape=jax.ShapeDtypeStruct((Mp, w2.shape[1]), jnp.float32),
        in_specs=[pl.BlockSpec(memory_space=pltpu.MemorySpace.VMEM)] * 5,
        out_specs=pl.BlockSpec(memory_space=pltpu.MemorySpace.VMEM),
        compiler_params=pltpu.CompilerParams(vmem_limit_bytes=16 * 1024 * 1024),
    )(a, w1, b1, w2, b2)
    return out[:M]


# ----------------------------------------------------------------------------
# im2col glue (tiny at these shapes; row order (kh, kw, cin) matches weight prep).
# Channel padding is folded into the same single jnp.pad (review item 8).
# ----------------------------------------------------------------------------
def _im2col(x, kh, kw, stride, pad, pad_c=0):
    N, H, W, C = x.shape
    xp = jnp.pad(x, ((0, 0), (pad, pad), (pad, pad), (0, pad_c)))
    Cp = C + pad_c
    OH = (H + 2 * pad - kh) // stride + 1
    OW = (W + 2 * pad - kw) // stride + 1
    cols = [
        xp[:, di:di + stride * OH:stride, dj:dj + stride * OW:stride, :]
        for di in range(kh) for dj in range(kw)
    ]
    patches = jnp.stack(cols, axis=3)               # [N, OH, OW, kh*kw, Cp]
    return patches.reshape(N * OH * OW, kh * kw * Cp), OH, OW


# ----------------------------------------------------------------------------
# Parameters: synthetic init (PyTorch module shapes) + one-time packing
# ----------------------------------------------------------------------------
def init_params(key, input_dim, hidden_dim, latent_dim):
    ki = iter(jax.random.split(key, 16))

    def nrm(shape, fan_in):
        return jax.random.normal(next(ki), shape, jnp.float32) / jnp.sqrt(float(fan_in))

    p = {}
    enc = [(input_dim, 32), (32, 32), (32, 64), (64, 64), (64, 256)]
    for i, (cin, cout) in enumerate(enc, start=1):
        p[f"e{i}_w"] = nrm((cout, cin, 4, 4), cin * 16)   # PyTorch Conv2d layout
        p[f"e{i}_b"] = nrm((cout,), cin * 16)
    p["fc_mean_w"] = nrm((latent_dim, hidden_dim), hidden_dim)
    p["fc_mean_b"] = nrm((latent_dim,), hidden_dim)
    p["fc_var_w"] = nrm((latent_dim, hidden_dim), hidden_dim)
    p["fc_var_b"] = nrm((latent_dim,), hidden_dim)
    return p


def _prep_conv_weight(w, b, cin_pad):
    cout, cin, kh, kw = w.shape
    if cin_pad > cin:
        w = jnp.pad(w, ((0, 0), (0, cin_pad - cin), (0, 0), (0, 0)))
    wmat = jnp.transpose(w, (2, 3, 1, 0)).reshape(kh * kw * cin_pad, cout)
    np_ = _round_up(cout, 128)
    wmat = jnp.pad(wmat, ((0, 0), (0, np_ - cout))).astype(jnp.bfloat16)
    bias = jnp.pad(b, (0, np_ - cout)).astype(jnp.float32).reshape(1, np_)
    return wmat, bias


def prepare_params(params, input_dim, hidden_dim, latent_dim):
    """One-time weight packing: everything the forward needs, already tiled.

    e2..e5 weights are padded along cin to the 128-wide (lane-dense) channel
    carry of the previous layer, so the forward never slices channels (item 4).
    """
    prep = {"c_in_pad": int(_round_up(input_dim, 8)), "latent_dim": int(latent_dim)}
    cin_pad = prep["c_in_pad"]
    for i in range(1, 6):
        w = params[f"e{i}_w"]
        prep[f"e{i}_w"], prep[f"e{i}_b"] = _prep_conv_weight(w, params[f"e{i}_b"], cin_pad)
        # Next layer consumes this layer's 128-padded output channels directly.
        # Correct only because padded weight cols / bias are zero and ReLU(0)=0.
        cin_pad = int(_round_up(w.shape[0], 128))
    # fc_mean and fc_var fused along N into a single [hidden, 2*latent] weight.
    wh = jnp.concatenate([params["fc_mean_w"].T, params["fc_var_w"].T], axis=1)
    bh = jnp.concatenate([params["fc_mean_b"], params["fc_var_b"]])
    nh = _round_up(2 * latent_dim, 128)
    prep["head_w"] = jnp.pad(wh, ((0, 0), (0, nh - 2 * latent_dim))).astype(jnp.bfloat16)
    prep["head_b"] = jnp.pad(bh, (0, nh - 2 * latent_dim)).astype(jnp.float32).reshape(1, nh)
    return prep


# ----------------------------------------------------------------------------
# Encoder forward: x (NCHW) -> (mu, logvar)
# ----------------------------------------------------------------------------
def encoder_forward(prep, x_nchw):
    # NCHW -> NHWC + bf16 cast; channel pad to 8 is folded into the first
    # im2col's single jnp.pad (XLA fuses transpose+cast+pad into one fusion).
    x = jnp.transpose(x_nchw, (0, 2, 3, 1)).astype(jnp.bfloat16)
    n, _, _, c = x.shape
    pad_c = prep["c_in_pad"] - c

    h = x
    for i in range(1, 5):                                          # Conv(4,4,s=2,p=1) + ReLU x4
        a, oh, ow = _im2col(h, 4, 4, stride=2, pad=1, pad_c=pad_c)
        o = matmul_bias_act(a, prep[f"e{i}_w"], prep[f"e{i}_b"],
                            act="relu", out_dtype=jnp.bfloat16)
        # Carry the full 128-wide channel dim (lane-dense, no [:, :cout] slice).
        h = o.reshape(n, oh, ow, o.shape[-1])
        pad_c = 0

    # Conv(64->256, 4x4, s=1, p=0) over the 4x4 map + ReLU + Flatten + fc_mean/fc_var,
    # all in one fused Pallas kernel (NHWC flatten order == (kh, kw, cin) weight order).
    assert h.shape[1] == 4 and h.shape[2] == 4, h.shape
    a5 = h.reshape(n, -1)
    out = fused_head(a5, prep["e5_w"], prep["e5_b"], prep["head_w"], prep["head_b"])
    ld = prep["latent_dim"]
    mu = out[:, :ld]
    logvar = out[:, ld:2 * ld]
    return mu, logvar


if __name__ == "__main__":
    # The conv stack (4x stride-2 + one 4x4 valid conv) forces 64x64 spatial input
    # so Flatten yields hidden_dim = 256, matching the fc layers.
    args = dict(input_dim=3, hidden_dim=256, latent_dim=8)
    key = jax.random.PRNGKey(0)
    pkey, xkey = jax.random.split(key)
    params = init_params(pkey, **args)
    prep = prepare_params(params, **args)      # one-time packing, hoisted out of forward
    x = jax.random.uniform(xkey, (2, args["input_dim"], 64, 64), jnp.float32)

    fwd = jax.jit(lambda xv: encoder_forward(prep, xv))
    mu, logvar = fwd(x)
    jax.block_until_ready((mu, logvar))

    assert mu.shape == (2, args["latent_dim"])
    assert logvar.shape == (2, args["latent_dim"])
    assert bool(jnp.all(jnp.isfinite(mu))) and bool(jnp.all(jnp.isfinite(logvar)))
    print("KERNEL_OK")
</pallas_src>

<mosaic_0001>
module attributes {stable_mosaic.version = 11 : i64} {
  func.func @_matmul_bias_act_kernel(%arg0: i32, %arg1: memref<1024x128xbf16, #tpu.memory_space<vmem>>, %arg2: memref<128x128xbf16, #tpu.memory_space<vmem>>, %arg3: memref<1x128xf32, #tpu.memory_space<vmem>>, %arg4: memref<1024x128xbf16, #tpu.memory_space<vmem>>) attributes {dimension_semantics = [#tpu.dimension_semantics<parallel>], iteration_bounds = array<i64: 2>, scalar_prefetch = 0 : i64, scratch_operands = 0 : i64, tpu.core_type = #tpu.core_type<tc>, window_params = [{transform_indices = @transform_0, window_bounds = array<i64: 1024, 128>}, {pipeline_mode = #tpu.pipeline_mode<synchronous>, transform_indices = @transform_1, window_bounds = array<i64: 128, 128>}, {pipeline_mode = #tpu.pipeline_mode<synchronous>, transform_indices = @transform_2, window_bounds = array<i64: 1, 128>}, {transform_indices = @transform_3, window_bounds = array<i64: 1024, 128>}]} {
    %c0 = arith.constant 0 : index
    %c0_0 = arith.constant 0 : index
    %0 = vector.load %arg1[%c0, %c0_0] : memref<1024x128xbf16, #tpu.memory_space<vmem>>, vector<1024x128xbf16>
    %c0_1 = arith.constant 0 : index
    %c0_2 = arith.constant 0 : index
    %1 = vector.load %arg2[%c0_1, %c0_2] : memref<128x128xbf16, #tpu.memory_space<vmem>>, vector<128x128xbf16>
    %cst = arith.constant dense<0.000000e+00> : vector<1024x128xf32>
    %2 = tpu.matmul %0, %1, %cst {dimension_numbers = #tpu.dot_dimension_numbers<[1], [0], [0], [1], [0, 0, 1, 1], [], []>} : vector<1024x128xbf16>, vector<128x128xbf16>, vector<1024x128xf32> -> vector<1024x128xf32>
    %c0_3 = arith.constant 0 : index
    %c0_4 = arith.constant 0 : index
    %3 = vector.load %arg3[%c0_3, %c0_4] : memref<1x128xf32, #tpu.memory_space<vmem>>, vector<1x128xf32>
    %4 = vector.broadcast %3 : vector<1x128xf32> to vector<1024x128xf32>
    %5 = arith.addf %2, %4 : vector<1024x128xf32>
    %cst_5 = arith.constant 0.000000e+00 : f32
    %6 = vector.broadcast %cst_5 : f32 to vector<1024x128xf32>
    %7 = arith.maximumf %5, %6 : vector<1024x128xf32>
    %8 = arith.truncf %7 : vector<1024x128xf32> to vector<1024x128xbf16>
    %c0_6 = arith.constant 0 : index
    %c0_7 = arith.constant 0 : index
    %9 = vector.load %arg4[%c0_6, %c0_7] : memref<1024x128xbf16, #tpu.memory_space<vmem>>, vector<1024x128xbf16>
    tpu.vector_store %arg4[%c0_6, %c0_7], %8 {strides = array<i32>} : memref<1024x128xbf16, #tpu.memory_space<vmem>>, vector<1024x128xbf16>,
    return
  }
  func.func @transform_0(%arg0: i32) -> (i32, i32) {
    %c0_i32 = arith.constant 0 : i32
    %c0_i32_0 = arith.constant 0 : i32
    return %arg0, %c0_i32 : i32, i32
  }
  func.func @transform_1(%arg0: i32) -> (i32, i32) {
    %c0_i32 = arith.constant 0 : i32
    %c0_i32_0 = arith.constant 0 : i32
    %c0_i32_1 = arith.constant 0 : i32
    return %c0_i32, %c0_i32_0 : i32, i32
  }
  func.func @transform_2(%arg0: i32) -> (i32, i32) {
    %c0_i32 = arith.constant 0 : i32
    %c0_i32_0 = arith.constant 0 : i32
    %c0_i32_1 = arith.constant 0 : i32
    return %c0_i32, %c0_i32_0 : i32, i32
  }
  func.func @transform_3(%arg0: i32) -> (i32, i32) {
    %c0_i32 = arith.constant 0 : i32
    %c0_i32_0 = arith.constant 0 : i32
    return %arg0, %c0_i32 : i32, i32
  }
}

module attributes {stable_mosaic.version = 11 : i64} {
  func.func @_matmul_bias_act_kernel(%arg0: i32, %arg1: memref<512x2048xbf16, #tpu.memory_space<vmem>>, %arg2: memref<2048x128xbf16, #tpu.memory_space<vmem>>, %arg3: memref<1x128xf32, #tpu.memory_space<vmem>>, %arg4: memref<512x128xbf16, #tpu.memory_space<vmem>>) attributes {dimension_semantics = [#tpu.dimension_semantics<parallel>], iteration_bounds = array<i64: 1>, scalar_prefetch = 0 : i64, scratch_operands = 0 : i64, tpu.core_type = #tpu.core_type<tc>, window_params = [{transform_indices = @transform_0, window_bounds = array<i64: 512, 2048>}, {pipeline_mode = #tpu.pipeline_mode<synchronous>, transform_indices = @transform_1, window_bounds = array<i64: 2048, 128>}, {pipeline_mode = #tpu.pipeline_mode<synchronous>, transform_indices = @transform_2, window_bounds = array<i64: 1, 128>}, {transform_indices = @transform_3, window_bounds = array<i64: 512, 128>}]} {
    %c0 = arith.constant 0 : index
    %c0_0 = arith.constant 0 : index
    %0 = vector.load %arg1[%c0, %c0_0] : memref<512x2048xbf16, #tpu.memory_space<vmem>>, vector<512x2048xbf16>
    %c0_1 = arith.constant 0 : index
    %c0_2 = arith.constant 0 : index
    %1 = vector.load %arg2[%c0_1, %c0_2] : memref<2048x128xbf16, #tpu.memory_space<vmem>>, vector<2048x128xbf16>
    %cst = arith.constant dense<0.000000e+00> : vector<512x128xf32>
    %2 = tpu.matmul %0, %1, %cst {dimension_numbers = #tpu.dot_dimension_numbers<[1], [0], [0], [1], [0, 0, 1, 1], [], []>} : vector<512x2048xbf16>, vector<2048x128xbf16>, vector<512x128xf32> -> vector<512x128xf32>
    %c0_3 = arith.constant 0 : index
    %c0_4 = arith.constant 0 : index
    %3 = vector.load %arg3[%c0_3, %c0_4] : memref<1x128xf32, #tpu.memory_space<vmem>>, vector<1x128xf32>
    %4 = vector.broadcast %3 : vector<1x128xf32> to vector<512x128xf32>
    %5 = arith.addf %2, %4 : vector<512x128xf32>
    %cst_5 = arith.constant 0.000000e+00 : f32
    %6 = vector.broadcast %cst_5 : f32 to vector<512x128xf32>
    %7 = arith.maximumf %5, %6 : vector<512x128xf32>
    %8 = arith.truncf %7 : vector<512x128xf32> to vector<512x128xbf16>
    %c0_6 = arith.constant 0 : index
    %c0_7 = arith.constant 0 : index
    %9 = vector.load %arg4[%c0_6, %c0_7] : memref<512x128xbf16, #tpu.memory_space<vmem>>, vector<512x128xbf16>
    tpu.vector_store %arg4[%c0_6, %c0_7], %8 {strides = array<i32>} : memref<512x128xbf16, #tpu.memory_space<vmem>>, vector<512x128xbf16>,
    return
  }
  func.func @transform_0(%arg0: i32) -> (i32, i32) {
    %c0_i32 = arith.constant 0 : i32
    %c0_i32_0 = arith.constant 0 : i32
    return %arg0, %c0_i32 : i32, i32
  }
  func.func @transform_1(%arg0: i32) -> (i32, i32) {
    %c0_i32 = arith.constant 0 : i32
    %c0_i32_0 = arith.constant 0 : i32
    %c0_i32_1 = arith.constant 0 : i32
    return %c0_i32, %c0_i32_0 : i32, i32
  }
  func.func @transform_2(%arg0: i32) -> (i32, i32) {
    %c0_i32 = arith.constant 0 : i32
    %c0_i32_0 = arith.constant 0 : i32
    %c0_i32_1 = arith.constant 0 : i32
    return %c0_i32, %c0_i32_0 : i32, i32
  }
  func.func @transform_3(%arg0: i32) -> (i32, i32) {
    %c0_i32 = arith.constant 0 : i32
    %c0_i32_0 = arith.constant 0 : i32
    return %arg0, %c0_i32 : i32, i32
  }
}

module attributes {stable_mosaic.version = 11 : i64} {
  func.func @_matmul_bias_act_kernel(%arg0: i32, %arg1: memref<128x2048xbf16, #tpu.memory_space<vmem>>, %arg2: memref<2048x128xbf16, #tpu.memory_space<vmem>>, %arg3: memref<1x128xf32, #tpu.memory_space<vmem>>, %arg4: memref<128x128xbf16, #tpu.memory_space<vmem>>) attributes {dimension_semantics = [#tpu.dimension_semantics<parallel>], iteration_bounds = array<i64: 1>, scalar_prefetch = 0 : i64, scratch_operands = 0 : i64, tpu.core_type = #tpu.core_type<tc>, window_params = [{transform_indices = @transform_0, window_bounds = array<i64: 128, 2048>}, {pipeline_mode = #tpu.pipeline_mode<synchronous>, transform_indices = @transform_1, window_bounds = array<i64: 2048, 128>}, {pipeline_mode = #tpu.pipeline_mode<synchronous>, transform_indices = @transform_2, window_bounds = array<i64: 1, 128>}, {transform_indices = @transform_3, window_bounds = array<i64: 128, 128>}]} {
    %c0 = arith.constant 0 : index
    %c0_0 = arith.constant 0 : index
    %0 = vector.load %arg1[%c0, %c0_0] : memref<128x2048xbf16, #tpu.memory_space<vmem>>, vector<128x2048xbf16>
    %c0_1 = arith.constant 0 : index
    %c0_2 = arith.constant 0 : index
    %1 = vector.load %arg2[%c0_1, %c0_2] : memref<2048x128xbf16, #tpu.memory_space<vmem>>, vector<2048x128xbf16>
    %cst = arith.constant dense<0.000000e+00> : vector<128x128xf32>
    %2 = tpu.matmul %0, %1, %cst {dimension_numbers = #tpu.dot_dimension_numbers<[1], [0], [0], [1], [0, 0, 1, 1], [], []>} : vector<128x2048xbf16>, vector<2048x128xbf16>, vector<128x128xf32> -> vector<128x128xf32>
    %c0_3 = arith.constant 0 : index
    %c0_4 = arith.constant 0 : index
    %3 = vector.load %arg3[%c0_3, %c0_4] : memref<1x128xf32, #tpu.memory_space<vmem>>, vector<1x128xf32>
    %4 = vector.broadcast %3 : vector<1x128xf32> to vector<128x128xf32>
    %5 = arith.addf %2, %4 : vector<128x128xf32>
    %cst_5 = arith.constant 0.000000e+00 : f32
    %6 = vector.broadcast %cst_5 : f32 to vector<128x128xf32>
    %7 = arith.maximumf %5, %6 : vector<128x128xf32>
    %8 = arith.truncf %7 : vector<128x128xf32> to vector<128x128xbf16>
    %c0_6 = arith.constant 0 : index
    %c0_7 = arith.constant 0 : index
    %9 = vector.load %arg4[%c0_6, %c0_7] : memref<128x128xbf16, #tpu.memory_space<vmem>>, vector<128x128xbf16>
    tpu.vector_store %arg4[%c0_6, %c0_7], %8 {strides = array<i32>} : memref<128x128xbf16, #tpu.memory_space<vmem>>, vector<128x128xbf16>,
    return
  }
  func.func @transform_0(%arg0: i32) -> (i32, i32) {
    %c0_i32 = arith.constant 0 : i32
    %c0_i32_0 = arith.constant 0 : i32
    return %arg0, %c0_i32 : i32, i32
  }
  func.func @transform_1(%arg0: i32) -> (i32, i32) {
    %c0_i32 = arith.constant 0 : i32
    %c0_i32_0 = arith.constant 0 : i32
    %c0_i32_1 = arith.constant 0 : i32
    return %c0_i32, %c0_i32_0 : i32, i32
  }
  func.func @transform_2(%arg0: i32) -> (i32, i32) {
    %c0_i32 = arith.constant 0 : i32
    %c0_i32_0 = arith.constant 0 : i32
    %c0_i32_1 = arith.constant 0 : i32
    return %c0_i32, %c0_i32_0 : i32, i32
  }
  func.func @transform_3(%arg0: i32) -> (i32, i32) {
    %c0_i32 = arith.constant 0 : i32
    %c0_i32_0 = arith.constant 0 : i32
    return %arg0, %c0_i32 : i32, i32
  }
}

module attributes {stable_mosaic.version = 11 : i64} {
  func.func @_matmul_bias_act_kernel(%arg0: i32, %arg1: memref<32x2048xbf16, #tpu.memory_space<vmem>>, %arg2: memref<2048x128xbf16, #tpu.memory_space<vmem>>, %arg3: memref<1x128xf32, #tpu.memory_space<vmem>>, %arg4: memref<32x128xbf16, #tpu.memory_space<vmem>>) attributes {dimension_semantics = [#tpu.dimension_semantics<parallel>], iteration_bounds = array<i64: 1>, scalar_prefetch = 0 : i64, scratch_operands = 0 : i64, tpu.core_type = #tpu.core_type<tc>, window_params = [{transform_indices = @transform_0, window_bounds = array<i64: 32, 2048>}, {pipeline_mode = #tpu.pipeline_mode<synchronous>, transform_indices = @transform_1, window_bounds = array<i64: 2048, 128>}, {pipeline_mode = #tpu.pipeline_mode<synchronous>, transform_indices = @transform_2, window_bounds = array<i64: 1, 128>}, {transform_indices = @transform_3, window_bounds = array<i64: 32, 128>}]} {
    %c0 = arith.constant 0 : index
    %c0_0 = arith.constant 0 : index
    %0 = vector.load %arg1[%c0, %c0_0] : memref<32x2048xbf16, #tpu.memory_space<vmem>>, vector<32x2048xbf16>
    %c0_1 = arith.constant 0 : index
    %c0_2 = arith.constant 0 : index
    %1 = vector.load %arg2[%c0_1, %c0_2] : memref<2048x128xbf16, #tpu.memory_space<vmem>>, vector<2048x128xbf16>
    %cst = arith.constant dense<0.000000e+00> : vector<32x128xf32>
    %2 = tpu.matmul %0, %1, %cst {dimension_numbers = #tpu.dot_dimension_numbers<[1], [0], [0], [1], [0, 0, 1, 1], [], []>} : vector<32x2048xbf16>, vector<2048x128xbf16>, vector<32x128xf32> -> vector<32x128xf32>
    %c0_3 = arith.constant 0 : index
    %c0_4 = arith.constant 0 : index
    %3 = vector.load %arg3[%c0_3, %c0_4] : memref<1x128xf32, #tpu.memory_space<vmem>>, vector<1x128xf32>
    %4 = vector.broadcast %3 : vector<1x128xf32> to vector<32x128xf32>
    %5 = arith.addf %2, %4 : vector<32x128xf32>
    %cst_5 = arith.constant 0.000000e+00 : f32
    %6 = vector.broadcast %cst_5 : f32 to vector<32x128xf32>
    %7 = arith.maximumf %5, %6 : vector<32x128xf32>
    %8 = arith.truncf %7 : vector<32x128xf32> to vector<32x128xbf16>
    %c0_6 = arith.constant 0 : index
    %c0_7 = arith.constant 0 : index
    %9 = vector.load %arg4[%c0_6, %c0_7] : memref<32x128xbf16, #tpu.memory_space<vmem>>, vector<32x128xbf16>
    tpu.vector_store %arg4[%c0_6, %c0_7], %8 {strides = array<i32>} : memref<32x128xbf16, #tpu.memory_space<vmem>>, vector<32x128xbf16>,
    return
  }
  func.func @transform_0(%arg0: i32) -> (i32, i32) {
    %c0_i32 = arith.constant 0 : i32
    %c0_i32_0 = arith.constant 0 : i32
    return %arg0, %c0_i32 : i32, i32
  }
  func.func @transform_1(%arg0: i32) -> (i32, i32) {
    %c0_i32 = arith.constant 0 : i32
    %c0_i32_0 = arith.constant 0 : i32
    %c0_i32_1 = arith.constant 0 : i32
    return %c0_i32, %c0_i32_0 : i32, i32
  }
  func.func @transform_2(%arg0: i32) -> (i32, i32) {
    %c0_i32 = arith.constant 0 : i32
    %c0_i32_0 = arith.constant 0 : i32
    %c0_i32_1 = arith.constant 0 : i32
    return %c0_i32, %c0_i32_0 : i32, i32
  }
  func.func @transform_3(%arg0: i32) -> (i32, i32) {
    %c0_i32 = arith.constant 0 : i32
    %c0_i32_0 = arith.constant 0 : i32
    return %arg0, %c0_i32 : i32, i32
  }
}

module attributes {stable_mosaic.version = 11 : i64} {
  func.func @_head_kernel(%arg0: memref<16x2048xbf16, #tpu.memory_space<vmem>>, %arg1: memref<2048x256xbf16, #tpu.memory_space<vmem>>, %arg2: memref<1x256xf32, #tpu.memory_space<vmem>>, %arg3: memref<256x128xbf16, #tpu.memory_space<vmem>>, %arg4: memref<1x128xf32, #tpu.memory_space<vmem>>, %arg5: memref<16x128xf32, #tpu.memory_space<vmem>>) attributes {dimension_semantics = [], scalar_prefetch = 0 : i64, scratch_operands = 0 : i64, tpu.core_type = #tpu.core_type<tc>} {
    %c0 = arith.constant 0 : index
    %c0_0 = arith.constant 0 : index
    %0 = vector.load %arg0[%c0, %c0_0] : memref<16x2048xbf16, #tpu.memory_space<vmem>>, vector<16x2048xbf16>
    %c0_1 = arith.constant 0 : index
    %c0_2 = arith.constant 0 : index
    %1 = vector.load %arg1[%c0_1, %c0_2] : memref<2048x256xbf16, #tpu.memory_space<vmem>>, vector<2048x256xbf16>
    %cst = arith.constant dense<0.000000e+00> : vector<16x256xf32>
    %2 = tpu.matmul %0, %1, %cst {dimension_numbers = #tpu.dot_dimension_numbers<[1], [0], [0], [1], [0, 0, 1, 1], [], []>} : vector<16x2048xbf16>, vector<2048x256xbf16>, vector<16x256xf32> -> vector<16x256xf32>
    %c0_3 = arith.constant 0 : index
    %c0_4 = arith.constant 0 : index
    %3 = vector.load %arg2[%c0_3, %c0_4] : memref<1x256xf32, #tpu.memory_space<vmem>>, vector<1x256xf32>
    %4 = vector.broadcast %3 : vector<1x256xf32> to vector<16x256xf32>
    %5 = arith.addf %2, %4 : vector<16x256xf32>
    %cst_5 = arith.constant 0.000000e+00 : f32
    %6 = vector.broadcast %cst_5 : f32 to vector<16x256xf32>
    %7 = arith.maximumf %5, %6 : vector<16x256xf32>
    %8 = arith.truncf %7 : vector<16x256xf32> to vector<16x256xbf16>
    %c0_6 = arith.constant 0 : index
    %c0_7 = arith.constant 0 : index
    %9 = vector.load %arg3[%c0_6, %c0_7] : memref<256x128xbf16, #tpu.memory_space<vmem>>, vector<256x128xbf16>
    %cst_8 = arith.constant dense<0.000000e+00> : vector<16x128xf32>
    %10 = tpu.matmul %8, %9, %cst_8 {dimension_numbers = #tpu.dot_dimension_numbers<[1], [0], [0], [1], [0, 0, 1, 1], [], []>} : vector<16x256xbf16>, vector<256x128xbf16>, vector<16x128xf32> -> vector<16x128xf32>
    %c0_9 = arith.constant 0 : index
    %c0_10 = arith.constant 0 : index
    %11 = vector.load %arg4[%c0_9, %c0_10] : memref<1x128xf32, #tpu.memory_space<vmem>>, vector<1x128xf32>
    %12 = vector.broadcast %11 : vector<1x128xf32> to vector<16x128xf32>
    %13 = arith.addf %10, %12 : vector<16x128xf32>
    %c0_11 = arith.constant 0 : index
    %c0_12 = arith.constant 0 : index
    %14 = vector.load %arg5[%c0_11, %c0_12] : memref<16x128xf32, #tpu.memory_space<vmem>>, vector<16x128xf32>
    tpu.vector_store %arg5[%c0_11, %c0_12], %13 {strides = array<i32>} : memref<16x128xf32, #tpu.memory_space<vmem>>, vector<16x128xf32>,
    return
  }
}

</mosaic_0001>

<llo_original>
// kernel: _lambda_.5
$region0: #{_lambda_.5}
  #allocation0 [shape = 'u32[]', space=smem, size = 0x4, offset = 0x4, fixed_abs, tag = 'smem constant byte address 0x4 - core index']
  #allocation1 [shape = 'u32[72,128]{1,0:T(1,128)}', space=vmem, size = 0x9000, scoped, tag = 'internal scratch']
  %s0 = inlined_call_operand.vmem [shape: bf16[2048,128], index: 0, kind: input, shape index: {}]
  %s1 = inlined_call_operand.vmem [shape: bf16[128,128], index: 1, kind: input, shape index: {}]
  %s2 = inlined_call_operand.vmem [shape: f32[1,128], index: 2, kind: input, shape index: {}]
  %s3 = inlined_call_operand.vmem [shape: bf16[2048,128], index: 3, kind: output, shape index: {}]
  %s4 = sld [smem:[#allocation0]]
  $region45: #{_lambda_.5} parent=0
    _
  %s6 = ssub.s32 1, %s4
  %s7 = scalar_select 0, %s6, %s4
  loop: start=0, step=1, limit=4
  $region2: #{_lambda_.5} parent=0 // loop_pre_header
    _
  $region3: #{_lambda_.5} parent=0 // loop_header
    %s9 = sphi 0, %s13
    %p10 = scmp.ge.s32.totalorder %s9, 4
    %s19 = sphi 0, %s21
    %s22 = sphi 0, %s19
    %s23 = sphi 0, %s22
    %s39 = sphi 0, %s23
    %s43 = sphi 0, %s43
    %s45 = sphi 0, %s43
    %s46 = sphi 0, %s45
    %s60 = sphi 0, %s46
    %s64 = sphi 0, %s64
    %s66 = sphi 0, %s64
    %s67 = sphi 0, %s66
    %s81 = sphi 0, %s67
    %s87 = sphi 0, %s89
    %s90 = sphi 0, %s87
    %s91 = sphi 0, %s90
    %s107 = sphi 0, %s91
  $region4: #{_lambda_.5} parent=0 // loop_header_branch
    %12 = sbr.rel (%p10) target = $region8
  $region5: #{_lambda_.5} parent=0 // loop_body
    %s14 = ssub.s32 %s9, 1
    %s15 = ssub.s32 %s9, 2
    %s16 = sadd.s32 %s9, 1
    %s17 = ssub.s32 %s9, %s16
    %p18 = scmp.eq.s32.totalorder %s17, 0
    %s20 = sadd.s32 %s19, 1
    %s21 = scalar_select %p18, %s19, %s20
    %p24 = pneg %p18
    %p25 = scmp.eq.s32.totalorder %s9, 1
    %p26 = por %p24, %p25
    %p27 = scmp.ne.s32.totalorder %s19, %s22
    %p28 = scmp.eq.s32.totalorder %s9, 0
    %p29 = por %p27, %p28
    %p30 = scmp.ne.s32.totalorder %s19, %s22
    %p31 = scmp.eq.s32.totalorder %s14, 1
    %p32 = por %p30, %p31
    %p33 = scmp.ne.s32.totalorder %s22, %s23
    %p34 = scmp.eq.s32.totalorder %s14, 0
    %p35 = por %p33, %p34
    %p36 = scmp.ne.s32.totalorder %s22, %s23
    %p37 = scmp.eq.s32.totalorder %s15, 1
    %p38 = por %p36, %p37
    %p40 = scmp.ne.s32.totalorder %s23, %s39
    %p41 = scmp.eq.s32.totalorder %s15, 0
    %p42 = por %p40, %p41
    %s44 = sadd.s32 %s43, 1
    %p47 = scmp.eq.s32.totalorder %s9, 1
    %p48 = scmp.ne.s32.totalorder %s43, %s45
    %p49 = scmp.eq.s32.totalorder %s9, 0
    %p50 = por %p48, %p49
    %p51 = scmp.ne.s32.totalorder %s43, %s45
    %p52 = scmp.eq.s32.totalorder %s14, 1
    %p53 = por %p51, %p52
    %p54 = scmp.ne.s32.totalorder %s45, %s46
    %p55 = scmp.eq.s32.totalorder %s14, 0
    %p56 = por %p54, %p55
    %p57 = scmp.ne.s32.totalorder %s45, %s46
    %p58 = scmp.eq.s32.totalorder %s15, 1
    %p59 = por %p57, %p58
    %p61 = scmp.ne.s32.totalorder %s46, %s60
    %p62 = scmp.eq.s32.totalorder %s15, 0
    %p63 = por %p61, %p62
    %s65 = sadd.s32 %s64, 1
    %p68 = scmp.eq.s32.totalorder %s9, 1
    %p69 = scmp.ne.s32.totalorder %s64, %s66
    %p70 = scmp.eq.s32.totalorder %s9, 0
    %p71 = por %p69, %p70
    %p72 = scmp.ne.s32.totalorder %s64, %s66
    %p73 = scmp.eq.s32.totalorder %s14, 1
    %p74 = por %p72, %p73
    %p75 = scmp.ne.s32.totalorder %s66, %s67
    %p76 = scmp.eq.s32.totalorder %s14, 0
    %p77 = por %p75, %p76
    %p78 = scmp.ne.s32.totalorder %s66, %s67
    %p79 = scmp.eq.s32.totalorder %s15, 1
    %p80 = por %p78, %p79
    %p82 = scmp.ne.s32.totalorder %s67, %s81
    %p83 = scmp.eq.s32.totalorder %s15, 0
    %p84 = por %p82, %p83
    %s85 = ssub.s32 %s9, %s16
    %p86 = scmp.eq.s32.totalorder %s85, 0
    %s88 = sadd.s32 %s87, 1
    %s89 = scalar_select %p86, %s87, %s88
    %p92 = pneg %p86
    %p93 = scmp.eq.s32.totalorder %s9, 1
    %p94 = por %p92, %p93
    %p95 = scmp.ne.s32.totalorder %s87, %s90
    %p96 = scmp.eq.s32.totalorder %s9, 0
    %p97 = por %p95, %p96
    %p98 = scmp.ne.s32.totalorder %s87, %s90
    %p99 = scmp.eq.s32.totalorder %s14, 1
    %p100 = por %p98, %p99
    %p101 = scmp.ne.s32.totalorder %s90, %s91
    %p102 = scmp.eq.s32.totalorder %s14, 0
    %p103 = por %p101, %p102
    %p104 = scmp.ne.s32.totalorder %s90, %s91
    %p105 = scmp.eq.s32.totalorder %s15, 1
    %p106 = por %p104, %p105
    %p108 = scmp.ne.s32.totalorder %s91, %s107
    %p109 = scmp.eq.s32.totalorder %s15, 0
    %p110 = por %p108, %p109
    %p111 = scmp.le.s32.totalorder 1, %s9
    %p112 = scmp.lt.s32.totalorder %s9, 3
    %p113 = pnand %p111, %p112
    %p114 = pneg %p113
    // Predicated region
    $region9: #{_lambda_.5} parent=5 // pred_check
      _
    $region10: #{_lambda_.5} parent=5 // pred_check_branch
      %116 = sbr.rel (%p113) target = $region12
    $region11: #{_lambda_.5} parent=5 // pred_region
      %s117 = ssub.s32 %s9, 1
      // Predicated region
      $region13: #{_lambda_.5} parent=11 // pred_check
        %p118 = pneg %p56
      $region14: #{_lambda_.5} parent=11 // pred_check_branch
        %120 = sbr.rel (%p118) target = $region16
      $region15: #{_lambda_.5} parent=11 // pred_region
        _
      $region16: #{_lambda_.5} parent=11 // pred_fallthru
        _
      // Predicated region
      $region17: #{_lambda_.5} parent=11 // pred_check
        %p121 = pneg %p77
      $region18: #{_lambda_.5} parent=11 // pred_check_branch
        %123 = sbr.rel (%p121) target = $region20
      $region19: #{_lambda_.5} parent=11 // pred_region
        _
      $region20: #{_lambda_.5} parent=11 // pred_fallthru
        _
    $region12: #{_lambda_.5} parent=5 // pred_fallthru
      _
    %p124 = scmp.lt.s32.totalorder %s9, 2
    // Predicated region
    $region21: #{_lambda_.5} parent=5 // pred_check
      %p125 = pneg %p124
    $region22: #{_lambda_.5} parent=5 // pred_check_branch
      %127 = sbr.rel (%p125) target = $region24
    $region23: #{_lambda_.5} parent=5 // pred_region
      // Predicated region
      $region25: #{_lambda_.5} parent=23 // pred_check
        %p128 = pneg %p29
      $region26: #{_lambda_.5} parent=23 // pred_check_branch
        %130 = sbr.rel (%p128) target = $region28
      $region27: #{_lambda_.5} parent=23 // pred_region
        %s131 = smul.u32 128, %s9
        %p132 = scmp.lt.s32.totalorder %s131, 255
        %s133 = scalar_select %p132, %s131, 255
        %s134 = smul.addr %s133, 4
        %s135 = scalar_lea.vmem %s0, %s134
        %s136 = smul.u32 128, %s9
      $region28: #{_lambda_.5} parent=23 // pred_fallthru
        _
    $region24: #{_lambda_.5} parent=5 // pred_fallthru
      _
    %p137 = scmp.le.s32.totalorder 1, %s9
    %p138 = scmp.lt.s32.totalorder %s9, 3
    %p139 = pnand %p137, %p138
    %p140 = pneg %p139
    // Predicated region
    $region29: #{_lambda_.5} parent=5 // pred_check
      _
    $region30: #{_lambda_.5} parent=5 // pred_check_branch
      %142 = sbr.rel (%p139) target = $region32
    $region31: #{_lambda_.5} parent=5 // pred_region
      %s143 = ssub.s32 %s9, 1
      %s144 = smul.u32 128, %s14
      %p145 = scmp.lt.s32.totalorder %s144, 255
      %s146 = scalar_select %p145, %s144, 255
      %s147 = smul.addr %s146, 4
      %s148 = scalar_lea.vmem %s0, %s147
      %p149 = pneg %p35
      %p150 = pneg %p32
      %p151 = pneg %p56
      %p152 = pneg %p53
      %p153 = pneg %p77
      %p154 = pneg %p74
      %p155 = pneg %p103
      %p156 = pneg %p100
      %s157 = smul.u32 128, %s14
      %p158 = scmp.lt.s32.totalorder %s157, 255
      %s159 = scalar_select %p158, %s157, 255
      %s160 = smul.addr %s159, 4
      %s161 = scalar_lea.vmem %s3, %s160
      %s162 = smul.u32 128, %s14
      %p163 = scmp.lt.s32.totalorder %s162, 255
      %s164 = scalar_select %p163, %s162, 255
      %s165 = smul.addr %s164, 4
      %s166 = scalar_lea.vmem %s0, %s165
      %s167 = smul.u32 128, %s14
      %s168 = smul.u32 128, %s14
      %p169 = scmp.lt.s32.totalorder %s168, 255
      %s170 = scalar_select %p169, %s168, 255
      %s171 = smul.addr %s170, 4
      %s172 = scalar_lea.vmem %s3, %s171
      %s173 = smul.u32 128, %s14
      %v174 = vld [vmem:[%s166] sm:$0xf]
      %v175 = vld [vmem:[%s166 + $0x4] sm:$0xf]
      %v176 = vld [vmem:[%s166 + $0x8] sm:$0xf]
      %v177 = vld [vmem:[%s166 + $0xc] sm:$0xf]
      %v178 = vld [vmem:[%s166 + $0x10] sm:$0xf]
      %v179 = vld [vmem:[%s166 + $0x14] sm:$0xf]
      %v180 = vld [vmem:[%s166 + $0x18] sm:$0xf]
      %v181 = vld [vmem:[%s166 + $0x1c] sm:$0xf]
      %v182 = vld [vmem:[%s166 + $0x20] sm:$0xf]
      %v183 = vld [vmem:[%s166 + $0x24] sm:$0xf]
      %v184 = vld [vmem:[%s166 + $0x28] sm:$0xf]
      %v185 = vld [vmem:[%s166 + $0x2c] sm:$0xf]
      %v186 = vld [vmem:[%s166 + $0x30] sm:$0xf]
      %v187 = vld [vmem:[%s166 + $0x34] sm:$0xf]
      %v188 = vld [vmem:[%s166 + $0x38] sm:$0xf]
      %v189 = vld [vmem:[%s166 + $0x3c] sm:$0xf]
      %v190 = vld [vmem:[%s166 + $0x40] sm:$0xf]
      %v191 = vld [vmem:[%s166 + $0x44] sm:$0xf]
      %v192 = vld [vmem:[%s166 + $0x48] sm:$0xf]
      %v193 = vld [vmem:[%s166 + $0x4c] sm:$0xf]
      %v194 = vld [vmem:[%s166 + $0x50] sm:$0xf]
      %v195 = vld [vmem:[%s166 + $0x54] sm:$0xf]
      %v196 = vld [vmem:[%s166 + $0x58] sm:$0xf]
      %v197 = vld [vmem:[%s166 + $0x5c] sm:$0xf]
      %v198 = vld [vmem:[%s166 + $0x60] sm:$0xf]
      %v199 = vld [vmem:[%s166 + $0x64] sm:$0xf]
      %v200 = vld [vmem:[%s166 + $0x68] sm:$0xf]
      %v201 = vld [vmem:[%s166 + $0x6c] sm:$0xf]
      %v202 = vld [vmem:[%s166 + $0x70] sm:$0xf]
      %v203 = vld [vmem:[%s166 + $0x74] sm:$0xf]
      %v204 = vld [vmem:[%s166 + $0x78] sm:$0xf]
      %v205 = vld [vmem:[%s166 + $0x7c] sm:$0xf]
      %v206 = vld [vmem:[%s166 + $0x80] sm:$0xf]
      %v207 = vld [vmem:[%s166 + $0x84] sm:$0xf]
      %v208 = vld [vmem:[%s166 + $0x88] sm:$0xf]
      %v209 = vld [vmem:[%s166 + $0x8c] sm:$0xf]
      %v210 = vld [vmem:[%s166 + $0x90] sm:$0xf]
      %v211 = vld [vmem:[%s166 + $0x94] sm:$0xf]
      %v212 = vld [vmem:[%s166 + $0x98] sm:$0xf]
      %v213 = vld [vmem:[%s166 + $0x9c] sm:$0xf]
      %v214 = vld [vmem:[%s166 + $0xa0] sm:$0xf]
      %v215 = vld [vmem:[%s166 + $0xa4] sm:$0xf]
      %v216 = vld [vmem:[%s166 + $0xa8] sm:$0xf]
      %v217 = vld [vmem:[%s166 + $0xac] sm:$0xf]
      %v218 = vld [vmem:[%s166 + $0xb0] sm:$0xf]
      %v219 = vld [vmem:[%s166 + $0xb4] sm:$0xf]
      %v220 = vld [vmem:[%s166 + $0xb8] sm:$0xf]
      %v221 = vld [vmem:[%s166 + $0xbc] sm:$0xf]
      %v222 = vld [vmem:[%s166 + $0xc0] sm:$0xf]
      %v223 = vld [vmem:[%s166 + $0xc4] sm:$0xf]
      %v224 = vld [vmem:[%s166 + $0xc8] sm:$0xf]
      %v225 = vld [vmem:[%s166 + $0xcc] sm:$0xf]
      %v226 = vld [vmem:[%s166 + $0xd0] sm:$0xf]
      %v227 = vld [vmem:[%s166 + $0xd4] sm:$0xf]
      %v228 = vld [vmem:[%s166 + $0xd8] sm:$0xf]
      %v229 = vld [vmem:[%s166 + $0xdc] sm:$0xf]
      %v230 = vld [vmem:[%s166 + $0xe0] sm:$0xf]
      %v231 = vld [vmem:[%s166 + $0xe4] sm:$0xf]
      %v232 = vld [vmem:[%s166 + $0xe8] sm:$0xf]
      %v233 = vld [vmem:[%s166 + $0xec] sm:$0xf]
      %v234 = vld [vmem:[%s166 + $0xf0] sm:$0xf]
      %v235 = vld [vmem:[%s166 + $0xf4] sm:$0xf]
      %v236 = vld [vmem:[%s166 + $0xf8] sm:$0xf]
      %v237 = vld [vmem:[%s166 + $0xfc] sm:$0xf]
      %v238 = vld [vmem:[%s166 + $0x100] sm:$0xf]
      %v239 = vld [vmem:[%s166 + $0x104] sm:$0xf]
      %v240 = vld [vmem:[%s166 + $0x108] sm:$0xf]
      %v241 = vld [vmem:[%s166 + $0x10c] sm:$0xf]
      %v242 = vld [vmem:[%s166 + $0x110] sm:$0xf]
      %v243 = vld [vmem:[%s166 + $0x114] sm:$0xf]
      %v244 = vld [vmem:[%s166 + $0x118] sm:$0xf]
      %v245 = vld [vmem:[%s166 + $0x11c] sm:$0xf]
      %v246 = vld [vmem:[%s166 + $0x120] sm:$0xf]
      %v247 = vld [vmem:[%s166 + $0x124] sm:$0xf]
      %v248 = vld [vmem:[%s166 + $0x128] sm:$0xf]
      %v249 = vld [vmem:[%s166 + $0x12c] sm:$0xf]
      %v250 = vld [vmem:[%s166 + $0x130] sm:$0xf]
      %v251 = vld [vmem:[%s166 + $0x134] sm:$0xf]
      %v252 = vld [vmem:[%s166 + $0x138] sm:$0xf]
      %v253 = vld [vmem:[%s166 + $0x13c] sm:$0xf]
      %v254 = vld [vmem:[%s166 + $0x140] sm:$0xf]
      %v255 = vld [vmem:[%s166 + $0x144] sm:$0xf]
      %v256 = vld [vmem:[%s166 + $0x148] sm:$0xf]
      %v257 = vld [vmem:[%s166 + $0x14c] sm:$0xf]
      %v258 = vld [vmem:[%s166 + $0x150] sm:$0xf]
      %v259 = vld [vmem:[%s166 + $0x154] sm:$0xf]
      %v260 = vld [vmem:[%s166 + $0x158] sm:$0xf]
      %v261 = vld [vmem:[%s166 + $0x15c] sm:$0xf]
      %v262 = vld [vmem:[%s166 + $0x160] sm:$0xf]
      %v263 = vld [vmem:[%s166 + $0x164] sm:$0xf]
      %v264 = vld [vmem:[%s166 + $0x168] sm:$0xf]
      %v265 = vld [vmem:[%s166 + $0x16c] sm:$0xf]
      %v266 = vld [vmem:[%s166 + $0x170] sm:$0xf]
      %v267 = vld [vmem:[%s166 + $0x174] sm:$0xf]
      %v268 = vld [vmem:[%s166 + $0x178] sm:$0xf]
      %v269 = vld [vmem:[%s166 + $0x17c] sm:$0xf]
      %v270 = vld [vmem:[%s166 + $0x180] sm:$0xf]
      %v271 = vld [vmem:[%s166 + $0x184] sm:$0xf]
      %v272 = vld [vmem:[%s166 + $0x188] sm:$0xf]
      %v273 = vld [vmem:[%s166 + $0x18c] sm:$0xf]
      %v274 = vld [vmem:[%s166 + $0x190] sm:$0xf]
      %v275 = vld [vmem:[%s166 + $0x194] sm:$0xf]
      %v276 = vld [vmem:[%s166 + $0x198] sm:$0xf]
      %v277 = vld [vmem:[%s166 + $0x19c] sm:$0xf]
      %v278 = vld [vmem:[%s166 + $0x1a0] sm:$0xf]
      %v279 = vld [vmem:[%s166 + $0x1a4] sm:$0xf]
      %v280 = vld [vmem:[%s166 + $0x1a8] sm:$0xf]
      %v281 = vld [vmem:[%s166 + $0x1ac] sm:$0xf]
      %v282 = vld [vmem:[%s166 + $0x1b0] sm:$0xf]
      %v283 = vld [vmem:[%s166 + $0x1b4] sm:$0xf]
      %v284 = vld [vmem:[%s166 + $0x1b8] sm:$0xf]
      %v285 = vld [vmem:[%s166 + $0x1bc] sm:$0xf]
      %v286 = vld [vmem:[%s166 + $0x1c0] sm:$0xf]
      %v287 = vld [vmem:[%s166 + $0x1c4] sm:$0xf]
      %v288 = vld [vmem:[%s166 + $0x1c8] sm:$0xf]
      %v289 = vld [vmem:[%s166 + $0x1cc] sm:$0xf]
      %v290 = vld [vmem:[%s166 + $0x1d0] sm:$0xf]
      %v291 = vld [vmem:[%s166 + $0x1d4] sm:$0xf]
      %v292 = vld [vmem:[%s166 + $0x1d8] sm:$0xf]
      %v293 = vld [vmem:[%s166 + $0x1dc] sm:$0xf]
      %v294 = vld [vmem:[%s166 + $0x1e0] sm:$0xf]
      %v295 = vld [vmem:[%s166 + $0x1e4] sm:$0xf]
      %v296 = vld [vmem:[%s166 + $0x1e8] sm:$0xf]
      %v297 = vld [vmem:[%s166 + $0x1ec] sm:$0xf]
      %v298 = vld [vmem:[%s166 + $0x1f0] sm:$0xf]
      %v299 = vld [vmem:[%s166 + $0x1f4] sm:$0xf]
      %v300 = vld [vmem:[%s166 + $0x1f8] sm:$0xf]
      %v301 = vld [vmem:[%s166 + $0x1fc] sm:$0xf]
      %v302 = vld [vmem:[%s1] sm:$0xf]
      %v303 = vld [vmem:[%s1 + $0x4] sm:$0xf]
      %v304 = vld [vmem:[%s1 + $0x8] sm:$0xf]
      %v305 = vld [vmem:[%s1 + $0xc] sm:$0xf]
      %v306 = vld [vmem:[%s1 + $0x10] sm:$0xf]
      %v307 = vld [vmem:[%s1 + $0x14] sm:$0xf]
      %v308 = vld [vmem:[%s1 + $0x18] sm:$0xf]
      %v309 = vld [vmem:[%s1 + $0x1c] sm:$0xf]
      %v310 = vld [vmem:[%s1 + $0x20] sm:$0xf]
      %v311 = vld [vmem:[%s1 + $0x24] sm:$0xf]
      %v312 = vld [vmem:[%s1 + $0x28] sm:$0xf]
      %v313 = vld [vmem:[%s1 + $0x2c] sm:$0xf]
      %v314 = vld [vmem:[%s1 + $0x30] sm:$0xf]
      %v315 = vld [vmem:[%s1 + $0x34] sm:$0xf]
      %v316 = vld [vmem:[%s1 + $0x38] sm:$0xf]
      %v317 = vld [vmem:[%s1 + $0x3c] sm:$0xf]
      %v318 = vld [vmem:[%s2] sm:$0x1]
      %v320 = vperm.slane %v318, 0
      %v450 = vunpack.c.l.b16 %v174
      %v451 = vunpack.c.l.b16 %v175
      %v452 = vunpack.c.l.b16 %v176
      %v453 = vunpack.c.l.b16 %v177
      %v454 = vunpack.c.l.b16 %v178
      %v455 = vunpack.c.l.b16 %v179
      %v456 = vunpack.c.l.b16 %v180
      %v457 = vunpack.c.l.b16 %v181
      %v458 = vunpack.c.l.b16 %v182
      %v459 = vunpack.c.l.b16 %v183
      %v460 = vunpack.c.l.b16 %v184
      %v461 = vunpack.c.l.b16 %v185
      %v462 = vunpack.c.l.b16 %v186
      %v463 = vunpack.c.l.b16 %v187
      %v464 = vunpack.c.l.b16 %v188
      %v465 = vunpack.c.l.b16 %v189
      %v466 = vunpack.c.l.b16 %v190
      %v467 = vunpack.c.l.b16 %v191
      %v468 = vunpack.c.l.b16 %v192
      %v469 = vunpack.c.l.b16 %v193
      %v470 = vunpack.c.l.b16 %v194
      %v471 = vunpack.c.l.b16 %v195
      %v472 = vunpack.c.l.b16 %v196
      %v473 = vunpack.c.l.b16 %v197
      %v474 = vunpack.c.l.b16 %v198
      %v475 = vunpack.c.l.b16 %v199
      %v476 = vunpack.c.l.b16 %v200
      %v477 = vunpack.c.l.b16 %v201
      %v478 = vunpack.c.l.b16 %v202
      %v479 = vunpack.c.l.b16 %v203
      %v480 = vunpack.c.l.b16 %v204
      %v481 = vunpack.c.l.b16 %v205
      %v482 = vunpack.c.l.b16 %v206
      %v483 = vunpack.c.l.b16 %v207
      %v484 = vunpack.c.l.b16 %v208
      %v485 = vunpack.c.l.b16 %v209
      %v486 = vunpack.c.l.b16 %v210
      %v487 = vunpack.c.l.b16 %v211
      %v488 = vunpack.c.l.b16 %v212
      %v489 = vunpack.c.l.b16 %v213
      %v490 = vunpack.c.l.b16 %v214
      %v491 = vunpack.c.l.b16 %v215
      %v492 = vunpack.c.l.b16 %v216
      %v493 = vunpack.c.l.b16 %v217
      %v494 = vunpack.c.l.b16 %v218
      %v495 = vunpack.c.l.b16 %v219
      %v496 = vunpack.c.l.b16 %v220
      %v497 = vunpack.c.l.b16 %v221
      %v498 = vunpack.c.l.b16 %v222
      %v499 = vunpack.c.l.b16 %v223
      %v500 = vunpack.c.l.b16 %v224
      %v501 = vunpack.c.l.b16 %v225
      %v502 = vunpack.c.l.b16 %v226
      %v503 = vunpack.c.l.b16 %v227
      %v504 = vunpack.c.l.b16 %v228
      %v505 = vunpack.c.l.b16 %v229
      %v506 = vunpack.c.l.b16 %v230
      %v507 = vunpack.c.l.b16 %v231
      %v508 = vunpack.c.l.b16 %v232
      %v509 = vunpack.c.l.b16 %v233
      %v510 = vunpack.c.l.b16 %v234
      %v511 = vunpack.c.l.b16 %v235
      %v512 = vunpack.c.l.b16 %v236
      %v513 = vunpack.c.l.b16 %v237
      %v514 = vunpack.c.l.b16 %v238
      %v515 = vunpack.c.l.b16 %v239
      %v516 = vunpack.c.l.b16 %v240
      %v517 = vunpack.c.l.b16 %v241
      %v518 = vunpack.c.l.b16 %v242
      %v519 = vunpack.c.l.b16 %v243
      %v520 = vunpack.c.l.b16 %v244
      %v521 = vunpack.c.l.b16 %v245
      %v522 = vunpack.c.l.b16 %v246
      %v523 = vunpack.c.l.b16 %v247
      %v524 = vunpack.c.l.b16 %v248
      %v525 = vunpack.c.l.b16 %v249
      %v526 = vunpack.c.l.b16 %v250
      %v527 = vunpack.c.l.b16 %v251
      %v528 = vunpack.c.l.b16 %v252
      %v529 = vunpack.c.l.b16 %v253
      %v530 = vunpack.c.l.b16 %v254
      %v531 = vunpack.c.l.b16 %v255
      %v532 = vunpack.c.l.b16 %v256
      %v533 = vunpack.c.l.b16 %v257
      %v534 = vunpack.c.l.b16 %v258
      %v535 = vunpack.c.l.b16 %v259
      %v536 = vunpack.c.l.b16 %v260
      %v537 = vunpack.c.l.b16 %v261
      %v538 = vunpack.c.l.b16 %v262
      %v539 = vunpack.c.l.b16 %v263
      %v540 = vunpack.c.l.b16 %v264
      %v541 = vunpack.c.l.b16 %v265
      %v542 = vunpack.c.l.b16 %v266
      %v543 = vunpack.c.l.b16 %v267
      %v544 = vunpack.c.l.b16 %v268
      %v545 = vunpack.c.l.b16 %v269
      %v546 = vunpack.c.l.b16 %v270
      %v547 = vunpack.c.l.b16 %v271
      %v548 = vunpack.c.l.b16 %v272
      %v549 = vunpack.c.l.b16 %v273
      %v550 = vunpack.c.l.b16 %v274
      %v551 = vunpack.c.l.b16 %v275
      %v552 = vunpack.c.l.b16 %v276
      %v553 = vunpack.c.l.b16 %v277
      %v554 = vunpack.c.l.b16 %v278
      %v555 = vunpack.c.l.b16 %v279
      %v556 = vunpack.c.l.b16 %v280
      %v557 = vunpack.c.l.b16 %v281
      %v558 = vunpack.c.l.b16 %v282
      %v559 = vunpack.c.l.b16 %v283
      %v560 = vunpack.c.l.b16 %v284
      %v561 = vunpack.c.l.b16 %v285
      %v562 = vunpack.c.l.b16 %v286
      %v563 = vunpack.c.l.b16 %v287
      %v564 = vunpack.c.l.b16 %v288
      %v565 = vunpack.c.l.b16 %v289
      %v566 = vunpack.c.l.b16 %v290
      %v567 = vunpack.c.l.b16 %v291
      %v568 = vunpack.c.l.b16 %v292
      %v569 = vunpack.c.l.b16 %v293
      %v570 = vunpack.c.l.b16 %v294
      %v571 = vunpack.c.l.b16 %v295
      %v572 = vunpack.c.l.b16 %v296
      %v573 = vunpack.c.l.b16 %v297
      %v574 = vunpack.c.l.b16 %v298
      %v575 = vunpack.c.l.b16 %v299
      %v576 = vunpack.c.l.b16 %v300
      %v577 = vunpack.c.l.b16 %v301
      %v578 = vpack.c.b16 %v451, %v450
      %v579 = vpack.c.b16 %v453, %v452
      %v580 = vpack.c.b16 %v455, %v454
      %v581 = vpack.c.b16 %v457, %v456
      %v582 = vpack.c.b16 %v459, %v458
      %v583 = vpack.c.b16 %v461, %v460
      %v584 = vpack.c.b16 %v463, %v462
      %v585 = vpack.c.b16 %v465, %v464
      %v586 = vpack.c.b16 %v467, %v466
      %v587 = vpack.c.b16 %v469, %v468
      %v588 = vpack.c.b16 %v471, %v470
      %v589 = vpack.c.b16 %v473, %v472
      %v590 = vpack.c.b16 %v475, %v474
      %v591 = vpack.c.b16 %v477, %v476
      %v592 = vpack.c.b16 %v479, %v478
      %v593 = vpack.c.b16 %v481, %v480
      %v594 = vpack.c.b16 %v483, %v482
      %v595 = vpack.c.b16 %v485, %v484
      %v596 = vpack.c.b16 %v487, %v486
      %v597 = vpack.c.b16 %v489, %v488
      %v598 = vpack.c.b16 %v491, %v490
      %v599 = vpack.c.b16 %v493, %v492
      %v600 = vpack.c.b16 %v495, %v494
      %v601 = vpack.c.b16 %v497, %v496
      %v602 = vpack.c.b16 %v499, %v498
      %v603 = vpack.c.b16 %v501, %v500
      %v604 = vpack.c.b16 %v503, %v502
      %v605 = vpack.c.b16 %v505, %v504
      %v606 = vpack.c.b16 %v507, %v506
      %v607 = vpack.c.b16 %v509, %v508
      %v608 = vpack.c.b16 %v511, %v510
      %v609 = vpack.c.b16 %v513, %v512
      %v610 = vpack.c.b16 %v515, %v514
      %v611 = vpack.c.b16 %v517, %v516
      %v612 = vpack.c.b16 %v519, %v518
      %v613 = vpack.c.b16 %v521, %v520
      %v614 = vpack.c.b16 %v523, %v522
      %v615 = vpack.c.b16 %v525, %v524
      %v616 = vpack.c.b16 %v527, %v526
      %v617 = vpack.c.b16 %v529, %v528
      %v618 = vpack.c.b16 %v531, %v530
      %v619 = vpack.c.b16 %v533, %v532
      %v620 = vpack.c.b16 %v535, %v534
      %v621 = vpack.c.b16 %v537, %v536
      %v622 = vpack.c.b16 %v539, %v538
      %v623 = vpack.c.b16 %v541, %v540
      %v624 = vpack.c.b16 %v543, %v542
      %v625 = vpack.c.b16 %v545, %v544
      %v626 = vpack.c.b16 %v547, %v546
      %v627 = vpack.c.b16 %v549, %v548
      %v628 = vpack.c.b16 %v551, %v550
      %v629 = vpack.c.b16 %v553, %v552
      %v630 = vpack.c.b16 %v555, %v554
      %v631 = vpack.c.b16 %v557, %v556
      %v632 = vpack.c.b16 %v559, %v558
      %v633 = vpack.c.b16 %v561, %v560
      %v634 = vpack.c.b16 %v563, %v562
      %v635 = vpack.c.b16 %v565, %v564
      %v636 = vpack.c.b16 %v567, %v566
      %v637 = vpack.c.b16 %v569, %v568
      %v638 = vpack.c.b16 %v571, %v570
      %v639 = vpack.c.b16 %v573, %v572
      %v640 = vpack.c.b16 %v575, %v574
      %v641 = vpack.c.b16 %v577, %v576
      %v722 = vunpack.c.l.b16 %v302
      %v723 = vunpack.c.l.b16 %v303
      %v724 = vunpack.c.l.b16 %v304
      %v725 = vunpack.c.l.b16 %v305
      %v726 = vunpack.c.l.b16 %v306
      %v727 = vunpack.c.l.b16 %v307
      %v728 = vunpack.c.l.b16 %v308
      %v729 = vunpack.c.l.b16 %v309
      %v730 = vunpack.c.l.b16 %v310
      %v731 = vunpack.c.l.b16 %v311
      %v732 = vunpack.c.l.b16 %v312
      %v733 = vunpack.c.l.b16 %v313
      %v734 = vunpack.c.l.b16 %v314
      %v735 = vunpack.c.l.b16 %v315
      %v736 = vunpack.c.l.b16 %v316
      %v737 = vunpack.c.l.b16 %v317
      %v738 = vpack.c.b16 %v723, %v722
      %v739 = vpack.c.b16 %v725, %v724
      %v740 = vpack.c.b16 %v727, %v726
      %v741 = vpack.c.b16 %v729, %v728
      %v742 = vpack.c.b16 %v731, %v730
      %v743 = vpack.c.b16 %v733, %v732
      %v744 = vpack.c.b16 %v735, %v734
      %v745 = vpack.c.b16 %v737, %v736
      %754 = vmatpush.bf16.msra.mxu0 %v745
      %755 = vmatpush.bf16.msra.mxu0 %v744
      %756 = vmatpush.bf16.msra.mxu0 %v743
      %757 = vmatpush.bf16.msra.mxu0 %v742
      %758 = vmatpush.bf16.msra.mxu0 %v741
      %759 = vmatpush.bf16.msra.mxu0 %v740
      %760 = vmatpush.bf16.msra.mxu0 %v739
      %761 = vmatpush.bf16.msra.mxu0 %v738
      %762 = vmatmul.bf16.gmra.mxu0 %v578
      %v763 = vpop.f32.mrf.mxu0
      %v764 = vadd.f32 %v320, %v763
      %v765 = vpop.f32.mrf.mxu0
      %v766 = vadd.f32 %v320, %v765
      %767 = vmatmul.bf16.gmra.mxu0 %v579
      %v768 = vpop.f32.mrf.mxu0
      %v769 = vadd.f32 %v320, %v768
      %v770 = vpop.f32.mrf.mxu0
      %v771 = vadd.f32 %v320, %v770
      %772 = vmatmul.bf16.gmra.mxu0 %v580
      %v773 = vpop.f32.mrf.mxu0
      %v774 = vadd.f32 %v320, %v773
      %v775 = vpop.f32.mrf.mxu0
      %v776 = vadd.f32 %v320, %v775
      %777 = vmatmul.bf16.gmra.mxu0 %v581
      %v778 = vpop.f32.mrf.mxu0
      %v779 = vadd.f32 %v320, %v778
      %v780 = vpop.f32.mrf.mxu0
      %v781 = vadd.f32 %v320, %v780
      %782 = vmatmul.bf16.gmra.mxu0 %v582
      %v783 = vpop.f32.mrf.mxu0
      %v784 = vadd.f32 %v320, %v783
      %v785 = vpop.f32.mrf.mxu0
      %v786 = vadd.f32 %v320, %v785
      %787 = vmatmul.bf16.gmra.mxu0 %v583
      %v788 = vpop.f32.mrf.mxu0
      %v789 = vadd.f32 %v320, %v788
      %v790 = vpop.f32.mrf.mxu0
      %v791 = vadd.f32 %v320, %v790
      %792 = vmatmul.bf16.gmra.mxu0 %v584
      %v793 = vpop.f32.mrf.mxu0
      %v794 = vadd.f32 %v320, %v793
      %v795 = vpop.f32.mrf.mxu0
      %v796 = vadd.f32 %v320, %v795
      %797 = vmatmul.bf16.gmra.mxu0 %v585
      %v798 = vpop.f32.mrf.mxu0
      %v799 = vadd.f32 %v320, %v798
      %v800 = vpop.f32.mrf.mxu0
      %v801 = vadd.f32 %v320, %v800
      %802 = vmatmul.bf16.gmra.mxu0 %v586
      %v803 = vpop.f32.mrf.mxu0
      %v804 = vadd.f32 %v320, %v803
      %v805 = vpop.f32.mrf.mxu0
      %v806 = vadd.f32 %v320, %v805
      %807 = vmatmul.bf16.gmra.mxu0 %v587
      %v808 = vpop.f32.mrf.mxu0
      %v809 = vadd.f32 %v320, %v808
      %v810 = vpop.f32.mrf.mxu0
      %v811 = vadd.f32 %v320, %v810
      %812 = vmatmul.bf16.gmra.mxu0 %v588
      %v813 = vpop.f32.mrf.mxu0
      %v814 = vadd.f32 %v320, %v813
      %v815 = vpop.f32.mrf.mxu0
      %v816 = vadd.f32 %v320, %v815
      %817 = vmatmul.bf16.gmra.mxu0 %v589
      %v818 = vpop.f32.mrf.mxu0
      %v819 = vadd.f32 %v320, %v818
      %v820 = vpop.f32.mrf.mxu0
      %v821 = vadd.f32 %v320, %v820
      %822 = vmatmul.bf16.gmra.mxu0 %v590
      %v823 = vpop.f32.mrf.mxu0
      %v824 = vadd.f32 %v320, %v823
      %v825 = vpop.f32.mrf.mxu0
      %v826 = vadd.f32 %v320, %v825
      %827 = vmatmul.bf16.gmra.mxu0 %v591
      %v828 = vpop.f32.mrf.mxu0
      %v829 = vadd.f32 %v320, %v828
      %v830 = vpop.f32.mrf.mxu0
      %v831 = vadd.f32 %v320, %v830
      %832 = vmatmul.bf16.gmra.mxu0 %v592
      %v833 = vpop.f32.mrf.mxu0
      %v834 = vadd.f32 %v320, %v833
      %v835 = vpop.f32.mrf.mxu0
      %v836 = vadd.f32 %v320, %v835
      %837 = vmatmul.bf16.gmra.mxu0 %v593
      %v838 = vpop.f32.mrf.mxu0
      %v839 = vadd.f32 %v320, %v838
      %v840 = vpop.f32.mrf.mxu0
      %v841 = vadd.f32 %v320, %v840
      %842 = vmatmul.bf16.gmra.mxu0 %v594
      %v843 = vpop.f32.mrf.mxu0
      %v844 = vadd.f32 %v320, %v843
      %v845 = vpop.f32.mrf.mxu0
      %v846 = vadd.f32 %v320, %v845
      %847 = vmatmul.bf16.gmra.mxu0 %v595
      %v848 = vpop.f32.mrf.mxu0
      %v849 = vadd.f32 %v320, %v848
      %v850 = vpop.f32.mrf.mxu0
      %v851 = vadd.f32 %v320, %v850
      %852 = vmatmul.bf16.gmra.mxu0 %v596
      %v853 = vpop.f32.mrf.mxu0
      %v854 = vadd.f32 %v320, %v853
      %v855 = vpop.f32.mrf.mxu0
      %v856 = vadd.f32 %v320, %v855
      %857 = vmatmul.bf16.gmra.mxu0 %v597
      %v858 = vpop.f32.mrf.mxu0
      %v859 = vadd.f32 %v320, %v858
      %v860 = vpop.f32.mrf.mxu0
      %v861 = vadd.f32 %v320, %v860
      %862 = vmatmul.bf16.gmra.mxu0 %v598
      %v863 = vpop.f32.mrf.mxu0
      %v864 = vadd.f32 %v320, %v863
      %v865 = vpop.f32.mrf.mxu0
      %v866 = vadd.f32 %v320, %v865
      %867 = vmatmul.bf16.gmra.mxu0 %v599
      %v868 = vpop.f32.mrf.mxu0
      %v869 = vadd.f32 %v320, %v868
      %v870 = vpop.f32.mrf.mxu0
      %v871 = vadd.f32 %v320, %v870
      %872 = vmatmul.bf16.gmra.mxu0 %v600
      %v873 = vpop.f32.mrf.mxu0
      %v874 = vadd.f32 %v320, %v873
      %v875 = vpop.f32.mrf.mxu0
      %v876 = vadd.f32 %v320, %v875
      %877 = vmatmul.bf16.gmra.mxu0 %v601
      %v878 = vpop.f32.mrf.mxu0
      %v879 = vadd.f32 %v320, %v878
      %v880 = vpop.f32.mrf.mxu0
      %v881 = vadd.f32 %v320, %v880
      %882 = vmatmul.bf16.gmra.mxu0 %v602
      %v883 = vpop.f32.mrf.mxu0
      %v884 = vadd.f32 %v320, %v883
      %v885 = vpop.f32.mrf.mxu0
      %v886 = vadd.f32 %v320, %v885
      %887 = vmatmul.bf16.gmra.mxu0 %v603
      %v888 = vpop.f32.mrf.mxu0
      %v889 = vadd.f32 %v320, %v888
      %v890 = vpop.f32.mrf.mxu0
      %v891 = vadd.f32 %v320, %v890
      %892 = vmatmul.bf16.gmra.mxu0 %v604
      %v893 = vpop.f32.mrf.mxu0
      %v894 = vadd.f32 %v320, %v893
      %v895 = vpop.f32.mrf.mxu0
      %v896 = vadd.f32 %v320, %v895
      %897 = vmatmul.bf16.gmra.mxu0 %v605
      %v898 = vpop.f32.mrf.mxu0
      %v899 = vadd.f32 %v320, %v898
      %v900 = vpop.f32.mrf.mxu0
      %v901 = vadd.f32 %v320, %v900
      %902 = vmatmul.bf16.gmra.mxu0 %v606
      %v903 = vpop.f32.mrf.mxu0
      %v904 = vadd.f32 %v320, %v903
      %v905 = vpop.f32.mrf.mxu0
      %v906 = vadd.f32 %v320, %v905
      %907 = vmatmul.bf16.gmra.mxu0 %v607
      %v908 = vpop.f32.mrf.mxu0
      %v909 = vadd.f32 %v320, %v908
      %v910 = vpop.f32.mrf.mxu0
      %v911 = vadd.f32 %v320, %v910
      %912 = vmatmul.bf16.gmra.mxu0 %v608
      %v913 = vpop.f32.mrf.mxu0
      %v914 = vadd.f32 %v320, %v913
      %v915 = vpop.f32.mrf.mxu0
      %v916 = vadd.f32 %v320, %v915
      %917 = vmatmul.bf16.gmra.mxu0 %v609
      %v918 = vpop.f32.mrf.mxu0
      %v919 = vadd.f32 %v320, %v918
      %v920 = vpop.f32.mrf.mxu0
      %v921 = vadd.f32 %v320, %v920
      %922 = vmatmul.bf16.gmra.mxu0 %v610
      %v923 = vpop.f32.mrf.mxu0
      %v924 = vadd.f32 %v320, %v923
      %v925 = vpop.f32.mrf.mxu0
      %v926 = vadd.f32 %v320, %v925
      %927 = vmatmul.bf16.gmra.mxu0 %v611
      %v928 = vpop.f32.mrf.mxu0
      %v929 = vadd.f32 %v320, %v928
      %v930 = vpop.f32.mrf.mxu0
      %v931 = vadd.f32 %v320, %v930
      %932 = vmatmul.bf16.gmra.mxu0 %v612
      %v933 = vpop.f32.mrf.mxu0
      %v934 = vadd.f32 %v320, %v933
      %v935 = vpop.f32.mrf.mxu0
      %v936 = vadd.f32 %v320, %v935
      %937 = vmatmul.bf16.gmra.mxu0 %v613
      %v938 = vpop.f32.mrf.mxu0
      %v939 = vadd.f32 %v320, %v938
      %v940 = vpop.f32.mrf.mxu0
      %v941 = vadd.f32 %v320, %v940
      %942 = vmatmul.bf16.gmra.mxu0 %v614
      %v943 = vpop.f32.mrf.mxu0
      %v944 = vadd.f32 %v320, %v943
      %v945 = vpop.f32.mrf.mxu0
      %v946 = vadd.f32 %v320, %v945
      %947 = vmatmul.bf16.gmra.mxu0 %v615
      %v948 = vpop.f32.mrf.mxu0
      %v949 = vadd.f32 %v320, %v948
      %v950 = vpop.f32.mrf.mxu0
      %v951 = vadd.f32 %v320, %v950
      %952 = vmatmul.bf16.gmra.mxu0 %v616
      %v953 = vpop.f32.mrf.mxu0
      %v954 = vadd.f32 %v320, %v953
      %v955 = vpop.f32.mrf.mxu0
      %v956 = vadd.f32 %v320, %v955
      %957 = vmatmul.bf16.gmra.mxu0 %v617
      %v958 = vpop.f32.mrf.mxu0
      %v959 = vadd.f32 %v320, %v958
      %v960 = vpop.f32.mrf.mxu0
      %v961 = vadd.f32 %v320, %v960
      %962 = vmatmul.bf16.gmra.mxu0 %v618
      %v963 = vpop.f32.mrf.mxu0
      %v964 = vadd.f32 %v320, %v963
      %v965 = vpop.f32.mrf.mxu0
      %v966 = vadd.f32 %v320, %v965
      %967 = vmatmul.bf16.gmra.mxu0 %v619
      %v968 = vpop.f32.mrf.mxu0
      %v969 = vadd.f32 %v320, %v968
      %v970 = vpop.f32.mrf.mxu0
      %v971 = vadd.f32 %v320, %v970
      %972 = vmatmul.bf16.gmra.mxu0 %v620
      %v973 = vpop.f32.mrf.mxu0
      %v974 = vadd.f32 %v320, %v973
      %v975 = vpop.f32.mrf.mxu0
      %v976 = vadd.f32 %v320, %v975
      %977 = vmatmul.bf16.gmra.mxu0 %v621
      %v978 = vpop.f32.mrf.mxu0
      %v979 = vadd.f32 %v320, %v978
      %v980 = vpop.f32.mrf.mxu0
      %v981 = vadd.f32 %v320, %v980
      %982 = vmatmul.bf16.gmra.mxu0 %v622
      %v983 = vpop.f32.mrf.mxu0
      %v984 = vadd.f32 %v320, %v983
      %v985 = vpop.f32.mrf.mxu0
      %v986 = vadd.f32 %v320, %v985
      %987 = vmatmul.bf16.gmra.mxu0 %v623
      %v988 = vpop.f32.mrf.mxu0
      %v989 = vadd.f32 %v320, %v988
      %v990 = vpop.f32.mrf.mxu0
      %v991 = vadd.f32 %v320, %v990
      %992 = vmatmul.bf16.gmra.mxu0 %v624
      %v993 = vpop.f32.mrf.mxu0
      %v994 = vadd.f32 %v320, %v993
      %v995 = vpop.f32.mrf.mxu0
      %v996 = vadd.f32 %v320, %v995
      %997 = vmatmul.bf16.gmra.mxu0 %v625
      %v998 = vpop.f32.mrf.mxu0
      %v999 = vadd.f32 %v320, %v998
      %v1000 = vpop.f32.mrf.mxu0
      %v1001 = vadd.f32 %v320, %v1000
      %1002 = vmatmul.bf16.gmra.mxu0 %v626
      %v1003 = vpop.f32.mrf.mxu0
      %v1004 = vadd.f32 %v320, %v1003
      %v1005 = vpop.f32.mrf.mxu0
      %v1006 = vadd.f32 %v320, %v1005
      %1007 = vmatmul.bf16.gmra.mxu0 %v627
      %v1008 = vpop.f32.mrf.mxu0
      %v1009 = vadd.f32 %v320, %v1008
      %v1010 = vpop.f32.mrf.mxu0
      %v1011 = vadd.f32 %v320, %v1010
      %1012 = vmatmul.bf16.gmra.mxu0 %v628
      %v1013 = vpop.f32.mrf.mxu0
      %v1014 = vadd.f32 %v320, %v1013
      %v1015 = vpop.f32.mrf.mxu0
      %v1016 = vadd.f32 %v320, %v1015
      %1017 = vmatmul.bf16.gmra.mxu0 %v629
      %v1018 = vpop.f32.mrf.mxu0
      %v1019 = vadd.f32 %v320, %v1018
      %v1020 = vpop.f32.mrf.mxu0
      %v1021 = vadd.f32 %v320, %v1020
      %1022 = vmatmul.bf16.gmra.mxu0 %v630
      %v1023 = vpop.f32.mrf.mxu0
      %v1024 = vadd.f32 %v320, %v1023
      %v1025 = vpop.f32.mrf.mxu0
      %v1026 = vadd.f32 %v320, %v1025
      %1027 = vmatmul.bf16.gmra.mxu0 %v631
      %v1028 = vpop.f32.mrf.mxu0
      %v1029 = vadd.f32 %v320, %v1028
      %v1030 = vpop.f32.mrf.mxu0
      %v1031 = vadd.f32 %v320, %v1030
      %1032 = vmatmul.bf16.gmra.mxu0 %v632
      %v1033 = vpop.f32.mrf.mxu0
      %v1034 = vadd.f32 %v320, %v1033
      %v1035 = vpop.f32.mrf.mxu0
      %v1036 = vadd.f32 %v320, %v1035
      %1037 = vmatmul.bf16.gmra.mxu0 %v633
      %v1038 = vpop.f32.mrf.mxu0
      %v1039 = vadd.f32 %v320, %v1038
      %v1040 = vpop.f32.mrf.mxu0
      %v1041 = vadd.f32 %v320, %v1040
      %1042 = vmatmul.bf16.gmra.mxu0 %v634
      %v1043 = vpop.f32.mrf.mxu0
      %v1044 = vadd.f32 %v320, %v1043
      %v1045 = vpop.f32.mrf.mxu0
      %v1046 = vadd.f32 %v320, %v1045
      %1047 = vmatmul.bf16.gmra.mxu0 %v635
      %v1048 = vpop.f32.mrf.mxu0
      %v1049 = vadd.f32 %v320, %v1048
      %v1050 = vpop.f32.mrf.mxu0
      %v1051 = vadd.f32 %v320, %v1050
      %1052 = vmatmul.bf16.gmra.mxu0 %v636
      %v1053 = vpop.f32.mrf.mxu0
      %v1054 = vadd.f32 %v320, %v1053
      %v1055 = vpop.f32.mrf.mxu0
      %v1056 = vadd.f32 %v320, %v1055
      %1057 = vmatmul.bf16.gmra.mxu0 %v637
      %v1058 = vpop.f32.mrf.mxu0
      %v1059 = vadd.f32 %v320, %v1058
      %v1060 = vpop.f32.mrf.mxu0
      %v1061 = vadd.f32 %v320, %v1060
      %1062 = vmatmul.bf16.gmra.mxu0 %v638
      %v1063 = vpop.f32.mrf.mxu0
      %v1064 = vadd.f32 %v320, %v1063
      %v1065 = vpop.f32.mrf.mxu0
      %v1066 = vadd.f32 %v320, %v1065
      %1067 = vmatmul.bf16.gmra.mxu0 %v639
      %v1068 = vpop.f32.mrf.mxu0
      %v1069 = vadd.f32 %v320, %v1068
      %v1070 = vpop.f32.mrf.mxu0
      %v1071 = vadd.f32 %v320, %v1070
      %1072 = vmatmul.bf16.gmra.mxu0 %v640
      %v1073 = vpop.f32.mrf.mxu0
      %v1074 = vadd.f32 %v320, %v1073
      %v1075 = vpop.f32.mrf.mxu0
      %v1076 = vadd.f32 %v320, %v1075
      %1077 = vmatmul.bf16.gmra.mxu0 %v641
      %v1078 = vpop.f32.mrf.mxu0
      %v1079 = vadd.f32 %v320, %v1078
      %v1080 = vpop.f32.mrf.mxu0
      %v1081 = vadd.f32 %v320, %v1080
      %1082 = vdwg.mxu0
      %v1083 = vmax.f32 %v764, 0.0
      %v1084 = vmax.f32 %v766, 0.0
      %v1085 = vmax.f32 %v769, 0.0
      %v1086 = vmax.f32 %v771, 0.0
      %v1087 = vmax.f32 %v774, 0.0
      %v1088 = vmax.f32 %v776, 0.0
      %v1089 = vmax.f32 %v779, 0.0
      %v1090 = vmax.f32 %v781, 0.0
      %v1091 = vmax.f32 %v784, 0.0
      %v1092 = vmax.f32 %v786, 0.0
      %v1093 = vmax.f32 %v789, 0.0
      %v1094 = vmax.f32 %v791, 0.0
      %v1095 = vmax.f32 %v794, 0.0
      %v1096 = vmax.f32 %v796, 0.0
      %v1097 = vmax.f32 %v799, 0.0
      %v1098 = vmax.f32 %v801, 0.0
      %v1099 = vmax.f32 %v804, 0.0
      %v1100 = vmax.f32 %v806, 0.0
      %v1101 = vmax.f32 %v809, 0.0
      %v1102 = vmax.f32 %v811, 0.0
      %v1103 = vmax.f32 %v814, 0.0
      %v1104 = vmax.f32 %v816, 0.0
      %v1105 = vmax.f32 %v819, 0.0
      %v1106 = vmax.f32 %v821, 0.0
      %v1107 = vmax.f32 %v824, 0.0
      %v1108 = vmax.f32 %v826, 0.0
      %v1109 = vmax.f32 %v829, 0.0
      %v1110 = vmax.f32 %v831, 0.0
      %v1111 = vmax.f32 %v834, 0.0
      %v1112 = vmax.f32 %v836, 0.0
      %v1113 = vmax.f32 %v839, 0.0
      %v1114 = vmax.f32 %v841, 0.0
      %v1115 = vmax.f32 %v844, 0.0
      %v1116 = vmax.f32 %v846, 0.0
      %v1117 = vmax.f32 %v849, 0.0
      %v1118 = vmax.f32 %v851, 0.0
      %v1119 = vmax.f32 %v854, 0.0
      %v1120 = vmax.f32 %v856, 0.0
      %v1121 = vmax.f32 %v859, 0.0
      %v1122 = vmax.f32 %v861, 0.0
      %v1123 = vmax.f32 %v864, 0.0
      %v1124 = vmax.f32 %v866, 0.0
      %v1125 = vmax.f32 %v869, 0.0
      %v1126 = vmax.f32 %v871, 0.0
      %v1127 = vmax.f32 %v874, 0.0
      %v1128 = vmax.f32 %v876, 0.0
      %v1129 = vmax.f32 %v879, 0.0
      %v1130 = vmax.f32 %v881, 0.0
      %v1131 = vmax.f32 %v884, 0.0
      %v1132 = vmax.f32 %v886, 0.0
      %v1133 = vmax.f32 %v889, 0.0
      %v1134 = vmax.f32 %v891, 0.0
      %v1135 = vmax.f32 %v894, 0.0
      %v1136 = vmax.f32 %v896, 0.0
      %v1137 = vmax.f32 %v899, 0.0
      %v1138 = vmax.f32 %v901, 0.0
      %v1139 = vmax.f32 %v904, 0.0
      %v1140 = vmax.f32 %v906, 0.0
      %v1141 = vmax.f32 %v909, 0.0
      %v1142 = vmax.f32 %v911, 0.0
      %v1143 = vmax.f32 %v914, 0.0
      %v1144 = vmax.f32 %v916, 0.0
      %v1145 = vmax.f32 %v919, 0.0
      %v1146 = vmax.f32 %v921, 0.0
      %v1147 = vmax.f32 %v924, 0.0
      %v1148 = vmax.f32 %v926, 0.0
      %v1149 = vmax.f32 %v929, 0.0
      %v1150 = vmax.f32 %v931, 0.0
      %v1151 = vmax.f32 %v934, 0.0
      %v1152 = vmax.f32 %v936, 0.0
      %v1153 = vmax.f32 %v939, 0.0
      %v1154 = vmax.f32 %v941, 0.0
      %v1155 = vmax.f32 %v944, 0.0
      %v1156 = vmax.f32 %v946, 0.0
      %v1157 = vmax.f32 %v949, 0.0
      %v1158 = vmax.f32 %v951, 0.0
      %v1159 = vmax.f32 %v954, 0.0
      %v1160 = vmax.f32 %v956, 0.0
      %v1161 = vmax.f32 %v959, 0.0
      %v1162 = vmax.f32 %v961, 0.0
      %v1163 = vmax.f32 %v964, 0.0
      %v1164 = vmax.f32 %v966, 0.0
      %v1165 = vmax.f32 %v969, 0.0
      %v1166 = vmax.f32 %v971, 0.0
      %v1167 = vmax.f32 %v974, 0.0
      %v1168 = vmax.f32 %v976, 0.0
      %v1169 = vmax.f32 %v979, 0.0
      %v1170 = vmax.f32 %v981, 0.0
      %v1171 = vmax.f32 %v984, 0.0
      %v1172 = vmax.f32 %v986, 0.0
      %v1173 = vmax.f32 %v989, 0.0
      %v1174 = vmax.f32 %v991, 0.0
      %v1175 = vmax.f32 %v994, 0.0
      %v1176 = vmax.f32 %v996, 0.0
      %v1177 = vmax.f32 %v999, 0.0
      %v1178 = vmax.f32 %v1001, 0.0
      %v1179 = vmax.f32 %v1004, 0.0
      %v1180 = vmax.f32 %v1006, 0.0
      %v1181 = vmax.f32 %v1009, 0.0
      %v1182 = vmax.f32 %v1011, 0.0
      %v1183 = vmax.f32 %v1014, 0.0
      %v1184 = vmax.f32 %v1016, 0.0
      %v1185 = vmax.f32 %v1019, 0.0
      %v1186 = vmax.f32 %v1021, 0.0
      %v1187 = vmax.f32 %v1024, 0.0
      %v1188 = vmax.f32 %v1026, 0.0
      %v1189 = vmax.f32 %v1029, 0.0
      %v1190 = vmax.f32 %v1031, 0.0
      %v1191 = vmax.f32 %v1034, 0.0
      %v1192 = vmax.f32 %v1036, 0.0
      %v1193 = vmax.f32 %v1039, 0.0
      %v1194 = vmax.f32 %v1041, 0.0
      %v1195 = vmax.f32 %v1044, 0.0
      %v1196 = vmax.f32 %v1046, 0.0
      %v1197 = vmax.f32 %v1049, 0.0
      %v1198 = vmax.f32 %v1051, 0.0
      %v1199 = vmax.f32 %v1054, 0.0
      %v1200 = vmax.f32 %v1056, 0.0
      %v1201 = vmax.f32 %v1059, 0.0
      %v1202 = vmax.f32 %v1061, 0.0
      %v1203 = vmax.f32 %v1064, 0.0
      %v1204 = vmax.f32 %v1066, 0.0
      %v1205 = vmax.f32 %v1069, 0.0
      %v1206 = vmax.f32 %v1071, 0.0
      %v1207 = vmax.f32 %v1074, 0.0
      %v1208 = vmax.f32 %v1076, 0.0
      %v1209 = vmax.f32 %v1079, 0.0
      %v1210 = vmax.f32 %v1081, 0.0
      %v1211 = vpack.c.bf16 %v1083, %v1083
      %v1212 = vpack.c.bf16 %v1084, %v1084
      %v1213 = vpack.c.bf16 %v1085, %v1085
      %v1214 = vpack.c.bf16 %v1086, %v1086
      %v1215 = vpack.c.bf16 %v1087, %v1087
      %v1216 = vpack.c.bf16 %v1088, %v1088
      %v1217 = vpack.c.bf16 %v1089, %v1089
      %v1218 = vpack.c.bf16 %v1090, %v1090
      %v1219 = vpack.c.bf16 %v1091, %v1091
      %v1220 = vpack.c.bf16 %v1092, %v1092
      %v1221 = vpack.c.bf16 %v1093, %v1093
      %v1222 = vpack.c.bf16 %v1094, %v1094
      %v1223 = vpack.c.bf16 %v1095, %v1095
      %v1224 = vpack.c.bf16 %v1096, %v1096
      %v1225 = vpack.c.bf16 %v1097, %v1097
      %v1226 = vpack.c.bf16 %v1098, %v1098
      %v1227 = vpack.c.bf16 %v1099, %v1099
      %v1228 = vpack.c.bf16 %v1100, %v1100
      %v1229 = vpack.c.bf16 %v1101, %v1101
      %v1230 = vpack.c.bf16 %v1102, %v1102
      %v1231 = vpack.c.bf16 %v1103, %v1103
      %v1232 = vpack.c.bf16 %v1104, %v1104
      %v1233 = vpack.c.bf16 %v1105, %v1105
      %v1234 = vpack.c.bf16 %v1106, %v1106
      %v1235 = vpack.c.bf16 %v1107, %v1107
      %v1236 = vpack.c.bf16 %v1108, %v1108
      %v1237 = vpack.c.bf16 %v1109, %v1109
      %v1238 = vpack.c.bf16 %v1110, %v1110
      %v1239 = vpack.c.bf16 %v1111, %v1111
      %v1240 = vpack.c.bf16 %v1112, %v1112
      %v1241 = vpack.c.bf16 %v1113, %v1113
      %v1242 = vpack.c.bf16 %v1114, %v1114
      %v1243 = vpack.c.bf16 %v1115, %v1115
      %v1244 = vpack.c.bf16 %v1116, %v1116
      %v1245 = vpack.c.bf16 %v1117, %v1117
      %v1246 = vpack.c.bf16 %v1118, %v1118
      %v1247 = vpack.c.bf16 %v1119, %v1119
      %v1248 = vpack.c.bf16 %v1120, %v1120
      %v1249 = vpack.c.bf16 %v1121, %v1121
      %v1250 = vpack.c.bf16 %v1122, %v1122
      %v1251 = vpack.c.bf16 %v1123, %v1123
      %v1252 = vpack.c.bf16 %v1124, %v1124
      %v1253 = vpack.c.bf16 %v1125, %v1125
      %v1254 = vpack.c.bf16 %v1126, %v1126
      %v1255 = vpack.c.bf16 %v1127, %v1127
      %v1256 = vpack.c.bf16 %v1128, %v1128
      %v1257 = vpack.c.bf16 %v1129, %v1129
      %v1258 = vpack.c.bf16 %v1130, %v1130
      %v1259 = vpack.c.bf16 %v1131, %v1131
      %v1260 = vpack.c.bf16 %v1132, %v1132
      %v1261 = vpack.c.bf16 %v1133, %v1133
      %v1262 = vpack.c.bf16 %v1134, %v1134
      %v1263 = vpack.c.bf16 %v1135, %v1135
      %v1264 = vpack.c.bf16 %v1136, %v1136
      %v1265 = vpack.c.bf16 %v1137, %v1137
      %v1266 = vpack.c.bf16 %v1138, %v1138
      %v1267 = vpack.c.bf16 %v1139, %v1139
      %v1268 = vpack.c.bf16 %v1140, %v1140
      %v1269 = vpack.c.bf16 %v1141, %v1141
      %v1270 = vpack.c.bf16 %v1142, %v1142
      %v1271 = vpack.c.bf16 %v1143, %v1143
      %v1272 = vpack.c.bf16 %v1144, %v1144
      %v1273 = vpack.c.bf16 %v1145, %v1145
      %v1274 = vpack.c.bf16 %v1146, %v1146
      %v1275 = vpack.c.bf16 %v1147, %v1147
      %v1276 = vpack.c.bf16 %v1148, %v1148
      %v1277 = vpack.c.bf16 %v1149, %v1149
      %v1278 = vpack.c.bf16 %v1150, %v1150
      %v1279 = vpack.c.bf16 %v1151, %v1151
      %v1280 = vpack.c.bf16 %v1152, %v1152
      %v1281 = vpack.c.bf16 %v1153, %v1153
      %v1282 = vpack.c.bf16 %v1154, %v1154
      %v1283 = vpack.c.bf16 %v1155, %v1155
      %v1284 = vpack.c.bf16 %v1156, %v1156
      %v1285 = vpack.c.bf16 %v1157, %v1157
      %v1286 = vpack.c.bf16 %v1158, %v1158
      %v1287 = vpack.c.bf16 %v1159, %v1159
      %v1288 = vpack.c.bf16 %v1160, %v1160
      %v1289 = vpack.c.bf16 %v1161, %v1161
      %v1290 = vpack.c.bf16 %v1162, %v1162
      %v1291 = vpack.c.bf16 %v1163, %v1163
      %v1292 = vpack.c.bf16 %v1164, %v1164
      %v1293 = vpack.c.bf16 %v1165, %v1165
      %v1294 = vpack.c.bf16 %v1166, %v1166
      %v1295 = vpack.c.bf16 %v1167, %v1167
      %v1296 = vpack.c.bf16 %v1168, %v1168
      %v1297 = vpack.c.bf16 %v1169, %v1169
      %v1298 = vpack.c.bf16 %v1170, %v1170
      %v1299 = vpack.c.bf16 %v1171, %v1171
      %v1300 = vpack.c.bf16 %v1172, %v1172
      %v1301 = vpack.c.bf16 %v1173, %v1173
      %v1302 = vpack.c.bf16 %v1174, %v1174
      %v1303 = vpack.c.bf16 %v1175, %v1175
      %v1304 = vpack.c.bf16 %v1176, %v1176
      %v1305 = vpack.c.bf16 %v1177, %v1177
      %v1306 = vpack.c.bf16 %v1178, %v1178
      %v1307 = vpack.c.bf16 %v1179, %v1179
      %v1308 = vpack.c.bf16 %v1180, %v1180
      %v1309 = vpack.c.bf16 %v1181, %v1181
      %v1310 = vpack.c.bf16 %v1182, %v1182
      %v1311 = vpack.c.bf16 %v1183, %v1183
      %v1312 = vpack.c.bf16 %v1184, %v1184
      %v1313 = vpack.c.bf16 %v1185, %v1185
      %v1314 = vpack.c.bf16 %v1186, %v1186
      %v1315 = vpack.c.bf16 %v1187, %v1187
      %v1316 = vpack.c.bf16 %v1188, %v1188
      %v1317 = vpack.c.bf16 %v1189, %v1189
      %v1318 = vpack.c.bf16 %v1190, %v1190
      %v1319 = vpack.c.bf16 %v1191, %v1191
      %v1320 = vpack.c.bf16 %v1192, %v1192
      %v1321 = vpack.c.bf16 %v1193, %v1193
      %v1322 = vpack.c.bf16 %v1194, %v1194
      %v1323 = vpack.c.bf16 %v1195, %v1195
      %v1324 = vpack.c.bf16 %v1196, %v1196
      %v1325 = vpack.c.bf16 %v1197, %v1197
      %v1326 = vpack.c.bf16 %v1198, %v1198
      %v1327 = vpack.c.bf16 %v1199, %v1199
      %v1328 = vpack.c.bf16 %v1200, %v1200
      %v1329 = vpack.c.bf16 %v1201, %v1201
      %v1330 = vpack.c.bf16 %v1202, %v1202
      %v1331 = vpack.c.bf16 %v1203, %v1203
      %v1332 = vpack.c.bf16 %v1204, %v1204
      %v1333 = vpack.c.bf16 %v1205, %v1205
      %v1334 = vpack.c.bf16 %v1206, %v1206
      %v1335 = vpack.c.bf16 %v1207, %v1207
      %v1336 = vpack.c.bf16 %v1208, %v1208
      %v1337 = vpack.c.bf16 %v1209, %v1209
      %v1338 = vpack.c.bf16 %v1210, %v1210
      %1339 = vst [vmem:[%s172] sm:$0xf] %v1211
      %1340 = vst [vmem:[%s172 + $0x4] sm:$0xf] %v1212
      %1341 = vst [vmem:[%s172 + $0x8] sm:$0xf] %v1213
      %1342 = vst [vmem:[%s172 + $0xc] sm:$0xf] %v1214
      %1343 = vst [vmem:[%s172 + $0x10] sm:$0xf] %v1215
      %1344 = vst [vmem:[%s172 + $0x14] sm:$0xf] %v1216
      %1345 = vst [vmem:[%s172 + $0x18] sm:$0xf] %v1217
      %1346 = vst [vmem:[%s172 + $0x1c] sm:$0xf] %v1218
      %1347 = vst [vmem:[%s172 + $0x20] sm:$0xf] %v1219
      %1348 = vst [vmem:[%s172 + $0x24] sm:$0xf] %v1220
      %1349 = vst [vmem:[%s172 + $0x28] sm:$0xf] %v1221
      %1350 = vst [vmem:[%s172 + $0x2c] sm:$0xf] %v1222
      %1351 = vst [vmem:[%s172 + $0x30] sm:$0xf] %v1223
      %1352 = vst [vmem:[%s172 + $0x34] sm:$0xf] %v1224
      %1353 = vst [vmem:[%s172 + $0x38] sm:$0xf] %v1225
      %1354 = vst [vmem:[%s172 + $0x3c] sm:$0xf] %v1226
      %1355 = vst [vmem:[%s172 + $0x40] sm:$0xf] %v1227
      %1356 = vst [vmem:[%s172 + $0x44] sm:$0xf] %v1228
      %1357 = vst [vmem:[%s172 + $0x48] sm:$0xf] %v1229
      %1358 = vst [vmem:[%s172 + $0x4c] sm:$0xf] %v1230
      %1359 = vst [vmem:[%s172 + $0x50] sm:$0xf] %v1231
      %1360 = vst [vmem:[%s172 + $0x54] sm:$0xf] %v1232
      %1361 = vst [vmem:[%s172 + $0x58] sm:$0xf] %v1233
      %1362 = vst [vmem:[%s172 + $0x5c] sm:$0xf] %v1234
      %1363 = vst [vmem:[%s172 + $0x60] sm:$0xf] %v1235
      %1364 = vst [vmem:[%s172 + $0x64] sm:$0xf] %v1236
      %1365 = vst [vmem:[%s172 + $0x68] sm:$0xf] %v1237
      %1366 = vst [vmem:[%s172 + $0x6c] sm:$0xf] %v1238
      %1367 = vst [vmem:[%s172 + $0x70] sm:$0xf] %v1239
      %1368 = vst [vmem:[%s172 + $0x74] sm:$0xf] %v1240
      %1369 = vst [vmem:[%s172 + $0x78] sm:$0xf] %v1241
      %1370 = vst [vmem:[%s172 + $0x7c] sm:$0xf] %v1242
      %1371 = vst [vmem:[%s172 + $0x80] sm:$0xf] %v1243
      %1372 = vst [vmem:[%s172 + $0x84] sm:$0xf] %v1244
      %1373 = vst [vmem:[%s172 + $0x88] sm:$0xf] %v1245
      %1374 = vst [vmem:[%s172 + $0x8c] sm:$0xf] %v1246
      %1375 = vst [vmem:[%s172 + $0x90] sm:$0xf] %v1247
      %1376 = vst [vmem:[%s172 + $0x94] sm:$0xf] %v1248
      %1377 = vst [vmem:[%s172 + $0x98] sm:$0xf] %v1249
      %1378 = vst [vmem:[%s172 + $0x9c] sm:$0xf] %v1250
      %1379 = vst [vmem:[%s172 + $0xa0] sm:$0xf] %v1251
      %1380 = vst [vmem:[%s172 + $0xa4] sm:$0xf] %v1252
      %1381 = vst [vmem:[%s172 + $0xa8] sm:$0xf] %v1253
      %1382 = vst [vmem:[%s172 + $0xac] sm:$0xf] %v1254
      %1383 = vst [vmem:[%s172 + $0xb0] sm:$0xf] %v1255
      %1384 = vst [vmem:[%s172 + $0xb4] sm:$0xf] %v1256
      %1385 = vst [vmem:[%s172 + $0xb8] sm:$0xf] %v1257
      %1386 = vst [vmem:[%s172 + $0xbc] sm:$0xf] %v1258
      %1387 = vst [vmem:[%s172 + $0xc0] sm:$0xf] %v1259
      %1388 = vst [vmem:[%s172 + $0xc4] sm:$0xf] %v1260
      %1389 = vst [vmem:[%s172 + $0xc8] sm:$0xf] %v1261
      %1390 = vst [vmem:[%s172 + $0xcc] sm:$0xf] %v1262
      %1391 = vst [vmem:[%s172 + $0xd0] sm:$0xf] %v1263
      %1392 = vst [vmem:[%s172 + $0xd4] sm:$0xf] %v1264
      %1393 = vst [vmem:[%s172 + $0xd8] sm:$0xf] %v1265
      %1394 = vst [vmem:[%s172 + $0xdc] sm:$0xf] %v1266
      %1395 = vst [vmem:[%s172 + $0xe0] sm:$0xf] %v1267
      %1396 = vst [vmem:[%s172 + $0xe4] sm:$0xf] %v1268
      %1397 = vst [vmem:[%s172 + $0xe8] sm:$0xf] %v1269
      %1398 = vst [vmem:[%s172 + $0xec] sm:$0xf] %v1270
      %1399 = vst [vmem:[%s172 + $0xf0] sm:$0xf] %v1271
      %1400 = vst [vmem:[%s172 + $0xf4] sm:$0xf] %v1272
      %1401 = vst [vmem:[%s172 + $0xf8] sm:$0xf] %v1273
      %1402 = vst [vmem:[%s172 + $0xfc] sm:$0xf] %v1274
      %1403 = vst [vmem:[%s172 + $0x100] sm:$0xf] %v1275
      %1404 = vst [vmem:[%s172 + $0x104] sm:$0xf] %v1276
      %1405 = vst [vmem:[%s172 + $0x108] sm:$0xf] %v1277
      %1406 = vst [vmem:[%s172 + $0x10c] sm:$0xf] %v1278
      %1407 = vst [vmem:[%s172 + $0x110] sm:$0xf] %v1279
      %1408 = vst [vmem:[%s172 + $0x114] sm:$0xf] %v1280
      %1409 = vst [vmem:[%s172 + $0x118] sm:$0xf] %v1281
      %1410 = vst [vmem:[%s172 + $0x11c] sm:$0xf] %v1282
      %1411 = vst [vmem:[%s172 + $0x120] sm:$0xf] %v1283
      %1412 = vst [vmem:[%s172 + $0x124] sm:$0xf] %v1284
      %1413 = vst [vmem:[%s172 + $0x128] sm:$0xf] %v1285
      %1414 = vst [vmem:[%s172 + $0x12c] sm:$0xf] %v1286
      %1415 = vst [vmem:[%s172 + $0x130] sm:$0xf] %v1287
      %1416 = vst [vmem:[%s172 + $0x134] sm:$0xf] %v1288
      %1417 = vst [vmem:[%s172 + $0x138] sm:$0xf] %v1289
      %1418 = vst [vmem:[%s172 + $0x13c] sm:$0xf] %v1290
      %1419 = vst [vmem:[%s172 + $0x140] sm:$0xf] %v1291
      %1420 = vst [vmem:[%s172 + $0x144] sm:$0xf] %v1292
      %1421 = vst [vmem:[%s172 + $0x148] sm:$0xf] %v1293
      %1422 = vst [vmem:[%s172 + $0x14c] sm:$0xf] %v1294
      %1423 = vst [vmem:[%s172 + $0x150] sm:$0xf] %v1295
      %1424 = vst [vmem:[%s172 + $0x154] sm:$0xf] %v1296
      %1425 = vst [vmem:[%s172 + $0x158] sm:$0xf] %v1297
      %1426 = vst [vmem:[%s172 + $0x15c] sm:$0xf] %v1298
      %1427 = vst [vmem:[%s172 + $0x160] sm:$0xf] %v1299
      %1428 = vst [vmem:[%s172 + $0x164] sm:$0xf] %v1300
      %1429 = vst [vmem:[%s172 + $0x168] sm:$0xf] %v1301
      %1430 = vst [vmem:[%s172 + $0x16c] sm:$0xf] %v1302
      %1431 = vst [vmem:[%s172 + $0x170] sm:$0xf] %v1303
      %1432 = vst [vmem:[%s172 + $0x174] sm:$0xf] %v1304
      %1433 = vst [vmem:[%s172 + $0x178] sm:$0xf] %v1305
      %1434 = vst [vmem:[%s172 + $0x17c] sm:$0xf] %v1306
      %1435 = vst [vmem:[%s172 + $0x180] sm:$0xf] %v1307
      %1436 = vst [vmem:[%s172 + $0x184] sm:$0xf] %v1308
      %1437 = vst [vmem:[%s172 + $0x188] sm:$0xf] %v1309
      %1438 = vst [vmem:[%s172 + $0x18c] sm:$0xf] %v1310
      %1439 = vst [vmem:[%s172 + $0x190] sm:$0xf] %v1311
      %1440 = vst [vmem:[%s172 + $0x194] sm:$0xf] %v1312
      %1441 = vst [vmem:[%s172 + $0x198] sm:$0xf] %v1313
      %1442 = vst [vmem:[%s172 + $0x19c] sm:$0xf] %v1314
      %1443 = vst [vmem:[%s172 + $0x1a0] sm:$0xf] %v1315
      %1444 = vst [vmem:[%s172 + $0x1a4] sm:$0xf] %v1316
      %1445 = vst [vmem:[%s172 + $0x1a8] sm:$0xf] %v1317
      %1446 = vst [vmem:[%s172 + $0x1ac] sm:$0xf] %v1318
      %1447 = vst [vmem:[%s172 + $0x1b0] sm:$0xf] %v1319
      %1448 = vst [vmem:[%s172 + $0x1b4] sm:$0xf] %v1320
      %1449 = vst [vmem:[%s172 + $0x1b8] sm:$0xf] %v1321
      %1450 = vst [vmem:[%s172 + $0x1bc] sm:$0xf] %v1322
      %1451 = vst [vmem:[%s172 + $0x1c0] sm:$0xf] %v1323
      %1452 = vst [vmem:[%s172 + $0x1c4] sm:$0xf] %v1324
      %1453 = vst [vmem:[%s172 + $0x1c8] sm:$0xf] %v1325
      %1454 = vst [vmem:[%s172 + $0x1cc] sm:$0xf] %v1326
      %1455 = vst [vmem:[%s172 + $0x1d0] sm:$0xf] %v1327
      %1456 = vst [vmem:[%s172 + $0x1d4] sm:$0xf] %v1328
      %1457 = vst [vmem:[%s172 + $0x1d8] sm:$0xf] %v1329
      %1458 = vst [vmem:[%s172 + $0x1dc] sm:$0xf] %v1330
      %1459 = vst [vmem:[%s172 + $0x1e0] sm:$0xf] %v1331
      %1460 = vst [vmem:[%s172 + $0x1e4] sm:$0xf] %v1332
      %1461 = vst [vmem:[%s172 + $0x1e8] sm:$0xf] %v1333
      %1462 = vst [vmem:[%s172 + $0x1ec] sm:$0xf] %v1334
      %1463 = vst [vmem:[%s172 + $0x1f0] sm:$0xf] %v1335
      %1464 = vst [vmem:[%s172 + $0x1f4] sm:$0xf] %v1336
      %1465 = vst [vmem:[%s172 + $0x1f8] sm:$0xf] %v1337
      %1466 = vst [vmem:[%s172 + $0x1fc] sm:$0xf] %v1338
      %s1467 = smul.u32 128, %s14
      %p1468 = scmp.lt.s32.totalorder %s1467, 255
      %s1469 = scalar_select %p1468, %s1467, 255
      %s1470 = smul.addr %s1469, 4
      %s1471 = scalar_lea.vmem %s3, %s1470
      // Predicated region
      $region33: #{_lambda_.5} parent=31 // pred_check
        %p1472 = pneg %p100
      $region34: #{_lambda_.5} parent=31 // pred_check_branch
        %1474 = sbr.rel (%p1472) target = $region36
      $region35: #{_lambda_.5} parent=31 // pred_region
        %s1475 = smul.u32 128, %s14
      $region36: #{_lambda_.5} parent=31 // pred_fallthru
        _
    $region32: #{_lambda_.5} parent=5 // pred_fallthru
      _
    %p1476 = scmp.le.s32.totalorder 2, %s9
    // Predicated region
    $region37: #{_lambda_.5} parent=5 // pred_check
      %p1477 = pneg %p1476
    $region38: #{_lambda_.5} parent=5 // pred_check_branch
      %1479 = sbr.rel (%p1477) target = $region40
    $region39: #{_lambda_.5} parent=5 // pred_region
      %s1480 = ssub.s32 %s9, 2
      // Predicated region
      $region41: #{_lambda_.5} parent=39 // pred_check
        %p1481 = pneg %p106
      $region42: #{_lambda_.5} parent=39 // pred_check_branch
        %1483 = sbr.rel (%p1481) target = $region44
      $region43: #{_lambda_.5} parent=39 // pred_region
        %s1484 = smul.u32 128, %s15
        %p1485 = scmp.lt.s32.totalorder %s1484, 255
        %s1486 = scalar_select %p1485, %s1484, 255
        %s1487 = smul.addr %s1486, 4
        %s1488 = scalar_lea.vmem %s3, %s1487
      $region44: #{_lambda_.5} parent=39 // pred_fallthru
        _
    $region40: #{_lambda_.5} parent=5 // pred_fallthru
      _
  $region6: #{_lambda_.5} parent=0 // loop_footer
    %s13 = sadd.s32 1, %s9
  $region7: #{_lambda_.5} parent=0 // loop_footer_branch
    %8 = sbr.rel target = $region3
  $region8: #{_lambda_.5} parent=0 // loop_exit
    _

// kernel: _lambda_.6
$region0: #{_lambda_.6}
  #allocation0 [shape = 'u32[]', space=smem, size = 0x4, offset = 0x4, fixed_abs, tag = 'smem constant byte address 0x4 - core index']
  #allocation1 [shape = 'u32[72,128]{1,0:T(1,128)}', space=vmem, size = 0x9000, scoped, tag = 'internal scratch']
  %s0 = inlined_call_operand.vmem [shape: bf16[512,2048], index: 0, kind: input, shape index: {}]
  %s1 = inlined_call_operand.vmem [shape: bf16[2048,128], index: 1, kind: input, shape index: {}]
  %s2 = inlined_call_operand.vmem [shape: f32[1,128], index: 2, kind: input, shape index: {}]
  %s3 = inlined_call_operand.vmem [shape: bf16[512,128], index: 3, kind: output, shape index: {}]
  %s4 = sld [smem:[#allocation0]]
  $region22: #{_lambda_.6} parent=0
    _
  %s6 = ssub.s32 1, %s4
  %s7 = scalar_select 0, %s6, %s4
  // Predicated region
  $region2: #{_lambda_.6} parent=0 // pred_check
    _
  $region3: #{_lambda_.6} parent=0 // pred_check_branch
    %9 = sbr.rel (0) target = $region5
  $region4: #{_lambda_.6} parent=0 // pred_region
    _
  $region5: #{_lambda_.6} parent=0 // pred_fallthru
    _
  // Predicated region
  $region6: #{_lambda_.6} parent=0 // pred_check
    _
  $region7: #{_lambda_.6} parent=0 // pred_check_branch
    %11 = sbr.rel (0) target = $region9
  $region8: #{_lambda_.6} parent=0 // pred_region
    _
  $region9: #{_lambda_.6} parent=0 // pred_fallthru
    _
  // Predicated region
  $region10: #{_lambda_.6} parent=0 // pred_check
    _
  $region11: #{_lambda_.6} parent=0 // pred_check_branch
    %13 = sbr.rel (0) target = $region13
  $region12: #{_lambda_.6} parent=0 // pred_region
    _
  $region13: #{_lambda_.6} parent=0 // pred_fallthru
    _
  %v14 = vld [vmem:[%s0] sm:$0xff]
  %v15 = vld [vmem:[%s0 + $0x8] sm:$0xff]
  %v16 = vld [vmem:[%s0 + $0x10] sm:$0xff]
  %v17 = vld [vmem:[%s0 + $0x18] sm:$0xff]
  %v18 = vld [vmem:[%s0 + $0x20] sm:$0xff]
  %v19 = vld [vmem:[%s0 + $0x28] sm:$0xff]
  %v20 = vld [vmem:[%s0 + $0x30] sm:$0xff]
  %v21 = vld [vmem:[%s0 + $0x38] sm:$0xff]
  %v22 = vld [vmem:[%s0 + $0x40] sm:$0xff]
  %v23 = vld [vmem:[%s0 + $0x48] sm:$0xff]
  %v24 = vld [vmem:[%s0 + $0x50] sm:$0xff]
  %v25 = vld [vmem:[%s0 + $0x58] sm:$0xff]
  %v26 = vld [vmem:[%s0 + $0x60] sm:$0xff]
  %v27 = vld [vmem:[%s0 + $0x68] sm:$0xff]
  %v28 = vld [vmem:[%s0 + $0x70] sm:$0xff]
  %v29 = vld [vmem:[%s0 + $0x78] sm:$0xff]
  %v30 = vld [vmem:[%s0 + $0x80] sm:$0xff]
  %v31 = vld [vmem:[%s0 + $0x88] sm:$0xff]
  %v32 = vld [vmem:[%s0 + $0x90] sm:$0xff]
  %v33 = vld [vmem:[%s0 + $0x98] sm:$0xff]
  %v34 = vld [vmem:[%s0 + $0xa0] sm:$0xff]
  %v35 = vld [vmem:[%s0 + $0xa8] sm:$0xff]
  %v36 = vld [vmem:[%s0 + $0xb0] sm:$0xff]
  %v37 = vld [vmem:[%s0 + $0xb8] sm:$0xff]
  %v38 = vld [vmem:[%s0 + $0xc0] sm:$0xff]
  %v39 = vld [vmem:[%s0 + $0xc8] sm:$0xff]
  %v40 = vld [vmem:[%s0 + $0xd0] sm:$0xff]
  %v41 = vld [vmem:[%s0 + $0xd8] sm:$0xff]
  %v42 = vld [vmem:[%s0 + $0xe0] sm:$0xff]
  %v43 = vld [vmem:[%s0 + $0xe8] sm:$0xff]
  %v44 = vld [vmem:[%s0 + $0xf0] sm:$0xff]
  %v45 = vld [vmem:[%s0 + $0xf8] sm:$0xff]
  %v46 = vld [vmem:[%s0 + $0x100] sm:$0xff]
  %v47 = vld [vmem:[%s0 + $0x108] sm:$0xff]
  %v48 = vld [vmem:[%s0 + $0x110] sm:$0xff]
  %v49 = vld [vmem:[%s0 + $0x118] sm:$0xff]
  %v50 = vld [vmem:[%s0 + $0x120] sm:$0xff]
  %v51 = vld [vmem:[%s0 + $0x128] sm:$0xff]
  %v52 = vld [vmem:[%s0 + $0x130] sm:$0xff]
  %v53 = vld [vmem:[%s0 + $0x138] sm:$0xff]
  %v54 = vld [vmem:[%s0 + $0x140] sm:$0xff]
  %v55 = vld [vmem:[%s0 + $0x148] sm:$0xff]
  %v56 = vld [vmem:[%s0 + $0x150] sm:$0xff]
  %v57 = vld [vmem:[%s0 + $0x158] sm:$0xff]
  %v58 = vld [vmem:[%s0 + $0x160] sm:$0xff]
  %v59 = vld [vmem:[%s0 + $0x168] sm:$0xff]
  %v60 = vld [vmem:[%s0 + $0x170] sm:$0xff]
  %v61 = vld [vmem:[%s0 + $0x178] sm:$0xff]
  %v62 = vld [vmem:[%s0 + $0x180] sm:$0xff]
  %v63 = vld [vmem:[%s0 + $0x188] sm:$0xff]
  %v64 = vld [vmem:[%s0 + $0x190] sm:$0xff]
  %v65 = vld [vmem:[%s0 + $0x198] sm:$0xff]
  %v66 = vld [vmem:[%s0 + $0x1a0] sm:$0xff]
  %v67 = vld [vmem:[%s0 + $0x1a8] sm:$0xff]
  %v68 = vld [vmem:[%s0 + $0x1b0] sm:$0xff]
  %v69 = vld [vmem:[%s0 + $0x1b8] sm:$0xff]
  %v70 = vld [vmem:[%s0 + $0x1c0] sm:$0xff]
  %v71 = vld [vmem:[%s0 + $0x1c8] sm:$0xff]
  %v72 = vld [vmem:[%s0 + $0x1d0] sm:$0xff]
  %v73 = vld [vmem:[%s0 + $0x1d8] sm:$0xff]
  %v74 = vld [vmem:[%s0 + $0x1e0] sm:$0xff]
  %v75 = vld [vmem:[%s0 + $0x1e8] sm:$0xff]
  %v76 = vld [vmem:[%s0 + $0x1f0] sm:$0xff]
  %v77 = vld [vmem:[%s0 + $0x1f8] sm:$0xff]
  %v78 = vld [vmem:[%s0 + $0x200] sm:$0xff]
  %v79 = vld [vmem:[%s0 + $0x208] sm:$0xff]
  %v80 = vld [vmem:[%s0 + $0x210] sm:$0xff]
  %v81 = vld [vmem:[%s0 + $0x218] sm:$0xff]
  %v82 = vld [vmem:[%s0 + $0x220] sm:$0xff]
  %v83 = vld [vmem:[%s0 + $0x228] sm:$0xff]
  %v84 = vld [vmem:[%s0 + $0x230] sm:$0xff]
  %v85 = vld [vmem:[%s0 + $0x238] sm:$0xff]
  %v86 = vld [vmem:[%s0 + $0x240] sm:$0xff]
  %v87 = vld [vmem:[%s0 + $0x248] sm:$0xff]
  %v88 = vld [vmem:[%s0 + $0x250] sm:$0xff]
  %v89 = vld [vmem:[%s0 + $0x258] sm:$0xff]
  %v90 = vld [vmem:[%s0 + $0x260] sm:$0xff]
  %v91 = vld [vmem:[%s0 + $0x268] sm:$0xff]
  %v92 = vld [vmem:[%s0 + $0x270] sm:$0xff]
  %v93 = vld [vmem:[%s0 + $0x278] sm:$0xff]
  %v94 = vld [vmem:[%s0 + $0x280] sm:$0xff]
  %v95 = vld [vmem:[%s0 + $0x288] sm:$0xff]
  %v96 = vld [vmem:[%s0 + $0x290] sm:$0xff]
  %v97 = vld [vmem:[%s0 + $0x298] sm:$0xff]
  %v98 = vld [vmem:[%s0 + $0x2a0] sm:$0xff]
  %v99 = vld [vmem:[%s0 + $0x2a8] sm:$0xff]
  %v100 = vld [vmem:[%s0 + $0x2b0] sm:$0xff]
  %v101 = vld [vmem:[%s0 + $0x2b8] sm:$0xff]
  %v102 = vld [vmem:[%s0 + $0x2c0] sm:$0xff]
  %v103 = vld [vmem:[%s0 + $0x2c8] sm:$0xff]
  %v104 = vld [vmem:[%s0 + $0x2d0] sm:$0xff]
  %v105 = vld [vmem:[%s0 + $0x2d8] sm:$0xff]
  %v106 = vld [vmem:[%s0 + $0x2e0] sm:$0xff]
  %v107 = vld [vmem:[%s0 + $0x2e8] sm:$0xff]
  %v108 = vld [vmem:[%s0 + $0x2f0] sm:$0xff]
  %v109 = vld [vmem:[%s0 + $0x2f8] sm:$0xff]
  %v110 = vld [vmem:[%s0 + $0x300] sm:$0xff]
  %v111 = vld [vmem:[%s0 + $0x308] sm:$0xff]
  %v112 = vld [vmem:[%s0 + $0x310] sm:$0xff]
  %v113 = vld [vmem:[%s0 + $0x318] sm:$0xff]
  %v114 = vld [vmem:[%s0 + $0x320] sm:$0xff]
  %v115 = vld [vmem:[%s0 + $0x328] sm:$0xff]
  %v116 = vld [vmem:[%s0 + $0x330] sm:$0xff]
  %v117 = vld [vmem:[%s0 + $0x338] sm:$0xff]
  %v118 = vld [vmem:[%s0 + $0x340] sm:$0xff]
  %v119 = vld [vmem:[%s0 + $0x348] sm:$0xff]
  %v120 = vld [vmem:[%s0 + $0x350] sm:$0xff]
  %v121 = vld [vmem:[%s0 + $0x358] sm:$0xff]
  %v122 = vld [vmem:[%s0 + $0x360] sm:$0xff]
  %v123 = vld [vmem:[%s0 + $0x368] sm:$0xff]
  %v124 = vld [vmem:[%s0 + $0x370] sm:$0xff]
  %v125 = vld [vmem:[%s0 + $0x378] sm:$0xff]
  %v126 = vld [vmem:[%s0 + $0x380] sm:$0xff]
  %v127 = vld [vmem:[%s0 + $0x388] sm:$0xff]
  %v128 = vld [vmem:[%s0 + $0x390] sm:$0xff]
  %v129 = vld [vmem:[%s0 + $0x398] sm:$0xff]
  %v130 = vld [vmem:[%s0 + $0x3a0] sm:$0xff]
  %v131 = vld [vmem:[%s0 + $0x3a8] sm:$0xff]
  %v132 = vld [vmem:[%s0 + $0x3b0] sm:$0xff]
  %v133 = vld [vmem:[%s0 + $0x3b8] sm:$0xff]
  %v134 = vld [vmem:[%s0 + $0x3c0] sm:$0xff]
  %v135 = vld [vmem:[%s0 + $0x3c8] sm:$0xff]
  %v136 = vld [vmem:[%s0 + $0x3d0] sm:$0xff]
  %v137 = vld [vmem:[%s0 + $0x3d8] sm:$0xff]
  %v138 = vld [vmem:[%s0 + $0x3e0] sm:$0xff]
  %v139 = vld [vmem:[%s0 + $0x3e8] sm:$0xff]
  %v140 = vld [vmem:[%s0 + $0x3f0] sm:$0xff]
  %v141 = vld [vmem:[%s0 + $0x3f8] sm:$0xff]
  %v142 = vld [vmem:[%s0 + $0x400] sm:$0xff]
  %v143 = vld [vmem:[%s0 + $0x408] sm:$0xff]
  %v144 = vld [vmem:[%s0 + $0x410] sm:$0xff]
  %v145 = vld [vmem:[%s0 + $0x418] sm:$0xff]
  %v146 = vld [vmem:[%s0 + $0x420] sm:$0xff]
  %v147 = vld [vmem:[%s0 + $0x428] sm:$0xff]
  %v148 = vld [vmem:[%s0 + $0x430] sm:$0xff]
  %v149 = vld [vmem:[%s0 + $0x438] sm:$0xff]
  %v150 = vld [vmem:[%s0 + $0x440] sm:$0xff]
  %v151 = vld [vmem:[%s0 + $0x448] sm:$0xff]
  %v152 = vld [vmem:[%s0 + $0x450] sm:$0xff]
  %v153 = vld [vmem:[%s0 + $0x458] sm:$0xff]
  %v154 = vld [vmem:[%s0 + $0x460] sm:$0xff]
  %v155 = vld [vmem:[%s0 + $0x468] sm:$0xff]
  %v156 = vld [vmem:[%s0 + $0x470] sm:$0xff]
  %v157 = vld [vmem:[%s0 + $0x478] sm:$0xff]
  %v158 = vld [vmem:[%s0 + $0x480] sm:$0xff]
  %v159 = vld [vmem:[%s0 + $0x488] sm:$0xff]
  %v160 = vld [vmem:[%s0 + $0x490] sm:$0xff]
  %v161 = vld [vmem:[%s0 + $0x498] sm:$0xff]
  %v162 = vld [vmem:[%s0 + $0x4a0] sm:$0xff]
  %v163 = vld [vmem:[%s0 + $0x4a8] sm:$0xff]
  %v164 = vld [vmem:[%s0 + $0x4b0] sm:$0xff]
  %v165 = vld [vmem:[%s0 + $0x4b8] sm:$0xff]
  %v166 = vld [vmem:[%s0 + $0x4c0] sm:$0xff]
  %v167 = vld [vmem:[%s0 + $0x4c8] sm:$0xff]
  %v168 = vld [vmem:[%s0 + $0x4d0] sm:$0xff]
  %v169 = vld [vmem:[%s0 + $0x4d8] sm:$0xff]
  %v170 = vld [vmem:[%s0 + $0x4e0] sm:$0xff]
  %v171 = vld [vmem:[%s0 + $0x4e8] sm:$0xff]
  %v172 = vld [vmem:[%s0 + $0x4f0] sm:$0xff]
  %v173 = vld [vmem:[%s0 + $0x4f8] sm:$0xff]
  %v174 = vld [vmem:[%s0 + $0x500] sm:$0xff]
  %v175 = vld [vmem:[%s0 + $0x508] sm:$0xff]
  %v176 = vld [vmem:[%s0 + $0x510] sm:$0xff]
  %v177 = vld [vmem:[%s0 + $0x518] sm:$0xff]
  %v178 = vld [vmem:[%s0 + $0x520] sm:$0xff]
  %v179 = vld [vmem:[%s0 + $0x528] sm:$0xff]
  %v180 = vld [vmem:[%s0 + $0x530] sm:$0xff]
  %v181 = vld [vmem:[%s0 + $0x538] sm:$0xff]
  %v182 = vld [vmem:[%s0 + $0x540] sm:$0xff]
  %v183 = vld [vmem:[%s0 + $0x548] sm:$0xff]
  %v184 = vld [vmem:[%s0 + $0x550] sm:$0xff]
  %v185 = vld [vmem:[%s0 + $0x558] sm:$0xff]
  %v186 = vld [vmem:[%s0 + $0x560] sm:$0xff]
  %v187 = vld [vmem:[%s0 + $0x568] sm:$0xff]
  %v188 = vld [vmem:[%s0 + $0x570] sm:$0xff]
  %v189 = vld [vmem:[%s0 + $0x578] sm:$0xff]
  %v190 = vld [vmem:[%s0 + $0x580] sm:$0xff]
  %v191 = vld [vmem:[%s0 + $0x588] sm:$0xff]
  %v192 = vld [vmem:[%s0 + $0x590] sm:$0xff]
  %v193 = vld [vmem:[%s0 + $0x598] sm:$0xff]
  %v194 = vld [vmem:[%s0 + $0x5a0] sm:$0xff]
  %v195 = vld [vmem:[%s0 + $0x5a8] sm:$0xff]
  %v196 = vld [vmem:[%s0 + $0x5b0] sm:$0xff]
  %v197 = vld [vmem:[%s0 + $0x5b8] sm:$0xff]
  %v198 = vld [vmem:[%s0 + $0x5c0] sm:$0xff]
  %v199 = vld [vmem:[%s0 + $0x5c8] sm:$0xff]
  %v200 = vld [vmem:[%s0 + $0x5d0] sm:$0xff]
  %v201 = vld [vmem:[%s0 + $0x5d8] sm:$0xff]
  %v202 = vld [vmem:[%s0 + $0x5e0] sm:$0xff]
  %v203 = vld [vmem:[%s0 + $0x5e8] sm:$0xff]
  %v204 = vld [vmem:[%s0 + $0x5f0] sm:$0xff]
  %v205 = vld [vmem:[%s0 + $0x5f8] sm:$0xff]
  %v206 = vld [vmem:[%s0 + $0x600] sm:$0xff]
  %v207 = vld [vmem:[%s0 + $0x608] sm:$0xff]
  %v208 = vld [vmem:[%s0 + $0x610] sm:$0xff]
  %v209 = vld [vmem:[%s0 + $0x618] sm:$0xff]
  %v210 = vld [vmem:[%s0 + $0x620] sm:$0xff]
  %v211 = vld [vmem:[%s0 + $0x628] sm:$0xff]
  %v212 = vld [vmem:[%s0 + $0x630] sm:$0xff]
  %v213 = vld [vmem:[%s0 + $0x638] sm:$0xff]
  %v214 = vld [vmem:[%s0 + $0x640] sm:$0xff]
  %v215 = vld [vmem:[%s0 + $0x648] sm:$0xff]
  %v216 = vld [vmem:[%s0 + $0x650] sm:$0xff]
  %v217 = vld [vmem:[%s0 + $0x658] sm:$0xff]
  %v218 = vld [vmem:[%s0 + $0x660] sm:$0xff]
  %v219 = vld [vmem:[%s0 + $0x668] sm:$0xff]
  %v220 = vld [vmem:[%s0 + $0x670] sm:$0xff]
  %v221 = vld [vmem:[%s0 + $0x678] sm:$0xff]
  %v222 = vld [vmem:[%s0 + $0x680] sm:$0xff]
  %v223 = vld [vmem:[%s0 + $0x688] sm:$0xff]
  %v224 = vld [vmem:[%s0 + $0x690] sm:$0xff]
  %v225 = vld [vmem:[%s0 + $0x698] sm:$0xff]
  %v226 = vld [vmem:[%s0 + $0x6a0] sm:$0xff]
  %v227 = vld [vmem:[%s0 + $0x6a8] sm:$0xff]
  %v228 = vld [vmem:[%s0 + $0x6b0] sm:$0xff]
  %v229 = vld [vmem:[%s0 + $0x6b8] sm:$0xff]
  %v230 = vld [vmem:[%s0 + $0x6c0] sm:$0xff]
  %v231 = vld [vmem:[%s0 + $0x6c8] sm:$0xff]
  %v232 = vld [vmem:[%s0 + $0x6d0] sm:$0xff]
  %v233 = vld [vmem:[%s0 + $0x6d8] sm:$0xff]
  %v234 = vld [vmem:[%s0 + $0x6e0] sm:$0xff]
  %v235 = vld [vmem:[%s0 + $0x6e8] sm:$0xff]
  %v236 = vld [vmem:[%s0 + $0x6f0] sm:$0xff]
  %v237 = vld [vmem:[%s0 + $0x6f8] sm:$0xff]
  %v238 = vld [vmem:[%s0 + $0x700] sm:$0xff]
  %v239 = vld [vmem:[%s0 + $0x708] sm:$0xff]
  %v240 = vld [vmem:[%s0 + $0x710] sm:$0xff]
  %v241 = vld [vmem:[%s0 + $0x718] sm:$0xff]
  %v242 = vld [vmem:[%s0 + $0x720] sm:$0xff]
  %v243 = vld [vmem:[%s0 + $0x728] sm:$0xff]
  %v244 = vld [vmem:[%s0 + $0x730] sm:$0xff]
  %v245 = vld [vmem:[%s0 + $0x738] sm:$0xff]
  %v246 = vld [vmem:[%s0 + $0x740] sm:$0xff]
  %v247 = vld [vmem:[%s0 + $0x748] sm:$0xff]
  %v248 = vld [vmem:[%s0 + $0x750] sm:$0xff]
  %v249 = vld [vmem:[%s0 + $0x758] sm:$0xff]
  %v250 = vld [vmem:[%s0 + $0x760] sm:$0xff]
  %v251 = vld [vmem:[%s0 + $0x768] sm:$0xff]
  %v252 = vld [vmem:[%s0 + $0x770] sm:$0xff]
  %v253 = vld [vmem:[%s0 + $0x778] sm:$0xff]
  %v254 = vld [vmem:[%s0 + $0x780] sm:$0xff]
  %v255 = vld [vmem:[%s0 + $0x788] sm:$0xff]
  %v256 = vld [vmem:[%s0 + $0x790] sm:$0xff]
  %v257 = vld [vmem:[%s0 + $0x798] sm:$0xff]
  %v258 = vld [vmem:[%s0 + $0x7a0] sm:$0xff]
  %v259 = vld [vmem:[%s0 + $0x7a8] sm:$0xff]
  %v260 = vld [vmem:[%s0 + $0x7b0] sm:$0xff]
  %v261 = vld [vmem:[%s0 + $0x7b8] sm:$0xff]
  %v262 = vld [vmem:[%s0 + $0x7c0] sm:$0xff]
  %v263 = vld [vmem:[%s0 + $0x7c8] sm:$0xff]
  %v264 = vld [vmem:[%s0 + $0x7d0] sm:$0xff]
  %v265 = vld [vmem:[%s0 + $0x7d8] sm:$0xff]
  %v266 = vld [vmem:[%s0 + $0x7e0] sm:$0xff]
  %v267 = vld [vmem:[%s0 + $0x7e8] sm:$0xff]
  %v268 = vld [vmem:[%s0 + $0x7f0] sm:$0xff]
  %v269 = vld [vmem:[%s0 + $0x7f8] sm:$0xff]
  %v270 = vld [vmem:[%s0 + $0x800] sm:$0xff]
  %v271 = vld [vmem:[%s0 + $0x808] sm:$0xff]
  %v272 = vld [vmem:[%s0 + $0x810] sm:$0xff]
  %v273 = vld [vmem:[%s0 + $0x818] sm:$0xff]
  %v274 = vld [vmem:[%s0 + $0x820] sm:$0xff]
  %v275 = vld [vmem:[%s0 + $0x828] sm:$0xff]
  %v276 = vld [vmem:[%s0 + $0x830] sm:$0xff]
  %v277 = vld [vmem:[%s0 + $0x838] sm:$0xff]
  %v278 = vld [vmem:[%s0 + $0x840] sm:$0xff]
  %v279 = vld [vmem:[%s0 + $0x848] sm:$0xff]
  %v280 = vld [vmem:[%s0 + $0x850] sm:$0xff]
  %v281 = vld [vmem:[%s0 + $0x858] sm:$0xff]
  %v282 = vld [vmem:[%s0 + $0x860] sm:$0xff]
  %v283 = vld [vmem:[%s0 + $0x868] sm:$0xff]
  %v284 = vld [vmem:[%s0 + $0x870] sm:$0xff]
  %v285 = vld [vmem:[%s0 + $0x878] sm:$0xff]
  %v286 = vld [vmem:[%s0 + $0x880] sm:$0xff]
  %v287 = vld [vmem:[%s0 + $0x888] sm:$0xff]
  %v288 = vld [vmem:[%s0 + $0x890] sm:$0xff]
  %v289 = vld [vmem:[%s0 + $0x898] sm:$0xff]
  %v290 = vld [vmem:[%s0 + $0x8a0] sm:$0xff]
  %v291 = vld [vmem:[%s0 + $0x8a8] sm:$0xff]
  %v292 = vld [vmem:[%s0 + $0x8b0] sm:$0xff]
  %v293 = vld [vmem:[%s0 + $0x8b8] sm:$0xff]
  %v294 = vld [vmem:[%s0 + $0x8c0] sm:$0xff]
  %v295 = vld [vmem:[%s0 + $0x8c8] sm:$0xff]
  %v296 = vld [vmem:[%s0 + $0x8d0] sm:$0xff]
  %v297 = vld [vmem:[%s0 + $0x8d8] sm:$0xff]
  %v298 = vld [vmem:[%s0 + $0x8e0] sm:$0xff]
  %v299 = vld [vmem:[%s0 + $0x8e8] sm:$0xff]
  %v300 = vld [vmem:[%s0 + $0x8f0] sm:$0xff]
  %v301 = vld [vmem:[%s0 + $0x8f8] sm:$0xff]
  %v302 = vld [vmem:[%s0 + $0x900] sm:$0xff]
  %v303 = vld [vmem:[%s0 + $0x908] sm:$0xff]
  %v304 = vld [vmem:[%s0 + $0x910] sm:$0xff]
  %v305 = vld [vmem:[%s0 + $0x918] sm:$0xff]
  %v306 = vld [vmem:[%s0 + $0x920] sm:$0xff]
  %v307 = vld [vmem:[%s0 + $0x928] sm:$0xff]
  %v308 = vld [vmem:[%s0 + $0x930] sm:$0xff]
  %v309 = vld [vmem:[%s0 + $0x938] sm:$0xff]
  %v310 = vld [vmem:[%s0 + $0x940] sm:$0xff]
  %v311 = vld [vmem:[%s0 + $0x948] sm:$0xff]
  %v312 = vld [vmem:[%s0 + $0x950] sm:$0xff]
  %v313 = vld [vmem:[%s0 + $0x958] sm:$0xff]
  %v314 = vld [vmem:[%s0 + $0x960] sm:$0xff]
  %v315 = vld [vmem:[%s0 + $0x968] sm:$0xff]
  %v316 = vld [vmem:[%s0 + $0x970] sm:$0xff]
  %v317 = vld [vmem:[%s0 + $0x978] sm:$0xff]
  %v318 = vld [vmem:[%s0 + $0x980] sm:$0xff]
  %v319 = vld [vmem:[%s0 + $0x988] sm:$0xff]
  %v320 = vld [vmem:[%s0 + $0x990] sm:$0xff]
  %v321 = vld [vmem:[%s0 + $0x998] sm:$0xff]
  %v322 = vld [vmem:[%s0 + $0x9a0] sm:$0xff]
  %v323 = vld [vmem:[%s0 + $0x9a8] sm:$0xff]
  %v324 = vld [vmem:[%s0 + $0x9b0] sm:$0xff]
  %v325 = vld [vmem:[%s0 + $0x9b8] sm:$0xff]
  %v326 = vld [vmem:[%s0 + $0x9c0] sm:$0xff]
  %v327 = vld [vmem:[%s0 + $0x9c8] sm:$0xff]
  %v328 = vld [vmem:[%s0 + $0x9d0] sm:$0xff]
  %v329 = vld [vmem:[%s0 + $0x9d8] sm:$0xff]
  %v330 = vld [vmem:[%s0 + $0x9e0] sm:$0xff]
  %v331 = vld [vmem:[%s0 + $0x9e8] sm:$0xff]
  %v332 = vld [vmem:[%s0 + $0x9f0] sm:$0xff]
  %v333 = vld [vmem:[%s0 + $0x9f8] sm:$0xff]
  %v334 = vld [vmem:[%s0 + $0xa00] sm:$0xff]
  %v335 = vld [vmem:[%s0 + $0xa08] sm:$0xff]
  %v336 = vld [vmem:[%s0 + $0xa10] sm:$0xff]
  %v337 = vld [vmem:[%s0 + $0xa18] sm:$0xff]
  %v338 = vld [vmem:[%s0 + $0xa20] sm:$0xff]
  %v339 = vld [vmem:[%s0 + $0xa28] sm:$0xff]
  %v340 = vld [vmem:[%s0 + $0xa30] sm:$0xff]
  %v341 = vld [vmem:[%s0 + $0xa38] sm:$0xff]
  %v342 = vld [vmem:[%s0 + $0xa40] sm:$0xff]
  %v343 = vld [vmem:[%s0 + $0xa48] sm:$0xff]
  %v344 = vld [vmem:[%s0 + $0xa50] sm:$0xff]
  %v345 = vld [vmem:[%s0 + $0xa58] sm:$0xff]
  %v346 = vld [vmem:[%s0 + $0xa60] sm:$0xff]
  %v347 = vld [vmem:[%s0 + $0xa68] sm:$0xff]
  %v348 = vld [vmem:[%s0 + $0xa70] sm:$0xff]
  %v349 = vld [vmem:[%s0 + $0xa78] sm:$0xff]
  %v350 = vld [vmem:[%s0 + $0xa80] sm:$0xff]
  %v351 = vld [vmem:[%s0 + $0xa88] sm:$0xff]
  %v352 = vld [vmem:[%s0 + $0xa90] sm:$0xff]
  %v353 = vld [vmem:[%s0 + $0xa98] sm:$0xff]
  %v354 = vld [vmem:[%s0 + $0xaa0] sm:$0xff]
  %v355 = vld [vmem:[%s0 + $0xaa8] sm:$0xff]
  %v356 = vld [vmem:[%s0 + $0xab0] sm:$0xff]
  %v357 = vld [vmem:[%s0 + $0xab8] sm:$0xff]
  %v358 = vld [vmem:[%s0 + $0xac0] sm:$0xff]
  %v359 = vld [vmem:[%s0 + $0xac8] sm:$0xff]
  %v360 = vld [vmem:[%s0 + $0xad0] sm:$0xff]
  %v361 = vld [vmem:[%s0 + $0xad8] sm:$0xff]
  %v362 = vld [vmem:[%s0 + $0xae0] sm:$0xff]
  %v363 = vld [vmem:[%s0 + $0xae8] sm:$0xff]
  %v364 = vld [vmem:[%s0 + $0xaf0] sm:$0xff]
  %v365 = vld [vmem:[%s0 + $0xaf8] sm:$0xff]
  %v366 = vld [vmem:[%s0 + $0xb00] sm:$0xff]
  %v367 = vld [vmem:[%s0 + $0xb08] sm:$0xff]
  %v368 = vld [vmem:[%s0 + $0xb10] sm:$0xff]
  %v369 = vld [vmem:[%s0 + $0xb18] sm:$0xff]
  %v370 = vld [vmem:[%s0 + $0xb20] sm:$0xff]
  %v371 = vld [vmem:[%s0 + $0xb28] sm:$0xff]
  %v372 = vld [vmem:[%s0 + $0xb30] sm:$0xff]
  %v373 = vld [vmem:[%s0 + $0xb38] sm:$0xff]
  %v374 = vld [vmem:[%s0 + $0xb40] sm:$0xff]
  %v375 = vld [vmem:[%s0 + $0xb48] sm:$0xff]
  %v376 = vld [vmem:[%s0 + $0xb50] sm:$0xff]
  %v377 = vld [vmem:[%s0 + $0xb58] sm:$0xff]
  %v378 = vld [vmem:[%s0 + $0xb60] sm:$0xff]
  %v379 = vld [vmem:[%s0 + $0xb68] sm:$0xff]
  %v380 = vld [vmem:[%s0 + $0xb70] sm:$0xff]
  %v381 = vld [vmem:[%s0 + $0xb78] sm:$0xff]
  %v382 = vld [vmem:[%s0 + $0xb80] sm:$0xff]
  %v383 = vld [vmem:[%s0 + $0xb88] sm:$0xff]
  %v384 = vld [vmem:[%s0 + $0xb90] sm:$0xff]
  %v385 = vld [vmem:[%s0 + $0xb98] sm:$0xff]
  %v386 = vld [vmem:[%s0 + $0xba0] sm:$0xff]
  %v387 = vld [vmem:[%s0 + $0xba8] sm:$0xff]
  %v388 = vld [vmem:[%s0 + $0xbb0] sm:$0xff]
  %v389 = vld [vmem:[%s0 + $0xbb8] sm:$0xff]
  %v390 = vld [vmem:[%s0 + $0xbc0] sm:$0xff]
  %v391 = vld [vmem:[%s0 + $0xbc8] sm:$0xff]
  %v392 = vld [vmem:[%s0 + $0xbd0] sm:$0xff]
  %v393 = vld [vmem:[%s0 + $0xbd8] sm:$0xff]
  %v394 = vld [vmem:[%s0 + $0xbe0] sm:$0xff]
  %v395 = vld [vmem:[%s0 + $0xbe8] sm:$0xff]
  %v396 = vld [vmem:[%s0 + $0xbf0] sm:$0xff]
  %v397 = vld [vmem:[%s0 + $0xbf8] sm:$0xff]
  %v398 = vld [vmem:[%s0 + $0xc00] sm:$0xff]
  %v399 = vld [vmem:[%s0 + $0xc08] sm:$0xff]
  %v400 = vld [vmem:[%s0 + $0xc10] sm:$0xff]
  %v401 = vld [vmem:[%s0 + $0xc18] sm:$0xff]
  %v402 = vld [vmem:[%s0 + $0xc20] sm:$0xff]
  %v403 = vld [vmem:[%s0 + $0xc28] sm:$0xff]
  %v404 = vld [vmem:[%s0 + $0xc30] sm:$0xff]
  %v405 = vld [vmem:[%s0 + $0xc38] sm:$0xff]
  %v406 = vld [vmem:[%s0 + $0xc40] sm:$0xff]
  %v407 = vld [vmem:[%s0 + $0xc48] sm:$0xff]
  %v408 = vld [vmem:[%s0 + $0xc50] sm:$0xff]
  %v409 = vld [vmem:[%s0 + $0xc58] sm:$0xff]
  %v410 = vld [vmem:[%s0 + $0xc60] sm:$0xff]
  %v411 = vld [vmem:[%s0 + $0xc68] sm:$0xff]
  %v412 = vld [vmem:[%s0 + $0xc70] sm:$0xff]
  %v413 = vld [vmem:[%s0 + $0xc78] sm:$0xff]
  %v414 = vld [vmem:[%s0 + $0xc80] sm:$0xff]
  %v415 = vld [vmem:[%s0 + $0xc88] sm:$0xff]
  %v416 = vld [vmem:[%s0 + $0xc90] sm:$0xff]
  %v417 = vld [vmem:[%s0 + $0xc98] sm:$0xff]
  %v418 = vld [vmem:[%s0 + $0xca0] sm:$0xff]
  %v419 = vld [vmem:[%s0 + $0xca8] sm:$0xff]
  %v420 = vld [vmem:[%s0 + $0xcb0] sm:$0xff]
  %v421 = vld [vmem:[%s0 + $0xcb8] sm:$0xff]
  %v422 = vld [vmem:[%s0 + $0xcc0] sm:$0xff]
  %v423 = vld [vmem:[%s0 + $0xcc8] sm:$0xff]
  %v424 = vld [vmem:[%s0 + $0xcd0] sm:$0xff]
  %v425 = vld [vmem:[%s0 + $0xcd8] sm:$0xff]
  %v426 = vld [vmem:[%s0 + $0xce0] sm:$0xff]
  %v427 = vld [vmem:[%s0 + $0xce8] sm:$0xff]
  %v428 = vld [vmem:[%s0 + $0xcf0] sm:$0xff]
  %v429 = vld [vmem:[%s0 + $0xcf8] sm:$0xff]
  %v430 = vld [vmem:[%s0 + $0xd00] sm:$0xff]
  %v431 = vld [vmem:[%s0 + $0xd08] sm:$0xff]
  %v432 = vld [vmem:[%s0 + $0xd10] sm:$0xff]
  %v433 = vld [vmem:[%s0 + $0xd18] sm:$0xff]
  %v434 = vld [vmem:[%s0 + $0xd20] sm:$0xff]
  %v435 = vld [vmem:[%s0 + $0xd28] sm:$0xff]
  %v436 = vld [vmem:[%s0 + $0xd30] sm:$0xff]
  %v437 = vld [vmem:[%s0 + $0xd38] sm:$0xff]
  %v438 = vld [vmem:[%s0 + $0xd40] sm:$0xff]
  %v439 = vld [vmem:[%s0 + $0xd48] sm:$0xff]
  %v440 = vld [vmem:[%s0 + $0xd50] sm:$0xff]
  %v441 = vld [vmem:[%s0 + $0xd58] sm:$0xff]
  %v442 = vld [vmem:[%s0 + $0xd60] sm:$0xff]
  %v443 = vld [vmem:[%s0 + $0xd68] sm:$0xff]
  %v444 = vld [vmem:[%s0 + $0xd70] sm:$0xff]
  %v445 = vld [vmem:[%s0 + $0xd78] sm:$0xff]
  %v446 = vld [vmem:[%s0 + $0xd80] sm:$0xff]
  %v447 = vld [vmem:[%s0 + $0xd88] sm:$0xff]
  %v448 = vld [vmem:[%s0 + $0xd90] sm:$0xff]
  %v449 = vld [vmem:[%s0 + $0xd98] sm:$0xff]
  %v450 = vld [vmem:[%s0 + $0xda0] sm:$0xff]
  %v451 = vld [vmem:[%s0 + $0xda8] sm:$0xff]
  %v452 = vld [vmem:[%s0 + $0xdb0] sm:$0xff]
  %v453 = vld [vmem:[%s0 + $0xdb8] sm:$0xff]
  %v454 = vld [vmem:[%s0 + $0xdc0] sm:$0xff]
  %v455 = vld [vmem:[%s0 + $0xdc8] sm:$0xff]
  %v456 = vld [vmem:[%s0 + $0xdd0] sm:$0xff]
  %v457 = vld [vmem:[%s0 + $0xdd8] sm:$0xff]
  %v458 = vld [vmem:[%s0 + $0xde0] sm:$0xff]
  %v459 = vld [vmem:[%s0 + $0xde8] sm:$0xff]
  %v460 = vld [vmem:[%s0 + $0xdf0] sm:$0xff]
  %v461 = vld [vmem:[%s0 + $0xdf8] sm:$0xff]
  %v462 = vld [vmem:[%s0 + $0xe00] sm:$0xff]
  %v463 = vld [vmem:[%s0 + $0xe08] sm:$0xff]
  %v464 = vld [vmem:[%s0 + $0xe10] sm:$0xff]
  %v465 = vld [vmem:[%s0 + $0xe18] sm:$0xff]
  %v466 = vld [vmem:[%s0 + $0xe20] sm:$0xff]
  %v467 = vld [vmem:[%s0 + $0xe28] sm:$0xff]
  %v468 = vld [vmem:[%s0 + $0xe30] sm:$0xff]
  %v469 = vld [vmem:[%s0 + $0xe38] sm:$0xff]
  %v470 = vld [vmem:[%s0 + $0xe40] sm:$0xff]
  %v471 = vld [vmem:[%s0 + $0xe48] sm:$0xff]
  %v472 = vld [vmem:[%s0 + $0xe50] sm:$0xff]
  %v473 = vld [vmem:[%s0 + $0xe58] sm:$0xff]
  %v474 = vld [vmem:[%s0 + $0xe60] sm:$0xff]
  %v475 = vld [vmem:[%s0 + $0xe68] sm:$0xff]
  %v476 = vld [vmem:[%s0 + $0xe70] sm:$0xff]
  %v477 = vld [vmem:[%s0 + $0xe78] sm:$0xff]
  %v478 = vld [vmem:[%s0 + $0xe80] sm:$0xff]
  %v479 = vld [vmem:[%s0 + $0xe88] sm:$0xff]
  %v480 = vld [vmem:[%s0 + $0xe90] sm:$0xff]
  %v481 = vld [vmem:[%s0 + $0xe98] sm:$0xff]
  %v482 = vld [vmem:[%s0 + $0xea0] sm:$0xff]
  %v483 = vld [vmem:[%s0 + $0xea8] sm:$0xff]
  %v484 = vld [vmem:[%s0 + $0xeb0] sm:$0xff]
  %v485 = vld [vmem:[%s0 + $0xeb8] sm:$0xff]
  %v486 = vld [vmem:[%s0 + $0xec0] sm:$0xff]
  %v487 = vld [vmem:[%s0 + $0xec8] sm:$0xff]
  %v488 = vld [vmem:[%s0 + $0xed0] sm:$0xff]
  %v489 = vld [vmem:[%s0 + $0xed8] sm:$0xff]
  %v490 = vld [vmem:[%s0 + $0xee0] sm:$0xff]
  %v491 = vld [vmem:[%s0 + $0xee8] sm:$0xff]
  %v492 = vld [vmem:[%s0 + $0xef0] sm:$0xff]
  %v493 = vld [vmem:[%s0 + $0xef8] sm:$0xff]
  %v494 = vld [vmem:[%s0 + $0xf00] sm:$0xff]
  %v495 = vld [vmem:[%s0 + $0xf08] sm:$0xff]
  %v496 = vld [vmem:[%s0 + $0xf10] sm:$0xff]
  %v497 = vld [vmem:[%s0 + $0xf18] sm:$0xff]
  %v498 = vld [vmem:[%s0 + $0xf20] sm:$0xff]
  %v499 = vld [vmem:[%s0 + $0xf28] sm:$0xff]
  %v500 = vld [vmem:[%s0 + $0xf30] sm:$0xff]
  %v501 = vld [vmem:[%s0 + $0xf38] sm:$0xff]
  %v502 = vld [vmem:[%s0 + $0xf40] sm:$0xff]
  %v503 = vld [vmem:[%s0 + $0xf48] sm:$0xff]
  %v504 = vld [vmem:[%s0 + $0xf50] sm:$0xff]
  %v505 = vld [vmem:[%s0 + $0xf58] sm:$0xff]
  %v506 = vld [vmem:[%s0 + $0xf60] sm:$0xff]
  %v507 = vld [vmem:[%s0 + $0xf68] sm:$0xff]
  %v508 = vld [vmem:[%s0 + $0xf70] sm:$0xff]
  %v509 = vld [vmem:[%s0 + $0xf78] sm:$0xff]
  %v510 = vld [vmem:[%s0 + $0xf80] sm:$0xff]
  %v511 = vld [vmem:[%s0 + $0xf88] sm:$0xff]
  %v512 = vld [vmem:[%s0 + $0xf90] sm:$0xff]
  %v513 = vld [vmem:[%s0 + $0xf98] sm:$0xff]
  %v514 = vld [vmem:[%s0 + $0xfa0] sm:$0xff]
  %v515 = vld [vmem:[%s0 + $0xfa8] sm:$0xff]
  %v516 = vld [vmem:[%s0 + $0xfb0] sm:$0xff]
  %v517 = vld [vmem:[%s0 + $0xfb8] sm:$0xff]
  %v518 = vld [vmem:[%s0 + $0xfc0] sm:$0xff]
  %v519 = vld [vmem:[%s0 + $0xfc8] sm:$0xff]
  %v520 = vld [vmem:[%s0 + $0xfd0] sm:$0xff]
  %v521 = vld [vmem:[%s0 + $0xfd8] sm:$0xff]
  %v522 = vld [vmem:[%s0 + $0xfe0] sm:$0xff]
  %v523 = vld [vmem:[%s0 + $0xfe8] sm:$0xff]
  %v524 = vld [vmem:[%s0 + $0xff0] sm:$0xff]
  %v525 = vld [vmem:[%s0 + $0xff8] sm:$0xff]
  %v526 = vld [vmem:[%s1] sm:$0xf]
  %v527 = vld [vmem:[%s1 + $0x4] sm:$0xf]
  %v528 = vld [vmem:[%s1 + $0x8] sm:$0xf]
  %v529 = vld [vmem:[%s1 + $0xc] sm:$0xf]
  %v530 = vld [vmem:[%s1 + $0x10] sm:$0xf]
  %v531 = vld [vmem:[%s1 + $0x14] sm:$0xf]
  %v532 = vld [vmem:[%s1 + $0x18] sm:$0xf]
  %v533 = vld [vmem:[%s1 + $0x1c] sm:$0xf]
  %v534 = vld [vmem:[%s1 + $0x20] sm:$0xf]
  %v535 = vld [vmem:[%s1 + $0x24] sm:$0xf]
  %v536 = vld [vmem:[%s1 + $0x28] sm:$0xf]
  %v537 = vld [vmem:[%s1 + $0x2c] sm:$0xf]
  %v538 = vld [vmem:[%s1 + $0x30] sm:$0xf]
  %v539 = vld [vmem:[%s1 + $0x34] sm:$0xf]
  %v540 = vld [vmem:[%s1 + $0x38] sm:$0xf]
  %v541 = vld [vmem:[%s1 + $0x3c] sm:$0xf]
  %v542 = vld [vmem:[%s1 + $0x40] sm:$0xf]
  %v543 = vld [vmem:[%s1 + $0x44] sm:$0xf]
  %v544 = vld [vmem:[%s1 + $0x48] sm:$0xf]
  %v545 = vld [vmem:[%s1 + $0x4c] sm:$0xf]
  %v546 = vld [vmem:[%s1 + $0x50] sm:$0xf]
  %v547 = vld [vmem:[%s1 + $0x54] sm:$0xf]
  %v548 = vld [vmem:[%s1 + $0x58] sm:$0xf]
  %v549 = vld [vmem:[%s1 + $0x5c] sm:$0xf]
  %v550 = vld [vmem:[%s1 + $0x60] sm:$0xf]
  %v551 = vld [vmem:[%s1 + $0x64] sm:$0xf]
  %v552 = vld [vmem:[%s1 + $0x68] sm:$0xf]
  %v553 = vld [vmem:[%s1 + $0x6c] sm:$0xf]
  %v554 = vld [vmem:[%s1 + $0x70] sm:$0xf]
  %v555 = vld [vmem:[%s1 + $0x74] sm:$0xf]
  %v556 = vld [vmem:[%s1 + $0x78] sm:$0xf]
  %v557 = vld [vmem:[%s1 + $0x7c] sm:$0xf]
  %v558 = vld [vmem:[%s1 + $0x80] sm:$0xf]
  %v559 = vld [vmem:[%s1 + $0x84] sm:$0xf]
  %v560 = vld [vmem:[%s1 + $0x88] sm:$0xf]
  %v561 = vld [vmem:[%s1 + $0x8c] sm:$0xf]
  %v562 = vld [vmem:[%s1 + $0x90] sm:$0xf]
  %v563 = vld [vmem:[%s1 + $0x94] sm:$0xf]
  %v564 = vld [vmem:[%s1 + $0x98] sm:$0xf]
  %v565 = vld [vmem:[%s1 + $0x9c] sm:$0xf]
  %v566 = vld [vmem:[%s1 + $0xa0] sm:$0xf]
  %v567 = vld [vmem:[%s1 + $0xa4] sm:$0xf]
  %v568 = vld [vmem:[%s1 + $0xa8] sm:$0xf]
  %v569 = vld [vmem:[%s1 + $0xac] sm:$0xf]
  %v570 = vld [vmem:[%s1 + $0xb0] sm:$0xf]
  %v571 = vld [vmem:[%s1 + $0xb4] sm:$0xf]
  %v572 = vld [vmem:[%s1 + $0xb8] sm:$0xf]
  %v573 = vld [vmem:[%s1 + $0xbc] sm:$0xf]
  %v574 = vld [vmem:[%s1 + $0xc0] sm:$0xf]
  %v575 = vld [vmem:[%s1 + $0xc4] sm:$0xf]
  %v576 = vld [vmem:[%s1 + $0xc8] sm:$0xf]
  %v577 = vld [vmem:[%s1 + $0xcc] sm:$0xf]
  %v578 = vld [vmem:[%s1 + $0xd0] sm:$0xf]
  %v579 = vld [vmem:[%s1 + $0xd4] sm:$0xf]
  %v580 = vld [vmem:[%s1 + $0xd8] sm:$0xf]
  %v581 = vld [vmem:[%s1 + $0xdc] sm:$0xf]
  %v582 = vld [vmem:[%s1 + $0xe0] sm:$0xf]
  %v583 = vld [vmem:[%s1 + $0xe4] sm:$0xf]
  %v584 = vld [vmem:[%s1 + $0xe8] sm:$0xf]
  %v585 = vld [vmem:[%s1 + $0xec] sm:$0xf]
  %v586 = vld [vmem:[%s1 + $0xf0] sm:$0xf]
  %v587 = vld [vmem:[%s1 + $0xf4] sm:$0xf]
  %v588 = vld [vmem:[%s1 + $0xf8] sm:$0xf]
  %v589 = vld [vmem:[%s1 + $0xfc] sm:$0xf]
  %v590 = vld [vmem:[%s1 + $0x100] sm:$0xf]
  %v591 = vld [vmem:[%s1 + $0x104] sm:$0xf]
  %v592 = vld [vmem:[%s1 + $0x108] sm:$0xf]
  %v593 = vld [vmem:[%s1 + $0x10c] sm:$0xf]
  %v594 = vld [vmem:[%s1 + $0x110] sm:$0xf]
  %v595 = vld [vmem:[%s1 + $0x114] sm:$0xf]
  %v596 = vld [vmem:[%s1 + $0x118] sm:$0xf]
  %v597 = vld [vmem:[%s1 + $0x11c] sm:$0xf]
  %v598 = vld [vmem:[%s1 + $0x120] sm:$0xf]
  %v599 = vld [vmem:[%s1 + $0x124] sm:$0xf]
  %v600 = vld [vmem:[%s1 + $0x128] sm:$0xf]
  %v601 = vld [vmem:[%s1 + $0x12c] sm:$0xf]
  %v602 = vld [vmem:[%s1 + $0x130] sm:$0xf]
  %v603 = vld [vmem:[%s1 + $0x134] sm:$0xf]
  %v604 = vld [vmem:[%s1 + $0x138] sm:$0xf]
  %v605 = vld [vmem:[%s1 + $0x13c] sm:$0xf]
  %v606 = vld [vmem:[%s1 + $0x140] sm:$0xf]
  %v607 = vld [vmem:[%s1 + $0x144] sm:$0xf]
  %v608 = vld [vmem:[%s1 + $0x148] sm:$0xf]
  %v609 = vld [vmem:[%s1 + $0x14c] sm:$0xf]
  %v610 = vld [vmem:[%s1 + $0x150] sm:$0xf]
  %v611 = vld [vmem:[%s1 + $0x154] sm:$0xf]
  %v612 = vld [vmem:[%s1 + $0x158] sm:$0xf]
  %v613 = vld [vmem:[%s1 + $0x15c] sm:$0xf]
  %v614 = vld [vmem:[%s1 + $0x160] sm:$0xf]
  %v615 = vld [vmem:[%s1 + $0x164] sm:$0xf]
  %v616 = vld [vmem:[%s1 + $0x168] sm:$0xf]
  %v617 = vld [vmem:[%s1 + $0x16c] sm:$0xf]
  %v618 = vld [vmem:[%s1 + $0x170] sm:$0xf]
  %v619 = vld [vmem:[%s1 + $0x174] sm:$0xf]
  %v620 = vld [vmem:[%s1 + $0x178] sm:$0xf]
  %v621 = vld [vmem:[%s1 + $0x17c] sm:$0xf]
  %v622 = vld [vmem:[%s1 + $0x180] sm:$0xf]
  %v623 = vld [vmem:[%s1 + $0x184] sm:$0xf]
  %v624 = vld [vmem:[%s1 + $0x188] sm:$0xf]
  %v625 = vld [vmem:[%s1 + $0x18c] sm:$0xf]
  %v626 = vld [vmem:[%s1 + $0x190] sm:$0xf]
  %v627 = vld [vmem:[%s1 + $0x194] sm:$0xf]
  %v628 = vld [vmem:[%s1 + $0x198] sm:$0xf]
  %v629 = vld [vmem:[%s1 + $0x19c] sm:$0xf]
  %v630 = vld [vmem:[%s1 + $0x1a0] sm:$0xf]
  %v631 = vld [vmem:[%s1 + $0x1a4] sm:$0xf]
  %v632 = vld [vmem:[%s1 + $0x1a8] sm:$0xf]
  %v633 = vld [vmem:[%s1 + $0x1ac] sm:$0xf]
  %v634 = vld [vmem:[%s1 + $0x1b0] sm:$0xf]
  %v635 = vld [vmem:[%s1 + $0x1b4] sm:$0xf]
  %v636 = vld [vmem:[%s1 + $0x1b8] sm:$0xf]
  %v637 = vld [vmem:[%s1 + $0x1bc] sm:$0xf]
  %v638 = vld [vmem:[%s1 + $0x1c0] sm:$0xf]
  %v639 = vld [vmem:[%s1 + $0x1c4] sm:$0xf]
  %v640 = vld [vmem:[%s1 + $0x1c8] sm:$0xf]
  %v641 = vld [vmem:[%s1 + $0x1cc] sm:$0xf]
  %v642 = vld [vmem:[%s1 + $0x1d0] sm:$0xf]
  %v643 = vld [vmem:[%s1 + $0x1d4] sm:$0xf]
  %v644 = vld [vmem:[%s1 + $0x1d8] sm:$0xf]
  %v645 = vld [vmem:[%s1 + $0x1dc] sm:$0xf]
  %v646 = vld [vmem:[%s1 + $0x1e0] sm:$0xf]
  %v647 = vld [vmem:[%s1 + $0x1e4] sm:$0xf]
  %v648 = vld [vmem:[%s1 + $0x1e8] sm:$0xf]
  %v649 = vld [vmem:[%s1 + $0x1ec] sm:$0xf]
  %v650 = vld [vmem:[%s1 + $0x1f0] sm:$0xf]
  %v651 = vld [vmem:[%s1 + $0x1f4] sm:$0xf]
  %v652 = vld [vmem:[%s1 + $0x1f8] sm:$0xf]
  %v653 = vld [vmem:[%s1 + $0x1fc] sm:$0xf]
  %v654 = vld [vmem:[%s1 + $0x200] sm:$0xf]
  %v655 = vld [vmem:[%s1 + $0x204] sm:$0xf]
  %v656 = vld [vmem:[%s1 + $0x208] sm:$0xf]
  %v657 = vld [vmem:[%s1 + $0x20c] sm:$0xf]
  %v658 = vld [vmem:[%s1 + $0x210] sm:$0xf]
  %v659 = vld [vmem:[%s1 + $0x214] sm:$0xf]
  %v660 = vld [vmem:[%s1 + $0x218] sm:$0xf]
  %v661 = vld [vmem:[%s1 + $0x21c] sm:$0xf]
  %v662 = vld [vmem:[%s1 + $0x220] sm:$0xf]
  %v663 = vld [vmem:[%s1 + $0x224] sm:$0xf]
  %v664 = vld [vmem:[%s1 + $0x228] sm:$0xf]
  %v665 = vld [vmem:[%s1 + $0x22c] sm:$0xf]
  %v666 = vld [vmem:[%s1 + $0x230] sm:$0xf]
  %v667 = vld [vmem:[%s1 + $0x234] sm:$0xf]
  %v668 = vld [vmem:[%s1 + $0x238] sm:$0xf]
  %v669 = vld [vmem:[%s1 + $0x23c] sm:$0xf]
  %v670 = vld [vmem:[%s1 + $0x240] sm:$0xf]
  %v671 = vld [vmem:[%s1 + $0x244] sm:$0xf]
  %v672 = vld [vmem:[%s1 + $0x248] sm:$0xf]
  %v673 = vld [vmem:[%s1 + $0x24c] sm:$0xf]
  %v674 = vld [vmem:[%s1 + $0x250] sm:$0xf]
  %v675 = vld [vmem:[%s1 + $0x254] sm:$0xf]
  %v676 = vld [vmem:[%s1 + $0x258] sm:$0xf]
  %v677 = vld [vmem:[%s1 + $0x25c] sm:$0xf]
  %v678 = vld [vmem:[%s1 + $0x260] sm:$0xf]
  %v679 = vld [vmem:[%s1 + $0x264] sm:$0xf]
  %v680 = vld [vmem:[%s1 + $0x268] sm:$0xf]
  %v681 = vld [vmem:[%s1 + $0x26c] sm:$0xf]
  %v682 = vld [vmem:[%s1 + $0x270] sm:$0xf]
  %v683 = vld [vmem:[%s1 + $0x274] sm:$0xf]
  %v684 = vld [vmem:[%s1 + $0x278] sm:$0xf]
  %v685 = vld [vmem:[%s1 + $0x27c] sm:$0xf]
  %v686 = vld [vmem:[%s1 + $0x280] sm:$0xf]
  %v687 = vld [vmem:[%s1 + $0x284] sm:$0xf]
  %v688 = vld [vmem:[%s1 + $0x288] sm:$0xf]
  %v689 = vld [vmem:[%s1 + $0x28c] sm:$0xf]
  %v690 = vld [vmem:[%s1 + $0x290] sm:$0xf]
  %v691 = vld [vmem:[%s1 + $0x294] sm:$0xf]
  %v692 = vld [vmem:[%s1 + $0x298] sm:$0xf]
  %v693 = vld [vmem:[%s1 + $0x29c] sm:$0xf]
  %v694 = vld [vmem:[%s1 + $0x2a0] sm:$0xf]
  %v695 = vld [vmem:[%s1 + $0x2a4] sm:$0xf]
  %v696 = vld [vmem:[%s1 + $0x2a8] sm:$0xf]
  %v697 = vld [vmem:[%s1 + $0x2ac] sm:$0xf]
  %v698 = vld [vmem:[%s1 + $0x2b0] sm:$0xf]
  %v699 = vld [vmem:[%s1 + $0x2b4] sm:$0xf]
  %v700 = vld [vmem:[%s1 + $0x2b8] sm:$0xf]
  %v701 = vld [vmem:[%s1 + $0x2bc] sm:$0xf]
  %v702 = vld [vmem:[%s1 + $0x2c0] sm:$0xf]
  %v703 = vld [vmem:[%s1 + $0x2c4] sm:$0xf]
  %v704 = vld [vmem:[%s1 + $0x2c8] sm:$0xf]
  %v705 = vld [vmem:[%s1 + $0x2cc] sm:$0xf]
  %v706 = vld [vmem:[%s1 + $0x2d0] sm:$0xf]
  %v707 = vld [vmem:[%s1 + $0x2d4] sm:$0xf]
  %v708 = vld [vmem:[%s1 + $0x2d8] sm:$0xf]
  %v709 = vld [vmem:[%s1 + $0x2dc] sm:$0xf]
  %v710 = vld [vmem:[%s1 + $0x2e0] sm:$0xf]
  %v711 = vld [vmem:[%s1 + $0x2e4] sm:$0xf]
  %v712 = vld [vmem:[%s1 + $0x2e8] sm:$0xf]
  %v713 = vld [vmem:[%s1 + $0x2ec] sm:$0xf]
  %v714 = vld [vmem:[%s1 + $0x2f0] sm:$0xf]
  %v715 = vld [vmem:[%s1 + $0x2f4] sm:$0xf]
  %v716 = vld [vmem:[%s1 + $0x2f8] sm:$0xf]
  %v717 = vld [vmem:[%s1 + $0x2fc] sm:$0xf]
  %v718 = vld [vmem:[%s1 + $0x300] sm:$0xf]
  %v719 = vld [vmem:[%s1 + $0x304] sm:$0xf]
  %v720 = vld [vmem:[%s1 + $0x308] sm:$0xf]
  %v721 = vld [vmem:[%s1 + $0x30c] sm:$0xf]
  %v722 = vld [vmem:[%s1 + $0x310] sm:$0xf]
  %v723 = vld [vmem:[%s1 + $0x314] sm:$0xf]
  %v724 = vld [vmem:[%s1 + $0x318] sm:$0xf]
  %v725 = vld [vmem:[%s1 + $0x31c] sm:$0xf]
  %v726 = vld [vmem:[%s1 + $0x320] sm:$0xf]
  %v727 = vld [vmem:[%s1 + $0x324] sm:$0xf]
  %v728 = vld [vmem:[%s1 + $0x328] sm:$0xf]
  %v729 = vld [vmem:[%s1 + $0x32c] sm:$0xf]
  %v730 = vld [vmem:[%s1 + $0x330] sm:$0xf]
  %v731 = vld [vmem:[%s1 + $0x334] sm:$0xf]
  %v732 = vld [vmem:[%s1 + $0x338] sm:$0xf]
  %v733 = vld [vmem:[%s1 + $0x33c] sm:$0xf]
  %v734 = vld [vmem:[%s1 + $0x340] sm:$0xf]
  %v735 = vld [vmem:[%s1 + $0x344] sm:$0xf]
  %v736 = vld [vmem:[%s1 + $0x348] sm:$0xf]
  %v737 = vld [vmem:[%s1 + $0x34c] sm:$0xf]
  %v738 = vld [vmem:[%s1 + $0x350] sm:$0xf]
  %v739 = vld [vmem:[%s1 + $0x354] sm:$0xf]
  %v740 = vld [vmem:[%s1 + $0x358] sm:$0xf]
  %v741 = vld [vmem:[%s1 + $0x35c] sm:$0xf]
  %v742 = vld [vmem:[%s1 + $0x360] sm:$0xf]
  %v743 = vld [vmem:[%s1 + $0x364] sm:$0xf]
  %v744 = vld [vmem:[%s1 + $0x368] sm:$0xf]
  %v745 = vld [vmem:[%s1 + $0x36c] sm:$0xf]
  %v746 = vld [vmem:[%s1 + $0x370] sm:$0xf]
  %v747 = vld [vmem:[%s1 + $0x374] sm:$0xf]
  %v748 = vld [vmem:[%s1 + $0x378] sm:$0xf]
  %v749 = vld [vmem:[%s1 + $0x37c] sm:$0xf]
  %v750 = vld [vmem:[%s1 + $0x380] sm:$0xf]
  %v751 = vld [vmem:[%s1 + $0x384] sm:$0xf]
  %v752 = vld [vmem:[%s1 + $0x388] sm:$0xf]
  %v753 = vld [vmem:[%s1 + $0x38c] sm:$0xf]
  %v754 = vld [vmem:[%s1 + $0x390] sm:$0xf]
  %v755 = vld [vmem:[%s1 + $0x394] sm:$0xf]
  %v756 = vld [vmem:[%s1 + $0x398] sm:$0xf]
  %v757 = vld [vmem:[%s1 + $0x39c] sm:$0xf]
  %v758 = vld [vmem:[%s1 + $0x3a0] sm:$0xf]
  %v759 = vld [vmem:[%s1 + $0x3a4] sm:$0xf]
  %v760 = vld [vmem:[%s1 + $0x3a8] sm:$0xf]
  %v761 = vld [vmem:[%s1 + $0x3ac] sm:$0xf]
  %v762 = vld [vmem:[%s1 + $0x3b0] sm:$0xf]
  %v763 = vld [vmem:[%s1 + $0x3b4] sm:$0xf]
  %v764 = vld [vmem:[%s1 + $0x3b8] sm:$0xf]
  %v765 = vld [vmem:[%s1 + $0x3bc] sm:$0xf]
  %v766 = vld [vmem:[%s1 + $0x3c0] sm:$0xf]
  %v767 = vld [vmem:[%s1 + $0x3c4] sm:$0xf]
  %v768 = vld [vmem:[%s1 + $0x3c8] sm:$0xf]
  %v769 = vld [vmem:[%s1 + $0x3cc] sm:$0xf]
  %v770 = vld [vmem:[%s1 + $0x3d0] sm:$0xf]
  %v771 = vld [vmem:[%s1 + $0x3d4] sm:$0xf]
  %v772 = vld [vmem:[%s1 + $0x3d8] sm:$0xf]
  %v773 = vld [vmem:[%s1 + $0x3dc] sm:$0xf]
  %v774 = vld [vmem:[%s1 + $0x3e0] sm:$0xf]
  %v775 = vld [vmem:[%s1 + $0x3e4] sm:$0xf]
  %v776 = vld [vmem:[%s1 + $0x3e8] sm:$0xf]
  %v777 = vld [vmem:[%s1 + $0x3ec] sm:$0xf]
  %v778 = vld [vmem:[%s1 + $0x3f0] sm:$0xf]
  %v779 = vld [vmem:[%s1 + $0x3f4] sm:$0xf]
  %v780 = vld [vmem:[%s1 + $0x3f8] sm:$0xf]
  %v781 = vld [vmem:[%s1 + $0x3fc] sm:$0xf]
  %v782 = vld [vmem:[%s2] sm:$0x1]
  %v784 = vperm.slane %v782, 0
  %v1298 = vunpack.c.l.b16 %v14
  %v1299 = vunpack.c.h.b16 %v14
  %v1300 = vunpack.c.l.b16 %v15
  %v1301 = vunpack.c.h.b16 %v15
  %v1302 = vunpack.c.l.b16 %v16
  %v1303 = vunpack.c.h.b16 %v16
  %v1304 = vunpack.c.l.b16 %v17
  %v1305 = vunpack.c.h.b16 %v17
  %v1306 = vunpack.c.l.b16 %v18
  %v1307 = vunpack.c.h.b16 %v18
  %v1308 = vunpack.c.l.b16 %v19
  %v1309 = vunpack.c.h.b16 %v19
  %v1310 = vunpack.c.l.b16 %v20
  %v1311 = vunpack.c.h.b16 %v20
  %v1312 = vunpack.c.l.b16 %v21
  %v1313 = vunpack.c.h.b16 %v21
  %v1314 = vunpack.c.l.b16 %v22
  %v1315 = vunpack.c.h.b16 %v22
  %v1316 = vunpack.c.l.b16 %v23
  %v1317 = vunpack.c.h.b16 %v23
  %v1318 = vunpack.c.l.b16 %v24
  %v1319 = vunpack.c.h.b16 %v24
  %v1320 = vunpack.c.l.b16 %v25
  %v1321 = vunpack.c.h.b16 %v25
  %v1322 = vunpack.c.l.b16 %v26
  %v1323 = vunpack.c.h.b16 %v26
  %v1324 = vunpack.c.l.b16 %v27
  %v1325 = vunpack.c.h.b16 %v27
  %v1326 = vunpack.c.l.b16 %v28
  %v1327 = vunpack.c.h.b16 %v28
  %v1328 = vunpack.c.l.b16 %v29
  %v1329 = vunpack.c.h.b16 %v29
  %v1330 = vunpack.c.l.b16 %v30
  %v1331 = vunpack.c.h.b16 %v30
  %v1332 = vunpack.c.l.b16 %v31
  %v1333 = vunpack.c.h.b16 %v31
  %v1334 = vunpack.c.l.b16 %v32
  %v1335 = vunpack.c.h.b16 %v32
  %v1336 = vunpack.c.l.b16 %v33
  %v1337 = vunpack.c.h.b16 %v33
  %v1338 = vunpack.c.l.b16 %v34
  %v1339 = vunpack.c.h.b16 %v34
  %v1340 = vunpack.c.l.b16 %v35
  %v1341 = vunpack.c.h.b16 %v35
  %v1342 = vunpack.c.l.b16 %v36
  %v1343 = vunpack.c.h.b16 %v36
  %v1344 = vunpack.c.l.b16 %v37
  %v1345 = vunpack.c.h.b16 %v37
  %v1346 = vunpack.c.l.b16 %v38
  %v1347 = vunpack.c.h.b16 %v38
  %v1348 = vunpack.c.l.b16 %v39
  %v1349 = vunpack.c.h.b16 %v39
  %v1350 = vunpack.c.l.b16 %v40
  %v1351 = vunpack.c.h.b16 %v40
  %v1352 = vunpack.c.l.b16 %v41
  %v1353 = vunpack.c.h.b16 %v41
  %v1354 = vunpack.c.l.b16 %v42
  %v1355 = vunpack.c.h.b16 %v42
  %v1356 = vunpack.c.l.b16 %v43
  %v1357 = vunpack.c.h.b16 %v43
  %v1358 = vunpack.c.l.b16 %v44
  %v1359 = vunpack.c.h.b16 %v44
  %v1360 = vunpack.c.l.b16 %v45
  %v1361 = vunpack.c.h.b16 %v45
  %v1362 = vunpack.c.l.b16 %v46
  %v1363 = vunpack.c.h.b16 %v46
  %v1364 = vunpack.c.l.b16 %v47
  %v1365 = vunpack.c.h.b16 %v47
  %v1366 = vunpack.c.l.b16 %v48
  %v1367 = vunpack.c.h.b16 %v48
  %v1368 = vunpack.c.l.b16 %v49
  %v1369 = vunpack.c.h.b16 %v49
  %v1370 = vunpack.c.l.b16 %v50
  %v1371 = vunpack.c.h.b16 %v50
  %v1372 = vunpack.c.l.b16 %v51
  %v1373 = vunpack.c.h.b16 %v51
  %v1374 = vunpack.c.l.b16 %v52
  %v1375 = vunpack.c.h.b16 %v52
  %v1376 = vunpack.c.l.b16 %v53
  %v1377 = vunpack.c.h.b16 %v53
  %v1378 = vunpack.c.l.b16 %v54
  %v1379 = vunpack.c.h.b16 %v54
  %v1380 = vunpack.c.l.b16 %v55
  %v1381 = vunpack.c.h.b16 %v55
  %v1382 = vunpack.c.l.b16 %v56
  %v1383 = vunpack.c.h.b16 %v56
  %v1384 = vunpack.c.l.b16 %v57
  %v1385 = vunpack.c.h.b16 %v57
  %v1386 = vunpack.c.l.b16 %v58
  %v1387 = vunpack.c.h.b16 %v58
  %v1388 = vunpack.c.l.b16 %v59
  %v1389 = vunpack.c.h.b16 %v59
  %v1390 = vunpack.c.l.b16 %v60
  %v1391 = vunpack.c.h.b16 %v60
  %v1392 = vunpack.c.l.b16 %v61
  %v1393 = vunpack.c.h.b16 %v61
  %v1394 = vunpack.c.l.b16 %v62
  %v1395 = vunpack.c.h.b16 %v62
  %v1396 = vunpack.c.l.b16 %v63
  %v1397 = vunpack.c.h.b16 %v63
  %v1398 = vunpack.c.l.b16 %v64
  %v1399 = vunpack.c.h.b16 %v64
  %v1400 = vunpack.c.l.b16 %v65
  %v1401 = vunpack.c.h.b16 %v65
  %v1402 = vunpack.c.l.b16 %v66
  %v1403 = vunpack.c.h.b16 %v66
  %v1404 = vunpack.c.l.b16 %v67
  %v1405 = vunpack.c.h.b16 %v67
  %v1406 = vunpack.c.l.b16 %v68
  %v1407 = vunpack.c.h.b16 %v68
  %v1408 = vunpack.c.l.b16 %v69
  %v1409 = vunpack.c.h.b16 %v69
  %v1410 = vunpack.c.l.b16 %v70
  %v1411 = vunpack.c.h.b16 %v70
  %v1412 = vunpack.c.l.b16 %v71
  %v1413 = vunpack.c.h.b16 %v71
  %v1414 = vunpack.c.l.b16 %v72
  %v1415 = vunpack.c.h.b16 %v72
  %v1416 = vunpack.c.l.b16 %v73
  %v1417 = vunpack.c.h.b16 %v73
  %v1418 = vunpack.c.l.b16 %v74
  %v1419 = vunpack.c.h.b16 %v74
  %v1420 = vunpack.c.l.b16 %v75
  %v1421 = vunpack.c.h.b16 %v75
  %v1422 = vunpack.c.l.b16 %v76
  %v1423 = vunpack.c.h.b16 %v76
  %v1424 = vunpack.c.l.b16 %v77
  %v1425 = vunpack.c.h.b16 %v77
  %v1426 = vunpack.c.l.b16 %v78
  %v1427 = vunpack.c.h.b16 %v78
  %v1428 = vunpack.c.l.b16 %v79
  %v1429 = vunpack.c.h.b16 %v79
  %v1430 = vunpack.c.l.b16 %v80
  %v1431 = vunpack.c.h.b16 %v80
  %v1432 = vunpack.c.l.b16 %v81
  %v1433 = vunpack.c.h.b16 %v81
  %v1434 = vunpack.c.l.b16 %v82
  %v1435 = vunpack.c.h.b16 %v82
  %v1436 = vunpack.c.l.b16 %v83
  %v1437 = vunpack.c.h.b16 %v83
  %v1438 = vunpack.c.l.b16 %v84
  %v1439 = vunpack.c.h.b16 %v84
  %v1440 = vunpack.c.l.b16 %v85
  %v1441 = vunpack.c.h.b16 %v85
  %v1442 = vunpack.c.l.b16 %v86
  %v1443 = vunpack.c.h.b16 %v86
  %v1444 = vunpack.c.l.b16 %v87
  %v1445 = vunpack.c.h.b16 %v87
  %v1446 = vunpack.c.l.b16 %v88
  %v1447 = vunpack.c.h.b16 %v88
  %v1448 = vunpack.c.l.b16 %v89
  %v1449 = vunpack.c.h.b16 %v89
  %v1450 = vunpack.c.l.b16 %v90
  %v1451 = vunpack.c.h.b16 %v90
  %v1452 = vunpack.c.l.b16 %v91
  %v1453 = vunpack.c.h.b16 %v91
  %v1454 = vunpack.c.l.b16 %v92
  %v1455 = vunpack.c.h.b16 %v92
  %v1456 = vunpack.c.l.b16 %v93
  %v1457 = vunpack.c.h.b16 %v93
  %v1458 = vunpack.c.l.b16 %v94
  %v1459 = vunpack.c.h.b16 %v94
  %v1460 = vunpack.c.l.b16 %v95
  %v1461 = vunpack.c.h.b16 %v95
  %v1462 = vunpack.c.l.b16 %v96
  %v1463 = vunpack.c.h.b16 %v96
  %v1464 = vunpack.c.l.b16 %v97
  %v1465 = vunpack.c.h.b16 %v97
  %v1466 = vunpack.c.l.b16 %v98
  %v1467 = vunpack.c.h.b16 %v98
  %v1468 = vunpack.c.l.b16 %v99
  %v1469 = vunpack.c.h.b16 %v99
  %v1470 = vunpack.c.l.b16 %v100
  %v1471 = vunpack.c.h.b16 %v100
  %v1472 = vunpack.c.l.b16 %v101
  %v1473 = vunpack.c.h.b16 %v101
  %v1474 = vunpack.c.l.b16 %v102
  %v1475 = vunpack.c.h.b16 %v102
  %v1476 = vunpack.c.l.b16 %v103
  %v1477 = vunpack.c.h.b16 %v103
  %v1478 = vunpack.c.l.b16 %v104
  %v1479 = vunpack.c.h.b16 %v104
  %v1480 = vunpack.c.l.b16 %v105
  %v1481 = vunpack.c.h.b16 %v105
  %v1482 = vunpack.c.l.b16 %v106
  %v1483 = vunpack.c.h.b16 %v106
  %v1484 = vunpack.c.l.b16 %v107
  %v1485 = vunpack.c.h.b16 %v107
  %v1486 = vunpack.c.l.b16 %v108
  %v1487 = vunpack.c.h.b16 %v108
  %v1488 = vunpack.c.l.b16 %v109
  %v1489 = vunpack.c.h.b16 %v109
  %v1490 = vunpack.c.l.b16 %v110
  %v1491 = vunpack.c.h.b16 %v110
  %v1492 = vunpack.c.l.b16 %v111
  %v1493 = vunpack.c.h.b16 %v111
  %v1494 = vunpack.c.l.b16 %v112
  %v1495 = vunpack.c.h.b16 %v112
  %v1496 = vunpack.c.l.b16 %v113
  %v1497 = vunpack.c.h.b16 %v113
  %v1498 = vunpack.c.l.b16 %v114
  %v1499 = vunpack.c.h.b16 %v114
  %v1500 = vunpack.c.l.b16 %v115
  %v1501 = vunpack.c.h.b16 %v115
  %v1502 = vunpack.c.l.b16 %v116
  %v1503 = vunpack.c.h.b16 %v116
  %v1504 = vunpack.c.l.b16 %v117
  %v1505 = vunpack.c.h.b16 %v117
  %v1506 = vunpack.c.l.b16 %v118
  %v1507 = vunpack.c.h.b16 %v118
  %v1508 = vunpack.c.l.b16 %v119
  %v1509 = vunpack.c.h.b16 %v119
  %v1510 = vunpack.c.l.b16 %v120
  %v1511 = vunpack.c.h.b16 %v120
  %v1512 = vunpack.c.l.b16 %v121
  %v1513 = vunpack.c.h.b16 %v121
  %v1514 = vunpack.c.l.b16 %v122
  %v1515 = vunpack.c.h.b16 %v122
  %v1516 = vunpack.c.l.b16 %v123
  %v1517 = vunpack.c.h.b16 %v123
  %v1518 = vunpack.c.l.b16 %v124
  %v1519 = vunpack.c.h.b16 %v124
  %v1520 = vunpack.c.l.b16 %v125
  %v1521 = vunpack.c.h.b16 %v125
  %v1522 = vunpack.c.l.b16 %v126
  %v1523 = vunpack.c.h.b16 %v126
  %v1524 = vunpack.c.l.b16 %v127
  %v1525 = vunpack.c.h.b16 %v127
  %v1526 = vunpack.c.l.b16 %v128
  %v1527 = vunpack.c.h.b16 %v128
  %v1528 = vunpack.c.l.b16 %v129
  %v1529 = vunpack.c.h.b16 %v129
  %v1530 = vunpack.c.l.b16 %v130
  %v1531 = vunpack.c.h.b16 %v130
  %v1532 = vunpack.c.l.b16 %v131
  %v1533 = vunpack.c.h.b16 %v131
  %v1534 = vunpack.c.l.b16 %v132
  %v1535 = vunpack.c.h.b16 %v132
  %v1536 = vunpack.c.l.b16 %v133
  %v1537 = vunpack.c.h.b16 %v133
  %v1538 = vunpack.c.l.b16 %v134
  %v1539 = vunpack.c.h.b16 %v134
  %v1540 = vunpack.c.l.b16 %v135
  %v1541 = vunpack.c.h.b16 %v135
  %v1542 = vunpack.c.l.b16 %v136
  %v1543 = vunpack.c.h.b16 %v136
  %v1544 = vunpack.c.l.b16 %v137
  %v1545 = vunpack.c.h.b16 %v137
  %v1546 = vunpack.c.l.b16 %v138
  %v1547 = vunpack.c.h.b16 %v138
  %v1548 = vunpack.c.l.b16 %v139
  %v1549 = vunpack.c.h.b16 %v139
  %v1550 = vunpack.c.l.b16 %v140
  %v1551 = vunpack.c.h.b16 %v140
  %v1552 = vunpack.c.l.b16 %v141
  %v1553 = vunpack.c.h.b16 %v141
  %v1554 = vunpack.c.l.b16 %v142
  %v1555 = vunpack.c.h.b16 %v142
  %v1556 = vunpack.c.l.b16 %v143
  %v1557 = vunpack.c.h.b16 %v143
  %v1558 = vunpack.c.l.b16 %v144
  %v1559 = vunpack.c.h.b16 %v144
  %v1560 = vunpack.c.l.b16 %v145
  %v1561 = vunpack.c.h.b16 %v145
  %v1562 = vunpack.c.l.b16 %v146
  %v1563 = vunpack.c.h.b16 %v146
  %v1564 = vunpack.c.l.b16 %v147
  %v1565 = vunpack.c.h.b16 %v147
  %v1566 = vunpack.c.l.b16 %v148
  %v1567 = vunpack.c.h.b16 %v148
  %v1568 = vunpack.c.l.b16 %v149
  %v1569 = vunpack.c.h.b16 %v149
  %v1570 = vunpack.c.l.b16 %v150
  %v1571 = vunpack.c.h.b16 %v150
  %v1572 = vunpack.c.l.b16 %v151
  %v1573 = vunpack.c.h.b16 %v151
  %v1574 = vunpack.c.l.b16 %v152
  %v1575 = vunpack.c.h.b16 %v152
  %v1576 = vunpack.c.l.b16 %v153
  %v1577 = vunpack.c.h.b16 %v153
  %v1578 = vunpack.c.l.b16 %v154
  %v1579 = vunpack.c.h.b16 %v154
  %v1580 = vunpack.c.l.b16 %v155
  %v1581 = vunpack.c.h.b16 %v155
  %v1582 = vunpack.c.l.b16 %v156
  %v1583 = vunpack.c.h.b16 %v156
  %v1584 = vunpack.c.l.b16 %v157
  %v1585 = vunpack.c.h.b16 %v157
  %v1586 = vunpack.c.l.b16 %v158
  %v1587 = vunpack.c.h.b16 %v158
  %v1588 = vunpack.c.l.b16 %v159
  %v1589 = vunpack.c.h.b16 %v159
  %v1590 = vunpack.c.l.b16 %v160
  %v1591 = vunpack.c.h.b16 %v160
  %v1592 = vunpack.c.l.b16 %v161
  %v1593 = vunpack.c.h.b16 %v161
  %v1594 = vunpack.c.l.b16 %v162
  %v1595 = vunpack.c.h.b16 %v162
  %v1596 = vunpack.c.l.b16 %v163
  %v1597 = vunpack.c.h.b16 %v163
  %v1598 = vunpack.c.l.b16 %v164
  %v1599 = vunpack.c.h.b16 %v164
  %v1600 = vunpack.c.l.b16 %v165
  %v1601 = vunpack.c.h.b16 %v165
  %v1602 = vunpack.c.l.b16 %v166
  %v1603 = vunpack.c.h.b16 %v166
  %v1604 = vunpack.c.l.b16 %v167
  %v1605 = vunpack.c.h.b16 %v167
  %v1606 = vunpack.c.l.b16 %v168
  %v1607 = vunpack.c.h.b16 %v168
  %v1608 = vunpack.c.l.b16 %v169
  %v1609 = vunpack.c.h.b16 %v169
  %v1610 = vunpack.c.l.b16 %v170
  %v1611 = vunpack.c.h.b16 %v170
  %v1612 = vunpack.c.l.b16 %v171
  %v1613 = vunpack.c.h.b16 %v171
  %v1614 = vunpack.c.l.b16 %v172
  %v1615 = vunpack.c.h.b16 %v172
  %v1616 = vunpack.c.l.b16 %v173
  %v1617 = vunpack.c.h.b16 %v173
  %v1618 = vunpack.c.l.b16 %v174
  %v1619 = vunpack.c.h.b16 %v174
  %v1620 = vunpack.c.l.b16 %v175
  %v1621 = vunpack.c.h.b16 %v175
  %v1622 = vunpack.c.l.b16 %v176
  %v1623 = vunpack.c.h.b16 %v176
  %v1624 = vunpack.c.l.b16 %v177
  %v1625 = vunpack.c.h.b16 %v177
  %v1626 = vunpack.c.l.b16 %v178
  %v1627 = vunpack.c.h.b16 %v178
  %v1628 = vunpack.c.l.b16 %v179
  %v1629 = vunpack.c.h.b16 %v179
  %v1630 = vunpack.c.l.b16 %v180
  %v1631 = vunpack.c.h.b16 %v180
  %v1632 = vunpack.c.l.b16 %v181
  %v1633 = vunpack.c.h.b16 %v181
  %v1634 = vunpack.c.l.b16 %v182
  %v1635 = vunpack.c.h.b16 %v182
  %v1636 = vunpack.c.l.b16 %v183
  %v1637 = vunpack.c.h.b16 %v183
  %v1638 = vunpack.c.l.b16 %v184
  %v1639 = vunpack.c.h.b16 %v184
  %v1640 = vunpack.c.l.b16 %v185
  %v1641 = vunpack.c.h.b16 %v185
  %v1642 = vunpack.c.l.b16 %v186
  %v1643 = vunpack.c.h.b16 %v186
  %v1644 = vunpack.c.l.b16 %v187
  %v1645 = vunpack.c.h.b16 %v187
  %v1646 = vunpack.c.l.b16 %v188
  %v1647 = vunpack.c.h.b16 %v188
  %v1648 = vunpack.c.l.b16 %v189
  %v1649 = vunpack.c.h.b16 %v189
  %v1650 = vunpack.c.l.b16 %v190
  %v1651 = vunpack.c.h.b16 %v190
  %v1652 = vunpack.c.l.b16 %v191
  %v1653 = vunpack.c.h.b16 %v191
  %v1654 = vunpack.c.l.b16 %v192
  %v1655 = vunpack.c.h.b16 %v192
  %v1656 = vunpack.c.l.b16 %v193
  %v1657 = vunpack.c.h.b16 %v193
  %v1658 = vunpack.c.l.b16 %v194
  %v1659 = vunpack.c.h.b16 %v194
  %v1660 = vunpack.c.l.b16 %v195
  %v1661 = vunpack.c.h.b16 %v195
  %v1662 = vunpack.c.l.b16 %v196
  %v1663 = vunpack.c.h.b16 %v196
  %v1664 = vunpack.c.l.b16 %v197
  %v1665 = vunpack.c.h.b16 %v197
  %v1666 = vunpack.c.l.b16 %v198
  %v1667 = vunpack.c.h.b16 %v198
  %v1668 = vunpack.c.l.b16 %v199
  %v1669 = vunpack.c.h.b16 %v199
  %v1670 = vunpack.c.l.b16 %v200
  %v1671 = vunpack.c.h.b16 %v200
  %v1672 = vunpack.c.l.b16 %v201
  %v1673 = vunpack.c.h.b16 %v201
  %v1674 = vunpack.c.l.b16 %v202
  %v1675 = vunpack.c.h.b16 %v202
  %v1676 = vunpack.c.l.b16 %v203
  %v1677 = vunpack.c.h.b16 %v203
  %v1678 = vunpack.c.l.b16 %v204
  %v1679 = vunpack.c.h.b16 %v204
  %v1680 = vunpack.c.l.b16 %v205
  %v1681 = vunpack.c.h.b16 %v205
  %v1682 = vunpack.c.l.b16 %v206
  %v1683 = vunpack.c.h.b16 %v206
  %v1684 = vunpack.c.l.b16 %v207
  %v1685 = vunpack.c.h.b16 %v207
  %v1686 = vunpack.c.l.b16 %v208
  %v1687 = vunpack.c.h.b16 %v208
  %v1688 = vunpack.c.l.b16 %v209
  %v1689 = vunpack.c.h.b16 %v209
  %v1690 = vunpack.c.l.b16 %v210
  %v1691 = vunpack.c.h.b16 %v210
  %v1692 = vunpack.c.l.b16 %v211
  %v1693 = vunpack.c.h.b16 %v211
  %v1694 = vunpack.c.l.b16 %v212
  %v1695 = vunpack.c.h.b16 %v212
  %v1696 = vunpack.c.l.b16 %v213
  %v1697 = vunpack.c.h.b16 %v213
  %v1698 = vunpack.c.l.b16 %v214
  %v1699 = vunpack.c.h.b16 %v214
  %v1700 = vunpack.c.l.b16 %v215
  %v1701 = vunpack.c.h.b16 %v215
  %v1702 = vunpack.c.l.b16 %v216
  %v1703 = vunpack.c.h.b16 %v216
  %v1704 = vunpack.c.l.b16 %v217
  %v1705 = vunpack.c.h.b16 %v217
  %v1706 = vunpack.c.l.b16 %v218
  %v1707 = vunpack.c.h.b16 %v218
  %v1708 = vunpack.c.l.b16 %v219
  %v1709 = vunpack.c.h.b16 %v219
  %v1710 = vunpack.c.l.b16 %v220
  %v1711 = vunpack.c.h.b16 %v220
  %v1712 = vunpack.c.l.b16 %v221
  %v1713 = vunpack.c.h.b16 %v221
  %v1714 = vunpack.c.l.b16 %v222
  %v1715 = vunpack.c.h.b16 %v222
  %v1716 = vunpack.c.l.b16 %v223
  %v1717 = vunpack.c.h.b16 %v223
  %v1718 = vunpack.c.l.b16 %v224
  %v1719 = vunpack.c.h.b16 %v224
  %v1720 = vunpack.c.l.b16 %v225
  %v1721 = vunpack.c.h.b16 %v225
  %v1722 = vunpack.c.l.b16 %v226
  %v1723 = vunpack.c.h.b16 %v226
  %v1724 = vunpack.c.l.b16 %v227
  %v1725 = vunpack.c.h.b16 %v227
  %v1726 = vunpack.c.l.b16 %v228
  %v1727 = vunpack.c.h.b16 %v228
  %v1728 = vunpack.c.l.b16 %v229
  %v1729 = vunpack.c.h.b16 %v229
  %v1730 = vunpack.c.l.b16 %v230
  %v1731 = vunpack.c.h.b16 %v230
  %v1732 = vunpack.c.l.b16 %v231
  %v1733 = vunpack.c.h.b16 %v231
  %v1734 = vunpack.c.l.b16 %v232
  %v1735 = vunpack.c.h.b16 %v232
  %v1736 = vunpack.c.l.b16 %v233
  %v1737 = vunpack.c.h.b16 %v233
  %v1738 = vunpack.c.l.b16 %v234
  %v1739 = vunpack.c.h.b16 %v234
  %v1740 = vunpack.c.l.b16 %v235
  %v1741 = vunpack.c.h.b16 %v235
  %v1742 = vunpack.c.l.b16 %v236
  %v1743 = vunpack.c.h.b16 %v236
  %v1744 = vunpack.c.l.b16 %v237
  %v1745 = vunpack.c.h.b16 %v237
  %v1746 = vunpack.c.l.b16 %v238
  %v1747 = vunpack.c.h.b16 %v238
  %v1748 = vunpack.c.l.b16 %v239
  %v1749 = vunpack.c.h.b16 %v239
  %v1750 = vunpack.c.l.b16 %v240
  %v1751 = vunpack.c.h.b16 %v240
  %v1752 = vunpack.c.l.b16 %v241
  %v1753 = vunpack.c.h.b16 %v241
  %v1754 = vunpack.c.l.b16 %v242
  %v1755 = vunpack.c.h.b16 %v242
  %v1756 = vunpack.c.l.b16 %v243
  %v1757 = vunpack.c.h.b16 %v243
  %v1758 = vunpack.c.l.b16 %v244
  %v1759 = vunpack.c.h.b16 %v244
  %v1760 = vunpack.c.l.b16 %v245
  %v1761 = vunpack.c.h.b16 %v245
  %v1762 = vunpack.c.l.b16 %v246
  %v1763 = vunpack.c.h.b16 %v246
  %v1764 = vunpack.c.l.b16 %v247
  %v1765 = vunpack.c.h.b16 %v247
  %v1766 = vunpack.c.l.b16 %v248
  %v1767 = vunpack.c.h.b16 %v248
  %v1768 = vunpack.c.l.b16 %v249
  %v1769 = vunpack.c.h.b16 %v249
  %v1770 = vunpack.c.l.b16 %v250
  %v1771 = vunpack.c.h.b16 %v250
  %v1772 = vunpack.c.l.b16 %v251
  %v1773 = vunpack.c.h.b16 %v251
  %v1774 = vunpack.c.l.b16 %v252
  %v1775 = vunpack.c.h.b16 %v252
  %v1776 = vunpack.c.l.b16 %v253
  %v1777 = vunpack.c.h.b16 %v253
  %v1778 = vunpack.c.l.b16 %v254
  %v1779 = vunpack.c.h.b16 %v254
  %v1780 = vunpack.c.l.b16 %v255
  %v1781 = vunpack.c.h.b16 %v255
  %v1782 = vunpack.c.l.b16 %v256
  %v1783 = vunpack.c.h.b16 %v256
  %v1784 = vunpack.c.l.b16 %v257
  %v1785 = vunpack.c.h.b16 %v257
  %v1786 = vunpack.c.l.b16 %v258
  %v1787 = vunpack.c.h.b16 %v258
  %v1788 = vunpack.c.l.b16 %v259
  %v1789 = vunpack.c.h.b16 %v259
  %v1790 = vunpack.c.l.b16 %v260
  %v1791 = vunpack.c.h.b16 %v260
  %v1792 = vunpack.c.l.b16 %v261
  %v1793 = vunpack.c.h.b16 %v261
  %v1794 = vunpack.c.l.b16 %v262
  %v1795 = vunpack.c.h.b16 %v262
  %v1796 = vunpack.c.l.b16 %v263
  %v1797 = vunpack.c.h.b16 %v263
  %v1798 = vunpack.c.l.b16 %v264
  %v1799 = vunpack.c.h.b16 %v264
  %v1800 = vunpack.c.l.b16 %v265
  %v1801 = vunpack.c.h.b16 %v265
  %v1802 = vunpack.c.l.b16 %v266
  %v1803 = vunpack.c.h.b16 %v266
  %v1804 = vunpack.c.l.b16 %v267
  %v1805 = vunpack.c.h.b16 %v267
  %v1806 = vunpack.c.l.b16 %v268
  %v1807 = vunpack.c.h.b16 %v268
  %v1808 = vunpack.c.l.b16 %v269
  %v1809 = vunpack.c.h.b16 %v269
  %v1810 = vunpack.c.l.b16 %v270
  %v1811 = vunpack.c.h.b16 %v270
  %v1812 = vunpack.c.l.b16 %v271
  %v1813 = vunpack.c.h.b16 %v271
  %v1814 = vunpack.c.l.b16 %v272
  %v1815 = vunpack.c.h.b16 %v272
  %v1816 = vunpack.c.l.b16 %v273
  %v1817 = vunpack.c.h.b16 %v273
  %v1818 = vunpack.c.l.b16 %v274
  %v1819 = vunpack.c.h.b16 %v274
  %v1820 = vunpack.c.l.b16 %v275
  %v1821 = vunpack.c.h.b16 %v275
  %v1822 = vunpack.c.l.b16 %v276
  %v1823 = vunpack.c.h.b16 %v276
  %v1824 = vunpack.c.l.b16 %v277
  %v1825 = vunpack.c.h.b16 %v277
  %v1826 = vunpack.c.l.b16 %v278
  %v1827 = vunpack.c.h.b16 %v278
  %v1828 = vunpack.c.l.b16 %v279
  %v1829 = vunpack.c.h.b16 %v279
  %v1830 = vunpack.c.l.b16 %v280
  %v1831 = vunpack.c.h.b16 %v280
  %v1832 = vunpack.c.l.b16 %v281
  %v1833 = vunpack.c.h.b16 %v281
  %v1834 = vunpack.c.l.b16 %v282
  %v1835 = vunpack.c.h.b16 %v282
  %v1836 = vunpack.c.l.b16 %v283
  %v1837 = vunpack.c.h.b16 %v283
  %v1838 = vunpack.c.l.b16 %v284
  %v1839 = vunpack.c.h.b16 %v284
  %v1840 = vunpack.c.l.b16 %v285
  %v1841 = vunpack.c.h.b16 %v285
  %v1842 = vunpack.c.l.b16 %v286
  %v1843 = vunpack.c.h.b16 %v286
  %v1844 = vunpack.c.l.b16 %v287
  %v1845 = vunpack.c.h.b16 %v287
  %v1846 = vunpack.c.l.b16 %v288
  %v1847 = vunpack.c.h.b16 %v288
  %v1848 = vunpack.c.l.b16 %v289
  %v1849 = vunpack.c.h.b16 %v289
  %v1850 = vunpack.c.l.b16 %v290
  %v1851 = vunpack.c.h.b16 %v290
  %v1852 = vunpack.c.l.b16 %v291
  %v1853 = vunpack.c.h.b16 %v291
  %v1854 = vunpack.c.l.b16 %v292
  %v1855 = vunpack.c.h.b16 %v292
  %v1856 = vunpack.c.l.b16 %v293
  %v1857 = vunpack.c.h.b16 %v293
  %v1858 = vunpack.c.l.b16 %v294
  %v1859 = vunpack.c.h.b16 %v294
  %v1860 = vunpack.c.l.b16 %v295
  %v1861 = vunpack.c.h.b16 %v295
  %v1862 = vunpack.c.l.b16 %v296
  %v1863 = vunpack.c.h.b16 %v296
  %v1864 = vunpack.c.l.b16 %v297
  %v1865 = vunpack.c.h.b16 %v297
  %v1866 = vunpack.c.l.b16 %v298
  %v1867 = vunpack.c.h.b16 %v298
  %v1868 = vunpack.c.l.b16 %v299
  %v1869 = vunpack.c.h.b16 %v299
  %v1870 = vunpack.c.l.b16 %v300
  %v1871 = vunpack.c.h.b16 %v300
  %v1872 = vunpack.c.l.b16 %v301
  %v1873 = vunpack.c.h.b16 %v301
  %v1874 = vunpack.c.l.b16 %v302
  %v1875 = vunpack.c.h.b16 %v302
  %v1876 = vunpack.c.l.b16 %v303
  %v1877 = vunpack.c.h.b16 %v303
  %v1878 = vunpack.c.l.b16 %v304
  %v1879 = vunpack.c.h.b16 %v304
  %v1880 = vunpack.c.l.b16 %v305
  %v1881 = vunpack.c.h.b16 %v305
  %v1882 = vunpack.c.l.b16 %v306
  %v1883 = vunpack.c.h.b16 %v306
  %v1884 = vunpack.c.l.b16 %v307
  %v1885 = vunpack.c.h.b16 %v307
  %v1886 = vunpack.c.l.b16 %v308
  %v1887 = vunpack.c.h.b16 %v308
  %v1888 = vunpack.c.l.b16 %v309
  %v1889 = vunpack.c.h.b16 %v309
  %v1890 = vunpack.c.l.b16 %v310
  %v1891 = vunpack.c.h.b16 %v310
  %v1892 = vunpack.c.l.b16 %v311
  %v1893 = vunpack.c.h.b16 %v311
  %v1894 = vunpack.c.l.b16 %v312
  %v1895 = vunpack.c.h.b16 %v312
  %v1896 = vunpack.c.l.b16 %v313
  %v1897 = vunpack.c.h.b16 %v313
  %v1898 = vunpack.c.l.b16 %v314
  %v1899 = vunpack.c.h.b16 %v314
  %v1900 = vunpack.c.l.b16 %v315
  %v1901 = vunpack.c.h.b16 %v315
  %v1902 = vunpack.c.l.b16 %v316
  %v1903 = vunpack.c.h.b16 %v316
  %v1904 = vunpack.c.l.b16 %v317
  %v1905 = vunpack.c.h.b16 %v317
  %v1906 = vunpack.c.l.b16 %v318
  %v1907 = vunpack.c.h.b16 %v318
  %v1908 = vunpack.c.l.b16 %v319
  %v1909 = vunpack.c.h.b16 %v319
  %v1910 = vunpack.c.l.b16 %v320
  %v1911 = vunpack.c.h.b16 %v320
  %v1912 = vunpack.c.l.b16 %v321
  %v1913 = vunpack.c.h.b16 %v321
  %v1914 = vunpack.c.l.b16 %v322
  %v1915 = vunpack.c.h.b16 %v322
  %v1916 = vunpack.c.l.b16 %v323
  %v1917 = vunpack.c.h.b16 %v323
  %v1918 = vunpack.c.l.b16 %v324
  %v1919 = vunpack.c.h.b16 %v324
  %v1920 = vunpack.c.l.b16 %v325
  %v1921 = vunpack.c.h.b16 %v325
  %v1922 = vunpack.c.l.b16 %v326
  %v1923 = vunpack.c.h.b16 %v326
  %v1924 = vunpack.c.l.b16 %v327
  %v1925 = vunpack.c.h.b16 %v327
  %v1926 = vunpack.c.l.b16 %v328
  %v1927 = vunpack.c.h.b16 %v328
  %v1928 = vunpack.c.l.b16 %v329
  %v1929 = vunpack.c.h.b16 %v329
  %v1930 = vunpack.c.l.b16 %v330
  %v1931 = vunpack.c.h.b16 %v330
  %v1932 = vunpack.c.l.b16 %v331
  %v1933 = vunpack.c.h.b16 %v331
  %v1934 = vunpack.c.l.b16 %v332
  %v1935 = vunpack.c.h.b16 %v332
  %v1936 = vunpack.c.l.b16 %v333
  %v1937 = vunpack.c.h.b16 %v333
  %v1938 = vunpack.c.l.b16 %v334
  %v1939 = vunpack.c.h.b16 %v334
  %v1940 = vunpack.c.l.b16 %v335
  %v1941 = vunpack.c.h.b16 %v335
  %v1942 = vunpack.c.l.b16 %v336
  %v1943 = vunpack.c.h.b16 %v336
  %v1944 = vunpack.c.l.b16 %v337
  %v1945 = vunpack.c.h.b16 %v337
  %v1946 = vunpack.c.l.b16 %v338
  %v1947 = vunpack.c.h.b16 %v338
  %v1948 = vunpack.c.l.b16 %v339
  %v1949 = vunpack.c.h.b16 %v339
  %v1950 = vunpack.c.l.b16 %v340
  %v1951 = vunpack.c.h.b16 %v340
  %v1952 = vunpack.c.l.b16 %v341
  %v1953 = vunpack.c.h.b16 %v341
  %v1954 = vunpack.c.l.b16 %v342
  %v1955 = vunpack.c.h.b16 %v342
  %v1956 = vunpack.c.l.b16 %v343
  %v1957 = vunpack.c.h.b16 %v343
  %v1958 = vunpack.c.l.b16 %v344
  %v1959 = vunpack.c.h.b16 %v344
  %v1960 = vunpack.c.l.b16 %v345
  %v1961 = vunpack.c.h.b16 %v345
  %v1962 = vunpack.c.l.b16 %v346
  %v1963 = vunpack.c.h.b16 %v346
  %v1964 = vunpack.c.l.b16 %v347
  %v1965 = vunpack.c.h.b16 %v347
  %v1966 = vunpack.c.l.b16 %v348
  %v1967 = vunpack.c.h.b16 %v348
  %v1968 = vunpack.c.l.b16 %v349
  %v1969 = vunpack.c.h.b16 %v349
  %v1970 = vunpack.c.l.b16 %v350
  %v1971 = vunpack.c.h.b16 %v350
  %v1972 = vunpack.c.l.b16 %v351
  %v1973 = vunpack.c.h.b16 %v351
  %v1974 = vunpack.c.l.b16 %v352
  %v1975 = vunpack.c.h.b16 %v352
  %v1976 = vunpack.c.l.b16 %v353
  %v1977 = vunpack.c.h.b16 %v353
  %v1978 = vunpack.c.l.b16 %v354
  %v1979 = vunpack.c.h.b16 %v354
  %v1980 = vunpack.c.l.b16 %v355
  %v1981 = vunpack.c.h.b16 %v355
  %v1982 = vunpack.c.l.b16 %v356
  %v1983 = vunpack.c.h.b16 %v356
  %v1984 = vunpack.c.l.b16 %v357
  %v1985 = vunpack.c.h.b16 %v357
  %v1986 = vunpack.c.l.b16 %v358
  %v1987 = vunpack.c.h.b16 %v358
  %v1988 = vunpack.c.l.b16 %v359
  %v1989 = vunpack.c.h.b16 %v359
  %v1990 = vunpack.c.l.b16 %v360
  %v1991 = vunpack.c.h.b16 %v360
  %v1992 = vunpack.c.l.b16 %v361
  %v1993 = vunpack.c.h.b16 %v361
  %v1994 = vunpack.c.l.b16 %v362
  %v1995 = vunpack.c.h.b16 %v362
  %v1996 = vunpack.c.l.b16 %v363
  %v1997 = vunpack.c.h.b16 %v363
  %v1998 = vunpack.c.l.b16 %v364
  %v1999 = vunpack.c.h.b16 %v364
  %v2000 = vunpack.c.l.b16 %v365
  %v2001 = vunpack.c.h.b16 %v365
  %v2002 = vunpack.c.l.b16 %v366
  %v2003 = vunpack.c.h.b16 %v366
  %v2004 = vunpack.c.l.b16 %v367
  %v2005 = vunpack.c.h.b16 %v367
  %v2006 = vunpack.c.l.b16 %v368
  %v2007 = vunpack.c.h.b16 %v368
  %v2008 = vunpack.c.l.b16 %v369
  %v2009 = vunpack.c.h.b16 %v369
  %v2010 = vunpack.c.l.b16 %v370
  %v2011 = vunpack.c.h.b16 %v370
  %v2012 = vunpack.c.l.b16 %v371
  %v2013 = vunpack.c.h.b16 %v371
  %v2014 = vunpack.c.l.b16 %v372
  %v2015 = vunpack.c.h.b16 %v372
  %v2016 = vunpack.c.l.b16 %v373
  %v2017 = vunpack.c.h.b16 %v373
  %v2018 = vunpack.c.l.b16 %v374
  %v2019 = vunpack.c.h.b16 %v374
  %v2020 = vunpack.c.l.b16 %v375
  %v2021 = vunpack.c.h.b16 %v375
  %v2022 = vunpack.c.l.b16 %v376
  %v2023 = vunpack.c.h.b16 %v376
  %v2024 = vunpack.c.l.b16 %v377
  %v2025 = vunpack.c.h.b16 %v377
  %v2026 = vunpack.c.l.b16 %v378
  %v2027 = vunpack.c.h.b16 %v378
  %v2028 = vunpack.c.l.b16 %v379
  %v2029 = vunpack.c.h.b16 %v379
  %v2030 = vunpack.c.l.b16 %v380
  %v2031 = vunpack.c.h.b16 %v380
  %v2032 = vunpack.c.l.b16 %v381
  %v2033 = vunpack.c.h.b16 %v381
  %v2034 = vunpack.c.l.b16 %v382
  %v2035 = vunpack.c.h.b16 %v382
  %v2036 = vunpack.c.l.b16 %v383
  %v2037 = vunpack.c.h.b16 %v383
  %v2038 = vunpack.c.l.b16 %v384
  %v2039 = vunpack.c.h.b16 %v384
  %v2040 = vunpack.c.l.b16 %v385
  %v2041 = vunpack.c.h.b16 %v385
  %v2042 = vunpack.c.l.b16 %v386
  %v2043 = vunpack.c.h.b16 %v386
  %v2044 = vunpack.c.l.b16 %v387
  %v2045 = vunpack.c.h.b16 %v387
  %v2046 = vunpack.c.l.b16 %v388
  %v2047 = vunpack.c.h.b16 %v388
  %v2048 = vunpack.c.l.b16 %v389
  %v2049 = vunpack.c.h.b16 %v389
  %v2050 = vunpack.c.l.b16 %v390
  %v2051 = vunpack.c.h.b16 %v390
  %v2052 = vunpack.c.l.b16 %v391
  %v2053 = vunpack.c.h.b16 %v391
  %v2054 = vunpack.c.l.b16 %v392
  %v2055 = vunpack.c.h.b16 %v392
  %v2056 = vunpack.c.l.b16 %v393
  %v2057 = vunpack.c.h.b16 %v393
  %v2058 = vunpack.c.l.b16 %v394
  %v2059 = vunpack.c.h.b16 %v394
  %v2060 = vunpack.c.l.b16 %v395
  %v2061 = vunpack.c.h.b16 %v395
  %v2062 = vunpack.c.l.b16 %v396
  %v2063 = vunpack.c.h.b16 %v396
  %v2064 = vunpack.c.l.b16 %v397
  %v2065 = vunpack.c.h.b16 %v397
  %v2066 = vunpack.c.l.b16 %v398
  %v2067 = vunpack.c.h.b16 %v398
  %v2068 = vunpack.c.l.b16 %v399
  %v2069 = vunpack.c.h.b16 %v399
  %v2070 = vunpack.c.l.b16 %v400
  %v2071 = vunpack.c.h.b16 %v400
  %v2072 = vunpack.c.l.b16 %v401
  %v2073 = vunpack.c.h.b16 %v401
  %v2074 = vunpack.c.l.b16 %v402
  %v2075 = vunpack.c.h.b16 %v402
  %v2076 = vunpack.c.l.b16 %v403
  %v2077 = vunpack.c.h.b16 %v403
  %v2078 = vunpack.c.l.b16 %v404
  %v2079 = vunpack.c.h.b16 %v404
  %v2080 = vunpack.c.l.b16 %v405
  %v2081 = vunpack.c.h.b16 %v405
  %v2082 = vunpack.c.l.b16 %v406
  %v2083 = vunpack.c.h.b16 %v406
  %v2084 = vunpack.c.l.b16 %v407
  %v2085 = vunpack.c.h.b16 %v407
  %v2086 = vunpack.c.l.b16 %v408
  %v2087 = vunpack.c.h.b16 %v408
  %v2088 = vunpack.c.l.b16 %v409
  %v2089 = vunpack.c.h.b16 %v409
  %v2090 = vunpack.c.l.b16 %v410
  %v2091 = vunpack.c.h.b16 %v410
  %v2092 = vunpack.c.l.b16 %v411
  %v2093 = vunpack.c.h.b16 %v411
  %v2094 = vunpack.c.l.b16 %v412
  %v2095 = vunpack.c.h.b16 %v412
  %v2096 = vunpack.c.l.b16 %v413
  %v2097 = vunpack.c.h.b16 %v413
  %v2098 = vunpack.c.l.b16 %v414
  %v2099 = vunpack.c.h.b16 %v414
  %v2100 = vunpack.c.l.b16 %v415
  %v2101 = vunpack.c.h.b16 %v415
  %v2102 = vunpack.c.l.b16 %v416
  %v2103 = vunpack.c.h.b16 %v416
  %v2104 = vunpack.c.l.b16 %v417
  %v2105 = vunpack.c.h.b16 %v417
  %v2106 = vunpack.c.l.b16 %v418
  %v2107 = vunpack.c.h.b16 %v418
  %v2108 = vunpack.c.l.b16 %v419
  %v2109 = vunpack.c.h.b16 %v419
  %v2110 = vunpack.c.l.b16 %v420
  %v2111 = vunpack.c.h.b16 %v420
  %v2112 = vunpack.c.l.b16 %v421
  %v2113 = vunpack.c.h.b16 %v421
  %v2114 = vunpack.c.l.b16 %v422
  %v2115 = vunpack.c.h.b16 %v422
  %v2116 = vunpack.c.l.b16 %v423
  %v2117 = vunpack.c.h.b16 %v423
  %v2118 = vunpack.c.l.b16 %v424
  %v2119 = vunpack.c.h.b16 %v424
  %v2120 = vunpack.c.l.b16 %v425
  %v2121 = vunpack.c.h.b16 %v425
  %v2122 = vunpack.c.l.b16 %v426
  %v2123 = vunpack.c.h.b16 %v426
  %v2124 = vunpack.c.l.b16 %v427
  %v2125 = vunpack.c.h.b16 %v427
  %v2126 = vunpack.c.l.b16 %v428
  %v2127 = vunpack.c.h.b16 %v428
  %v2128 = vunpack.c.l.b16 %v429
  %v2129 = vunpack.c.h.b16 %v429
  %v2130 = vunpack.c.l.b16 %v430
  %v2131 = vunpack.c.h.b16 %v430
  %v2132 = vunpack.c.l.b16 %v431
  %v2133 = vunpack.c.h.b16 %v431
  %v2134 = vunpack.c.l.b16 %v432
  %v2135 = vunpack.c.h.b16 %v432
  %v2136 = vunpack.c.l.b16 %v433
  %v2137 = vunpack.c.h.b16 %v433
  %v2138 = vunpack.c.l.b16 %v434
  %v2139 = vunpack.c.h.b16 %v434
  %v2140 = vunpack.c.l.b16 %v435
  %v2141 = vunpack.c.h.b16 %v435
  %v2142 = vunpack.c.l.b16 %v436
  %v2143 = vunpack.c.h.b16 %v436
  %v2144 = vunpack.c.l.b16 %v437
  %v2145 = vunpack.c.h.b16 %v437
  %v2146 = vunpack.c.l.b16 %v438
  %v2147 = vunpack.c.h.b16 %v438
  %v2148 = vunpack.c.l.b16 %v439
  %v2149 = vunpack.c.h.b16 %v439
  %v2150 = vunpack.c.l.b16 %v440
  %v2151 = vunpack.c.h.b16 %v440
  %v2152 = vunpack.c.l.b16 %v441
  %v2153 = vunpack.c.h.b16 %v441
  %v2154 = vunpack.c.l.b16 %v442
  %v2155 = vunpack.c.h.b16 %v442
  %v2156 = vunpack.c.l.b16 %v443
  %v2157 = vunpack.c.h.b16 %v443
  %v2158 = vunpack.c.l.b16 %v444
  %v2159 = vunpack.c.h.b16 %v444
  %v2160 = vunpack.c.l.b16 %v445
  %v2161 = vunpack.c.h.b16 %v445
  %v2162 = vunpack.c.l.b16 %v446
  %v2163 = vunpack.c.h.b16 %v446
  %v2164 = vunpack.c.l.b16 %v447
  %v2165 = vunpack.c.h.b16 %v447
  %v2166 = vunpack.c.l.b16 %v448
  %v2167 = vunpack.c.h.b16 %v448
  %v2168 = vunpack.c.l.b16 %v449
  %v2169 = vunpack.c.h.b16 %v449
  %v2170 = vunpack.c.l.b16 %v450
  %v2171 = vunpack.c.h.b16 %v450
  %v2172 = vunpack.c.l.b16 %v451
  %v2173 = vunpack.c.h.b16 %v451
  %v2174 = vunpack.c.l.b16 %v452
  %v2175 = vunpack.c.h.b16 %v452
  %v2176 = vunpack.c.l.b16 %v453
  %v2177 = vunpack.c.h.b16 %v453
  %v2178 = vunpack.c.l.b16 %v454
  %v2179 = vunpack.c.h.b16 %v454
  %v2180 = vunpack.c.l.b16 %v455
  %v2181 = vunpack.c.h.b16 %v455
  %v2182 = vunpack.c.l.b16 %v456
  %v2183 = vunpack.c.h.b16 %v456
  %v2184 = vunpack.c.l.b16 %v457
  %v2185 = vunpack.c.h.b16 %v457
  %v2186 = vunpack.c.l.b16 %v458
  %v2187 = vunpack.c.h.b16 %v458
  %v2188 = vunpack.c.l.b16 %v459
  %v2189 = vunpack.c.h.b16 %v459
  %v2190 = vunpack.c.l.b16 %v460
  %v2191 = vunpack.c.h.b16 %v460
  %v2192 = vunpack.c.l.b16 %v461
  %v2193 = vunpack.c.h.b16 %v461
  %v2194 = vunpack.c.l.b16 %v462
  %v2195 = vunpack.c.h.b16 %v462
  %v2196 = vunpack.c.l.b16 %v463
  %v2197 = vunpack.c.h.b16 %v463
  %v2198 = vunpack.c.l.b16 %v464
  %v2199 = vunpack.c.h.b16 %v464
  %v2200 = vunpack.c.l.b16 %v465
  %v2201 = vunpack.c.h.b16 %v465
  %v2202 = vunpack.c.l.b16 %v466
  %v2203 = vunpack.c.h.b16 %v466
  %v2204 = vunpack.c.l.b16 %v467
  %v2205 = vunpack.c.h.b16 %v467
  %v2206 = vunpack.c.l.b16 %v468
  %v2207 = vunpack.c.h.b16 %v468
  %v2208 = vunpack.c.l.b16 %v469
  %v2209 = vunpack.c.h.b16 %v469
  %v2210 = vunpack.c.l.b16 %v470
  %v2211 = vunpack.c.h.b16 %v470
  %v2212 = vunpack.c.l.b16 %v471
  %v2213 = vunpack.c.h.b16 %v471
  %v2214 = vunpack.c.l.b16 %v472
  %v2215 = vunpack.c.h.b16 %v472
  %v2216 = vunpack.c.l.b16 %v473
  %v2217 = vunpack.c.h.b16 %v473
  %v2218 = vunpack.c.l.b16 %v474
  %v2219 = vunpack.c.h.b16 %v474
  %v2220 = vunpack.c.l.b16 %v475
  %v2221 = vunpack.c.h.b16 %v475
  %v2222 = vunpack.c.l.b16 %v476
  %v2223 = vunpack.c.h.b16 %v476
  %v2224 = vunpack.c.l.b16 %v477
  %v2225 = vunpack.c.h.b16 %v477
  %v2226 = vunpack.c.l.b16 %v478
  %v2227 = vunpack.c.h.b16 %v478
  %v2228 = vunpack.c.l.b16 %v479
  %v2229 = vunpack.c.h.b16 %v479
  %v2230 = vunpack.c.l.b16 %v480
  %v2231 = vunpack.c.h.b16 %v480
  %v2232 = vunpack.c.l.b16 %v481
  %v2233 = vunpack.c.h.b16 %v481
  %v2234 = vunpack.c.l.b16 %v482
  %v2235 = vunpack.c.h.b16 %v482
  %v2236 = vunpack.c.l.b16 %v483
  %v2237 = vunpack.c.h.b16 %v483
  %v2238 = vunpack.c.l.b16 %v484
  %v2239 = vunpack.c.h.b16 %v484
  %v2240 = vunpack.c.l.b16 %v485
  %v2241 = vunpack.c.h.b16 %v485
  %v2242 = vunpack.c.l.b16 %v486
  %v2243 = vunpack.c.h.b16 %v486
  %v2244 = vunpack.c.l.b16 %v487
  %v2245 = vunpack.c.h.b16 %v487
  %v2246 = vunpack.c.l.b16 %v488
  %v2247 = vunpack.c.h.b16 %v488
  %v2248 = vunpack.c.l.b16 %v489
  %v2249 = vunpack.c.h.b16 %v489
  %v2250 = vunpack.c.l.b16 %v490
  %v2251 = vunpack.c.h.b16 %v490
  %v2252 = vunpack.c.l.b16 %v491
  %v2253 = vunpack.c.h.b16 %v491
  %v2254 = vunpack.c.l.b16 %v492
  %v2255 = vunpack.c.h.b16 %v492
  %v2256 = vunpack.c.l.b16 %v493
  %v2257 = vunpack.c.h.b16 %v493
  %v2258 = vunpack.c.l.b16 %v494
  %v2259 = vunpack.c.h.b16 %v494
  %v2260 = vunpack.c.l.b16 %v495
  %v2261 = vunpack.c.h.b16 %v495
  %v2262 = vunpack.c.l.b16 %v496
  %v2263 = vunpack.c.h.b16 %v496
  %v2264 = vunpack.c.l.b16 %v497
  %v2265 = vunpack.c.h.b16 %v497
  %v2266 = vunpack.c.l.b16 %v498
  %v2267 = vunpack.c.h.b16 %v498
  %v2268 = vunpack.c.l.b16 %v499
  %v2269 = vunpack.c.h.b16 %v499
  %v2270 = vunpack.c.l.b16 %v500
  %v2271 = vunpack.c.h.b16 %v500
  %v2272 = vunpack.c.l.b16 %v501
  %v2273 = vunpack.c.h.b16 %v501
  %v2274 = vunpack.c.l.b16 %v502
  %v2275 = vunpack.c.h.b16 %v502
  %v2276 = vunpack.c.l.b16 %v503
  %v2277 = vunpack.c.h.b16 %v503
  %v2278 = vunpack.c.l.b16 %v504
  %v2279 = vunpack.c.h.b16 %v504
  %v2280 = vunpack.c.l.b16 %v505
  %v2281 = vunpack.c.h.b16 %v505
  %v2282 = vunpack.c.l.b16 %v506
  %v2283 = vunpack.c.h.b16 %v506
  %v2284 = vunpack.c.l.b16 %v507
  %v2285 = vunpack.c.h.b16 %v507
  %v2286 = vunpack.c.l.b16 %v508
  %v2287 = vunpack.c.h.b16 %v508
  %v2288 = vunpack.c.l.b16 %v509
  %v2289 = vunpack.c.h.b16 %v509
  %v2290 = vunpack.c.l.b16 %v510
  %v2291 = vunpack.c.h.b16 %v510
  %v2292 = vunpack.c.l.b16 %v511
  %v2293 = vunpack.c.h.b16 %v511
  %v2294 = vunpack.c.l.b16 %v512
  %v2295 = vunpack.c.h.b16 %v512
  %v2296 = vunpack.c.l.b16 %v513
  %v2297 = vunpack.c.h.b16 %v513
  %v2298 = vunpack.c.l.b16 %v514
  %v2299 = vunpack.c.h.b16 %v514
  %v2300 = vunpack.c.l.b16 %v515
  %v2301 = vunpack.c.h.b16 %v515
  %v2302 = vunpack.c.l.b16 %v516
  %v2303 = vunpack.c.h.b16 %v516
  %v2304 = vunpack.c.l.b16 %v517
  %v2305 = vunpack.c.h.b16 %v517
  %v2306 = vunpack.c.l.b16 %v518
  %v2307 = vunpack.c.h.b16 %v518
  %v2308 = vunpack.c.l.b16 %v519
  %v2309 = vunpack.c.h.b16 %v519
  %v2310 = vunpack.c.l.b16 %v520
  %v2311 = vunpack.c.h.b16 %v520
  %v2312 = vunpack.c.l.b16 %v521
  %v2313 = vunpack.c.h.b16 %v521
  %v2314 = vunpack.c.l.b16 %v522
  %v2315 = vunpack.c.h.b16 %v522
  %v2316 = vunpack.c.l.b16 %v523
  %v2317 = vunpack.c.h.b16 %v523
  %v2318 = vunpack.c.l.b16 %v524
  %v2319 = vunpack.c.h.b16 %v524
  %v2320 = vunpack.c.l.b16 %v525
  %v2321 = vunpack.c.h.b16 %v525
  %v2322 = vpack.c.b16 %v1314, %v1298
  %v2323 = vpack.c.b16 %v1315, %v1299
  %v2324 = vpack.c.b16 %v1316, %v1300
  %v2325 = vpack.c.b16 %v1317, %v1301
  %v2326 = vpack.c.b16 %v1318, %v1302
  %v2327 = vpack.c.b16 %v1319, %v1303
  %v2328 = vpack.c.b16 %v1320, %v1304
  %v2329 = vpack.c.b16 %v1321, %v1305
  %v2330 = vpack.c.b16 %v1322, %v1306
  %v2331 = vpack.c.b16 %v1323, %v1307
  %v2332 = vpack.c.b16 %v1324, %v1308
  %v2333 = vpack.c.b16 %v1325, %v1309
  %v2334 = vpack.c.b16 %v1326, %v1310
  %v2335 = vpack.c.b16 %v1327, %v1311
  %v2336 = vpack.c.b16 %v1328, %v1312
  %v2337 = vpack.c.b16 %v1329, %v1313
  %v2338 = vpack.c.b16 %v1346, %v1330
  %v2339 = vpack.c.b16 %v1347, %v1331
  %v2340 = vpack.c.b16 %v1348, %v1332
  %v2341 = vpack.c.b16 %v1349, %v1333
  %v2342 = vpack.c.b16 %v1350, %v1334
  %v2343 = vpack.c.b16 %v1351, %v1335
  %v2344 = vpack.c.b16 %v1352, %v1336
  %v2345 = vpack.c.b16 %v1353, %v1337
  %v2346 = vpack.c.b16 %v1354, %v1338
  %v2347 = vpack.c.b16 %v1355, %v1339
  %v2348 = vpack.c.b16 %v1356, %v1340
  %v2349 = vpack.c.b16 %v1357, %v1341
  %v2350 = vpack.c.b16 %v1358, %v1342
  %v2351 = vpack.c.b16 %v1359, %v1343
  %v2352 = vpack.c.b16 %v1360, %v1344
  %v2353 = vpack.c.b16 %v1361, %v1345
  %v2354 = vpack.c.b16 %v1378, %v1362
  %v2355 = vpack.c.b16 %v1379, %v1363
  %v2356 = vpack.c.b16 %v1380, %v1364
  %v2357 = vpack.c.b16 %v1381, %v1365
  %v2358 = vpack.c.b16 %v1382, %v1366
  %v2359 = vpack.c.b16 %v1383, %v1367
  %v2360 = vpack.c.b16 %v1384, %v1368
  %v2361 = vpack.c.b16 %v1385, %v1369
  %v2362 = vpack.c.b16 %v1386, %v1370
  %v2363 = vpack.c.b16 %v1387, %v1371
  %v2364 = vpack.c.b16 %v1388, %v1372
  %v2365 = vpack.c.b16 %v1389, %v1373
  %v2366 = vpack.c.b16 %v1390, %v1374
  %v2367 = vpack.c.b16 %v1391, %v1375
  %v2368 = vpack.c.b16 %v1392, %v1376
  %v2369 = vpack.c.b16 %v1393, %v1377
  %v2370 = vpack.c.b16 %v1410, %v1394
  %v2371 = vpack.c.b16 %v1411, %v1395
  %v2372 = vpack.c.b16 %v1412, %v1396
  %v2373 = vpack.c.b16 %v1413, %v1397
  %v2374 = vpack.c.b16 %v1414, %v1398
  %v2375 = vpack.c.b16 %v1415, %v1399
  %v2376 = vpack.c.b16 %v1416, %v1400
  %v2377 = vpack.c.b16 %v1417, %v1401
  %v2378 = vpack.c.b16 %v1418, %v1402
  %v2379 = vpack.c.b16 %v1419, %v1403
  %v2380 = vpack.c.b16 %v1420, %v1404
  %v2381 = vpack.c.b16 %v1421, %v1405
  %v2382 = vpack.c.b16 %v1422, %v1406
  %v2383 = vpack.c.b16 %v1423, %v1407
  %v2384 = vpack.c.b16 %v1424, %v1408
  %v2385 = vpack.c.b16 %v1425, %v1409
  %v2386 = vpack.c.b16 %v1442, %v1426
  %v2387 = vpack.c.b16 %v1443, %v1427
  %v2388 = vpack.c.b16 %v1444, %v1428
  %v2389 = vpack.c.b16 %v1445, %v1429
  %v2390 = vpack.c.b16 %v1446, %v1430
  %v2391 = vpack.c.b16 %v1447, %v1431
  %v2392 = vpack.c.b16 %v1448, %v1432
  %v2393 = vpack.c.b16 %v1449, %v1433
  %v2394 = vpack.c.b16 %v1450, %v1434
  %v2395 = vpack.c.b16 %v1451, %v1435
  %v2396 = vpack.c.b16 %v1452, %v1436
  %v2397 = vpack.c.b16 %v1453, %v1437
  %v2398 = vpack.c.b16 %v1454, %v1438
  %v2399 = vpack.c.b16 %v1455, %v1439
  %v2400 = vpack.c.b16 %v1456, %v1440
  %v2401 = vpack.c.b16 %v1457, %v1441
  %v2402 = vpack.c.b16 %v1474, %v1458
  %v2403 = vpack.c.b16 %v1475, %v1459
  %v2404 = vpack.c.b16 %v1476, %v1460
  %v2405 = vpack.c.b16 %v1477, %v1461
  %v2406 = vpack.c.b16 %v1478, %v1462
  %v2407 = vpack.c.b16 %v1479, %v1463
  %v2408 = vpack.c.b16 %v1480, %v1464
  %v2409 = vpack.c.b16 %v1481, %v1465
  %v2410 = vpack.c.b16 %v1482, %v1466
  %v2411 = vpack.c.b16 %v1483, %v1467
  %v2412 = vpack.c.b16 %v1484, %v1468
  %v2413 = vpack.c.b16 %v1485, %v1469
  %v2414 = vpack.c.b16 %v1486, %v1470
  %v2415 = vpack.c.b16 %v1487, %v1471
  %v2416 = vpack.c.b16 %v1488, %v1472
  %v2417 = vpack.c.b16 %v1489, %v1473
  %v2418 = vpack.c.b16 %v1506, %v1490
  %v2419 = vpack.c.b16 %v1507, %v1491
  %v2420 = vpack.c.b16 %v1508, %v1492
  %v2421 = vpack.c.b16 %v1509, %v1493
  %v2422 = vpack.c.b16 %v1510, %v1494
  %v2423 = vpack.c.b16 %v1511, %v1495
  %v2424 = vpack.c.b16 %v1512, %v1496
  %v2425 = vpack.c.b16 %v1513, %v1497
  %v2426 = vpack.c.b16 %v1514, %v1498
  %v2427 = vpack.c.b16 %v1515, %v1499
  %v2428 = vpack.c.b16 %v1516, %v1500
  %v2429 = vpack.c.b16 %v1517, %v1501
  %v2430 = vpack.c.b16 %v1518, %v1502
  %v2431 = vpack.c.b16 %v1519, %v1503
  %v2432 = vpack.c.b16 %v1520, %v1504
  %v2433 = vpack.c.b16 %v1521, %v1505
  %v2434 = vpack.c.b16 %v1538, %v1522
  %v2435 = vpack.c.b16 %v1539, %v1523
  %v2436 = vpack.c.b16 %v1540, %v1524
  %v2437 = vpack.c.b16 %v1541, %v1525
  %v2438 = vpack.c.b16 %v1542, %v1526
  %v2439 = vpack.c.b16 %v1543, %v1527
  %v2440 = vpack.c.b16 %v1544, %v1528
  %v2441 = vpack.c.b16 %v1545, %v1529
  %v2442 = vpack.c.b16 %v1546, %v1530
  %v2443 = vpack.c.b16 %v1547, %v1531
  %v2444 = vpack.c.b16 %v1548, %v1532
  %v2445 = vpack.c.b16 %v1549, %v1533
  %v2446 = vpack.c.b16 %v1550, %v1534
  %v2447 = vpack.c.b16 %v1551, %v1535
  %v2448 = vpack.c.b16 %v1552, %v1536
  %v2449 = vpack.c.b16 %v1553, %v1537
  %v2450 = vpack.c.b16 %v1570, %v1554
  %v2451 = vpack.c.b16 %v1571, %v1555
  %v2452 = vpack.c.b16 %v1572, %v1556
  %v2453 = vpack.c.b16 %v1573, %v1557
  %v2454 = vpack.c.b16 %v1574, %v1558
  %v2455 = vpack.c.b16 %v1575, %v1559
  %v2456 = vpack.c.b16 %v1576, %v1560
  %v2457 = vpack.c.b16 %v1577, %v1561
  %v2458 = vpack.c.b16 %v1578, %v1562
  %v2459 = vpack.c.b16 %v1579, %v1563
  %v2460 = vpack.c.b16 %v1580, %v1564
  %v2461 = vpack.c.b16 %v1581, %v1565
  %v2462 = vpack.c.b16 %v1582, %v1566
  %v2463 = vpack.c.b16 %v1583, %v1567
  %v2464 = vpack.c.b16 %v1584, %v1568
  %v2465 = vpack.c.b16 %v1585, %v1569
  %v2466 = vpack.c.b16 %v1602, %v1586
  %v2467 = vpack.c.b16 %v1603, %v1587
  %v2468 = vpack.c.b16 %v1604, %v1588
  %v2469 = vpack.c.b16 %v1605, %v1589
  %v2470 = vpack.c.b16 %v1606, %v1590
  %v2471 = vpack.c.b16 %v1607, %v1591
  %v2472 = vpack.c.b16 %v1608, %v1592
  %v2473 = vpack.c.b16 %v1609, %v1593
  %v2474 = vpack.c.b16 %v1610, %v1594
  %v2475 = vpack.c.b16 %v1611, %v1595
  %v2476 = vpack.c.b16 %v1612, %v1596
  %v2477 = vpack.c.b16 %v1613, %v1597
  %v2478 = vpack.c.b16 %v1614, %v1598
  %v2479 = vpack.c.b16 %v1615, %v1599
  %v2480 = vpack.c.b16 %v1616, %v1600
  %v2481 = vpack.c.b16 %v1617, %v1601
  %v2482 = vpack.c.b16 %v1634, %v1618
  %v2483 = vpack.c.b16 %v1635, %v1619
  %v2484 = vpack.c.b16 %v1636, %v1620
  %v2485 = vpack.c.b16 %v1637, %v1621
  %v2486 = vpack.c.b16 %v1638, %v1622
  %v2487 = vpack.c.b16 %v1639, %v1623
  %v2488 = vpack.c.b16 %v1640, %v1624
  %v2489 = vpack.c.b16 %v1641, %v1625
  %v2490 = vpack.c.b16 %v1642, %v1626
  %v2491 = vpack.c.b16 %v1643, %v1627
  %v2492 = vpack.c.b16 %v1644, %v1628
  %v2493 = vpack.c.b16 %v1645, %v1629
  %v2494 = vpack.c.b16 %v1646, %v1630
  %v2495 = vpack.c.b16 %v1647, %v1631
  %v2496 = vpack.c.b16 %v1648, %v1632
  %v2497 = vpack.c.b16 %v1649, %v1633
  %v2498 = vpack.c.b16 %v1666, %v1650
  %v2499 = vpack.c.b16 %v1667, %v1651
  %v2500 = vpack.c.b16 %v1668, %v1652
  %v2501 = vpack.c.b16 %v1669, %v1653
  %v2502 = vpack.c.b16 %v1670, %v1654
  %v2503 = vpack.c.b16 %v1671, %v1655
  %v2504 = vpack.c.b16 %v1672, %v1656
  %v2505 = vpack.c.b16 %v1673, %v1657
  %v2506 = vpack.c.b16 %v1674, %v1658
  %v2507 = vpack.c.b16 %v1675, %v1659
  %v2508 = vpack.c.b16 %v1676, %v1660
  %v2509 = vpack.c.b16 %v1677, %v1661
  %v2510 = vpack.c.b16 %v1678, %v1662
  %v2511 = vpack.c.b16 %v1679, %v1663
  %v2512 = vpack.c.b16 %v1680, %v1664
  %v2513 = vpack.c.b16 %v1681, %v1665
  %v2514 = vpack.c.b16 %v1698, %v1682
  %v2515 = vpack.c.b16 %v1699, %v1683
  %v2516 = vpack.c.b16 %v1700, %v1684
  %v2517 = vpack.c.b16 %v1701, %v1685
  %v2518 = vpack.c.b16 %v1702, %v1686
  %v2519 = vpack.c.b16 %v1703, %v1687
  %v2520 = vpack.c.b16 %v1704, %v1688
  %v2521 = vpack.c.b16 %v1705, %v1689
  %v2522 = vpack.c.b16 %v1706, %v1690
  %v2523 = vpack.c.b16 %v1707, %v1691
  %v2524 = vpack.c.b16 %v1708, %v1692
  %v2525 = vpack.c.b16 %v1709, %v1693
  %v2526 = vpack.c.b16 %v1710, %v1694
  %v2527 = vpack.c.b16 %v1711, %v1695
  %v2528 = vpack.c.b16 %v1712, %v1696
  %v2529 = vpack.c.b16 %v1713, %v1697
  %v2530 = vpack.c.b16 %v1730, %v1714
  %v2531 = vpack.c.b16 %v1731, %v1715
  %v2532 = vpack.c.b16 %v1732, %v1716
  %v2533 = vpack.c.b16 %v1733, %v1717
  %v2534 = vpack.c.b16 %v1734, %v1718
  %v2535 = vpack.c.b16 %v1735, %v1719
  %v2536 = vpack.c.b16 %v1736, %v1720
  %v2537 = vpack.c.b16 %v1737, %v1721
  %v2538 = vpack.c.b16 %v1738, %v1722
  %v2539 = vpack.c.b16 %v1739, %v1723
  %v2540 = vpack.c.b16 %v1740, %v1724
  %v2541 = vpack.c.b16 %v1741, %v1725
  %v2542 = vpack.c.b16 %v1742, %v1726
  %v2543 = vpack.c.b16 %v1743, %v1727
  %v2544 = vpack.c.b16 %v1744, %v1728
  %v2545 = vpack.c.b16 %v1745, %v1729
  %v2546 = vpack.c.b16 %v1762, %v1746
  %v2547 = vpack.c.b16 %v1763, %v1747
  %v2548 = vpack.c.b16 %v1764, %v1748
  %v2549 = vpack.c.b16 %v1765, %v1749
  %v2550 = vpack.c.b16 %v1766, %v1750
  %v2551 = vpack.c.b16 %v1767, %v1751
  %v2552 = vpack.c.b16 %v1768, %v1752
  %v2553 = vpack.c.b16 %v1769, %v1753
  %v2554 = vpack.c.b16 %v1770, %v1754
  %v2555 = vpack.c.b16 %v1771, %v1755
  %v2556 = vpack.c.b16 %v1772, %v1756
  %v2557 = vpack.c.b16 %v1773, %v1757
  %v2558 = vpack.c.b16 %v1774, %v1758
  %v2559 = vpack.c.b16 %v1775, %v1759
  %v2560 = vpack.c.b16 %v1776, %v1760
  %v2561 = vpack.c.b16 %v1777, %v1761
  %v2562 = vpack.c.b16 %v1794, %v1778
  %v2563 = vpack.c.b16 %v1795, %v1779
  %v2564 = vpack.c.b16 %v1796, %v1780
  %v2565 = vpack.c.b16 %v1797, %v1781
  %v2566 = vpack.c.b16 %v1798, %v1782
  %v2567 = vpack.c.b16 %v1799, %v1783
  %v2568 = vpack.c.b16 %v1800, %v1784
  %v2569 = vpack.c.b16 %v1801, %v1785
  %v2570 = vpack.c.b16 %v1802, %v1786
  %v2571 = vpack.c.b16 %v1803, %v1787
  %v2572 = vpack.c.b16 %v1804, %v1788
  %v2573 = vpack.c.b16 %v1805, %v1789
  %v2574 = vpack.c.b16 %v1806, %v1790
  %v2575 = vpack.c.b16 %v1807, %v1791
  %v2576 = vpack.c.b16 %v1808, %v1792
  %v2577 = vpack.c.b16 %v1809, %v1793
  %v2578 = vpack.c.b16 %v1826, %v1810
  %v2579 = vpack.c.b16 %v1827, %v1811
  %v2580 = vpack.c.b16 %v1828, %v1812
  %v2581 = vpack.c.b16 %v1829, %v1813
  %v2582 = vpack.c.b16 %v1830, %v1814
  %v2583 = vpack.c.b16 %v1831, %v1815
  %v2584 = vpack.c.b16 %v1832, %v1816
  %v2585 = vpack.c.b16 %v1833, %v1817
  %v2586 = vpack.c.b16 %v1834, %v1818
  %v2587 = vpack.c.b16 %v1835, %v1819
  %v2588 = vpack.c.b16 %v1836, %v1820
  %v2589 = vpack.c.b16 %v1837, %v1821
  %v2590 = vpack.c.b16 %v1838, %v1822
  %v2591 = vpack.c.b16 %v1839, %v1823
  %v2592 = vpack.c.b16 %v1840, %v1824
  %v2593 = vpack.c.b16 %v1841, %v1825
  %v2594 = vpack.c.b16 %v1858, %v1842
  %v2595 = vpack.c.b16 %v1859, %v1843
  %v2596 = vpack.c.b16 %v1860, %v1844
  %v2597 = vpack.c.b16 %v1861, %v1845
  %v2598 = vpack.c.b16 %v1862, %v1846
  %v2599 = vpack.c.b16 %v1863, %v1847
  %v2600 = vpack.c.b16 %v1864, %v1848
  %v2601 = vpack.c.b16 %v1865, %v1849
  %v2602 = vpack.c.b16 %v1866, %v1850
  %v2603 = vpack.c.b16 %v1867, %v1851
  %v2604 = vpack.c.b16 %v1868, %v1852
  %v2605 = vpack.c.b16 %v1869, %v1853
  %v2606 = vpack.c.b16 %v1870, %v1854
  %v2607 = vpack.c.b16 %v1871, %v1855
  %v2608 = vpack.c.b16 %v1872, %v1856
  %v2609 = vpack.c.b16 %v1873, %v1857
  %v2610 = vpack.c.b16 %v1890, %v1874
  %v2611 = vpack.c.b16 %v1891, %v1875
  %v2612 = vpack.c.b16 %v1892, %v1876
  %v2613 = vpack.c.b16 %v1893, %v1877
  %v2614 = vpack.c.b16 %v1894, %v1878
  %v2615 = vpack.c.b16 %v1895, %v1879
  %v2616 = vpack.c.b16 %v1896, %v1880
  %v2617 = vpack.c.b16 %v1897, %v1881
  %v2618 = vpack.c.b16 %v1898, %v1882
  %v2619 = vpack.c.b16 %v1899, %v1883
  %v2620 = vpack.c.b16 %v1900, %v1884
  %v2621 = vpack.c.b16 %v1901, %v1885
  %v2622 = vpack.c.b16 %v1902, %v1886
  %v2623 = vpack.c.b16 %v1903, %v1887
  %v2624 = vpack.c.b16 %v1904, %v1888
  %v2625 = vpack.c.b16 %v1905, %v1889
  %v2626 = vpack.c.b16 %v1922, %v1906
  %v2627 = vpack.c.b16 %v1923, %v1907
  %v2628 = vpack.c.b16 %v1924, %v1908
  %v2629 = vpack.c.b16 %v1925, %v1909
  %v2630 = vpack.c.b16 %v1926, %v1910
  %v2631 = vpack.c.b16 %v1927, %v1911
  %v2632 = vpack.c.b16 %v1928, %v1912
  %v2633 = vpack.c.b16 %v1929, %v1913
  %v2634 = vpack.c.b16 %v1930, %v1914
  %v2635 = vpack.c.b16 %v1931, %v1915
  %v2636 = vpack.c.b16 %v1932, %v1916
  %v2637 = vpack.c.b16 %v1933, %v1917
  %v2638 = vpack.c.b16 %v1934, %v1918
  %v2639 = vpack.c.b16 %v1935, %v1919
  %v2640 = vpack.c.b16 %v1936, %v1920
  %v2641 = vpack.c.b16 %v1937, %v1921
  %v2642 = vpack.c.b16 %v1954, %v1938
  %v2643 = vpack.c.b16 %v1955, %v1939
  %v2644 = vpack.c.b16 %v1956, %v1940
  %v2645 = vpack.c.b16 %v1957, %v1941
  %v2646 = vpack.c.b16 %v1958, %v1942
  %v2647 = vpack.c.b16 %v1959, %v1943
  %v2648 = vpack.c.b16 %v1960, %v1944
  %v2649 = vpack.c.b16 %v1961, %v1945
  %v2650 = vpack.c.b16 %v1962, %v1946
  %v2651 = vpack.c.b16 %v1963, %v1947
  %v2652 = vpack.c.b16 %v1964, %v1948
  %v2653 = vpack.c.b16 %v1965, %v1949
  %v2654 = vpack.c.b16 %v1966, %v1950
  %v2655 = vpack.c.b16 %v1967, %v1951
  %v2656 = vpack.c.b16 %v1968, %v1952
  %v2657 = vpack.c.b16 %v1969, %v1953
  %v2658 = vpack.c.b16 %v1986, %v1970
  %v2659 = vpack.c.b16 %v1987, %v1971
  %v2660 = vpack.c.b16 %v1988, %v1972
  %v2661 = vpack.c.b16 %v1989, %v1973
  %v2662 = vpack.c.b16 %v1990, %v1974
  %v2663 = vpack.c.b16 %v1991, %v1975
  %v2664 = vpack.c.b16 %v1992, %v1976
  %v2665 = vpack.c.b16 %v1993, %v1977
  %v2666 = vpack.c.b16 %v1994, %v1978
  %v2667 = vpack.c.b16 %v1995, %v1979
  %v2668 = vpack.c.b16 %v1996, %v1980
  %v2669 = vpack.c.b16 %v1997, %v1981
  %v2670 = vpack.c.b16 %v1998, %v1982
  %v2671 = vpack.c.b16 %v1999, %v1983
  %v2672 = vpack.c.b16 %v2000, %v1984
  %v2673 = vpack.c.b16 %v2001, %v1985
  %v2674 = vpack.c.b16 %v2018, %v2002
  %v2675 = vpack.c.b16 %v2019, %v2003
  %v2676 = vpack.c.b16 %v2020, %v2004
  %v2677 = vpack.c.b16 %v2021, %v2005
  %v2678 = vpack.c.b16 %v2022, %v2006
  %v2679 = vpack.c.b16 %v2023, %v2007
  %v2680 = vpack.c.b16 %v2024, %v2008
  %v2681 = vpack.c.b16 %v2025, %v2009
  %v2682 = vpack.c.b16 %v2026, %v2010
  %v2683 = vpack.c.b16 %v2027, %v2011
  %v2684 = vpack.c.b16 %v2028, %v2012
  %v2685 = vpack.c.b16 %v2029, %v2013
  %v2686 = vpack.c.b16 %v2030, %v2014
  %v2687 = vpack.c.b16 %v2031, %v2015
  %v2688 = vpack.c.b16 %v2032, %v2016
  %v2689 = vpack.c.b16 %v2033, %v2017
  %v2690 = vpack.c.b16 %v2050, %v2034
  %v2691 = vpack.c.b16 %v2051, %v2035
  %v2692 = vpack.c.b16 %v2052, %v2036
  %v2693 = vpack.c.b16 %v2053, %v2037
  %v2694 = vpack.c.b16 %v2054, %v2038
  %v2695 = vpack.c.b16 %v2055, %v2039
  %v2696 = vpack.c.b16 %v2056, %v2040
  %v2697 = vpack.c.b16 %v2057, %v2041
  %v2698 = vpack.c.b16 %v2058, %v2042
  %v2699 = vpack.c.b16 %v2059, %v2043
  %v2700 = vpack.c.b16 %v2060, %v2044
  %v2701 = vpack.c.b16 %v2061, %v2045
  %v2702 = vpack.c.b16 %v2062, %v2046
  %v2703 = vpack.c.b16 %v2063, %v2047
  %v2704 = vpack.c.b16 %v2064, %v2048
  %v2705 = vpack.c.b16 %v2065, %v2049
  %v2706 = vpack.c.b16 %v2082, %v2066
  %v2707 = vpack.c.b16 %v2083, %v2067
  %v2708 = vpack.c.b16 %v2084, %v2068
  %v2709 = vpack.c.b16 %v2085, %v2069
  %v2710 = vpack.c.b16 %v2086, %v2070
  %v2711 = vpack.c.b16 %v2087, %v2071
  %v2712 = vpack.c.b16 %v2088, %v2072
  %v2713 = vpack.c.b16 %v2089, %v2073
  %v2714 = vpack.c.b16 %v2090, %v2074
  %v2715 = vpack.c.b16 %v2091, %v2075
  %v2716 = vpack.c.b16 %v2092, %v2076
  %v2717 = vpack.c.b16 %v2093, %v2077
  %v2718 = vpack.c.b16 %v2094, %v2078
  %v2719 = vpack.c.b16 %v2095, %v2079
  %v2720 = vpack.c.b16 %v2096, %v2080
  %v2721 = vpack.c.b16 %v2097, %v2081
  %v2722 = vpack.c.b16 %v2114, %v2098
  %v2723 = vpack.c.b16 %v2115, %v2099
  %v2724 = vpack.c.b16 %v2116, %v2100
  %v2725 = vpack.c.b16 %v2117, %v2101
  %v2726 = vpack.c.b16 %v2118, %v2102
  %v2727 = vpack.c.b16 %v2119, %v2103
  %v2728 = vpack.c.b16 %v2120, %v2104
  %v2729 = vpack.c.b16 %v2121, %v2105
  %v2730 = vpack.c.b16 %v2122, %v2106
  %v2731 = vpack.c.b16 %v2123, %v2107
  %v2732 = vpack.c.b16 %v2124, %v2108
  %v2733 = vpack.c.b16 %v2125, %v2109
  %v2734 = vpack.c.b16 %v2126, %v2110
  %v2735 = vpack.c.b16 %v2127, %v2111
  %v2736 = vpack.c.b16 %v2128, %v2112
  %v2737 = vpack.c.b16 %v2129, %v2113
  %v2738 = vpack.c.b16 %v2146, %v2130
  %v2739 = vpack.c.b16 %v2147, %v2131
  %v2740 = vpack.c.b16 %v2148, %v2132
  %v2741 = vpack.c.b16 %v2149, %v2133
  %v2742 = vpack.c.b16 %v2150, %v2134
  %v2743 = vpack.c.b16 %v2151, %v2135
  %v2744 = vpack.c.b16 %v2152, %v2136
  %v2745 = vpack.c.b16 %v2153, %v2137
  %v2746 = vpack.c.b16 %v2154, %v2138
  %v2747 = vpack.c.b16 %v2155, %v2139
  %v2748 = vpack.c.b16 %v2156, %v2140
  %v2749 = vpack.c.b16 %v2157, %v2141
  %v2750 = vpack.c.b16 %v2158, %v2142
  %v2751 = vpack.c.b16 %v2159, %v2143
  %v2752 = vpack.c.b16 %v2160, %v2144
  %v2753 = vpack.c.b16 %v2161, %v2145
  %v2754 = vpack.c.b16 %v2178, %v2162
  %v2755 = vpack.c.b16 %v2179, %v2163
  %v2756 = vpack.c.b16 %v2180, %v2164
  %v2757 = vpack.c.b16 %v2181, %v2165
  %v2758 = vpack.c.b16 %v2182, %v2166
  %v2759 = vpack.c.b16 %v2183, %v2167
  %v2760 = vpack.c.b16 %v2184, %v2168
  %v2761 = vpack.c.b16 %v2185, %v2169
  %v2762 = vpack.c.b16 %v2186, %v2170
  %v2763 = vpack.c.b16 %v2187, %v2171
  %v2764 = vpack.c.b16 %v2188, %v2172
  %v2765 = vpack.c.b16 %v2189, %v2173
  %v2766 = vpack.c.b16 %v2190, %v2174
  %v2767 = vpack.c.b16 %v2191, %v2175
  %v2768 = vpack.c.b16 %v2192, %v2176
  %v2769 = vpack.c.b16 %v2193, %v2177
  %v2770 = vpack.c.b16 %v2210, %v2194
  %v2771 = vpack.c.b16 %v2211, %v2195
  %v2772 = vpack.c.b16 %v2212, %v2196
  %v2773 = vpack.c.b16 %v2213, %v2197
  %v2774 = vpack.c.b16 %v2214, %v2198
  %v2775 = vpack.c.b16 %v2215, %v2199
  %v2776 = vpack.c.b16 %v2216, %v2200
  %v2777 = vpack.c.b16 %v2217, %v2201
  %v2778 = vpack.c.b16 %v2218, %v2202
  %v2779 = vpack.c.b16 %v2219, %v2203
  %v2780 = vpack.c.b16 %v2220, %v2204
  %v2781 = vpack.c.b16 %v2221, %v2205
  %v2782 = vpack.c.b16 %v2222, %v2206
  %v2783 = vpack.c.b16 %v2223, %v2207
  %v2784 = vpack.c.b16 %v2224, %v2208
  %v2785 = vpack.c.b16 %v2225, %v2209
  %v2786 = vpack.c.b16 %v2242, %v2226
  %v2787 = vpack.c.b16 %v2243, %v2227
  %v2788 = vpack.c.b16 %v2244, %v2228
  %v2789 = vpack.c.b16 %v2245, %v2229
  %v2790 = vpack.c.b16 %v2246, %v2230
  %v2791 = vpack.c.b16 %v2247, %v2231
  %v2792 = vpack.c.b16 %v2248, %v2232
  %v2793 = vpack.c.b16 %v2249, %v2233
  %v2794 = vpack.c.b16 %v2250, %v2234
  %v2795 = vpack.c.b16 %v2251, %v2235
  %v2796 = vpack.c.b16 %v2252, %v2236
  %v2797 = vpack.c.b16 %v2253, %v2237
  %v2798 = vpack.c.b16 %v2254, %v2238
  %v2799 = vpack.c.b16 %v2255, %v2239
  %v2800 = vpack.c.b16 %v2256, %v2240
  %v2801 = vpack.c.b16 %v2257, %v2241
  %v2802 = vpack.c.b16 %v2274, %v2258
  %v2803 = vpack.c.b16 %v2275, %v2259
  %v2804 = vpack.c.b16 %v2276, %v2260
  %v2805 = vpack.c.b16 %v2277, %v2261
  %v2806 = vpack.c.b16 %v2278, %v2262
  %v2807 = vpack.c.b16 %v2279, %v2263
  %v2808 = vpack.c.b16 %v2280, %v2264
  %v2809 = vpack.c.b16 %v2281, %v2265
  %v2810 = vpack.c.b16 %v2282, %v2266
  %v2811 = vpack.c.b16 %v2283, %v2267
  %v2812 = vpack.c.b16 %v2284, %v2268
  %v2813 = vpack.c.b16 %v2285, %v2269
  %v2814 = vpack.c.b16 %v2286, %v2270
  %v2815 = vpack.c.b16 %v2287, %v2271
  %v2816 = vpack.c.b16 %v2288, %v2272
  %v2817 = vpack.c.b16 %v2289, %v2273
  %v2818 = vpack.c.b16 %v2306, %v2290
  %v2819 = vpack.c.b16 %v2307, %v2291
  %v2820 = vpack.c.b16 %v2308, %v2292
  %v2821 = vpack.c.b16 %v2309, %v2293
  %v2822 = vpack.c.b16 %v2310, %v2294
  %v2823 = vpack.c.b16 %v2311, %v2295
  %v2824 = vpack.c.b16 %v2312, %v2296
  %v2825 = vpack.c.b16 %v2313, %v2297
  %v2826 = vpack.c.b16 %v2314, %v2298
  %v2827 = vpack.c.b16 %v2315, %v2299
  %v2828 = vpack.c.b16 %v2316, %v2300
  %v2829 = vpack.c.b16 %v2317, %v2301
  %v2830 = vpack.c.b16 %v2318, %v2302
  %v2831 = vpack.c.b16 %v2319, %v2303
  %v2832 = vpack.c.b16 %v2320, %v2304
  %v2833 = vpack.c.b16 %v2321, %v2305
  %v3602 = vunpack.c.l.b16 %v526
  %v3603 = vunpack.c.l.b16 %v527
  %v3604 = vunpack.c.l.b16 %v528
  %v3605 = vunpack.c.l.b16 %v529
  %v3606 = vunpack.c.l.b16 %v530
  %v3607 = vunpack.c.l.b16 %v531
  %v3608 = vunpack.c.l.b16 %v532
  %v3609 = vunpack.c.l.b16 %v533
  %v3610 = vunpack.c.l.b16 %v534
  %v3611 = vunpack.c.l.b16 %v535
  %v3612 = vunpack.c.l.b16 %v536
  %v3613 = vunpack.c.l.b16 %v537
  %v3614 = vunpack.c.l.b16 %v538
  %v3615 = vunpack.c.l.b16 %v539
  %v3616 = vunpack.c.l.b16 %v540
  %v3617 = vunpack.c.l.b16 %v541
  %v3618 = vunpack.c.l.b16 %v542
  %v3619 = vunpack.c.l.b16 %v543
  %v3620 = vunpack.c.l.b16 %v544
  %v3621 = vunpack.c.l.b16 %v545
  %v3622 = vunpack.c.l.b16 %v546
  %v3623 = vunpack.c.l.b16 %v547
  %v3624 = vunpack.c.l.b16 %v548
  %v3625 = vunpack.c.l.b16 %v549
  %v3626 = vunpack.c.l.b16 %v550
  %v3627 = vunpack.c.l.b16 %v551
  %v3628 = vunpack.c.l.b16 %v552
  %v3629 = vunpack.c.l.b16 %v553
  %v3630 = vunpack.c.l.b16 %v554
  %v3631 = vunpack.c.l.b16 %v555
  %v3632 = vunpack.c.l.b16 %v556
  %v3633 = vunpack.c.l.b16 %v557
  %v3634 = vunpack.c.l.b16 %v558
  %v3635 = vunpack.c.l.b16 %v559
  %v3636 = vunpack.c.l.b16 %v560
  %v3637 = vunpack.c.l.b16 %v561
  %v3638 = vunpack.c.l.b16 %v562
  %v3639 = vunpack.c.l.b16 %v563
  %v3640 = vunpack.c.l.b16 %v564
  %v3641 = vunpack.c.l.b16 %v565
  %v3642 = vunpack.c.l.b16 %v566
  %v3643 = vunpack.c.l.b16 %v567
  %v3644 = vunpack.c.l.b16 %v568
  %v3645 = vunpack.c.l.b16 %v569
  %v3646 = vunpack.c.l.b16 %v570
  %v3647 = vunpack.c.l.b16 %v571
  %v3648 = vunpack.c.l.b16 %v572
  %v3649 = vunpack.c.l.b16 %v573
  %v3650 = vunpack.c.l.b16 %v574
  %v3651 = vunpack.c.l.b16 %v575
  %v3652 = vunpack.c.l.b16 %v576
  %v3653 = vunpack.c.l.b16 %v577
  %v3654 = vunpack.c.l.b16 %v578
  %v3655 = vunpack.c.l.b16 %v579
  %v3656 = vunpack.c.l.b16 %v580
  %v3657 = vunpack.c.l.b16 %v581
  %v3658 = vunpack.c.l.b16 %v582
  %v3659 = vunpack.c.l.b16 %v583
  %v3660 = vunpack.c.l.b16 %v584
  %v3661 = vunpack.c.l.b16 %v585
  %v3662 = vunpack.c.l.b16 %v586
  %v3663 = vunpack.c.l.b16 %v587
  %v3664 = vunpack.c.l.b16 %v588
  %v3665 = vunpack.c.l.b16 %v589
  %v3666 = vunpack.c.l.b16 %v590
  %v3667 = vunpack.c.l.b16 %v591
  %v3668 = vunpack.c.l.b16 %v592
  %v3669 = vunpack.c.l.b16 %v593
  %v3670 = vunpack.c.l.b16 %v594
  %v3671 = vunpack.c.l.b16 %v595
  %v3672 = vunpack.c.l.b16 %v596
  %v3673 = vunpack.c.l.b16 %v597
  %v3674 = vunpack.c.l.b16 %v598
  %v3675 = vunpack.c.l.b16 %v599
  %v3676 = vunpack.c.l.b16 %v600
  %v3677 = vunpack.c.l.b16 %v601
  %v3678 = vunpack.c.l.b16 %v602
  %v3679 = vunpack.c.l.b16 %v603
  %v3680 = vunpack.c.l.b16 %v604
  %v3681 = vunpack.c.l.b16 %v605
  %v3682 = vunpack.c.l.b16 %v606
  %v3683 = vunpack.c.l.b16 %v607
  %v3684 = vunpack.c.l.b16 %v608
  %v3685 = vunpack.c.l.b16 %v609
  %v3686 = vunpack.c.l.b16 %v610
  %v3687 = vunpack.c.l.b16 %v611
  %v3688 = vunpack.c.l.b16 %v612
  %v3689 = vunpack.c.l.b16 %v613
  %v3690 = vunpack.c.l.b16 %v614
  %v3691 = vunpack.c.l.b16 %v615
  %v3692 = vunpack.c.l.b16 %v616
  %v3693 = vunpack.c.l.b16 %v617
  %v3694 = vunpack.c.l.b16 %v618
  %v3695 = vunpack.c.l.b16 %v619
  %v3696 = vunpack.c.l.b16 %v620
  %v3697 = vunpack.c.l.b16 %v621
  %v3698 = vunpack.c.l.b16 %v622
  %v3699 = vunpack.c.l.b16 %v623
  %v3700 = vunpack.c.l.b16 %v624
  %v3701 = vunpack.c.l.b16 %v625
  %v3702 = vunpack.c.l.b16 %v626
  %v3703 = vunpack.c.l.b16 %v627
  %v3704 = vunpack.c.l.b16 %v628
  %v3705 = vunpack.c.l.b16 %v629
  %v3706 = vunpack.c.l.b16 %v630
  %v3707 = vunpack.c.l.b16 %v631
  %v3708 = vunpack.c.l.b16 %v632
  %v3709 = vunpack.c.l.b16 %v633
  %v3710 = vunpack.c.l.b16 %v634
  %v3711 = vunpack.c.l.b16 %v635
  %v3712 = vunpack.c.l.b16 %v636
  %v3713 = vunpack.c.l.b16 %v637
  %v3714 = vunpack.c.l.b16 %v638
  %v3715 = vunpack.c.l.b16 %v639
  %v3716 = vunpack.c.l.b16 %v640
  %v3717 = vunpack.c.l.b16 %v641
  %v3718 = vunpack.c.l.b16 %v642
  %v3719 = vunpack.c.l.b16 %v643
  %v3720 = vunpack.c.l.b16 %v644
  %v3721 = vunpack.c.l.b16 %v645
  %v3722 = vunpack.c.l.b16 %v646
  %v3723 = vunpack.c.l.b16 %v647
  %v3724 = vunpack.c.l.b16 %v648
  %v3725 = vunpack.c.l.b16 %v649
  %v3726 = vunpack.c.l.b16 %v650
  %v3727 = vunpack.c.l.b16 %v651
  %v3728 = vunpack.c.l.b16 %v652
  %v3729 = vunpack.c.l.b16 %v653
  %v3730 = vunpack.c.l.b16 %v654
  %v3731 = vunpack.c.l.b16 %v655
  %v3732 = vunpack.c.l.b16 %v656
  %v3733 = vunpack.c.l.b16 %v657
  %v3734 = vunpack.c.l.b16 %v658
  %v3735 = vunpack.c.l.b16 %v659
  %v3736 = vunpack.c.l.b16 %v660
  %v3737 = vunpack.c.l.b16 %v661
  %v3738 = vunpack.c.l.b16 %v662
  %v3739 = vunpack.c.l.b16 %v663
  %v3740 = vunpack.c.l.b16 %v664
  %v3741 = vunpack.c.l.b16 %v665
  %v3742 = vunpack.c.l.b16 %v666
  %v3743 = vunpack.c.l.b16 %v667
  %v3744 = vunpack.c.l.b16 %v668
  %v3745 = vunpack.c.l.b16 %v669
  %v3746 = vunpack.c.l.b16 %v670
  %v3747 = vunpack.c.l.b16 %v671
  %v3748 = vunpack.c.l.b16 %v672
  %v3749 = vunpack.c.l.b16 %v673
  %v3750 = vunpack.c.l.b16 %v674
  %v3751 = vunpack.c.l.b16 %v675
  %v3752 = vunpack.c.l.b16 %v676
  %v3753 = vunpack.c.l.b16 %v677
  %v3754 = vunpack.c.l.b16 %v678
  %v3755 = vunpack.c.l.b16 %v679
  %v3756 = vunpack.c.l.b16 %v680
  %v3757 = vunpack.c.l.b16 %v681
  %v3758 = vunpack.c.l.b16 %v682
  %v3759 = vunpack.c.l.b16 %v683
  %v3760 = vunpack.c.l.b16 %v684
  %v3761 = vunpack.c.l.b16 %v685
  %v3762 = vunpack.c.l.b16 %v686
  %v3763 = vunpack.c.l.b16 %v687
  %v3764 = vunpack.c.l.b16 %v688
  %v3765 = vunpack.c.l.b16 %v689
  %v3766 = vunpack.c.l.b16 %v690
  %v3767 = vunpack.c.l.b16 %v691
  %v3768 = vunpack.c.l.b16 %v692
  %v3769 = vunpack.c.l.b16 %v693
  %v3770 = vunpack.c.l.b16 %v694
  %v3771 = vunpack.c.l.b16 %v695
  %v3772 = vunpack.c.l.b16 %v696
  %v3773 = vunpack.c.l.b16 %v697
  %v3774 = vunpack.c.l.b16 %v698
  %v3775 = vunpack.c.l.b16 %v699
  %v3776 = vunpack.c.l.b16 %v700
  %v3777 = vunpack.c.l.b16 %v701
  %v3778 = vunpack.c.l.b16 %v702
  %v3779 = vunpack.c.l.b16 %v703
  %v3780 = vunpack.c.l.b16 %v704
  %v3781 = vunpack.c.l.b16 %v705
  %v3782 = vunpack.c.l.b16 %v706
  %v3783 = vunpack.c.l.b16 %v707
  %v3784 = vunpack.c.l.b16 %v708
  %v3785 = vunpack.c.l.b16 %v709
  %v3786 = vunpack.c.l.b16 %v710
  %v3787 = vunpack.c.l.b16 %v711
  %v3788 = vunpack.c.l.b16 %v712
  %v3789 = vunpack.c.l.b16 %v713
  %v3790 = vunpack.c.l.b16 %v714
  %v3791 = vunpack.c.l.b16 %v715
  %v3792 = vunpack.c.l.b16 %v716
  %v3793 = vunpack.c.l.b16 %v717
  %v3794 = vunpack.c.l.b16 %v718
  %v3795 = vunpack.c.l.b16 %v719
  %v3796 = vunpack.c.l.b16 %v720
  %v3797 = vunpack.c.l.b16 %v721
  %v3798 = vunpack.c.l.b16 %v722
  %v3799 = vunpack.c.l.b16 %v723
  %v3800 = vunpack.c.l.b16 %v724
  %v3801 = vunpack.c.l.b16 %v725
  %v3802 = vunpack.c.l.b16 %v726
  %v3803 = vunpack.c.l.b16 %v727
  %v3804 = vunpack.c.l.b16 %v728
  %v3805 = vunpack.c.l.b16 %v729
  %v3806 = vunpack.c.l.b16 %v730
  %v3807 = vunpack.c.l.b16 %v731
  %v3808 = vunpack.c.l.b16 %v732
  %v3809 = vunpack.c.l.b16 %v733
  %v3810 = vunpack.c.l.b16 %v734
  %v3811 = vunpack.c.l.b16 %v735
  %v3812 = vunpack.c.l.b16 %v736
  %v3813 = vunpack.c.l.b16 %v737
  %v3814 = vunpack.c.l.b16 %v738
  %v3815 = vunpack.c.l.b16 %v739
  %v3816 = vunpack.c.l.b16 %v740
  %v3817 = vunpack.c.l.b16 %v741
  %v3818 = vunpack.c.l.b16 %v742
  %v3819 = vunpack.c.l.b16 %v743
  %v3820 = vunpack.c.l.b16 %v744
  %v3821 = vunpack.c.l.b16 %v745
  %v3822 = vunpack.c.l.b16 %v746
  %v3823 = vunpack.c.l.b16 %v747
  %v3824 = vunpack.c.l.b16 %v748
  %v3825 = vunpack.c.l.b16 %v749
  %v3826 = vunpack.c.l.b16 %v750
  %v3827 = vunpack.c.l.b16 %v751
  %v3828 = vunpack.c.l.b16 %v752
  %v3829 = vunpack.c.l.b16 %v753
  %v3830 = vunpack.c.l.b16 %v754
  %v3831 = vunpack.c.l.b16 %v755
  %v3832 = vunpack.c.l.b16 %v756
  %v3833 = vunpack.c.l.b16 %v757
  %v3834 = vunpack.c.l.b16 %v758
  %v3835 = vunpack.c.l.b16 %v759
  %v3836 = vunpack.c.l.b16 %v760
  %v3837 = vunpack.c.l.b16 %v761
  %v3838 = vunpack.c.l.b16 %v762
  %v3839 = vunpack.c.l.b16 %v763
  %v3840 = vunpack.c.l.b16 %v764
  %v3841 = vunpack.c.l.b16 %v765
  %v3842 = vunpack.c.l.b16 %v766
  %v3843 = vunpack.c.l.b16 %v767
  %v3844 = vunpack.c.l.b16 %v768
  %v3845 = vunpack.c.l.b16 %v769
  %v3846 = vunpack.c.l.b16 %v770
  %v3847 = vunpack.c.l.b16 %v771
  %v3848 = vunpack.c.l.b16 %v772
  %v3849 = vunpack.c.l.b16 %v773
  %v3850 = vunpack.c.l.b16 %v774
  %v3851 = vunpack.c.l.b16 %v775
  %v3852 = vunpack.c.l.b16 %v776
  %v3853 = vunpack.c.l.b16 %v777
  %v3854 = vunpack.c.l.b16 %v778
  %v3855 = vunpack.c.l.b16 %v779
  %v3856 = vunpack.c.l.b16 %v780
  %v3857 = vunpack.c.l.b16 %v781
  %v3858 = vpack.c.b16 %v3603, %v3602
  %v3859 = vpack.c.b16 %v3605, %v3604
  %v3860 = vpack.c.b16 %v3607, %v3606
  %v3861 = vpack.c.b16 %v3609, %v3608
  %v3862 = vpack.c.b16 %v3611, %v3610
  %v3863 = vpack.c.b16 %v3613, %v3612
  %v3864 = vpack.c.b16 %v3615, %v3614
  %v3865 = vpack.c.b16 %v3617, %v3616
  %v3866 = vpack.c.b16 %v3619, %v3618
  %v3867 = vpack.c.b16 %v3621, %v3620
  %v3868 = vpack.c.b16 %v3623, %v3622
  %v3869 = vpack.c.b16 %v3625, %v3624
  %v3870 = vpack.c.b16 %v3627, %v3626
  %v3871 = vpack.c.b16 %v3629, %v3628
  %v3872 = vpack.c.b16 %v3631, %v3630
  %v3873 = vpack.c.b16 %v3633, %v3632
  %v3874 = vpack.c.b16 %v3635, %v3634
  %v3875 = vpack.c.b16 %v3637, %v3636
  %v3876 = vpack.c.b16 %v3639, %v3638
  %v3877 = vpack.c.b16 %v3641, %v3640
  %v3878 = vpack.c.b16 %v3643, %v3642
  %v3879 = vpack.c.b16 %v3645, %v3644
  %v3880 = vpack.c.b16 %v3647, %v3646
  %v3881 = vpack.c.b16 %v3649, %v3648
  %v3882 = vpack.c.b16 %v3651, %v3650
  %v3883 = vpack.c.b16 %v3653, %v3652
  %v3884 = vpack.c.b16 %v3655, %v3654
  %v3885 = vpack.c.b16 %v3657, %v3656
  %v3886 = vpack.c.b16 %v3659, %v3658
  %v3887 = vpack.c.b16 %v3661, %v3660
  %v3888 = vpack.c.b16 %v3663, %v3662
  %v3889 = vpack.c.b16 %v3665, %v3664
  %v3890 = vpack.c.b16 %v3667, %v3666
  %v3891 = vpack.c.b16 %v3669, %v3668
  %v3892 = vpack.c.b16 %v3671, %v3670
  %v3893 = vpack.c.b16 %v3673, %v3672
  %v3894 = vpack.c.b16 %v3675, %v3674
  %v3895 = vpack.c.b16 %v3677, %v3676
  %v3896 = vpack.c.b16 %v3679, %v3678
  %v3897 = vpack.c.b16 %v3681, %v3680
  %v3898 = vpack.c.b16 %v3683, %v3682
  %v3899 = vpack.c.b16 %v3685, %v3684
  %v3900 = vpack.c.b16 %v3687, %v3686
  %v3901 = vpack.c.b16 %v3689, %v3688
  %v3902 = vpack.c.b16 %v3691, %v3690
  %v3903 = vpack.c.b16 %v3693, %v3692
  %v3904 = vpack.c.b16 %v3695, %v3694
  %v3905 = vpack.c.b16 %v3697, %v3696
  %v3906 = vpack.c.b16 %v3699, %v3698
  %v3907 = vpack.c.b16 %v3701, %v3700
  %v3908 = vpack.c.b16 %v3703, %v3702
  %v3909 = vpack.c.b16 %v3705, %v3704
  %v3910 = vpack.c.b16 %v3707, %v3706
  %v3911 = vpack.c.b16 %v3709, %v3708
  %v3912 = vpack.c.b16 %v3711, %v3710
  %v3913 = vpack.c.b16 %v3713, %v3712
  %v3914 = vpack.c.b16 %v3715, %v3714
  %v3915 = vpack.c.b16 %v3717, %v3716
  %v3916 = vpack.c.b16 %v3719, %v3718
  %v3917 = vpack.c.b16 %v3721, %v3720
  %v3918 = vpack.c.b16 %v3723, %v3722
  %v3919 = vpack.c.b16 %v3725, %v3724
  %v3920 = vpack.c.b16 %v3727, %v3726
  %v3921 = vpack.c.b16 %v3729, %v3728
  %v3922 = vpack.c.b16 %v3731, %v3730
  %v3923 = vpack.c.b16 %v3733, %v3732
  %v3924 = vpack.c.b16 %v3735, %v3734
  %v3925 = vpack.c.b16 %v3737, %v3736
  %v3926 = vpack.c.b16 %v3739, %v3738
  %v3927 = vpack.c.b16 %v3741, %v3740
  %v3928 = vpack.c.b16 %v3743, %v3742
  %v3929 = vpack.c.b16 %v3745, %v3744
  %v3930 = vpack.c.b16 %v3747, %v3746
  %v3931 = vpack.c.b16 %v3749, %v3748
  %v3932 = vpack.c.b16 %v3751, %v3750
  %v3933 = vpack.c.b16 %v3753, %v3752
  %v3934 = vpack.c.b16 %v3755, %v3754
  %v3935 = vpack.c.b16 %v3757, %v3756
  %v3936 = vpack.c.b16 %v3759, %v3758
  %v3937 = vpack.c.b16 %v3761, %v3760
  %v3938 = vpack.c.b16 %v3763, %v3762
  %v3939 = vpack.c.b16 %v3765, %v3764
  %v3940 = vpack.c.b16 %v3767, %v3766
  %v3941 = vpack.c.b16 %v3769, %v3768
  %v3942 = vpack.c.b16 %v3771, %v3770
  %v3943 = vpack.c.b16 %v3773, %v3772
  %v3944 = vpack.c.b16 %v3775, %v3774
  %v3945 = vpack.c.b16 %v3777, %v3776
  %v3946 = vpack.c.b16 %v3779, %v3778
  %v3947 = vpack.c.b16 %v3781, %v3780
  %v3948 = vpack.c.b16 %v3783, %v3782
  %v3949 = vpack.c.b16 %v3785, %v3784
  %v3950 = vpack.c.b16 %v3787, %v3786
  %v3951 = vpack.c.b16 %v3789, %v3788
  %v3952 = vpack.c.b16 %v3791, %v3790
  %v3953 = vpack.c.b16 %v3793, %v3792
  %v3954 = vpack.c.b16 %v3795, %v3794
  %v3955 = vpack.c.b16 %v3797, %v3796
  %v3956 = vpack.c.b16 %v3799, %v3798
  %v3957 = vpack.c.b16 %v3801, %v3800
  %v3958 = vpack.c.b16 %v3803, %v3802
  %v3959 = vpack.c.b16 %v3805, %v3804
  %v3960 = vpack.c.b16 %v3807, %v3806
  %v3961 = vpack.c.b16 %v3809, %v3808
  %v3962 = vpack.c.b16 %v3811, %v3810
  %v3963 = vpack.c.b16 %v3813, %v3812
  %v3964 = vpack.c.b16 %v3815, %v3814
  %v3965 = vpack.c.b16 %v3817, %v3816
  %v3966 = vpack.c.b16 %v3819, %v3818
  %v3967 = vpack.c.b16 %v3821, %v3820
  %v3968 = vpack.c.b16 %v3823, %v3822
  %v3969 = vpack.c.b16 %v3825, %v3824
  %v3970 = vpack.c.b16 %v3827, %v3826
  %v3971 = vpack.c.b16 %v3829, %v3828
  %v3972 = vpack.c.b16 %v3831, %v3830
  %v3973 = vpack.c.b16 %v3833, %v3832
  %v3974 = vpack.c.b16 %v3835, %v3834
  %v3975 = vpack.c.b16 %v3837, %v3836
  %v3976 = vpack.c.b16 %v3839, %v3838
  %v3977 = vpack.c.b16 %v3841, %v3840
  %v3978 = vpack.c.b16 %v3843, %v3842
  %v3979 = vpack.c.b16 %v3845, %v3844
  %v3980 = vpack.c.b16 %v3847, %v3846
  %v3981 = vpack.c.b16 %v3849, %v3848
  %v3982 = vpack.c.b16 %v3851, %v3850
  %v3983 = vpack.c.b16 %v3853, %v3852
  %v3984 = vpack.c.b16 %v3855, %v3854
  %v3985 = vpack.c.b16 %v3857, %v3856
  %4114 = vmatpush.bf16.msra.mxu0 %v3865
  %4115 = vmatpush.bf16.msra.mxu0 %v3864
  %4116 = vmatpush.bf16.msra.mxu0 %v3863
  %4117 = vmatpush.bf16.msra.mxu0 %v3862
  %4118 = vmatpush.bf16.msra.mxu0 %v3861
  %4119 = vmatpush.bf16.msra.mxu0 %v3860
  %4120 = vmatpush.bf16.msra.mxu0 %v3859
  %4121 = vmatpush.bf16.msra.mxu0 %v3858
  %4122 = vmatmul.bf16.gmra.mxu0 %v2322
  %v4123 = vpop.f32.mrf.mxu0
  %v4124 = vadd.f32 %v784, %v4123
  %v4125 = vpop.f32.mrf.mxu0
  %v4126 = vadd.f32 %v784, %v4125
  %4127 = vmatmul.bf16.gmra.mxu0 %v2338
  %v4128 = vpop.f32.mrf.mxu0
  %v4129 = vadd.f32 %v784, %v4128
  %v4130 = vpop.f32.mrf.mxu0
  %v4131 = vadd.f32 %v784, %v4130
  %4132 = vmatmul.bf16.gmra.mxu0 %v2354
  %v4133 = vpop.f32.mrf.mxu0
  %v4134 = vadd.f32 %v784, %v4133
  %v4135 = vpop.f32.mrf.mxu0
  %v4136 = vadd.f32 %v784, %v4135
  %4137 = vmatmul.bf16.gmra.mxu0 %v2370
  %v4138 = vpop.f32.mrf.mxu0
  %v4139 = vadd.f32 %v784, %v4138
  %v4140 = vpop.f32.mrf.mxu0
  %v4141 = vadd.f32 %v784, %v4140
  %4142 = vmatmul.bf16.gmra.mxu0 %v2386
  %v4143 = vpop.f32.mrf.mxu0
  %v4144 = vadd.f32 %v784, %v4143
  %v4145 = vpop.f32.mrf.mxu0
  %v4146 = vadd.f32 %v784, %v4145
  %4147 = vmatmul.bf16.gmra.mxu0 %v2402
  %v4148 = vpop.f32.mrf.mxu0
  %v4149 = vadd.f32 %v784, %v4148
  %v4150 = vpop.f32.mrf.mxu0
  %v4151 = vadd.f32 %v784, %v4150
  %4152 = vmatmul.bf16.gmra.mxu0 %v2418
  %v4153 = vpop.f32.mrf.mxu0
  %v4154 = vadd.f32 %v784, %v4153
  %v4155 = vpop.f32.mrf.mxu0
  %v4156 = vadd.f32 %v784, %v4155
  %4157 = vmatmul.bf16.gmra.mxu0 %v2434
  %v4158 = vpop.f32.mrf.mxu0
  %v4159 = vadd.f32 %v784, %v4158
  %v4160 = vpop.f32.mrf.mxu0
  %v4161 = vadd.f32 %v784, %v4160
  %4162 = vmatmul.bf16.gmra.mxu0 %v2450
  %v4163 = vpop.f32.mrf.mxu0
  %v4164 = vadd.f32 %v784, %v4163
  %v4165 = vpop.f32.mrf.mxu0
  %v4166 = vadd.f32 %v784, %v4165
  %4167 = vmatmul.bf16.gmra.mxu0 %v2466
  %v4168 = vpop.f32.mrf.mxu0
  %v4169 = vadd.f32 %v784, %v4168
  %v4170 = vpop.f32.mrf.mxu0
  %v4171 = vadd.f32 %v784, %v4170
  %4172 = vmatmul.bf16.gmra.mxu0 %v2482
  %v4173 = vpop.f32.mrf.mxu0
  %v4174 = vadd.f32 %v784, %v4173
  %v4175 = vpop.f32.mrf.mxu0
  %v4176 = vadd.f32 %v784, %v4175
  %4177 = vmatmul.bf16.gmra.mxu0 %v2498
  %v4178 = vpop.f32.mrf.mxu0
  %v4179 = vadd.f32 %v784, %v4178
  %v4180 = vpop.f32.mrf.mxu0
  %v4181 = vadd.f32 %v784, %v4180
  %4182 = vmatmul.bf16.gmra.mxu0 %v2514
  %v4183 = vpop.f32.mrf.mxu0
  %v4184 = vadd.f32 %v784, %v4183
  %v4185 = vpop.f32.mrf.mxu0
  %v4186 = vadd.f32 %v784, %v4185
  %4187 = vmatmul.bf16.gmra.mxu0 %v2530
  %v4188 = vpop.f32.mrf.mxu0
  %v4189 = vadd.f32 %v784, %v4188
  %v4190 = vpop.f32.mrf.mxu0
  %v4191 = vadd.f32 %v784, %v4190
  %4192 = vmatmul.bf16.gmra.mxu0 %v2546
  %v4193 = vpop.f32.mrf.mxu0
  %v4194 = vadd.f32 %v784, %v4193
  %v4195 = vpop.f32.mrf.mxu0
  %v4196 = vadd.f32 %v784, %v4195
  %4197 = vmatmul.bf16.gmra.mxu0 %v2562
  %v4198 = vpop.f32.mrf.mxu0
  %v4199 = vadd.f32 %v784, %v4198
  %v4200 = vpop.f32.mrf.mxu0
  %v4201 = vadd.f32 %v784, %v4200
  %4202 = vmatmul.bf16.gmra.mxu0 %v2578
  %v4203 = vpop.f32.mrf.mxu0
  %v4204 = vadd.f32 %v784, %v4203
  %v4205 = vpop.f32.mrf.mxu0
  %v4206 = vadd.f32 %v784, %v4205
  %4207 = vmatmul.bf16.gmra.mxu0 %v2594
  %v4208 = vpop.f32.mrf.mxu0
  %v4209 = vadd.f32 %v784, %v4208
  %v4210 = vpop.f32.mrf.mxu0
  %v4211 = vadd.f32 %v784, %v4210
  %4212 = vmatmul.bf16.gmra.mxu0 %v2610
  %v4213 = vpop.f32.mrf.mxu0
  %v4214 = vadd.f32 %v784, %v4213
  %v4215 = vpop.f32.mrf.mxu0
  %v4216 = vadd.f32 %v784, %v4215
  %4217 = vmatmul.bf16.gmra.mxu0 %v2626
  %v4218 = vpop.f32.mrf.mxu0
  %v4219 = vadd.f32 %v784, %v4218
  %v4220 = vpop.f32.mrf.mxu0
  %v4221 = vadd.f32 %v784, %v4220
  %4222 = vmatmul.bf16.gmra.mxu0 %v2642
  %v4223 = vpop.f32.mrf.mxu0
  %v4224 = vadd.f32 %v784, %v4223
  %v4225 = vpop.f32.mrf.mxu0
  %v4226 = vadd.f32 %v784, %v4225
  %4227 = vmatmul.bf16.gmra.mxu0 %v2658
  %v4228 = vpop.f32.mrf.mxu0
  %v4229 = vadd.f32 %v784, %v4228
  %v4230 = vpop.f32.mrf.mxu0
  %v4231 = vadd.f32 %v784, %v4230
  %4232 = vmatmul.bf16.gmra.mxu0 %v2674
  %v4233 = vpop.f32.mrf.mxu0
  %v4234 = vadd.f32 %v784, %v4233
  %v4235 = vpop.f32.mrf.mxu0
  %v4236 = vadd.f32 %v784, %v4235
  %4237 = vmatmul.bf16.gmra.mxu0 %v2690
  %v4238 = vpop.f32.mrf.mxu0
  %v4239 = vadd.f32 %v784, %v4238
  %v4240 = vpop.f32.mrf.mxu0
  %v4241 = vadd.f32 %v784, %v4240
  %4242 = vmatmul.bf16.gmra.mxu0 %v2706
  %v4243 = vpop.f32.mrf.mxu0
  %v4244 = vadd.f32 %v784, %v4243
  %v4245 = vpop.f32.mrf.mxu0
  %v4246 = vadd.f32 %v784, %v4245
  %4247 = vmatmul.bf16.gmra.mxu0 %v2722
  %v4248 = vpop.f32.mrf.mxu0
  %v4249 = vadd.f32 %v784, %v4248
  %v4250 = vpop.f32.mrf.mxu0
  %v4251 = vadd.f32 %v784, %v4250
  %4252 = vmatmul.bf16.gmra.mxu0 %v2738
  %v4253 = vpop.f32.mrf.mxu0
  %v4254 = vadd.f32 %v784, %v4253
  %v4255 = vpop.f32.mrf.mxu0
  %v4256 = vadd.f32 %v784, %v4255
  %4257 = vmatmul.bf16.gmra.mxu0 %v2754
  %v4258 = vpop.f32.mrf.mxu0
  %v4259 = vadd.f32 %v784, %v4258
  %v4260 = vpop.f32.mrf.mxu0
  %v4261 = vadd.f32 %v784, %v4260
  %4262 = vmatmul.bf16.gmra.mxu0 %v2770
  %v4263 = vpop.f32.mrf.mxu0
  %v4264 = vadd.f32 %v784, %v4263
  %v4265 = vpop.f32.mrf.mxu0
  %v4266 = vadd.f32 %v784, %v4265
  %4267 = vmatmul.bf16.gmra.mxu0 %v2786
  %v4268 = vpop.f32.mrf.mxu0
  %v4269 = vadd.f32 %v784, %v4268
  %v4270 = vpop.f32.mrf.mxu0
  %v4271 = vadd.f32 %v784, %v4270
  %4272 = vmatmul.bf16.gmra.mxu0 %v2802
  %v4273 = vpop.f32.mrf.mxu0
  %v4274 = vadd.f32 %v784, %v4273
  %v4275 = vpop.f32.mrf.mxu0
  %v4276 = vadd.f32 %v784, %v4275
  %4277 = vmatmul.bf16.gmra.mxu0 %v2818
  %v4278 = vpop.f32.mrf.mxu0
  %v4279 = vadd.f32 %v784, %v4278
  %v4280 = vpop.f32.mrf.mxu0
  %v4281 = vadd.f32 %v784, %v4280
  %4282 = vdwg.mxu0
  %4283 = vmatpush.bf16.msra.mxu0 %v3873
  %4284 = vmatpush.bf16.msra.mxu0 %v3872
  %4285 = vmatpush.bf16.msra.mxu0 %v3871
  %4286 = vmatpush.bf16.msra.mxu0 %v3870
  %4287 = vmatpush.bf16.msra.mxu0 %v3869
  %4288 = vmatpush.bf16.msra.mxu0 %v3868
  %4289 = vmatpush.bf16.msra.mxu0 %v3867
  %4290 = vmatpush.bf16.msra.mxu0 %v3866
  %4291 = vmatmul.bf16.gmra.mxu0 %v2323
  %v4292 = vpop.f32.mrf.mxu0
  %v4293 = vadd.f32 %v4124, %v4292
  %v4294 = vpop.f32.mrf.mxu0
  %v4295 = vadd.f32 %v4126, %v4294
  %4296 = vmatmul.bf16.gmra.mxu0 %v2339
  %v4297 = vpop.f32.mrf.mxu0
  %v4298 = vadd.f32 %v4129, %v4297
  %v4299 = vpop.f32.mrf.mxu0
  %v4300 = vadd.f32 %v4131, %v4299
  %4301 = vmatmul.bf16.gmra.mxu0 %v2355
  %v4302 = vpop.f32.mrf.mxu0
  %v4303 = vadd.f32 %v4134, %v4302
  %v4304 = vpop.f32.mrf.mxu0
  %v4305 = vadd.f32 %v4136, %v4304
  %4306 = vmatmul.bf16.gmra.mxu0 %v2371
  %v4307 = vpop.f32.mrf.mxu0
  %v4308 = vadd.f32 %v4139, %v4307
  %v4309 = vpop.f32.mrf.mxu0
  %v4310 = vadd.f32 %v4141, %v4309
  %4311 = vmatmul.bf16.gmra.mxu0 %v2387
  %v4312 = vpop.f32.mrf.mxu0
  %v4313 = vadd.f32 %v4144, %v4312
  %v4314 = vpop.f32.mrf.mxu0
  %v4315 = vadd.f32 %v4146, %v4314
  %4316 = vmatmul.bf16.gmra.mxu0 %v2403
  %v4317 = vpop.f32.mrf.mxu0
  %v4318 = vadd.f32 %v4149, %v4317
  %v4319 = vpop.f32.mrf.mxu0
  %v4320 = vadd.f32 %v4151, %v4319
  %4321 = vmatmul.bf16.gmra.mxu0 %v2419
  %v4322 = vpop.f32.mrf.mxu0
  %v4323 = vadd.f32 %v4154, %v4322
  %v4324 = vpop.f32.mrf.mxu0
  %v4325 = vadd.f32 %v4156, %v4324
  %4326 = vmatmul.bf16.gmra.mxu0 %v2435
  %v4327 = vpop.f32.mrf.mxu0
  %v4328 = vadd.f32 %v4159, %v4327
  %v4329 = vpop.f32.mrf.mxu0
  %v4330 = vadd.f32 %v4161, %v4329
  %4331 = vmatmul.bf16.gmra.mxu0 %v2451
  %v4332 = vpop.f32.mrf.mxu0
  %v4333 = vadd.f32 %v4164, %v4332
  %v4334 = vpop.f32.mrf.mxu0
  %v4335 = vadd.f32 %v4166, %v4334
  %4336 = vmatmul.bf16.gmra.mxu0 %v2467
  %v4337 = vpop.f32.mrf.mxu0
  %v4338 = vadd.f32 %v4169, %v4337
  %v4339 = vpop.f32.mrf.mxu0
  %v4340 = vadd.f32 %v4171, %v4339
  %4341 = vmatmul.bf16.gmra.mxu0 %v2483
  %v4342 = vpop.f32.mrf.mxu0
  %v4343 = vadd.f32 %v4174, %v4342
  %v4344 = vpop.f32.mrf.mxu0
  %v4345 = vadd.f32 %v4176, %v4344
  %4346 = vmatmul.bf16.gmra.mxu0 %v2499
  %v4347 = vpop.f32.mrf.mxu0
  %v4348 = vadd.f32 %v4179, %v4347
  %v4349 = vpop.f32.mrf.mxu0
  %v4350 = vadd.f32 %v4181, %v4349
  %4351 = vmatmul.bf16.gmra.mxu0 %v2515
  %v4352 = vpop.f32.mrf.mxu0
  %v4353 = vadd.f32 %v4184, %v4352
  %v4354 = vpop.f32.mrf.mxu0
  %v4355 = vadd.f32 %v4186, %v4354
  %4356 = vmatmul.bf16.gmra.mxu0 %v2531
  %v4357 = vpop.f32.mrf.mxu0
  %v4358 = vadd.f32 %v4189, %v4357
  %v4359 = vpop.f32.mrf.mxu0
  %v4360 = vadd.f32 %v4191, %v4359
  %4361 = vmatmul.bf16.gmra.mxu0 %v2547
  %v4362 = vpop.f32.mrf.mxu0
  %v4363 = vadd.f32 %v4194, %v4362
  %v4364 = vpop.f32.mrf.mxu0
  %v4365 = vadd.f32 %v4196, %v4364
  %4366 = vmatmul.bf16.gmra.mxu0 %v2563
  %v4367 = vpop.f32.mrf.mxu0
  %v4368 = vadd.f32 %v4199, %v4367
  %v4369 = vpop.f32.mrf.mxu0
  %v4370 = vadd.f32 %v4201, %v4369
  %4371 = vmatmul.bf16.gmra.mxu0 %v2579
  %v4372 = vpop.f32.mrf.mxu0
  %v4373 = vadd.f32 %v4204, %v4372
  %v4374 = vpop.f32.mrf.mxu0
  %v4375 = vadd.f32 %v4206, %v4374
  %4376 = vmatmul.bf16.gmra.mxu0 %v2595
  %v4377 = vpop.f32.mrf.mxu0
  %v4378 = vadd.f32 %v4209, %v4377
  %v4379 = vpop.f32.mrf.mxu0
  %v4380 = vadd.f32 %v4211, %v4379
  %4381 = vmatmul.bf16.gmra.mxu0 %v2611
  %v4382 = vpop.f32.mrf.mxu0
  %v4383 = vadd.f32 %v4214, %v4382
  %v4384 = vpop.f32.mrf.mxu0
  %v4385 = vadd.f32 %v4216, %v4384
  %4386 = vmatmul.bf16.gmra.mxu0 %v2627
  %v4387 = vpop.f32.mrf.mxu0
  %v4388 = vadd.f32 %v4219, %v4387
  %v4389 = vpop.f32.mrf.mxu0
  %v4390 = vadd.f32 %v4221, %v4389
  %4391 = vmatmul.bf16.gmra.mxu0 %v2643
  %v4392 = vpop.f32.mrf.mxu0
  %v4393 = vadd.f32 %v4224, %v4392
  %v4394 = vpop.f32.mrf.mxu0
  %v4395 = vadd.f32 %v4226, %v4394
  %4396 = vmatmul.bf16.gmra.mxu0 %v2659
  %v4397 = vpop.f32.mrf.mxu0
  %v4398 = vadd.f32 %v4229, %v4397
  %v4399 = vpop.f32.mrf.mxu0
  %v4400 = vadd.f32 %v4231, %v4399
  %4401 = vmatmul.bf16.gmra.mxu0 %v2675
  %v4402 = vpop.f32.mrf.mxu0
  %v4403 = vadd.f32 %v4234, %v4402
  %v4404 = vpop.f32.mrf.mxu0
  %v4405 = vadd.f32 %v4236, %v4404
  %4406 = vmatmul.bf16.gmra.mxu0 %v2691
  %v4407 = vpop.f32.mrf.mxu0
  %v4408 = vadd.f32 %v4239, %v4407
  %v4409 = vpop.f32.mrf.mxu0
  %v4410 = vadd.f32 %v4241, %v4409
  %4411 = vmatmul.bf16.gmra.mxu0 %v2707
  %v4412 = vpop.f32.mrf.mxu0
  %v4413 = vadd.f32 %v4244, %v4412
  %v4414 = vpop.f32.mrf.mxu0
  %v4415 = vadd.f32 %v4246, %v4414
  %4416 = vmatmul.bf16.gmra.mxu0 %v2723
  %v4417 = vpop.f32.mrf.mxu0
  %v4418 = vadd.f32 %v4249, %v4417
  %v4419 = vpop.f32.mrf.mxu0
  %v4420 = vadd.f32 %v4251, %v4419
  %4421 = vmatmul.bf16.gmra.mxu0 %v2739
  %v4422 = vpop.f32.mrf.mxu0
  %v4423 = vadd.f32 %v4254, %v4422
  %v4424 = vpop.f32.mrf.mxu0
  %v4425 = vadd.f32 %v4256, %v4424
  %4426 = vmatmul.bf16.gmra.mxu0 %v2755
  %v4427 = vpop.f32.mrf.mxu0
  %v4428 = vadd.f32 %v4259, %v4427
  %v4429 = vpop.f32.mrf.mxu0
  %v4430 = vadd.f32 %v4261, %v4429
  %4431 = vmatmul.bf16.gmra.mxu0 %v2771
  %v4432 = vpop.f32.mrf.mxu0
  %v4433 = vadd.f32 %v4264, %v4432
  %v4434 = vpop.f32.mrf.mxu0
  %v4435 = vadd.f32 %v4266, %v4434
  %4436 = vmatmul.bf16.gmra.mxu0 %v2787
  %v4437 = vpop.f32.mrf.mxu0
  %v4438 = vadd.f32 %v4269, %v4437
  %v4439 = vpop.f32.mrf.mxu0
  %v4440 = vadd.f32 %v4271, %v4439
  %4441 = vmatmul.bf16.gmra.mxu0 %v2803
  %v4442 = vpop.f32.mrf.mxu0
  %v4443 = vadd.f32 %v4274, %v4442
  %v4444 = vpop.f32.mrf.mxu0
  %v4445 = vadd.f32 %v4276, %v4444
  %4446 = vmatmul.bf16.gmra.mxu0 %v2819
  %v4447 = vpop.f32.mrf.mxu0
  %v4448 = vadd.f32 %v4279, %v4447
  %v4449 = vpop.f32.mrf.mxu0
  %v4450 = vadd.f32 %v4281, %v4449
  %4451 = vdwg.mxu0
  %4452 = vmatpush.bf16.msra.mxu0 %v3881
  %4453 = vmatpush.bf16.msra.mxu0 %v3880
  %4454 = vmatpush.bf16.msra.mxu0 %v3879
  %4455 = vmatpush.bf16.msra.mxu0 %v3878
  %4456 = vmatpush.bf16.msra.mxu0 %v3877
  %4457 = vmatpush.bf16.msra.mxu0 %v3876
  %4458 = vmatpush.bf16.msra.mxu0 %v3875
  %4459 = vmatpush.bf16.msra.mxu0 %v3874
  %4460 = vmatmul.bf16.gmra.mxu0 %v2324
  %v4461 = vpop.f32.mrf.mxu0
  %v4462 = vadd.f32 %v4293, %v4461
  %v4463 = vpop.f32.mrf.mxu0
  %v4464 = vadd.f32 %v4295, %v4463
  %4465 = vmatmul.bf16.gmra.mxu0 %v2340
  %v4466 = vpop.f32.mrf.mxu0
  %v4467 = vadd.f32 %v4298, %v4466
  %v4468 = vpop.f32.mrf.mxu0
  %v4469 = vadd.f32 %v4300, %v4468
  %4470 = vmatmul.bf16.gmra.mxu0 %v2356
  %v4471 = vpop.f32.mrf.mxu0
  %v4472 = vadd.f32 %v4303, %v4471
  %v4473 = vpop.f32.mrf.mxu0
  %v4474 = vadd.f32 %v4305, %v4473
  %4475 = vmatmul.bf16.gmra.mxu0 %v2372
  %v4476 = vpop.f32.mrf.mxu0
  %v4477 = vadd.f32 %v4308, %v4476
  %v4478 = vpop.f32.mrf.mxu0
  %v4479 = vadd.f32 %v4310, %v4478
  %4480 = vmatmul.bf16.gmra.mxu0 %v2388
  %v4481 = vpop.f32.mrf.mxu0
  %v4482 = vadd.f32 %v4313, %v4481
  %v4483 = vpop.f32.mrf.mxu0
  %v4484 = vadd.f32 %v4315, %v4483
  %4485 = vmatmul.bf16.gmra.mxu0 %v2404
  %v4486 = vpop.f32.mrf.mxu0
  %v4487 = vadd.f32 %v4318, %v4486
  %v4488 = vpop.f32.mrf.mxu0
  %v4489 = vadd.f32 %v4320, %v4488
  %4490 = vmatmul.bf16.gmra.mxu0 %v2420
  %v4491 = vpop.f32.mrf.mxu0
  %v4492 = vadd.f32 %v4323, %v4491
  %v4493 = vpop.f32.mrf.mxu0
  %v4494 = vadd.f32 %v4325, %v4493
  %4495 = vmatmul.bf16.gmra.mxu0 %v2436
  %v4496 = vpop.f32.mrf.mxu0
  %v4497 = vadd.f32 %v4328, %v4496
  %v4498 = vpop.f32.mrf.mxu0
  %v4499 = vadd.f32 %v4330, %v4498
  %4500 = vmatmul.bf16.gmra.mxu0 %v2452
  %v4501 = vpop.f32.mrf.mxu0
  %v4502 = vadd.f32 %v4333, %v4501
  %v4503 = vpop.f32.mrf.mxu0
  %v4504 = vadd.f32 %v4335, %v4503
  %4505 = vmatmul.bf16.gmra.mxu0 %v2468
  %v4506 = vpop.f32.mrf.mxu0
  %v4507 = vadd.f32 %v4338, %v4506
  %v4508 = vpop.f32.mrf.mxu0
  %v4509 = vadd.f32 %v4340, %v4508
  %4510 = vmatmul.bf16.gmra.mxu0 %v2484
  %v4511 = vpop.f32.mrf.mxu0
  %v4512 = vadd.f32 %v4343, %v4511
  %v4513 = vpop.f32.mrf.mxu0
  %v4514 = vadd.f32 %v4345, %v4513
  %4515 = vmatmul.bf16.gmra.mxu0 %v2500
  %v4516 = vpop.f32.mrf.mxu0
  %v4517 = vadd.f32 %v4348, %v4516
  %v4518 = vpop.f32.mrf.mxu0
  %v4519 = vadd.f32 %v4350, %v4518
  %4520 = vmatmul.bf16.gmra.mxu0 %v2516
  %v4521 = vpop.f32.mrf.mxu0
  %v4522 = vadd.f32 %v4353, %v4521
  %v4523 = vpop.f32.mrf.mxu0
  %v4524 = vadd.f32 %v4355, %v4523
  %4525 = vmatmul.bf16.gmra.mxu0 %v2532
  %v4526 = vpop.f32.mrf.mxu0
  %v4527 = vadd.f32 %v4358, %v4526
  %v4528 = vpop.f32.mrf.mxu0
  %v4529 = vadd.f32 %v4360, %v4528
  %4530 = vmatmul.bf16.gmra.mxu0 %v2548
  %v4531 = vpop.f32.mrf.mxu0
  %v4532 = vadd.f32 %v4363, %v4531
  %v4533 = vpop.f32.mrf.mxu0
  %v4534 = vadd.f32 %v4365, %v4533
  %4535 = vmatmul.bf16.gmra.mxu0 %v2564
  %v4536 = vpop.f32.mrf.mxu0
  %v4537 = vadd.f32 %v4368, %v4536
  %v4538 = vpop.f32.mrf.mxu0
  %v4539 = vadd.f32 %v4370, %v4538
  %4540 = vmatmul.bf16.gmra.mxu0 %v2580
  %v4541 = vpop.f32.mrf.mxu0
  %v4542 = vadd.f32 %v4373, %v4541
  %v4543 = vpop.f32.mrf.mxu0
  %v4544 = vadd.f32 %v4375, %v4543
  %4545 = vmatmul.bf16.gmra.mxu0 %v2596
  %v4546 = vpop.f32.mrf.mxu0
  %v4547 = vadd.f32 %v4378, %v4546
  %v4548 = vpop.f32.mrf.mxu0
  %v4549 = vadd.f32 %v4380, %v4548
  %4550 = vmatmul.bf16.gmra.mxu0 %v2612
  %v4551 = vpop.f32.mrf.mxu0
  %v4552 = vadd.f32 %v4383, %v4551
  %v4553 = vpop.f32.mrf.mxu0
  %v4554 = vadd.f32 %v4385, %v4553
  %4555 = vmatmul.bf16.gmra.mxu0 %v2628
  %v4556 = vpop.f32.mrf.mxu0
  %v4557 = vadd.f32 %v4388, %v4556
  %v4558 = vpop.f32.mrf.mxu0
  %v4559 = vadd.f32 %v4390, %v4558
  %4560 = vmatmul.bf16.gmra.mxu0 %v2644
  %v4561 = vpop.f32.mrf.mxu0
  %v4562 = vadd.f32 %v4393, %v4561
  %v4563 = vpop.f32.mrf.mxu0
  %v4564 = vadd.f32 %v4395, %v4563
  %4565 = vmatmul.bf16.gmra.mxu0 %v2660
  %v4566 = vpop.f32.mrf.mxu0
  %v4567 = vadd.f32 %v4398, %v4566
  %v4568 = vpop.f32.mrf.mxu0
  %v4569 = vadd.f32 %v4400, %v4568
  %4570 = vmatmul.bf16.gmra.mxu0 %v2676
  %v4571 = vpop.f32.mrf.mxu0
  %v4572 = vadd.f32 %v4403, %v4571
  %v4573 = vpop.f32.mrf.mxu0
  %v4574 = vadd.f32 %v4405, %v4573
  %4575 = vmatmul.bf16.gmra.mxu0 %v2692
  %v4576 = vpop.f32.mrf.mxu0
  %v4577 = vadd.f32 %v4408, %v4576
  %v4578 = vpop.f32.mrf.mxu0
  %v4579 = vadd.f32 %v4410, %v4578
  %4580 = vmatmul.bf16.gmra.mxu0 %v2708
  %v4581 = vpop.f32.mrf.mxu0
  %v4582 = vadd.f32 %v4413, %v4581
  %v4583 = vpop.f32.mrf.mxu0
  %v4584 = vadd.f32 %v4415, %v4583
  %4585 = vmatmul.bf16.gmra.mxu0 %v2724
  %v4586 = vpop.f32.mrf.mxu0
  %v4587 = vadd.f32 %v4418, %v4586
  %v4588 = vpop.f32.mrf.mxu0
  %v4589 = vadd.f32 %v4420, %v4588
  %4590 = vmatmul.bf16.gmra.mxu0 %v2740
  %v4591 = vpop.f32.mrf.mxu0
  %v4592 = vadd.f32 %v4423, %v4591
  %v4593 = vpop.f32.mrf.mxu0
  %v4594 = vadd.f32 %v4425, %v4593
  %4595 = vmatmul.bf16.gmra.mxu0 %v2756
  %v4596 = vpop.f32.mrf.mxu0
  %v4597 = vadd.f32 %v4428, %v4596
  %v4598 = vpop.f32.mrf.mxu0
  %v4599 = vadd.f32 %v4430, %v4598
  %4600 = vmatmul.bf16.gmra.mxu0 %v2772
  %v4601 = vpop.f32.mrf.mxu0
  %v4602 = vadd.f32 %v4433, %v4601
  %v4603 = vpop.f32.mrf.mxu0
  %v4604 = vadd.f32 %v4435, %v4603
  %4605 = vmatmul.bf16.gmra.mxu0 %v2788
  %v4606 = vpop.f32.mrf.mxu0
  %v4607 = vadd.f32 %v4438, %v4606
  %v4608 = vpop.f32.mrf.mxu0
  %v4609 = vadd.f32 %v4440, %v4608
  %4610 = vmatmul.bf16.gmra.mxu0 %v2804
  %v4611 = vpop.f32.mrf.mxu0
  %v4612 = vadd.f32 %v4443, %v4611
  %v4613 = vpop.f32.mrf.mxu0
  %v4614 = vadd.f32 %v4445, %v4613
  %4615 = vmatmul.bf16.gmra.mxu0 %v2820
  %v4616 = vpop.f32.mrf.mxu0
  %v4617 = vadd.f32 %v4448, %v4616
  %v4618 = vpop.f32.mrf.mxu0
  %v4619 = vadd.f32 %v4450, %v4618
  %4620 = vdwg.mxu0
  %4621 = vmatpush.bf16.msra.mxu0 %v3889
  %4622 = vmatpush.bf16.msra.mxu0 %v3888
  %4623 = vmatpush.bf16.msra.mxu0 %v3887
  %4624 = vmatpush.bf16.msra.mxu0 %v3886
  %4625 = vmatpush.bf16.msra.mxu0 %v3885
  %4626 = vmatpush.bf16.msra.mxu0 %v3884
  %4627 = vmatpush.bf16.msra.mxu0 %v3883
  %4628 = vmatpush.bf16.msra.mxu0 %v3882
  %4629 = vmatmul.bf16.gmra.mxu0 %v2325
  %v4630 = vpop.f32.mrf.mxu0
  %v4631 = vadd.f32 %v4462, %v4630
  %v4632 = vpop.f32.mrf.mxu0
  %v4633 = vadd.f32 %v4464, %v4632
  %4634 = vmatmul.bf16.gmra.mxu0 %v2341
  %v4635 = vpop.f32.mrf.mxu0
  %v4636 = vadd.f32 %v4467, %v4635
  %v4637 = vpop.f32.mrf.mxu0
  %v4638 = vadd.f32 %v4469, %v4637
  %4639 = vmatmul.bf16.gmra.mxu0 %v2357
  %v4640 = vpop.f32.mrf.mxu0
  %v4641 = vadd.f32 %v4472, %v4640
  %v4642 = vpop.f32.mrf.mxu0
  %v4643 = vadd.f32 %v4474, %v4642
  %4644 = vmatmul.bf16.gmra.mxu0 %v2373
  %v4645 = vpop.f32.mrf.mxu0
  %v4646 = vadd.f32 %v4477, %v4645
  %v4647 = vpop.f32.mrf.mxu0
  %v4648 = vadd.f32 %v4479, %v4647
  %4649 = vmatmul.bf16.gmra.mxu0 %v2389
  %v4650 = vpop.f32.mrf.mxu0
  %v4651 = vadd.f32 %v4482, %v4650
  %v4652 = vpop.f32.mrf.mxu0
  %v4653 = vadd.f32 %v4484, %v4652
  %4654 = vmatmul.bf16.gmra.mxu0 %v2405
  %v4655 = vpop.f32.mrf.mxu0
  %v4656 = vadd.f32 %v4487, %v4655
  %v4657 = vpop.f32.mrf.mxu0
  %v4658 = vadd.f32 %v4489, %v4657
  %4659 = vmatmul.bf16.gmra.mxu0 %v2421
  %v4660 = vpop.f32.mrf.mxu0
  %v4661 = vadd.f32 %v4492, %v4660
  %v4662 = vpop.f32.mrf.mxu0
  %v4663 = vadd.f32 %v4494, %v4662
  %4664 = vmatmul.bf16.gmra.mxu0 %v2437
  %v4665 = vpop.f32.mrf.mxu0
  %v4666 = vadd.f32 %v4497, %v4665
  %v4667 = vpop.f32.mrf.mxu0
  %v4668 = vadd.f32 %v4499, %v4667
  %4669 = vmatmul.bf16.gmra.mxu0 %v2453
  %v4670 = vpop.f32.mrf.mxu0
  %v4671 = vadd.f32 %v4502, %v4670
  %v4672 = vpop.f32.mrf.mxu0
  %v4673 = vadd.f32 %v4504, %v4672
  %4674 = vmatmul.bf16.gmra.mxu0 %v2469
  %v4675 = vpop.f32.mrf.mxu0
  %v4676 = vadd.f32 %v4507, %v4675
  %v4677 = vpop.f32.mrf.mxu0
  %v4678 = vadd.f32 %v4509, %v4677
  %4679 = vmatmul.bf16.gmra.mxu0 %v2485
  %v4680 = vpop.f32.mrf.mxu0
  %v4681 = vadd.f32 %v4512, %v4680
  %v4682 = vpop.f32.mrf.mxu0
  %v4683 = vadd.f32 %v4514, %v4682
  %4684 = vmatmul.bf16.gmra.mxu0 %v2501
  %v4685 = vpop.f32.mrf.mxu0
  %v4686 = vadd.f32 %v4517, %v4685
  %v4687 = vpop.f32.mrf.mxu0
  %v4688 = vadd.f32 %v4519, %v4687
  %4689 = vmatmul.bf16.gmra.mxu0 %v2517
  %v4690 = vpop.f32.mrf.mxu0
  %v4691 = vadd.f32 %v4522, %v4690
  %v4692 = vpop.f32.mrf.mxu0
  %v4693 = vadd.f32 %v4524, %v4692
  %4694 = vmatmul.bf16.gmra.mxu0 %v2533
  %v4695 = vpop.f32.mrf.mxu0
  %v4696 = vadd.f32 %v4527, %v4695
  %v4697 = vpop.f32.mrf.mxu0
  %v4698 = vadd.f32 %v4529, %v4697
  %4699 = vmatmul.bf16.gmra.mxu0 %v2549
  %v4700 = vpop.f32.mrf.mxu0
  %v4701 = vadd.f32 %v4532, %v4700
  %v4702 = vpop.f32.mrf.mxu0
  %v4703 = vadd.f32 %v4534, %v4702
  %4704 = vmatmul.bf16.gmra.mxu0 %v2565
  %v4705 = vpop.f32.mrf.mxu0
  %v4706 = vadd.f32 %v4537, %v4705
  %v4707 = vpop.f32.mrf.mxu0
  %v4708 = vadd.f32 %v4539, %v4707
  %4709 = vmatmul.bf16.gmra.mxu0 %v2581
  %v4710 = vpop.f32.mrf.mxu0
  %v4711 = vadd.f32 %v4542, %v4710
  %v4712 = vpop.f32.mrf.mxu0
  %v4713 = vadd.f32 %v4544, %v4712
  %4714 = vmatmul.bf16.gmra.mxu0 %v2597
  %v4715 = vpop.f32.mrf.mxu0
  %v4716 = vadd.f32 %v4547, %v4715
  %v4717 = vpop.f32.mrf.mxu0
  %v4718 = vadd.f32 %v4549, %v4717
  %4719 = vmatmul.bf16.gmra.mxu0 %v2613
  %v4720 = vpop.f32.mrf.mxu0
  %v4721 = vadd.f32 %v4552, %v4720
  %v4722 = vpop.f32.mrf.mxu0
  %v4723 = vadd.f32 %v4554, %v4722
  %4724 = vmatmul.bf16.gmra.mxu0 %v2629
  %v4725 = vpop.f32.mrf.mxu0
  %v4726 = vadd.f32 %v4557, %v4725
  %v4727 = vpop.f32.mrf.mxu0
  %v4728 = vadd.f32 %v4559, %v4727
  %4729 = vmatmul.bf16.gmra.mxu0 %v2645
  %v4730 = vpop.f32.mrf.mxu0
  %v4731 = vadd.f32 %v4562, %v4730
  %v4732 = vpop.f32.mrf.mxu0
  %v4733 = vadd.f32 %v4564, %v4732
  %4734 = vmatmul.bf16.gmra.mxu0 %v2661
  %v4735 = vpop.f32.mrf.mxu0
  %v4736 = vadd.f32 %v4567, %v4735
  %v4737 = vpop.f32.mrf.mxu0
  %v4738 = vadd.f32 %v4569, %v4737
  %4739 = vmatmul.bf16.gmra.mxu0 %v2677
  %v4740 = vpop.f32.mrf.mxu0
  %v4741 = vadd.f32 %v4572, %v4740
  %v4742 = vpop.f32.mrf.mxu0
  %v4743 = vadd.f32 %v4574, %v4742
  %4744 = vmatmul.bf16.gmra.mxu0 %v2693
  %v4745 = vpop.f32.mrf.mxu0
  %v4746 = vadd.f32 %v4577, %v4745
  %v4747 = vpop.f32.mrf.mxu0
  %v4748 = vadd.f32 %v4579, %v4747
  %4749 = vmatmul.bf16.gmra.mxu0 %v2709
  %v4750 = vpop.f32.mrf.mxu0
  %v4751 = vadd.f32 %v4582, %v4750
  %v4752 = vpop.f32.mrf.mxu0
  %v4753 = vadd.f32 %v4584, %v4752
  %4754 = vmatmul.bf16.gmra.mxu0 %v2725
  %v4755 = vpop.f32.mrf.mxu0
  %v4756 = vadd.f32 %v4587, %v4755
  %v4757 = vpop.f32.mrf.mxu0
  %v4758 = vadd.f32 %v4589, %v4757
  %4759 = vmatmul.bf16.gmra.mxu0 %v2741
  %v4760 = vpop.f32.mrf.mxu0
  %v4761 = vadd.f32 %v4592, %v4760
  %v4762 = vpop.f32.mrf.mxu0
  %v4763 = vadd.f32 %v4594, %v4762
  %4764 = vmatmul.bf16.gmra.mxu0 %v2757
  %v4765 = vpop.f32.mrf.mxu0
  %v4766 = vadd.f32 %v4597, %v4765
  %v4767 = vpop.f32.mrf.mxu0
  %v4768 = vadd.f32 %v4599, %v4767
  %4769 = vmatmul.bf16.gmra.mxu0 %v2773
  %v4770 = vpop.f32.mrf.mxu0
  %v4771 = vadd.f32 %v4602, %v4770
  %v4772 = vpop.f32.mrf.mxu0
  %v4773 = vadd.f32 %v4604, %v4772
  %4774 = vmatmul.bf16.gmra.mxu0 %v2789
  %v4775 = vpop.f32.mrf.mxu0
  %v4776 = vadd.f32 %v4607, %v4775
  %v4777 = vpop.f32.mrf.mxu0
  %v4778 = vadd.f32 %v4609, %v4777
  %4779 = vmatmul.bf16.gmra.mxu0 %v2805
  %v4780 = vpop.f32.mrf.mxu0
  %v4781 = vadd.f32 %v4612, %v4780
  %v4782 = vpop.f32.mrf.mxu0
  %v4783 = vadd.f32 %v4614, %v4782
  %4784 = vmatmul.bf16.gmra.mxu0 %v2821
  %v4785 = vpop.f32.mrf.mxu0
  %v4786 = vadd.f32 %v4617, %v4785
  %v4787 = vpop.f32.mrf.mxu0
  %v4788 = vadd.f32 %v4619, %v4787
  %4789 = vdwg.mxu0
  %4790 = vmatpush.bf16.msra.mxu0 %v3897
  %4791 = vmatpush.bf16.msra.mxu0 %v3896
  %4792 = vmatpush.bf16.msra.mxu0 %v3895
  %4793 = vmatpush.bf16.msra.mxu0 %v3894
  %4794 = vmatpush.bf16.msra.mxu0 %v3893
  %4795 = vmatpush.bf16.msra.mxu0 %v3892
  %4796 = vmatpush.bf16.msra.mxu0 %v3891
  %4797 = vmatpush.bf16.msra.mxu0 %v3890
  %4798 = vmatmul.bf16.gmra.mxu0 %v2326
  %v4799 = vpop.f32.mrf.mxu0
  %v4800 = vadd.f32 %v4631, %v4799
  %v4801 = vpop.f32.mrf.mxu0
  %v4802 = vadd.f32 %v4633, %v4801
  %4803 = vmatmul.bf16.gmra.mxu0 %v2342
  %v4804 = vpop.f32.mrf.mxu0
  %v4805 = vadd.f32 %v4636, %v4804
  %v4806 = vpop.f32.mrf.mxu0
  %v4807 = vadd.f32 %v4638, %v4806
  %4808 = vmatmul.bf16.gmra.mxu0 %v2358
  %v4809 = vpop.f32.mrf.mxu0
  %v4810 = vadd.f32 %v4641, %v4809
  %v4811 = vpop.f32.mrf.mxu0
  %v4812 = vadd.f32 %v4643, %v4811
  %4813 = vmatmul.bf16.gmra.mxu0 %v2374
  %v4814 = vpop.f32.mrf.mxu0
  %v4815 = vadd.f32 %v4646, %v4814
  %v4816 = vpop.f32.mrf.mxu0
  %v4817 = vadd.f32 %v4648, %v4816
  %4818 = vmatmul.bf16.gmra.mxu0 %v2390
  %v4819 = vpop.f32.mrf.mxu0
  %v4820 = vadd.f32 %v4651, %v4819
  %v4821 = vpop.f32.mrf.mxu0
  %v4822 = vadd.f32 %v4653, %v4821
  %4823 = vmatmul.bf16.gmra.mxu0 %v2406
  %v4824 = vpop.f32.mrf.mxu0
  %v4825 = vadd.f32 %v4656, %v4824
  %v4826 = vpop.f32.mrf.mxu0
  %v4827 = vadd.f32 %v4658, %v4826
  %4828 = vmatmul.bf16.gmra.mxu0 %v2422
  %v4829 = vpop.f32.mrf.mxu0
  %v4830 = vadd.f32 %v4661, %v4829
  %v4831 = vpop.f32.mrf.mxu0
  %v4832 = vadd.f32 %v4663, %v4831
  %4833 = vmatmul.bf16.gmra.mxu0 %v2438
  %v4834 = vpop.f32.mrf.mxu0
  %v4835 = vadd.f32 %v4666, %v4834
  %v4836 = vpop.f32.mrf.mxu0
  %v4837 = vadd.f32 %v4668, %v4836
  %4838 = vmatmul.bf16.gmra.mxu0 %v2454
  %v4839 = vpop.f32.mrf.mxu0
  %v4840 = vadd.f32 %v4671, %v4839
  %v4841 = vpop.f32.mrf.mxu0
  %v4842 = vadd.f32 %v4673, %v4841
  %4843 = vmatmul.bf16.gmra.mxu0 %v2470
  %v4844 = vpop.f32.mrf.mxu0
  %v4845 = vadd.f32 %v4676, %v4844
  %v4846 = vpop.f32.mrf.mxu0
  %v4847 = vadd.f32 %v4678, %v4846
  %4848 = vmatmul.bf16.gmra.mxu0 %v2486
  %v4849 = vpop.f32.mrf.mxu0
  %v4850 = vadd.f32 %v4681, %v4849
  %v4851 = vpop.f32.mrf.mxu0
  %v4852 = vadd.f32 %v4683, %v4851
  %4853 = vmatmul.bf16.gmra.mxu0 %v2502
  %v4854 = vpop.f32.mrf.mxu0
  %v4855 = vadd.f32 %v4686, %v4854
  %v4856 = vpop.f32.mrf.mxu0
  %v4857 = vadd.f32 %v4688, %v4856
  %4858 = vmatmul.bf16.gmra.mxu0 %v2518
  %v4859 = vpop.f32.mrf.mxu0
  %v4860 = vadd.f32 %v4691, %v4859
  %v4861 = vpop.f32.mrf.mxu0
  %v4862 = vadd.f32 %v4693, %v4861
  %4863 = vmatmul.bf16.gmra.mxu0 %v2534
  %v4864 = vpop.f32.mrf.mxu0
  %v4865 = vadd.f32 %v4696, %v4864
  %v4866 = vpop.f32.mrf.mxu0
  %v4867 = vadd.f32 %v4698, %v4866
  %4868 = vmatmul.bf16.gmra.mxu0 %v2550
  %v4869 = vpop.f32.mrf.mxu0
  %v4870 = vadd.f32 %v4701, %v4869
  %v4871 = vpop.f32.mrf.mxu0
  %v4872 = vadd.f32 %v4703, %v4871
  %4873 = vmatmul.bf16.gmra.mxu0 %v2566
  %v4874 = vpop.f32.mrf.mxu0
  %v4875 = vadd.f32 %v4706, %v4874
  %v4876 = vpop.f32.mrf.mxu0
  %v4877 = vadd.f32 %v4708, %v4876
  %4878 = vmatmul.bf16.gmra.mxu0 %v2582
  %v4879 = vpop.f32.mrf.mxu0
  %v4880 = vadd.f32 %v4711, %v4879
  %v4881 = vpop.f32.mrf.mxu0
  %v4882 = vadd.f32 %v4713, %v4881
  %4883 = vmatmul.bf16.gmra.mxu0 %v2598
  %v4884 = vpop.f32.mrf.mxu0
  %v4885 = vadd.f32 %v4716, %v4884
  %v4886 = vpop.f32.mrf.mxu0
  %v4887 = vadd.f32 %v4718, %v4886
  %4888 = vmatmul.bf16.gmra.mxu0 %v2614
  %v4889 = vpop.f32.mrf.mxu0
  %v4890 = vadd.f32 %v4721, %v4889
  %v4891 = vpop.f32.mrf.mxu0
  %v4892 = vadd.f32 %v4723, %v4891
  %4893 = vmatmul.bf16.gmra.mxu0 %v2630
  %v4894 = vpop.f32.mrf.mxu0
  %v4895 = vadd.f32 %v4726, %v4894
  %v4896 = vpop.f32.mrf.mxu0
  %v4897 = vadd.f32 %v4728, %v4896
  %4898 = vmatmul.bf16.gmra.mxu0 %v2646
  %v4899 = vpop.f32.mrf.mxu0
  %v4900 = vadd.f32 %v4731, %v4899
  %v4901 = vpop.f32.mrf.mxu0
  %v4902 = vadd.f32 %v4733, %v4901
  %4903 = vmatmul.bf16.gmra.mxu0 %v2662
  %v4904 = vpop.f32.mrf.mxu0
  %v4905 = vadd.f32 %v4736, %v4904
  %v4906 = vpop.f32.mrf.mxu0
  %v4907 = vadd.f32 %v4738, %v4906
  %4908 = vmatmul.bf16.gmra.mxu0 %v2678
  %v4909 = vpop.f32.mrf.mxu0
  %v4910 = vadd.f32 %v4741, %v4909
  %v4911 = vpop.f32.mrf.mxu0
  %v4912 = vadd.f32 %v4743, %v4911
  %4913 = vmatmul.bf16.gmra.mxu0 %v2694
  %v4914 = vpop.f32.mrf.mxu0
  %v4915 = vadd.f32 %v4746, %v4914
  %v4916 = vpop.f32.mrf.mxu0
  %v4917 = vadd.f32 %v4748, %v4916
  %4918 = vmatmul.bf16.gmra.mxu0 %v2710
  %v4919 = vpop.f32.mrf.mxu0
  %v4920 = vadd.f32 %v4751, %v4919
  %v4921 = vpop.f32.mrf.mxu0
  %v4922 = vadd.f32 %v4753, %v4921
  %4923 = vmatmul.bf16.gmra.mxu0 %v2726
  %v4924 = vpop.f32.mrf.mxu0
  %v4925 = vadd.f32 %v4756, %v4924
  %v4926 = vpop.f32.mrf.mxu0
  %v4927 = vadd.f32 %v4758, %v4926
  %4928 = vmatmul.bf16.gmra.mxu0 %v2742
  %v4929 = vpop.f32.mrf.mxu0
  %v4930 = vadd.f32 %v4761, %v4929
  %v4931 = vpop.f32.mrf.mxu0
  %v4932 = vadd.f32 %v4763, %v4931
  %4933 = vmatmul.bf16.gmra.mxu0 %v2758
  %v4934 = vpop.f32.mrf.mxu0
  %v4935 = vadd.f32 %v4766, %v4934
  %v4936 = vpop.f32.mrf.mxu0
  %v4937 = vadd.f32 %v4768, %v4936
  %4938 = vmatmul.bf16.gmra.mxu0 %v2774
  %v4939 = vpop.f32.mrf.mxu0
  %v4940 = vadd.f32 %v4771, %v4939
  %v4941 = vpop.f32.mrf.mxu0
  %v4942 = vadd.f32 %v4773, %v4941
  %4943 = vmatmul.bf16.gmra.mxu0 %v2790
  %v4944 = vpop.f32.mrf.mxu0
  %v4945 = vadd.f32 %v4776, %v4944
  %v4946 = vpop.f32.mrf.mxu0
  %v4947 = vadd.f32 %v4778, %v4946
  %4948 = vmatmul.bf16.gmra.mxu0 %v2806
  %v4949 = vpop.f32.mrf.mxu0
  %v4950 = vadd.f32 %v4781, %v4949
  %v4951 = vpop.f32.mrf.mxu0
  %v4952 = vadd.f32 %v4783, %v4951
  %4953 = vmatmul.bf16.gmra.mxu0 %v2822
  %v4954 = vpop.f32.mrf.mxu0
  %v4955 = vadd.f32 %v4786, %v4954
  %v4956 = vpop.f32.mrf.mxu0
  %v4957 = vadd.f32 %v4788, %v4956
  %4958 = vdwg.mxu0
  %4959 = vmatpush.bf16.msra.mxu0 %v3905
  %4960 = vmatpush.bf16.msra.mxu0 %v3904
  %4961 = vmatpush.bf16.msra.mxu0 %v3903
  %4962 = vmatpush.bf16.msra.mxu0 %v3902
  %4963 = vmatpush.bf16.msra.mxu0 %v3901
  %4964 = vmatpush.bf16.msra.mxu0 %v3900
  %4965 = vmatpush.bf16.msra.mxu0 %v3899
  %4966 = vmatpush.bf16.msra.mxu0 %v3898
  %4967 = vmatmul.bf16.gmra.mxu0 %v2327
  %v4968 = vpop.f32.mrf.mxu0
  %v4969 = vadd.f32 %v4800, %v4968
  %v4970 = vpop.f32.mrf.mxu0
  %v4971 = vadd.f32 %v4802, %v4970
  %4972 = vmatmul.bf16.gmra.mxu0 %v2343
  %v4973 = vpop.f32.mrf.mxu0
  %v4974 = vadd.f32 %v4805, %v4973
  %v4975 = vpop.f32.mrf.mxu0
  %v4976 = vadd.f32 %v4807, %v4975
  %4977 = vmatmul.bf16.gmra.mxu0 %v2359
  %v4978 = vpop.f32.mrf.mxu0
  %v4979 = vadd.f32 %v4810, %v4978
  %v4980 = vpop.f32.mrf.mxu0
  %v4981 = vadd.f32 %v4812, %v4980
  %4982 = vmatmul.bf16.gmra.mxu0 %v2375
  %v4983 = vpop.f32.mrf.mxu0
  %v4984 = vadd.f32 %v4815, %v4983
  %v4985 = vpop.f32.mrf.mxu0
  %v4986 = vadd.f32 %v4817, %v4985
  %4987 = vmatmul.bf16.gmra.mxu0 %v2391
  %v4988 = vpop.f32.mrf.mxu0
  %v4989 = vadd.f32 %v4820, %v4988
  %v4990 = vpop.f32.mrf.mxu0
  %v4991 = vadd.f32 %v4822, %v4990
  %4992 = vmatmul.bf16.gmra.mxu0 %v2407
  %v4993 = vpop.f32.mrf.mxu0
  %v4994 = vadd.f32 %v4825, %v4993
  %v4995 = vpop.f32.mrf.mxu0
  %v4996 = vadd.f32 %v4827, %v4995
  %4997 = vmatmul.bf16.gmra.mxu0 %v2423
  %v4998 = vpop.f32.mrf.mxu0
  %v4999 = vadd.f32 %v4830, %v4998
  %v5000 = vpop.f32.mrf.mxu0
  %v5001 = vadd.f32 %v4832, %v5000
  %5002 = vmatmul.bf16.gmra.mxu0 %v2439
  %v5003 = vpop.f32.mrf.mxu0
  %v5004 = vadd.f32 %v4835, %v5003
  %v5005 = vpop.f32.mrf.mxu0
  %v5006 = vadd.f32 %v4837, %v5005
  %5007 = vmatmul.bf16.gmra.mxu0 %v2455
  %v5008 = vpop.f32.mrf.mxu0
  %v5009 = vadd.f32 %v4840, %v5008
  %v5010 = vpop.f32.mrf.mxu0
  %v5011 = vadd.f32 %v4842, %v5010
  %5012 = vmatmul.bf16.gmra.mxu0 %v2471
  %v5013 = vpop.f32.mrf.mxu0
  %v5014 = vadd.f32 %v4845, %v5013
  %v5015 = vpop.f32.mrf.mxu0
  %v5016 = vadd.f32 %v4847, %v5015
  %5017 = vmatmul.bf16.gmra.mxu0 %v2487
  %v5018 = vpop.f32.mrf.mxu0
  %v5019 = vadd.f32 %v4850, %v5018
  %v5020 = vpop.f32.mrf.mxu0
  %v5021 = vadd.f32 %v4852, %v5020
  %5022 = vmatmul.bf16.gmra.mxu0 %v2503
  %v5023 = vpop.f32.mrf.mxu0
  %v5024 = vadd.f32 %v4855, %v5023
  %v5025 = vpop.f32.mrf.mxu0
  %v5026 = vadd.f32 %v4857, %v5025
  %5027 = vmatmul.bf16.gmra.mxu0 %v2519
  %v5028 = vpop.f32.mrf.mxu0
  %v5029 = vadd.f32 %v4860, %v5028
  %v5030 = vpop.f32.mrf.mxu0
  %v5031 = vadd.f32 %v4862, %v5030
  %5032 = vmatmul.bf16.gmra.mxu0 %v2535
  %v5033 = vpop.f32.mrf.mxu0
  %v5034 = vadd.f32 %v4865, %v5033
  %v5035 = vpop.f32.mrf.mxu0
  %v5036 = vadd.f32 %v4867, %v5035
  %5037 = vmatmul.bf16.gmra.mxu0 %v2551
  %v5038 = vpop.f32.mrf.mxu0
  %v5039 = vadd.f32 %v4870, %v5038
  %v5040 = vpop.f32.mrf.mxu0
  %v5041 = vadd.f32 %v4872, %v5040
  %5042 = vmatmul.bf16.gmra.mxu0 %v2567
  %v5043 = vpop.f32.mrf.mxu0
  %v5044 = vadd.f32 %v4875, %v5043
  %v5045 = vpop.f32.mrf.mxu0
  %v5046 = vadd.f32 %v4877, %v5045
  %5047 = vmatmul.bf16.gmra.mxu0 %v2583
  %v5048 = vpop.f32.mrf.mxu0
  %v5049 = vadd.f32 %v4880, %v5048
  %v5050 = vpop.f32.mrf.mxu0
  %v5051 = vadd.f32 %v4882, %v5050
  %5052 = vmatmul.bf16.gmra.mxu0 %v2599
  %v5053 = vpop.f32.mrf.mxu0
  %v5054 = vadd.f32 %v4885, %v5053
  %v5055 = vpop.f32.mrf.mxu0
  %v5056 = vadd.f32 %v4887, %v5055
  %5057 = vmatmul.bf16.gmra.mxu0 %v2615
  %v5058 = vpop.f32.mrf.mxu0
  %v5059 = vadd.f32 %v4890, %v5058
  %v5060 = vpop.f32.mrf.mxu0
  %v5061 = vadd.f32 %v4892, %v5060
  %5062 = vmatmul.bf16.gmra.mxu0 %v2631
  %v5063 = vpop.f32.mrf.mxu0
  %v5064 = vadd.f32 %v4895, %v5063
  %v5065 = vpop.f32.mrf.mxu0
  %v5066 = vadd.f32 %v4897, %v5065
  %5067 = vmatmul.bf16.gmra.mxu0 %v2647
  %v5068 = vpop.f32.mrf.mxu0
  %v5069 = vadd.f32 %v4900, %v5068
  %v5070 = vpop.f32.mrf.mxu0
  %v5071 = vadd.f32 %v4902, %v5070
  %5072 = vmatmul.bf16.gmra.mxu0 %v2663
  %v5073 = vpop.f32.mrf.mxu0
  %v5074 = vadd.f32 %v4905, %v5073
  %v5075 = vpop.f32.mrf.mxu0
  %v5076 = vadd.f32 %v4907, %v5075
  %5077 = vmatmul.bf16.gmra.mxu0 %v2679
  %v5078 = vpop.f32.mrf.mxu0
  %v5079 = vadd.f32 %v4910, %v5078
  %v5080 = vpop.f32.mrf.mxu0
  %v5081 = vadd.f32 %v4912, %v5080
  %5082 = vmatmul.bf16.gmra.mxu0 %v2695
  %v5083 = vpop.f32.mrf.mxu0
  %v5084 = vadd.f32 %v4915, %v5083
  %v5085 = vpop.f32.mrf.mxu0
  %v5086 = vadd.f32 %v4917, %v5085
  %5087 = vmatmul.bf16.gmra.mxu0 %v2711
  %v5088 = vpop.f32.mrf.mxu0
  %v5089 = vadd.f32 %v4920, %v5088
  %v5090 = vpop.f32.mrf.mxu0
  %v5091 = vadd.f32 %v4922, %v5090
  %5092 = vmatmul.bf16.gmra.mxu0 %v2727
  %v5093 = vpop.f32.mrf.mxu0
  %v5094 = vadd.f32 %v4925, %v5093
  %v5095 = vpop.f32.mrf.mxu0
  %v5096 = vadd.f32 %v4927, %v5095
  %5097 = vmatmul.bf16.gmra.mxu0 %v2743
  %v5098 = vpop.f32.mrf.mxu0
  %v5099 = vadd.f32 %v4930, %v5098
  %v5100 = vpop.f32.mrf.mxu0
  %v5101 = vadd.f32 %v4932, %v5100
  %5102 = vmatmul.bf16.gmra.mxu0 %v2759
  %v5103 = vpop.f32.mrf.mxu0
  %v5104 = vadd.f32 %v4935, %v5103
  %v5105 = vpop.f32.mrf.mxu0
  %v5106 = vadd.f32 %v4937, %v5105
  %5107 = vmatmul.bf16.gmra.mxu0 %v2775
  %v5108 = vpop.f32.mrf.mxu0
  %v5109 = vadd.f32 %v4940, %v5108
  %v5110 = vpop.f32.mrf.mxu0
  %v5111 = vadd.f32 %v4942, %v5110
  %5112 = vmatmul.bf16.gmra.mxu0 %v2791
  %v5113 = vpop.f32.mrf.mxu0
  %v5114 = vadd.f32 %v4945, %v5113
  %v5115 = vpop.f32.mrf.mxu0
  %v5116 = vadd.f32 %v4947, %v5115
  %5117 = vmatmul.bf16.gmra.mxu0 %v2807
  %v5118 = vpop.f32.mrf.mxu0
  %v5119 = vadd.f32 %v4950, %v5118
  %v5120 = vpop.f32.mrf.mxu0
  %v5121 = vadd.f32 %v4952, %v5120
  %5122 = vmatmul.bf16.gmra.mxu0 %v2823
  %v5123 = vpop.f32.mrf.mxu0
  %v5124 = vadd.f32 %v4955, %v5123
  %v5125 = vpop.f32.mrf.mxu0
  %v5126 = vadd.f32 %v4957, %v5125
  %5127 = vdwg.mxu0
  %5128 = vmatpush.bf16.msra.mxu0 %v3913
  %5129 = vmatpush.bf16.msra.mxu0 %v3912
  %5130 = vmatpush.bf16.msra.mxu0 %v3911
  %5131 = vmatpush.bf16.msra.mxu0 %v3910
  %5132 = vmatpush.bf16.msra.mxu0 %v3909
  %5133 = vmatpush.bf16.msra.mxu0 %v3908
  %5134 = vmatpush.bf16.msra.mxu0 %v3907
  %5135 = vmatpush.bf16.msra.mxu0 %v3906
  %5136 = vmatmul.bf16.gmra.mxu0 %v2328
  %v5137 = vpop.f32.mrf.mxu0
  %v5138 = vadd.f32 %v4969, %v5137
  %v5139 = vpop.f32.mrf.mxu0
  %v5140 = vadd.f32 %v4971, %v5139
  %5141 = vmatmul.bf16.gmra.mxu0 %v2344
  %v5142 = vpop.f32.mrf.mxu0
  %v5143 = vadd.f32 %v4974, %v5142
  %v5144 = vpop.f32.mrf.mxu0
  %v5145 = vadd.f32 %v4976, %v5144
  %5146 = vmatmul.bf16.gmra.mxu0 %v2360
  %v5147 = vpop.f32.mrf.mxu0
  %v5148 = vadd.f32 %v4979, %v5147
  %v5149 = vpop.f32.mrf.mxu0
  %v5150 = vadd.f32 %v4981, %v5149
  %5151 = vmatmul.bf16.gmra.mxu0 %v2376
  %v5152 = vpop.f32.mrf.mxu0
  %v5153 = vadd.f32 %v4984, %v5152
  %v5154 = vpop.f32.mrf.mxu0
  %v5155 = vadd.f32 %v4986, %v5154
  %5156 = vmatmul.bf16.gmra.mxu0 %v2392
  %v5157 = vpop.f32.mrf.mxu0
  %v5158 = vadd.f32 %v4989, %v5157
  %v5159 = vpop.f32.mrf.mxu0
  %v5160 = vadd.f32 %v4991, %v5159
  %5161 = vmatmul.bf16.gmra.mxu0 %v2408
  %v5162 = vpop.f32.mrf.mxu0
  %v5163 = vadd.f32 %v4994, %v5162
  %v5164 = vpop.f32.mrf.mxu0
  %v5165 = vadd.f32 %v4996, %v5164
  %5166 = vmatmul.bf16.gmra.mxu0 %v2424
  %v5167 = vpop.f32.mrf.mxu0
  %v5168 = vadd.f32 %v4999, %v5167
  %v5169 = vpop.f32.mrf.mxu0
  %v5170 = vadd.f32 %v5001, %v5169
  %5171 = vmatmul.bf16.gmra.mxu0 %v2440
  %v5172 = vpop.f32.mrf.mxu0
  %v5173 = vadd.f32 %v5004, %v5172
  %v5174 = vpop.f32.mrf.mxu0
  %v5175 = vadd.f32 %v5006, %v5174
  %5176 = vmatmul.bf16.gmra.mxu0 %v2456
  %v5177 = vpop.f32.mrf.mxu0
  %v5178 = vadd.f32 %v5009, %v5177
  %v5179 = vpop.f32.mrf.mxu0
  %v5180 = vadd.f32 %v5011, %v5179
  %5181 = vmatmul.bf16.gmra.mxu0 %v2472
  %v5182 = vpop.f32.mrf.mxu0
  %v5183 = vadd.f32 %v5014, %v5182
  %v5184 = vpop.f32.mrf.mxu0
  %v5185 = vadd.f32 %v5016, %v5184
  %5186 = vmatmul.bf16.gmra.mxu0 %v2488
  %v5187 = vpop.f32.mrf.mxu0
  %v5188 = vadd.f32 %v5019, %v5187
  %v5189 = vpop.f32.mrf.mxu0
  %v5190 = vadd.f32 %v5021, %v5189
  %5191 = vmatmul.bf16.gmra.mxu0 %v2504
  %v5192 = vpop.f32.mrf.mxu0
  %v5193 = vadd.f32 %v5024, %v5192
  %v5194 = vpop.f32.mrf.mxu0
  %v5195 = vadd.f32 %v5026, %v5194
  %5196 = vmatmul.bf16.gmra.mxu0 %v2520
  %v5197 = vpop.f32.mrf.mxu0
  %v5198 = vadd.f32 %v5029, %v5197
  %v5199 = vpop.f32.mrf.mxu0
  %v5200 = vadd.f32 %v5031, %v5199
  %5201 = vmatmul.bf16.gmra.mxu0 %v2536
  %v5202 = vpop.f32.mrf.mxu0
  %v5203 = vadd.f32 %v5034, %v5202
  %v5204 = vpop.f32.mrf.mxu0
  %v5205 = vadd.f32 %v5036, %v5204
  %5206 = vmatmul.bf16.gmra.mxu0 %v2552
  %v5207 = vpop.f32.mrf.mxu0
  %v5208 = vadd.f32 %v5039, %v5207
  %v5209 = vpop.f32.mrf.mxu0
  %v5210 = vadd.f32 %v5041, %v5209
  %5211 = vmatmul.bf16.gmra.mxu0 %v2568
  %v5212 = vpop.f32.mrf.mxu0
  %v5213 = vadd.f32 %v5044, %v5212
  %v5214 = vpop.f32.mrf.mxu0
  %v5215 = vadd.f32 %v5046, %v5214
  %5216 = vmatmul.bf16.gmra.mxu0 %v2584
  %v5217 = vpop.f32.mrf.mxu0
  %v5218 = vadd.f32 %v5049, %v5217
  %v5219 = vpop.f32.mrf.mxu0
  %v5220 = vadd.f32 %v5051, %v5219
  %5221 = vmatmul.bf16.gmra.mxu0 %v2600
  %v5222 = vpop.f32.mrf.mxu0
  %v5223 = vadd.f32 %v5054, %v5222
  %v5224 = vpop.f32.mrf.mxu0
  %v5225 = vadd.f32 %v5056, %v5224
  %5226 = vmatmul.bf16.gmra.mxu0 %v2616
  %v5227 = vpop.f32.mrf.mxu0
  %v5228 = vadd.f32 %v5059, %v5227
  %v5229 = vpop.f32.mrf.mxu0
  %v5230 = vadd.f32 %v5061, %v5229
  %5231 = vmatmul.bf16.gmra.mxu0 %v2632
  %v5232 = vpop.f32.mrf.mxu0
  %v5233 = vadd.f32 %v5064, %v5232
  %v5234 = vpop.f32.mrf.mxu0
  %v5235 = vadd.f32 %v5066, %v5234
  %5236 = vmatmul.bf16.gmra.mxu0 %v2648
  %v5237 = vpop.f32.mrf.mxu0
  %v5238 = vadd.f32 %v5069, %v5237
  %v5239 = vpop.f32.mrf.mxu0
  %v5240 = vadd.f32 %v5071, %v5239
  %5241 = vmatmul.bf16.gmra.mxu0 %v2664
  %v5242 = vpop.f32.mrf.mxu0
  %v5243 = vadd.f32 %v5074, %v5242
  %v5244 = vpop.f32.mrf.mxu0
  %v5245 = vadd.f32 %v5076, %v5244
  %5246 = vmatmul.bf16.gmra.mxu0 %v2680
  %v5247 = vpop.f32.mrf.mxu0
  %v5248 = vadd.f32 %v5079, %v5247
  %v5249 = vpop.f32.mrf.mxu0
  %v5250 = vadd.f32 %v5081, %v5249
  %5251 = vmatmul.bf16.gmra.mxu0 %v2696
  %v5252 = vpop.f32.mrf.mxu0
  %v5253 = vadd.f32 %v5084, %v5252
  %v5254 = vpop.f32.mrf.mxu0
  %v5255 = vadd.f32 %v5086, %v5254
  %5256 = vmatmul.bf16.gmra.mxu0 %v2712
  %v5257 = vpop.f32.mrf.mxu0
  %v5258 = vadd.f32 %v5089, %v5257
  %v5259 = vpop.f32.mrf.mxu0
  %v5260 = vadd.f32 %v5091, %v5259
  %5261 = vmatmul.bf16.gmra.mxu0 %v2728
  %v5262 = vpop.f32.mrf.mxu0
  %v5263 = vadd.f32 %v5094, %v5262
  %v5264 = vpop.f32.mrf.mxu0
  %v5265 = vadd.f32 %v5096, %v5264
  %5266 = vmatmul.bf16.gmra.mxu0 %v2744
  %v5267 = vpop.f32.mrf.mxu0
  %v5268 = vadd.f32 %v5099, %v5267
  %v5269 = vpop.f32.mrf.mxu0
  %v5270 = vadd.f32 %v5101, %v5269
  %5271 = vmatmul.bf16.gmra.mxu0 %v2760
  %v5272 = vpop.f32.mrf.mxu0
  %v5273 = vadd.f32 %v5104, %v5272
  %v5274 = vpop.f32.mrf.mxu0
  %v5275 = vadd.f32 %v5106, %v5274
  %5276 = vmatmul.bf16.gmra.mxu0 %v2776
  %v5277 = vpop.f32.mrf.mxu0
  %v5278 = vadd.f32 %v5109, %v5277
  %v5279 = vpop.f32.mrf.mxu0
  %v5280 = vadd.f32 %v5111, %v5279
  %5281 = vmatmul.bf16.gmra.mxu0 %v2792
  %v5282 = vpop.f32.mrf.mxu0
  %v5283 = vadd.f32 %v5114, %v5282
  %v5284 = vpop.f32.mrf.mxu0
  %v5285 = vadd.f32 %v5116, %v5284
  %5286 = vmatmul.bf16.gmra.mxu0 %v2808
  %v5287 = vpop.f32.mrf.mxu0
  %v5288 = vadd.f32 %v5119, %v5287
  %v5289 = vpop.f32.mrf.mxu0
  %v5290 = vadd.f32 %v5121, %v5289
  %5291 = vmatmul.bf16.gmra.mxu0 %v2824
  %v5292 = vpop.f32.mrf.mxu0
  %v5293 = vadd.f32 %v5124, %v5292
  %v5294 = vpop.f32.mrf.mxu0
  %v5295 = vadd.f32 %v5126, %v5294
  %5296 = vdwg.mxu0
  %5297 = vmatpush.bf16.msra.mxu0 %v3921
  %5298 = vmatpush.bf16.msra.mxu0 %v3920
  %5299 = vmatpush.bf16.msra.mxu0 %v3919
  %5300 = vmatpush.bf16.msra.mxu0 %v3918
  %5301 = vmatpush.bf16.msra.mxu0 %v3917
  %5302 = vmatpush.bf16.msra.mxu0 %v3916
  %5303 = vmatpush.bf16.msra.mxu0 %v3915
  %5304 = vmatpush.bf16.msra.mxu0 %v3914
  %5305 = vmatmul.bf16.gmra.mxu0 %v2329
  %v5306 = vpop.f32.mrf.mxu0
  %v5307 = vadd.f32 %v5138, %v5306
  %v5308 = vpop.f32.mrf.mxu0
  %v5309 = vadd.f32 %v5140, %v5308
  %5310 = vmatmul.bf16.gmra.mxu0 %v2345
  %v5311 = vpop.f32.mrf.mxu0
  %v5312 = vadd.f32 %v5143, %v5311
  %v5313 = vpop.f32.mrf.mxu0
  %v5314 = vadd.f32 %v5145, %v5313
  %5315 = vmatmul.bf16.gmra.mxu0 %v2361
  %v5316 = vpop.f32.mrf.mxu0
  %v5317 = vadd.f32 %v5148, %v5316
  %v5318 = vpop.f32.mrf.mxu0
  %v5319 = vadd.f32 %v5150, %v5318
  %5320 = vmatmul.bf16.gmra.mxu0 %v2377
  %v5321 = vpop.f32.mrf.mxu0
  %v5322 = vadd.f32 %v5153, %v5321
  %v5323 = vpop.f32.mrf.mxu0
  %v5324 = vadd.f32 %v5155, %v5323
  %5325 = vmatmul.bf16.gmra.mxu0 %v2393
  %v5326 = vpop.f32.mrf.mxu0
  %v5327 = vadd.f32 %v5158, %v5326
  %v5328 = vpop.f32.mrf.mxu0
  %v5329 = vadd.f32 %v5160, %v5328
  %5330 = vmatmul.bf16.gmra.mxu0 %v2409
  %v5331 = vpop.f32.mrf.mxu0
  %v5332 = vadd.f32 %v5163, %v5331
  %v5333 = vpop.f32.mrf.mxu0
  %v5334 = vadd.f32 %v5165, %v5333
  %5335 = vmatmul.bf16.gmra.mxu0 %v2425
  %v5336 = vpop.f32.mrf.mxu0
  %v5337 = vadd.f32 %v5168, %v5336
  %v5338 = vpop.f32.mrf.mxu0
  %v5339 = vadd.f32 %v5170, %v5338
  %5340 = vmatmul.bf16.gmra.mxu0 %v2441
  %v5341 = vpop.f32.mrf.mxu0
  %v5342 = vadd.f32 %v5173, %v5341
  %v5343 = vpop.f32.mrf.mxu0
  %v5344 = vadd.f32 %v5175, %v5343
  %5345 = vmatmul.bf16.gmra.mxu0 %v2457
  %v5346 = vpop.f32.mrf.mxu0
  %v5347 = vadd.f32 %v5178, %v5346
  %v5348 = vpop.f32.mrf.mxu0
  %v5349 = vadd.f32 %v5180, %v5348
  %5350 = vmatmul.bf16.gmra.mxu0 %v2473
  %v5351 = vpop.f32.mrf.mxu0
  %v5352 = vadd.f32 %v5183, %v5351
  %v5353 = vpop.f32.mrf.mxu0
  %v5354 = vadd.f32 %v5185, %v5353
  %5355 = vmatmul.bf16.gmra.mxu0 %v2489
  %v5356 = vpop.f32.mrf.mxu0
  %v5357 = vadd.f32 %v5188, %v5356
  %v5358 = vpop.f32.mrf.mxu0
  %v5359 = vadd.f32 %v5190, %v5358
  %5360 = vmatmul.bf16.gmra.mxu0 %v2505
  %v5361 = vpop.f32.mrf.mxu0
  %v5362 = vadd.f32 %v5193, %v5361
  %v5363 = vpop.f32.mrf.mxu0
  %v5364 = vadd.f32 %v5195, %v5363
  %5365 = vmatmul.bf16.gmra.mxu0 %v2521
  %v5366 = vpop.f32.mrf.mxu0
  %v5367 = vadd.f32 %v5198, %v5366
  %v5368 = vpop.f32.mrf.mxu0
  %v5369 = vadd.f32 %v5200, %v5368
  %5370 = vmatmul.bf16.gmra.mxu0 %v2537
  %v5371 = vpop.f32.mrf.mxu0
  %v5372 = vadd.f32 %v5203, %v5371
  %v5373 = vpop.f32.mrf.mxu0
  %v5374 = vadd.f32 %v5205, %v5373
  %5375 = vmatmul.bf16.gmra.mxu0 %v2553
  %v5376 = vpop.f32.mrf.mxu0
  %v5377 = vadd.f32 %v5208, %v5376
  %v5378 = vpop.f32.mrf.mxu0
  %v5379 = vadd.f32 %v5210, %v5378
  %5380 = vmatmul.bf16.gmra.mxu0 %v2569
  %v5381 = vpop.f32.mrf.mxu0
  %v5382 = vadd.f32 %v5213, %v5381
  %v5383 = vpop.f32.mrf.mxu0
  %v5384 = vadd.f32 %v5215, %v5383
  %5385 = vmatmul.bf16.gmra.mxu0 %v2585
  %v5386 = vpop.f32.mrf.mxu0
  %v5387 = vadd.f32 %v5218, %v5386
  %v5388 = vpop.f32.mrf.mxu0
  %v5389 = vadd.f32 %v5220, %v5388
  %5390 = vmatmul.bf16.gmra.mxu0 %v2601
  %v5391 = vpop.f32.mrf.mxu0
  %v5392 = vadd.f32 %v5223, %v5391
  %v5393 = vpop.f32.mrf.mxu0
  %v5394 = vadd.f32 %v5225, %v5393
  %5395 = vmatmul.bf16.gmra.mxu0 %v2617
  %v5396 = vpop.f32.mrf.mxu0
  %v5397 = vadd.f32 %v5228, %v5396
  %v5398 = vpop.f32.mrf.mxu0
  %v5399 = vadd.f32 %v5230, %v5398
  %5400 = vmatmul.bf16.gmra.mxu0 %v2633
  %v5401 = vpop.f32.mrf.mxu0
  %v5402 = vadd.f32 %v5233, %v5401
  %v5403 = vpop.f32.mrf.mxu0
  %v5404 = vadd.f32 %v5235, %v5403
  %5405 = vmatmul.bf16.gmra.mxu0 %v2649
  %v5406 = vpop.f32.mrf.mxu0
  %v5407 = vadd.f32 %v5238, %v5406
  %v5408 = vpop.f32.mrf.mxu0
  %v5409 = vadd.f32 %v5240, %v5408
  %5410 = vmatmul.bf16.gmra.mxu0 %v2665
  %v5411 = vpop.f32.mrf.mxu0
  %v5412 = vadd.f32 %v5243, %v5411
  %v5413 = vpop.f32.mrf.mxu0
  %v5414 = vadd.f32 %v5245, %v5413
  %5415 = vmatmul.bf16.gmra.mxu0 %v2681
  %v5416 = vpop.f32.mrf.mxu0
  %v5417 = vadd.f32 %v5248, %v5416
  %v5418 = vpop.f32.mrf.mxu0
  %v5419 = vadd.f32 %v5250, %v5418
  %5420 = vmatmul.bf16.gmra.mxu0 %v2697
  %v5421 = vpop.f32.mrf.mxu0
  %v5422 = vadd.f32 %v5253, %v5421
  %v5423 = vpop.f32.mrf.mxu0
  %v5424 = vadd.f32 %v5255, %v5423
  %5425 = vmatmul.bf16.gmra.mxu0 %v2713
  %v5426 = vpop.f32.mrf.mxu0
  %v5427 = vadd.f32 %v5258, %v5426
  %v5428 = vpop.f32.mrf.mxu0
  %v5429 = vadd.f32 %v5260, %v5428
  %5430 = vmatmul.bf16.gmra.mxu0 %v2729
  %v5431 = vpop.f32.mrf.mxu0
  %v5432 = vadd.f32 %v5263, %v5431
  %v5433 = vpop.f32.mrf.mxu0
  %v5434 = vadd.f32 %v5265, %v5433
  %5435 = vmatmul.bf16.gmra.mxu0 %v2745
  %v5436 = vpop.f32.mrf.mxu0
  %v5437 = vadd.f32 %v5268, %v5436
  %v5438 = vpop.f32.mrf.mxu0
  %v5439 = vadd.f32 %v5270, %v5438
  %5440 = vmatmul.bf16.gmra.mxu0 %v2761
  %v5441 = vpop.f32.mrf.mxu0
  %v5442 = vadd.f32 %v5273, %v5441
  %v5443 = vpop.f32.mrf.mxu0
  %v5444 = vadd.f32 %v5275, %v5443
  %5445 = vmatmul.bf16.gmra.mxu0 %v2777
  %v5446 = vpop.f32.mrf.mxu0
  %v5447 = vadd.f32 %v5278, %v5446
  %v5448 = vpop.f32.mrf.mxu0
  %v5449 = vadd.f32 %v5280, %v5448
  %5450 = vmatmul.bf16.gmra.mxu0 %v2793
  %v5451 = vpop.f32.mrf.mxu0
  %v5452 = vadd.f32 %v5283, %v5451
  %v5453 = vpop.f32.mrf.mxu0
  %v5454 = vadd.f32 %v5285, %v5453
  %5455 = vmatmul.bf16.gmra.mxu0 %v2809
  %v5456 = vpop.f32.mrf.mxu0
  %v5457 = vadd.f32 %v5288, %v5456
  %v5458 = vpop.f32.mrf.mxu0
  %v5459 = vadd.f32 %v5290, %v5458
  %5460 = vmatmul.bf16.gmra.mxu0 %v2825
  %v5461 = vpop.f32.mrf.mxu0
  %v5462 = vadd.f32 %v5293, %v5461
  %v5463 = vpop.f32.mrf.mxu0
  %v5464 = vadd.f32 %v5295, %v5463
  %5465 = vdwg.mxu0
  %5466 = vmatpush.bf16.msra.mxu0 %v3929
  %5467 = vmatpush.bf16.msra.mxu0 %v3928
  %5468 = vmatpush.bf16.msra.mxu0 %v3927
  %5469 = vmatpush.bf16.msra.mxu0 %v3926
  %5470 = vmatpush.bf16.msra.mxu0 %v3925
  %5471 = vmatpush.bf16.msra.mxu0 %v3924
  %5472 = vmatpush.bf16.msra.mxu0 %v3923
  %5473 = vmatpush.bf16.msra.mxu0 %v3922
  %5474 = vmatmul.bf16.gmra.mxu0 %v2330
  %v5475 = vpop.f32.mrf.mxu0
  %v5476 = vadd.f32 %v5307, %v5475
  %v5477 = vpop.f32.mrf.mxu0
  %v5478 = vadd.f32 %v5309, %v5477
  %5479 = vmatmul.bf16.gmra.mxu0 %v2346
  %v5480 = vpop.f32.mrf.mxu0
  %v5481 = vadd.f32 %v5312, %v5480
  %v5482 = vpop.f32.mrf.mxu0
  %v5483 = vadd.f32 %v5314, %v5482
  %5484 = vmatmul.bf16.gmra.mxu0 %v2362
  %v5485 = vpop.f32.mrf.mxu0
  %v5486 = vadd.f32 %v5317, %v5485
  %v5487 = vpop.f32.mrf.mxu0
  %v5488 = vadd.f32 %v5319, %v5487
  %5489 = vmatmul.bf16.gmra.mxu0 %v2378
  %v5490 = vpop.f32.mrf.mxu0
  %v5491 = vadd.f32 %v5322, %v5490
  %v5492 = vpop.f32.mrf.mxu0
  %v5493 = vadd.f32 %v5324, %v5492
  %5494 = vmatmul.bf16.gmra.mxu0 %v2394
  %v5495 = vpop.f32.mrf.mxu0
  %v5496 = vadd.f32 %v5327, %v5495
  %v5497 = vpop.f32.mrf.mxu0
  %v5498 = vadd.f32 %v5329, %v5497
  %5499 = vmatmul.bf16.gmra.mxu0 %v2410
  %v5500 = vpop.f32.mrf.mxu0
  %v5501 = vadd.f32 %v5332, %v5500
  %v5502 = vpop.f32.mrf.mxu0
  %v5503 = vadd.f32 %v5334, %v5502
  %5504 = vmatmul.bf16.gmra.mxu0 %v2426
  %v5505 = vpop.f32.mrf.mxu0
  %v5506 = vadd.f32 %v5337, %v5505
  %v5507 = vpop.f32.mrf.mxu0
  %v5508 = vadd.f32 %v5339, %v5507
  %5509 = vmatmul.bf16.gmra.mxu0 %v2442
  %v5510 = vpop.f32.mrf.mxu0
  %v5511 = vadd.f32 %v5342, %v5510
  %v5512 = vpop.f32.mrf.mxu0
  %v5513 = vadd.f32 %v5344, %v5512
  %5514 = vmatmul.bf16.gmra.mxu0 %v2458
  %v5515 = vpop.f32.mrf.mxu0
  %v5516 = vadd.f32 %v5347, %v5515
  %v5517 = vpop.f32.mrf.mxu0
  %v5518 = vadd.f32 %v5349, %v5517
  %5519 = vmatmul.bf16.gmra.mxu0 %v2474
  %v5520 = vpop.f32.mrf.mxu0
  %v5521 = vadd.f32 %v5352, %v5520
  %v5522 = vpop.f32.mrf.mxu0
  %v5523 = vadd.f32 %v5354, %v5522
  %5524 = vmatmul.bf16.gmra.mxu0 %v2490
  %v5525 = vpop.f32.mrf.mxu0
  %v5526 = vadd.f32 %v5357, %v5525
  %v5527 = vpop.f32.mrf.mxu0
  %v5528 = vadd.f32 %v5359, %v5527
  %5529 = vmatmul.bf16.gmra.mxu0 %v2506
  %v5530 = vpop.f32.mrf.mxu0
  %v5531 = vadd.f32 %v5362, %v5530
  %v5532 = vpop.f32.mrf.mxu0
  %v5533 = vadd.f32 %v5364, %v5532
  %5534 = vmatmul.bf16.gmra.mxu0 %v2522
  %v5535 = vpop.f32.mrf.mxu0
  %v5536 = vadd.f32 %v5367, %v5535
  %v5537 = vpop.f32.mrf.mxu0
  %v5538 = vadd.f32 %v5369, %v5537
  %5539 = vmatmul.bf16.gmra.mxu0 %v2538
  %v5540 = vpop.f32.mrf.mxu0
  %v5541 = vadd.f32 %v5372, %v5540
  %v5542 = vpop.f32.mrf.mxu0
  %v5543 = vadd.f32 %v5374, %v5542
  %5544 = vmatmul.bf16.gmra.mxu0 %v2554
  %v5545 = vpop.f32.mrf.mxu0
  %v5546 = vadd.f32 %v5377, %v5545
  %v5547 = vpop.f32.mrf.mxu0
  %v5548 = vadd.f32 %v5379, %v5547
  %5549 = vmatmul.bf16.gmra.mxu0 %v2570
  %v5550 = vpop.f32.mrf.mxu0
  %v5551 = vadd.f32 %v5382, %v5550
  %v5552 = vpop.f32.mrf.mxu0
  %v5553 = vadd.f32 %v5384, %v5552
  %5554 = vmatmul.bf16.gmra.mxu0 %v2586
  %v5555 = vpop.f32.mrf.mxu0
  %v5556 = vadd.f32 %v5387, %v5555
  %v5557 = vpop.f32.mrf.mxu0
  %v5558 = vadd.f32 %v5389, %v5557
  %5559 = vmatmul.bf16.gmra.mxu0 %v2602
  %v5560 = vpop.f32.mrf.mxu0
  %v5561 = vadd.f32 %v5392, %v5560
  %v5562 = vpop.f32.mrf.mxu0
  %v5563 = vadd.f32 %v5394, %v5562
  %5564 = vmatmul.bf16.gmra.mxu0 %v2618
  %v5565 = vpop.f32.mrf.mxu0
  %v5566 = vadd.f32 %v5397, %v5565
  %v5567 = vpop.f32.mrf.mxu0
  %v5568 = vadd.f32 %v5399, %v5567
  %5569 = vmatmul.bf16.gmra.mxu0 %v2634
  %v5570 = vpop.f32.mrf.mxu0
  %v5571 = vadd.f32 %v5402, %v5570
  %v5572 = vpop.f32.mrf.mxu0
  %v5573 = vadd.f32 %v5404, %v5572
  %5574 = vmatmul.bf16.gmra.mxu0 %v2650
  %v5575 = vpop.f32.mrf.mxu0
  %v5576 = vadd.f32 %v5407, %v5575
  %v5577 = vpop.f32.mrf.mxu0
  %v5578 = vadd.f32 %v5409, %v5577
  %5579 = vmatmul.bf16.gmra.mxu0 %v2666
  %v5580 = vpop.f32.mrf.mxu0
  %v5581 = vadd.f32 %v5412, %v5580
  %v5582 = vpop.f32.mrf.mxu0
  %v5583 = vadd.f32 %v5414, %v5582
  %5584 = vmatmul.bf16.gmra.mxu0 %v2682
  %v5585 = vpop.f32.mrf.mxu0
  %v5586 = vadd.f32 %v5417, %v5585
  %v5587 = vpop.f32.mrf.mxu0
  %v5588 = vadd.f32 %v5419, %v5587
  %5589 = vmatmul.bf16.gmra.mxu0 %v2698
  %v5590 = vpop.f32.mrf.mxu0
  %v5591 = vadd.f32 %v5422, %v5590
  %v5592 = vpop.f32.mrf.mxu0
  %v5593 = vadd.f32 %v5424, %v5592
  %5594 = vmatmul.bf16.gmra.mxu0 %v2714
  %v5595 = vpop.f32.mrf.mxu0
  %v5596 = vadd.f32 %v5427, %v5595
  %v5597 = vpop.f32.mrf.mxu0
  %v5598 = vadd.f32 %v5429, %v5597
  %5599 = vmatmul.bf16.gmra.mxu0 %v2730
  %v5600 = vpop.f32.mrf.mxu0
  %v5601 = vadd.f32 %v5432, %v5600
  %v5602 = vpop.f32.mrf.mxu0
  %v5603 = vadd.f32 %v5434, %v5602
  %5604 = vmatmul.bf16.gmra.mxu0 %v2746
  %v5605 = vpop.f32.mrf.mxu0
  %v5606 = vadd.f32 %v5437, %v5605
  %v5607 = vpop.f32.mrf.mxu0
  %v5608 = vadd.f32 %v5439, %v5607
  %5609 = vmatmul.bf16.gmra.mxu0 %v2762
  %v5610 = vpop.f32.mrf.mxu0
  %v5611 = vadd.f32 %v5442, %v5610
  %v5612 = vpop.f32.mrf.mxu0
  %v5613 = vadd.f32 %v5444, %v5612
  %5614 = vmatmul.bf16.gmra.mxu0 %v2778
  %v5615 = vpop.f32.mrf.mxu0
  %v5616 = vadd.f32 %v5447, %v5615
  %v5617 = vpop.f32.mrf.mxu0
  %v5618 = vadd.f32 %v5449, %v5617
  %5619 = vmatmul.bf16.gmra.mxu0 %v2794
  %v5620 = vpop.f32.mrf.mxu0
  %v5621 = vadd.f32 %v5452, %v5620
  %v5622 = vpop.f32.mrf.mxu0
  %v5623 = vadd.f32 %v5454, %v5622
  %5624 = vmatmul.bf16.gmra.mxu0 %v2810
  %v5625 = vpop.f32.mrf.mxu0
  %v5626 = vadd.f32 %v5457, %v5625
  %v5627 = vpop.f32.mrf.mxu0
  %v5628 = vadd.f32 %v5459, %v5627
  %5629 = vmatmul.bf16.gmra.mxu0 %v2826
  %v5630 = vpop.f32.mrf.mxu0
  %v5631 = vadd.f32 %v5462, %v5630
  %v5632 = vpop.f32.mrf.mxu0
  %v5633 = vadd.f32 %v5464, %v5632
  %5634 = vdwg.mxu0
  %5635 = vmatpush.bf16.msra.mxu0 %v3937
  %5636 = vmatpush.bf16.msra.mxu0 %v3936
  %5637 = vmatpush.bf16.msra.mxu0 %v3935
  %5638 = vmatpush.bf16.msra.mxu0 %v3934
  %5639 = vmatpush.bf16.msra.mxu0 %v3933
  %5640 = vmatpush.bf16.msra.mxu0 %v3932
  %5641 = vmatpush.bf16.msra.mxu0 %v3931
  %5642 = vmatpush.bf16.msra.mxu0 %v3930
  %5643 = vmatmul.bf16.gmra.mxu0 %v2331
  %v5644 = vpop.f32.mrf.mxu0
  %v5645 = vadd.f32 %v5476, %v5644
  %v5646 = vpop.f32.mrf.mxu0
  %v5647 = vadd.f32 %v5478, %v5646
  %5648 = vmatmul.bf16.gmra.mxu0 %v2347
  %v5649 = vpop.f32.mrf.mxu0
  %v5650 = vadd.f32 %v5481, %v5649
  %v5651 = vpop.f32.mrf.mxu0
  %v5652 = vadd.f32 %v5483, %v5651
  %5653 = vmatmul.bf16.gmra.mxu0 %v2363
  %v5654 = vpop.f32.mrf.mxu0
  %v5655 = vadd.f32 %v5486, %v5654
  %v5656 = vpop.f32.mrf.mxu0
  %v5657 = vadd.f32 %v5488, %v5656
  %5658 = vmatmul.bf16.gmra.mxu0 %v2379
  %v5659 = vpop.f32.mrf.mxu0
  %v5660 = vadd.f32 %v5491, %v5659
  %v5661 = vpop.f32.mrf.mxu0
  %v5662 = vadd.f32 %v5493, %v5661
  %5663 = vmatmul.bf16.gmra.mxu0 %v2395
  %v5664 = vpop.f32.mrf.mxu0
  %v5665 = vadd.f32 %v5496, %v5664
  %v5666 = vpop.f32.mrf.mxu0
  %v5667 = vadd.f32 %v5498, %v5666
  %5668 = vmatmul.bf16.gmra.mxu0 %v2411
  %v5669 = vpop.f32.mrf.mxu0
  %v5670 = vadd.f32 %v5501, %v5669
  %v5671 = vpop.f32.mrf.mxu0
  %v5672 = vadd.f32 %v5503, %v5671
  %5673 = vmatmul.bf16.gmra.mxu0 %v2427
  %v5674 = vpop.f32.mrf.mxu0
  %v5675 = vadd.f32 %v5506, %v5674
  %v5676 = vpop.f32.mrf.mxu0
  %v5677 = vadd.f32 %v5508, %v5676
  %5678 = vmatmul.bf16.gmra.mxu0 %v2443
  %v5679 = vpop.f32.mrf.mxu0
  %v5680 = vadd.f32 %v5511, %v5679
  %v5681 = vpop.f32.mrf.mxu0
  %v5682 = vadd.f32 %v5513, %v5681
  %5683 = vmatmul.bf16.gmra.mxu0 %v2459
  %v5684 = vpop.f32.mrf.mxu0
  %v5685 = vadd.f32 %v5516, %v5684
  %v5686 = vpop.f32.mrf.mxu0
  %v5687 = vadd.f32 %v5518, %v5686
  %5688 = vmatmul.bf16.gmra.mxu0 %v2475
  %v5689 = vpop.f32.mrf.mxu0
  %v5690 = vadd.f32 %v5521, %v5689
  %v5691 = vpop.f32.mrf.mxu0
  %v5692 = vadd.f32 %v5523, %v5691
  %5693 = vmatmul.bf16.gmra.mxu0 %v2491
  %v5694 = vpop.f32.mrf.mxu0
  %v5695 = vadd.f32 %v5526, %v5694
  %v5696 = vpop.f32.mrf.mxu0
  %v5697 = vadd.f32 %v5528, %v5696
  %5698 = vmatmul.bf16.gmra.mxu0 %v2507
  %v5699 = vpop.f32.mrf.mxu0
  %v5700 = vadd.f32 %v5531, %v5699
  %v5701 = vpop.f32.mrf.mxu0
  %v5702 = vadd.f32 %v5533, %v5701
  %5703 = vmatmul.bf16.gmra.mxu0 %v2523
  %v5704 = vpop.f32.mrf.mxu0
  %v5705 = vadd.f32 %v5536, %v5704
  %v5706 = vpop.f32.mrf.mxu0
  %v5707 = vadd.f32 %v5538, %v5706
  %5708 = vmatmul.bf16.gmra.mxu0 %v2539
  %v5709 = vpop.f32.mrf.mxu0
  %v5710 = vadd.f32 %v5541, %v5709
  %v5711 = vpop.f32.mrf.mxu0
  %v5712 = vadd.f32 %v5543, %v5711
  %5713 = vmatmul.bf16.gmra.mxu0 %v2555
  %v5714 = vpop.f32.mrf.mxu0
  %v5715 = vadd.f32 %v5546, %v5714
  %v5716 = vpop.f32.mrf.mxu0
  %v5717 = vadd.f32 %v5548, %v5716
  %5718 = vmatmul.bf16.gmra.mxu0 %v2571
  %v5719 = vpop.f32.mrf.mxu0
  %v5720 = vadd.f32 %v5551, %v5719
  %v5721 = vpop.f32.mrf.mxu0
  %v5722 = vadd.f32 %v5553, %v5721
  %5723 = vmatmul.bf16.gmra.mxu0 %v2587
  %v5724 = vpop.f32.mrf.mxu0
  %v5725 = vadd.f32 %v5556, %v5724
  %v5726 = vpop.f32.mrf.mxu0
  %v5727 = vadd.f32 %v5558, %v5726
  %5728 = vmatmul.bf16.gmra.mxu0 %v2603
  %v5729 = vpop.f32.mrf.mxu0
  %v5730 = vadd.f32 %v5561, %v5729
  %v5731 = vpop.f32.mrf.mxu0
  %v5732 = vadd.f32 %v5563, %v5731
  %5733 = vmatmul.bf16.gmra.mxu0 %v2619
  %v5734 = vpop.f32.mrf.mxu0
  %v5735 = vadd.f32 %v5566, %v5734
  %v5736 = vpop.f32.mrf.mxu0
  %v5737 = vadd.f32 %v5568, %v5736
  %5738 = vmatmul.bf16.gmra.mxu0 %v2635
  %v5739 = vpop.f32.mrf.mxu0
  %v5740 = vadd.f32 %v5571, %v5739
  %v5741 = vpop.f32.mrf.mxu0
  %v5742 = vadd.f32 %v5573, %v5741
  %5743 = vmatmul.bf16.gmra.mxu0 %v2651
  %v5744 = vpop.f32.mrf.mxu0
  %v5745 = vadd.f32 %v5576, %v5744
  %v5746 = vpop.f32.mrf.mxu0
  %v5747 = vadd.f32 %v5578, %v5746
  %5748 = vmatmul.bf16.gmra.mxu0 %v2667
  %v5749 = vpop.f32.mrf.mxu0
  %v5750 = vadd.f32 %v5581, %v5749
  %v5751 = vpop.f32.mrf.mxu0
  %v5752 = vadd.f32 %v5583, %v5751
  %5753 = vmatmul.bf16.gmra.mxu0 %v2683
  %v5754 = vpop.f32.mrf.mxu0
  %v5755 = vadd.f32 %v5586, %v5754
  %v5756 = vpop.f32.mrf.mxu0
  %v5757 = vadd.f32 %v5588, %v5756
  %5758 = vmatmul.bf16.gmra.mxu0 %v2699
  %v5759 = vpop.f32.mrf.mxu0
  %v5760 = vadd.f32 %v5591, %v5759
  %v5761 = vpop.f32.mrf.mxu0
  %v5762 = vadd.f32 %v5593, %v5761
  %5763 = vmatmul.bf16.gmra.mxu0 %v2715
  %v5764 = vpop.f32.mrf.mxu0
  %v5765 = vadd.f32 %v5596, %v5764
  %v5766 = vpop.f32.mrf.mxu0
  %v5767 = vadd.f32 %v5598, %v5766
  %5768 = vmatmul.bf16.gmra.mxu0 %v2731
  %v5769 = vpop.f32.mrf.mxu0
  %v5770 = vadd.f32 %v5601, %v5769
  %v5771 = vpop.f32.mrf.mxu0
  %v5772 = vadd.f32 %v5603, %v5771
  %5773 = vmatmul.bf16.gmra.mxu0 %v2747
  %v5774 = vpop.f32.mrf.mxu0
  %v5775 = vadd.f32 %v5606, %v5774
  %v5776 = vpop.f32.mrf.mxu0
  %v5777 = vadd.f32 %v5608, %v5776
  %5778 = vmatmul.bf16.gmra.mxu0 %v2763
  %v5779 = vpop.f32.mrf.mxu0
  %v5780 = vadd.f32 %v5611, %v5779
  %v5781 = vpop.f32.mrf.mxu0
  %v5782 = vadd.f32 %v5613, %v5781
  %5783 = vmatmul.bf16.gmra.mxu0 %v2779
  %v5784 = vpop.f32.mrf.mxu0
  %v5785 = vadd.f32 %v5616, %v5784
  %v5786 = vpop.f32.mrf.mxu0
  %v5787 = vadd.f32 %v5618, %v5786
  %5788 = vmatmul.bf16.gmra.mxu0 %v2795
  %v5789 = vpop.f32.mrf.mxu0
  %v5790 = vadd.f32 %v5621, %v5789
  %v5791 = vpop.f32.mrf.mxu0
  %v5792 = vadd.f32 %v5623, %v5791
  %5793 = vmatmul.bf16.gmra.mxu0 %v2811
  %v5794 = vpop.f32.mrf.mxu0
  %v5795 = vadd.f32 %v5626, %v5794
  %v5796 = vpop.f32.mrf.mxu0
  %v5797 = vadd.f32 %v5628, %v5796
  %5798 = vmatmul.bf16.gmra.mxu0 %v2827
  %v5799 = vpop.f32.mrf.mxu0
  %v5800 = vadd.f32 %v5631, %v5799
  %v5801 = vpop.f32.mrf.mxu0
  %v5802 = vadd.f32 %v5633, %v5801
  %5803 = vdwg.mxu0
  %5804 = vmatpush.bf16.msra.mxu0 %v3945
  %5805 = vmatpush.bf16.msra.mxu0 %v3944
  %5806 = vmatpush.bf16.msra.mxu0 %v3943
  %5807 = vmatpush.bf16.msra.mxu0 %v3942
  %5808 = vmatpush.bf16.msra.mxu0 %v3941
  %5809 = vmatpush.bf16.msra.mxu0 %v3940
  %5810 = vmatpush.bf16.msra.mxu0 %v3939
  %5811 = vmatpush.bf16.msra.mxu0 %v3938
  %5812 = vmatmul.bf16.gmra.mxu0 %v2332
  %v5813 = vpop.f32.mrf.mxu0
  %v5814 = vadd.f32 %v5645, %v5813
  %v5815 = vpop.f32.mrf.mxu0
  %v5816 = vadd.f32 %v5647, %v5815
  %5817 = vmatmul.bf16.gmra.mxu0 %v2348
  %v5818 = vpop.f32.mrf.mxu0
  %v5819 = vadd.f32 %v5650, %v5818
  %v5820 = vpop.f32.mrf.mxu0
  %v5821 = vadd.f32 %v5652, %v5820
  %5822 = vmatmul.bf16.gmra.mxu0 %v2364
  %v5823 = vpop.f32.mrf.mxu0
  %v5824 = vadd.f32 %v5655, %v5823
  %v5825 = vpop.f32.mrf.mxu0
  %v5826 = vadd.f32 %v5657, %v5825
  %5827 = vmatmul.bf16.gmra.mxu0 %v2380
  %v5828 = vpop.f32.mrf.mxu0
  %v5829 = vadd.f32 %v5660, %v5828
  %v5830 = vpop.f32.mrf.mxu0
  %v5831 = vadd.f32 %v5662, %v5830
  %5832 = vmatmul.bf16.gmra.mxu0 %v2396
  %v5833 = vpop.f32.mrf.mxu0
  %v5834 = vadd.f32 %v5665, %v5833
  %v5835 = vpop.f32.mrf.mxu0
  %v5836 = vadd.f32 %v5667, %v5835
  %5837 = vmatmul.bf16.gmra.mxu0 %v2412
  %v5838 = vpop.f32.mrf.mxu0
  %v5839 = vadd.f32 %v5670, %v5838
  %v5840 = vpop.f32.mrf.mxu0
  %v5841 = vadd.f32 %v5672, %v5840
  %5842 = vmatmul.bf16.gmra.mxu0 %v2428
  %v5843 = vpop.f32.mrf.mxu0
  %v5844 = vadd.f32 %v5675, %v5843
  %v5845 = vpop.f32.mrf.mxu0
  %v5846 = vadd.f32 %v5677, %v5845
  %5847 = vmatmul.bf16.gmra.mxu0 %v2444
  %v5848 = vpop.f32.mrf.mxu0
  %v5849 = vadd.f32 %v5680, %v5848
  %v5850 = vpop.f32.mrf.mxu0
  %v5851 = vadd.f32 %v5682, %v5850
  %5852 = vmatmul.bf16.gmra.mxu0 %v2460
  %v5853 = vpop.f32.mrf.mxu0
  %v5854 = vadd.f32 %v5685, %v5853
  %v5855 = vpop.f32.mrf.mxu0
  %v5856 = vadd.f32 %v5687, %v5855
  %5857 = vmatmul.bf16.gmra.mxu0 %v2476
  %v5858 = vpop.f32.mrf.mxu0
  %v5859 = vadd.f32 %v5690, %v5858
  %v5860 = vpop.f32.mrf.mxu0
  %v5861 = vadd.f32 %v5692, %v5860
  %5862 = vmatmul.bf16.gmra.mxu0 %v2492
  %v5863 = vpop.f32.mrf.mxu0
  %v5864 = vadd.f32 %v5695, %v5863
  %v5865 = vpop.f32.mrf.mxu0
  %v5866 = vadd.f32 %v5697, %v5865
  %5867 = vmatmul.bf16.gmra.mxu0 %v2508
  %v5868 = vpop.f32.mrf.mxu0
  %v5869 = vadd.f32 %v5700, %v5868
  %v5870 = vpop.f32.mrf.mxu0
  %v5871 = vadd.f32 %v5702, %v5870
  %5872 = vmatmul.bf16.gmra.mxu0 %v2524
  %v5873 = vpop.f32.mrf.mxu0
  %v5874 = vadd.f32 %v5705, %v5873
  %v5875 = vpop.f32.mrf.mxu0
  %v5876 = vadd.f32 %v5707, %v5875
  %5877 = vmatmul.bf16.gmra.mxu0 %v2540
  %v5878 = vpop.f32.mrf.mxu0
  %v5879 = vadd.f32 %v5710, %v5878
  %v5880 = vpop.f32.mrf.mxu0
  %v5881 = vadd.f32 %v5712, %v5880
  %5882 = vmatmul.bf16.gmra.mxu0 %v2556
  %v5883 = vpop.f32.mrf.mxu0
  %v5884 = vadd.f32 %v5715, %v5883
  %v5885 = vpop.f32.mrf.mxu0
  %v5886 = vadd.f32 %v5717, %v5885
  %5887 = vmatmul.bf16.gmra.mxu0 %v2572
  %v5888 = vpop.f32.mrf.mxu0
  %v5889 = vadd.f32 %v5720, %v5888
  %v5890 = vpop.f32.mrf.mxu0
  %v5891 = vadd.f32 %v5722, %v5890
  %5892 = vmatmul.bf16.gmra.mxu0 %v2588
  %v5893 = vpop.f32.mrf.mxu0
  %v5894 = vadd.f32 %v5725, %v5893
  %v5895 = vpop.f32.mrf.mxu0
  %v5896 = vadd.f32 %v5727, %v5895
  %5897 = vmatmul.bf16.gmra.mxu0 %v2604
  %v5898 = vpop.f32.mrf.mxu0
  %v5899 = vadd.f32 %v5730, %v5898
  %v5900 = vpop.f32.mrf.mxu0
  %v5901 = vadd.f32 %v5732, %v5900
  %5902 = vmatmul.bf16.gmra.mxu0 %v2620
  %v5903 = vpop.f32.mrf.mxu0
  %v5904 = vadd.f32 %v5735, %v5903
  %v5905 = vpop.f32.mrf.mxu0
  %v5906 = vadd.f32 %v5737, %v5905
  %5907 = vmatmul.bf16.gmra.mxu0 %v2636
  %v5908 = vpop.f32.mrf.mxu0
  %v5909 = vadd.f32 %v5740, %v5908
  %v5910 = vpop.f32.mrf.mxu0
  %v5911 = vadd.f32 %v5742, %v5910
  %5912 = vmatmul.bf16.gmra.mxu0 %v2652
  %v5913 = vpop.f32.mrf.mxu0
  %v5914 = vadd.f32 %v5745, %v5913
  %v5915 = vpop.f32.mrf.mxu0
  %v5916 = vadd.f32 %v5747, %v5915
  %5917 = vmatmul.bf16.gmra.mxu0 %v2668
  %v5918 = vpop.f32.mrf.mxu0
  %v5919 = vadd.f32 %v5750, %v5918
  %v5920 = vpop.f32.mrf.mxu0
  %v5921 = vadd.f32 %v5752, %v5920
  %5922 = vmatmul.bf16.gmra.mxu0 %v2684
  %v5923 = vpop.f32.mrf.mxu0
  %v5924 = vadd.f32 %v5755, %v5923
  %v5925 = vpop.f32.mrf.mxu0
  %v5926 = vadd.f32 %v5757, %v5925
  %5927 = vmatmul.bf16.gmra.mxu0 %v2700
  %v5928 = vpop.f32.mrf.mxu0
  %v5929 = vadd.f32 %v5760, %v5928
  %v5930 = vpop.f32.mrf.mxu0
  %v5931 = vadd.f32 %v5762, %v5930
  %5932 = vmatmul.bf16.gmra.mxu0 %v2716
  %v5933 = vpop.f32.mrf.mxu0
  %v5934 = vadd.f32 %v5765, %v5933
  %v5935 = vpop.f32.mrf.mxu0
  %v5936 = vadd.f32 %v5767, %v5935
  %5937 = vmatmul.bf16.gmra.mxu0 %v2732
  %v5938 = vpop.f32.mrf.mxu0
  %v5939 = vadd.f32 %v5770, %v5938
  %v5940 = vpop.f32.mrf.mxu0
  %v5941 = vadd.f32 %v5772, %v5940
  %5942 = vmatmul.bf16.gmra.mxu0 %v2748
  %v5943 = vpop.f32.mrf.mxu0
  %v5944 = vadd.f32 %v5775, %v5943
  %v5945 = vpop.f32.mrf.mxu0
  %v5946 = vadd.f32 %v5777, %v5945
  %5947 = vmatmul.bf16.gmra.mxu0 %v2764
  %v5948 = vpop.f32.mrf.mxu0
  %v5949 = vadd.f32 %v5780, %v5948
  %v5950 = vpop.f32.mrf.mxu0
  %v5951 = vadd.f32 %v5782, %v5950
  %5952 = vmatmul.bf16.gmra.mxu0 %v2780
  %v5953 = vpop.f32.mrf.mxu0
  %v5954 = vadd.f32 %v5785, %v5953
  %v5955 = vpop.f32.mrf.mxu0
  %v5956 = vadd.f32 %v5787, %v5955
  %5957 = vmatmul.bf16.gmra.mxu0 %v2796
  %v5958 = vpop.f32.mrf.mxu0
  %v5959 = vadd.f32 %v5790, %v5958
  %v5960 = vpop.f32.mrf.mxu0
  %v5961 = vadd.f32 %v5792, %v5960
  %5962 = vmatmul.bf16.gmra.mxu0 %v2812
  %v5963 = vpop.f32.mrf.mxu0
  %v5964 = vadd.f32 %v5795, %v5963
  %v5965 = vpop.f32.mrf.mxu0
  %v5966 = vadd.f32 %v5797, %v5965
  %5967 = vmatmul.bf16.gmra.mxu0 %v2828
  %v5968 = vpop.f32.mrf.mxu0
  %v5969 = vadd.f32 %v5800, %v5968
  %v5970 = vpop.f32.mrf.mxu0
  %v5971 = vadd.f32 %v5802, %v5970
  %5972 = vdwg.mxu0
  %5973 = vmatpush.bf16.msra.mxu0 %v3953
  %5974 = vmatpush.bf16.msra.mxu0 %v3952
  %5975 = vmatpush.bf16.msra.mxu0 %v3951
  %5976 = vmatpush.bf16.msra.mxu0 %v3950
  %5977 = vmatpush.bf16.msra.mxu0 %v3949
  %5978 = vmatpush.bf16.msra.mxu0 %v3948
  %5979 = vmatpush.bf16.msra.mxu0 %v3947
  %5980 = vmatpush.bf16.msra.mxu0 %v3946
  %5981 = vmatmul.bf16.gmra.mxu0 %v2333
  %v5982 = vpop.f32.mrf.mxu0
  %v5983 = vadd.f32 %v5814, %v5982
  %v5984 = vpop.f32.mrf.mxu0
  %v5985 = vadd.f32 %v5816, %v5984
  %5986 = vmatmul.bf16.gmra.mxu0 %v2349
  %v5987 = vpop.f32.mrf.mxu0
  %v5988 = vadd.f32 %v5819, %v5987
  %v5989 = vpop.f32.mrf.mxu0
  %v5990 = vadd.f32 %v5821, %v5989
  %5991 = vmatmul.bf16.gmra.mxu0 %v2365
  %v5992 = vpop.f32.mrf.mxu0
  %v5993 = vadd.f32 %v5824, %v5992
  %v5994 = vpop.f32.mrf.mxu0
  %v5995 = vadd.f32 %v5826, %v5994
  %5996 = vmatmul.bf16.gmra.mxu0 %v2381
  %v5997 = vpop.f32.mrf.mxu0
  %v5998 = vadd.f32 %v5829, %v5997
  %v5999 = vpop.f32.mrf.mxu0
  %v6000 = vadd.f32 %v5831, %v5999
  %6001 = vmatmul.bf16.gmra.mxu0 %v2397
  %v6002 = vpop.f32.mrf.mxu0
  %v6003 = vadd.f32 %v5834, %v6002
  %v6004 = vpop.f32.mrf.mxu0
  %v6005 = vadd.f32 %v5836, %v6004
  %6006 = vmatmul.bf16.gmra.mxu0 %v2413
  %v6007 = vpop.f32.mrf.mxu0
  %v6008 = vadd.f32 %v5839, %v6007
  %v6009 = vpop.f32.mrf.mxu0
  %v6010 = vadd.f32 %v5841, %v6009
  %6011 = vmatmul.bf16.gmra.mxu0 %v2429
  %v6012 = vpop.f32.mrf.mxu0
  %v6013 = vadd.f32 %v5844, %v6012
  %v6014 = vpop.f32.mrf.mxu0
  %v6015 = vadd.f32 %v5846, %v6014
  %6016 = vmatmul.bf16.gmra.mxu0 %v2445
  %v6017 = vpop.f32.mrf.mxu0
  %v6018 = vadd.f32 %v5849, %v6017
  %v6019 = vpop.f32.mrf.mxu0
  %v6020 = vadd.f32 %v5851, %v6019
  %6021 = vmatmul.bf16.gmra.mxu0 %v2461
  %v6022 = vpop.f32.mrf.mxu0
  %v6023 = vadd.f32 %v5854, %v6022
  %v6024 = vpop.f32.mrf.mxu0
  %v6025 = vadd.f32 %v5856, %v6024
  %6026 = vmatmul.bf16.gmra.mxu0 %v2477
  %v6027 = vpop.f32.mrf.mxu0
  %v6028 = vadd.f32 %v5859, %v6027
  %v6029 = vpop.f32.mrf.mxu0
  %v6030 = vadd.f32 %v5861, %v6029
  %6031 = vmatmul.bf16.gmra.mxu0 %v2493
  %v6032 = vpop.f32.mrf.mxu0
  %v6033 = vadd.f32 %v5864, %v6032
  %v6034 = vpop.f32.mrf.mxu0
  %v6035 = vadd.f32 %v5866, %v6034
  %6036 = vmatmul.bf16.gmra.mxu0 %v2509
  %v6037 = vpop.f32.mrf.mxu0
  %v6038 = vadd.f32 %v5869, %v6037
  %v6039 = vpop.f32.mrf.mxu0
  %v6040 = vadd.f32 %v5871, %v6039
  %6041 = vmatmul.bf16.gmra.mxu0 %v2525
  %v6042 = vpop.f32.mrf.mxu0
  %v6043 = vadd.f32 %v5874, %v6042
  %v6044 = vpop.f32.mrf.mxu0
  %v6045 = vadd.f32 %v5876, %v6044
  %6046 = vmatmul.bf16.gmra.mxu0 %v2541
  %v6047 = vpop.f32.mrf.mxu0
  %v6048 = vadd.f32 %v5879, %v6047
  %v6049 = vpop.f32.mrf.mxu0
  %v6050 = vadd.f32 %v5881, %v6049
  %6051 = vmatmul.bf16.gmra.mxu0 %v2557
  %v6052 = vpop.f32.mrf.mxu0
  %v6053 = vadd.f32 %v5884, %v6052
  %v6054 = vpop.f32.mrf.mxu0
  %v6055 = vadd.f32 %v5886, %v6054
  %6056 = vmatmul.bf16.gmra.mxu0 %v2573
  %v6057 = vpop.f32.mrf.mxu0
  %v6058 = vadd.f32 %v5889, %v6057
  %v6059 = vpop.f32.mrf.mxu0
  %v6060 = vadd.f32 %v5891, %v6059
  %6061 = vmatmul.bf16.gmra.mxu0 %v2589
  %v6062 = vpop.f32.mrf.mxu0
  %v6063 = vadd.f32 %v5894, %v6062
  %v6064 = vpop.f32.mrf.mxu0
  %v6065 = vadd.f32 %v5896, %v6064
  %6066 = vmatmul.bf16.gmra.mxu0 %v2605
  %v6067 = vpop.f32.mrf.mxu0
  %v6068 = vadd.f32 %v5899, %v6067
  %v6069 = vpop.f32.mrf.mxu0
  %v6070 = vadd.f32 %v5901, %v6069
  %6071 = vmatmul.bf16.gmra.mxu0 %v2621
  %v6072 = vpop.f32.mrf.mxu0
  %v6073 = vadd.f32 %v5904, %v6072
  %v6074 = vpop.f32.mrf.mxu0
  %v6075 = vadd.f32 %v5906, %v6074
  %6076 = vmatmul.bf16.gmra.mxu0 %v2637
  %v6077 = vpop.f32.mrf.mxu0
  %v6078 = vadd.f32 %v5909, %v6077
  %v6079 = vpop.f32.mrf.mxu0
  %v6080 = vadd.f32 %v5911, %v6079
  %6081 = vmatmul.bf16.gmra.mxu0 %v2653
  %v6082 = vpop.f32.mrf.mxu0
  %v6083 = vadd.f32 %v5914, %v6082
  %v6084 = vpop.f32.mrf.mxu0
  %v6085 = vadd.f32 %v5916, %v6084
  %6086 = vmatmul.bf16.gmra.mxu0 %v2669
  %v6087 = vpop.f32.mrf.mxu0
  %v6088 = vadd.f32 %v5919, %v6087
  %v6089 = vpop.f32.mrf.mxu0
  %v6090 = vadd.f32 %v5921, %v6089
  %6091 = vmatmul.bf16.gmra.mxu0 %v2685
  %v6092 = vpop.f32.mrf.mxu0
  %v6093 = vadd.f32 %v5924, %v6092
  %v6094 = vpop.f32.mrf.mxu0
  %v6095 = vadd.f32 %v5926, %v6094
  %6096 = vmatmul.bf16.gmra.mxu0 %v2701
  %v6097 = vpop.f32.mrf.mxu0
  %v6098 = vadd.f32 %v5929, %v6097
  %v6099 = vpop.f32.mrf.mxu0
  %v6100 = vadd.f32 %v5931, %v6099
  %6101 = vmatmul.bf16.gmra.mxu0 %v2717
  %v6102 = vpop.f32.mrf.mxu0
  %v6103 = vadd.f32 %v5934, %v6102
  %v6104 = vpop.f32.mrf.mxu0
  %v6105 = vadd.f32 %v5936, %v6104
  %6106 = vmatmul.bf16.gmra.mxu0 %v2733
  %v6107 = vpop.f32.mrf.mxu0
  %v6108 = vadd.f32 %v5939, %v6107
  %v6109 = vpop.f32.mrf.mxu0
  %v6110 = vadd.f32 %v5941, %v6109
  %6111 = vmatmul.bf16.gmra.mxu0 %v2749
  %v6112 = vpop.f32.mrf.mxu0
  %v6113 = vadd.f32 %v5944, %v6112
  %v6114 = vpop.f32.mrf.mxu0
  %v6115 = vadd.f32 %v5946, %v6114
  %6116 = vmatmul.bf16.gmra.mxu0 %v2765
  %v6117 = vpop.f32.mrf.mxu0
  %v6118 = vadd.f32 %v5949, %v6117
  %v6119 = vpop.f32.mrf.mxu0
  %v6120 = vadd.f32 %v5951, %v6119
  %6121 = vmatmul.bf16.gmra.mxu0 %v2781
  %v6122 = vpop.f32.mrf.mxu0
  %v6123 = vadd.f32 %v5954, %v6122
  %v6124 = vpop.f32.mrf.mxu0
  %v6125 = vadd.f32 %v5956, %v6124
  %6126 = vmatmul.bf16.gmra.mxu0 %v2797
  %v6127 = vpop.f32.mrf.mxu0
  %v6128 = vadd.f32 %v5959, %v6127
  %v6129 = vpop.f32.mrf.mxu0
  %v6130 = vadd.f32 %v5961, %v6129
  %6131 = vmatmul.bf16.gmra.mxu0 %v2813
  %v6132 = vpop.f32.mrf.mxu0
  %v6133 = vadd.f32 %v5964, %v6132
  %v6134 = vpop.f32.mrf.mxu0
  %v6135 = vadd.f32 %v5966, %v6134
  %6136 = vmatmul.bf16.gmra.mxu0 %v2829
  %v6137 = vpop.f32.mrf.mxu0
  %v6138 = vadd.f32 %v5969, %v6137
  %v6139 = vpop.f32.mrf.mxu0
  %v6140 = vadd.f32 %v5971, %v6139
  %6141 = vdwg.mxu0
  %6142 = vmatpush.bf16.msra.mxu0 %v3961
  %6143 = vmatpush.bf16.msra.mxu0 %v3960
  %6144 = vmatpush.bf16.msra.mxu0 %v3959
  %6145 = vmatpush.bf16.msra.mxu0 %v3958
  %6146 = vmatpush.bf16.msra.mxu0 %v3957
  %6147 = vmatpush.bf16.msra.mxu0 %v3956
  %6148 = vmatpush.bf16.msra.mxu0 %v3955
  %6149 = vmatpush.bf16.msra.mxu0 %v3954
  %6150 = vmatmul.bf16.gmra.mxu0 %v2334
  %v6151 = vpop.f32.mrf.mxu0
  %v6152 = vadd.f32 %v5983, %v6151
  %v6153 = vpop.f32.mrf.mxu0
  %v6154 = vadd.f32 %v5985, %v6153
  %6155 = vmatmul.bf16.gmra.mxu0 %v2350
  %v6156 = vpop.f32.mrf.mxu0
  %v6157 = vadd.f32 %v5988, %v6156
  %v6158 = vpop.f32.mrf.mxu0
  %v6159 = vadd.f32 %v5990, %v6158
  %6160 = vmatmul.bf16.gmra.mxu0 %v2366
  %v6161 = vpop.f32.mrf.mxu0
  %v6162 = vadd.f32 %v5993, %v6161
  %v6163 = vpop.f32.mrf.mxu0
  %v6164 = vadd.f32 %v5995, %v6163
  %6165 = vmatmul.bf16.gmra.mxu0 %v2382
  %v6166 = vpop.f32.mrf.mxu0
  %v6167 = vadd.f32 %v5998, %v6166
  %v6168 = vpop.f32.mrf.mxu0
  %v6169 = vadd.f32 %v6000, %v6168
  %6170 = vmatmul.bf16.gmra.mxu0 %v2398
  %v6171 = vpop.f32.mrf.mxu0
  %v6172 = vadd.f32 %v6003, %v6171
  %v6173 = vpop.f32.mrf.mxu0
  %v6174 = vadd.f32 %v6005, %v6173
  %6175 = vmatmul.bf16.gmra.mxu0 %v2414
  %v6176 = vpop.f32.mrf.mxu0
  %v6177 = vadd.f32 %v6008, %v6176
  %v6178 = vpop.f32.mrf.mxu0
  %v6179 = vadd.f32 %v6010, %v6178
  %6180 = vmatmul.bf16.gmra.mxu0 %v2430
  %v6181 = vpop.f32.mrf.mxu0
  %v6182 = vadd.f32 %v6013, %v6181
  %v6183 = vpop.f32.mrf.mxu0
  %v6184 = vadd.f32 %v6015, %v6183
  %6185 = vmatmul.bf16.gmra.mxu0 %v2446
  %v6186 = vpop.f32.mrf.mxu0
  %v6187 = vadd.f32 %v6018, %v6186
  %v6188 = vpop.f32.mrf.mxu0
  %v6189 = vadd.f32 %v6020, %v6188
  %6190 = vmatmul.bf16.gmra.mxu0 %v2462
  %v6191 = vpop.f32.mrf.mxu0
  %v6192 = vadd.f32 %v6023, %v6191
  %v6193 = vpop.f32.mrf.mxu0
  %v6194 = vadd.f32 %v6025, %v6193
  %6195 = vmatmul.bf16.gmra.mxu0 %v2478
  %v6196 = vpop.f32.mrf.mxu0
  %v6197 = vadd.f32 %v6028, %v6196
  %v6198 = vpop.f32.mrf.mxu0
  %v6199 = vadd.f32 %v6030, %v6198
  %6200 = vmatmul.bf16.gmra.mxu0 %v2494
  %v6201 = vpop.f32.mrf.mxu0
  %v6202 = vadd.f32 %v6033, %v6201
  %v6203 = vpop.f32.mrf.mxu0
  %v6204 = vadd.f32 %v6035, %v6203
  %6205 = vmatmul.bf16.gmra.mxu0 %v2510
  %v6206 = vpop.f32.mrf.mxu0
  %v6207 = vadd.f32 %v6038, %v6206
  %v6208 = vpop.f32.mrf.mxu0
  %v6209 = vadd.f32 %v6040, %v6208
  %6210 = vmatmul.bf16.gmra.mxu0 %v2526
  %v6211 = vpop.f32.mrf.mxu0
  %v6212 = vadd.f32 %v6043, %v6211
  %v6213 = vpop.f32.mrf.mxu0
  %v6214 = vadd.f32 %v6045, %v6213
  %6215 = vmatmul.bf16.gmra.mxu0 %v2542
  %v6216 = vpop.f32.mrf.mxu0
  %v6217 = vadd.f32 %v6048, %v6216
  %v6218 = vpop.f32.mrf.mxu0
  %v6219 = vadd.f32 %v6050, %v6218
  %6220 = vmatmul.bf16.gmra.mxu0 %v2558
  %v6221 = vpop.f32.mrf.mxu0
  %v6222 = vadd.f32 %v6053, %v6221
  %v6223 = vpop.f32.mrf.mxu0
  %v6224 = vadd.f32 %v6055, %v6223
  %6225 = vmatmul.bf16.gmra.mxu0 %v2574
  %v6226 = vpop.f32.mrf.mxu0
  %v6227 = vadd.f32 %v6058, %v6226
  %v6228 = vpop.f32.mrf.mxu0
  %v6229 = vadd.f32 %v6060, %v6228
  %6230 = vmatmul.bf16.gmra.mxu0 %v2590
  %v6231 = vpop.f32.mrf.mxu0
  %v6232 = vadd.f32 %v6063, %v6231
  %v6233 = vpop.f32.mrf.mxu0
  %v6234 = vadd.f32 %v6065, %v6233
  %6235 = vmatmul.bf16.gmra.mxu0 %v2606
  %v6236 = vpop.f32.mrf.mxu0
  %v6237 = vadd.f32 %v6068, %v6236
  %v6238 = vpop.f32.mrf.mxu0
  %v6239 = vadd.f32 %v6070, %v6238
  %6240 = vmatmul.bf16.gmra.mxu0 %v2622
  %v6241 = vpop.f32.mrf.mxu0
  %v6242 = vadd.f32 %v6073, %v6241
  %v6243 = vpop.f32.mrf.mxu0
  %v6244 = vadd.f32 %v6075, %v6243
  %6245 = vmatmul.bf16.gmra.mxu0 %v2638
  %v6246 = vpop.f32.mrf.mxu0
  %v6247 = vadd.f32 %v6078, %v6246
  %v6248 = vpop.f32.mrf.mxu0
  %v6249 = vadd.f32 %v6080, %v6248
  %6250 = vmatmul.bf16.gmra.mxu0 %v2654
  %v6251 = vpop.f32.mrf.mxu0
  %v6252 = vadd.f32 %v6083, %v6251
  %v6253 = vpop.f32.mrf.mxu0
  %v6254 = vadd.f32 %v6085, %v6253
  %6255 = vmatmul.bf16.gmra.mxu0 %v2670
  %v6256 = vpop.f32.mrf.mxu0
  %v6257 = vadd.f32 %v6088, %v6256
  %v6258 = vpop.f32.mrf.mxu0
  %v6259 = vadd.f32 %v6090, %v6258
  %6260 = vmatmul.bf16.gmra.mxu0 %v2686
  %v6261 = vpop.f32.mrf.mxu0
  %v6262 = vadd.f32 %v6093, %v6261
  %v6263 = vpop.f32.mrf.mxu0
  %v6264 = vadd.f32 %v6095, %v6263
  %6265 = vmatmul.bf16.gmra.mxu0 %v2702
  %v6266 = vpop.f32.mrf.mxu0
  %v6267 = vadd.f32 %v6098, %v6266
  %v6268 = vpop.f32.mrf.mxu0
  %v6269 = vadd.f32 %v6100, %v6268
  %6270 = vmatmul.bf16.gmra.mxu0 %v2718
  %v6271 = vpop.f32.mrf.mxu0
  %v6272 = vadd.f32 %v6103, %v6271
  %v6273 = vpop.f32.mrf.mxu0
  %v6274 = vadd.f32 %v6105, %v6273
  %6275 = vmatmul.bf16.gmra.mxu0 %v2734
  %v6276 = vpop.f32.mrf.mxu0
  %v6277 = vadd.f32 %v6108, %v6276
  %v6278 = vpop.f32.mrf.mxu0
  %v6279 = vadd.f32 %v6110, %v6278
  %6280 = vmatmul.bf16.gmra.mxu0 %v2750
  %v6281 = vpop.f32.mrf.mxu0
  %v6282 = vadd.f32 %v6113, %v6281
  %v6283 = vpop.f32.mrf.mxu0
  %v6284 = vadd.f32 %v6115, %v6283
  %6285 = vmatmul.bf16.gmra.mxu0 %v2766
  %v6286 = vpop.f32.mrf.mxu0
  %v6287 = vadd.f32 %v6118, %v6286
  %v6288 = vpop.f32.mrf.mxu0
  %v6289 = vadd.f32 %v6120, %v6288
  %6290 = vmatmul.bf16.gmra.mxu0 %v2782
  %v6291 = vpop.f32.mrf.mxu0
  %v6292 = vadd.f32 %v6123, %v6291
  %v6293 = vpop.f32.mrf.mxu0
  %v6294 = vadd.f32 %v6125, %v6293
  %6295 = vmatmul.bf16.gmra.mxu0 %v2798
  %v6296 = vpop.f32.mrf.mxu0
  %v6297 = vadd.f32 %v6128, %v6296
  %v6298 = vpop.f32.mrf.mxu0
  %v6299 = vadd.f32 %v6130, %v6298
  %6300 = vmatmul.bf16.gmra.mxu0 %v2814
  %v6301 = vpop.f32.mrf.mxu0
  %v6302 = vadd.f32 %v6133, %v6301
  %v6303 = vpop.f32.mrf.mxu0
  %v6304 = vadd.f32 %v6135, %v6303
  %6305 = vmatmul.bf16.gmra.mxu0 %v2830
  %v6306 = vpop.f32.mrf.mxu0
  %v6307 = vadd.f32 %v6138, %v6306
  %v6308 = vpop.f32.mrf.mxu0
  %v6309 = vadd.f32 %v6140, %v6308
  %6310 = vdwg.mxu0
  %6311 = vmatpush.bf16.msra.mxu0 %v3969
  %6312 = vmatpush.bf16.msra.mxu0 %v3968
  %6313 = vmatpush.bf16.msra.mxu0 %v3967
  %6314 = vmatpush.bf16.msra.mxu0 %v3966
  %6315 = vmatpush.bf16.msra.mxu0 %v3965
  %6316 = vmatpush.bf16.msra.mxu0 %v3964
  %6317 = vmatpush.bf16.msra.mxu0 %v3963
  %6318 = vmatpush.bf16.msra.mxu0 %v3962
  %6319 = vmatmul.bf16.gmra.mxu0 %v2335
  %v6320 = vpop.f32.mrf.mxu0
  %v6321 = vadd.f32 %v6152, %v6320
  %v6322 = vpop.f32.mrf.mxu0
  %v6323 = vadd.f32 %v6154, %v6322
  %6324 = vmatmul.bf16.gmra.mxu0 %v2351
  %v6325 = vpop.f32.mrf.mxu0
  %v6326 = vadd.f32 %v6157, %v6325
  %v6327 = vpop.f32.mrf.mxu0
  %v6328 = vadd.f32 %v6159, %v6327
  %6329 = vmatmul.bf16.gmra.mxu0 %v2367
  %v6330 = vpop.f32.mrf.mxu0
  %v6331 = vadd.f32 %v6162, %v6330
  %v6332 = vpop.f32.mrf.mxu0
  %v6333 = vadd.f32 %v6164, %v6332
  %6334 = vmatmul.bf16.gmra.mxu0 %v2383
  %v6335 = vpop.f32.mrf.mxu0
  %v6336 = vadd.f32 %v6167, %v6335
  %v6337 = vpop.f32.mrf.mxu0
  %v6338 = vadd.f32 %v6169, %v6337
  %6339 = vmatmul.bf16.gmra.mxu0 %v2399
  %v6340 = vpop.f32.mrf.mxu0
  %v6341 = vadd.f32 %v6172, %v6340
  %v6342 = vpop.f32.mrf.mxu0
  %v6343 = vadd.f32 %v6174, %v6342
  %6344 = vmatmul.bf16.gmra.mxu0 %v2415
  %v6345 = vpop.f32.mrf.mxu0
  %v6346 = vadd.f32 %v6177, %v6345
  %v6347 = vpop.f32.mrf.mxu0
  %v6348 = vadd.f32 %v6179, %v6347
  %6349 = vmatmul.bf16.gmra.mxu0 %v2431
  %v6350 = vpop.f32.mrf.mxu0
  %v6351 = vadd.f32 %v6182, %v6350
  %v6352 = vpop.f32.mrf.mxu0
  %v6353 = vadd.f32 %v6184, %v6352
  %6354 = vmatmul.bf16.gmra.mxu0 %v2447
  %v6355 = vpop.f32.mrf.mxu0
  %v6356 = vadd.f32 %v6187, %v6355
  %v6357 = vpop.f32.mrf.mxu0
  %v6358 = vadd.f32 %v6189, %v6357
  %6359 = vmatmul.bf16.gmra.mxu0 %v2463
  %v6360 = vpop.f32.mrf.mxu0
  %v6361 = vadd.f32 %v6192, %v6360
  %v6362 = vpop.f32.mrf.mxu0
  %v6363 = vadd.f32 %v6194, %v6362
  %6364 = vmatmul.bf16.gmra.mxu0 %v2479
  %v6365 = vpop.f32.mrf.mxu0
  %v6366 = vadd.f32 %v6197, %v6365
  %v6367 = vpop.f32.mrf.mxu0
  %v6368 = vadd.f32 %v6199, %v6367
  %6369 = vmatmul.bf16.gmra.mxu0 %v2495
  %v6370 = vpop.f32.mrf.mxu0
  %v6371 = vadd.f32 %v6202, %v6370
  %v6372 = vpop.f32.mrf.mxu0
  %v6373 = vadd.f32 %v6204, %v6372
  %6374 = vmatmul.bf16.gmra.mxu0 %v2511
  %v6375 = vpop.f32.mrf.mxu0
  %v6376 = vadd.f32 %v6207, %v6375
  %v6377 = vpop.f32.mrf.mxu0
  %v6378 = vadd.f32 %v6209, %v6377
  %6379 = vmatmul.bf16.gmra.mxu0 %v2527
  %v6380 = vpop.f32.mrf.mxu0
  %v6381 = vadd.f32 %v6212, %v6380
  %v6382 = vpop.f32.mrf.mxu0
  %v6383 = vadd.f32 %v6214, %v6382
  %6384 = vmatmul.bf16.gmra.mxu0 %v2543
  %v6385 = vpop.f32.mrf.mxu0
  %v6386 = vadd.f32 %v6217, %v6385
  %v6387 = vpop.f32.mrf.mxu0
  %v6388 = vadd.f32 %v6219, %v6387
  %6389 = vmatmul.bf16.gmra.mxu0 %v2559
  %v6390 = vpop.f32.mrf.mxu0
  %v6391 = vadd.f32 %v6222, %v6390
  %v6392 = vpop.f32.mrf.mxu0
  %v6393 = vadd.f32 %v6224, %v6392
  %6394 = vmatmul.bf16.gmra.mxu0 %v2575
  %v6395 = vpop.f32.mrf.mxu0
  %v6396 = vadd.f32 %v6227, %v6395
  %v6397 = vpop.f32.mrf.mxu0
  %v6398 = vadd.f32 %v6229, %v6397
  %6399 = vmatmul.bf16.gmra.mxu0 %v2591
  %v6400 = vpop.f32.mrf.mxu0
  %v6401 = vadd.f32 %v6232, %v6400
  %v6402 = vpop.f32.mrf.mxu0
  %v6403 = vadd.f32 %v6234, %v6402
  %6404 = vmatmul.bf16.gmra.mxu0 %v2607
  %v6405 = vpop.f32.mrf.mxu0
  %v6406 = vadd.f32 %v6237, %v6405
  %v6407 = vpop.f32.mrf.mxu0
  %v6408 = vadd.f32 %v6239, %v6407
  %6409 = vmatmul.bf16.gmra.mxu0 %v2623
  %v6410 = vpop.f32.mrf.mxu0
  %v6411 = vadd.f32 %v6242, %v6410
  %v6412 = vpop.f32.mrf.mxu0
  %v6413 = vadd.f32 %v6244, %v6412
  %6414 = vmatmul.bf16.gmra.mxu0 %v2639
  %v6415 = vpop.f32.mrf.mxu0
  %v6416 = vadd.f32 %v6247, %v6415
  %v6417 = vpop.f32.mrf.mxu0
  %v6418 = vadd.f32 %v6249, %v6417
  %6419 = vmatmul.bf16.gmra.mxu0 %v2655
  %v6420 = vpop.f32.mrf.mxu0
  %v6421 = vadd.f32 %v6252, %v6420
  %v6422 = vpop.f32.mrf.mxu0
  %v6423 = vadd.f32 %v6254, %v6422
  %6424 = vmatmul.bf16.gmra.mxu0 %v2671
  %v6425 = vpop.f32.mrf.mxu0
  %v6426 = vadd.f32 %v6257, %v6425
  %v6427 = vpop.f32.mrf.mxu0
  %v6428 = vadd.f32 %v6259, %v6427
  %6429 = vmatmul.bf16.gmra.mxu0 %v2687
  %v6430 = vpop.f32.mrf.mxu0
  %v6431 = vadd.f32 %v6262, %v6430
  %v6432 = vpop.f32.mrf.mxu0
  %v6433 = vadd.f32 %v6264, %v6432
  %6434 = vmatmul.bf16.gmra.mxu0 %v2703
  %v6435 = vpop.f32.mrf.mxu0
  %v6436 = vadd.f32 %v6267, %v6435
  %v6437 = vpop.f32.mrf.mxu0
  %v6438 = vadd.f32 %v6269, %v6437
  %6439 = vmatmul.bf16.gmra.mxu0 %v2719
  %v6440 = vpop.f32.mrf.mxu0
  %v6441 = vadd.f32 %v6272, %v6440
  %v6442 = vpop.f32.mrf.mxu0
  %v6443 = vadd.f32 %v6274, %v6442
  %6444 = vmatmul.bf16.gmra.mxu0 %v2735
  %v6445 = vpop.f32.mrf.mxu0
  %v6446 = vadd.f32 %v6277, %v6445
  %v6447 = vpop.f32.mrf.mxu0
  %v6448 = vadd.f32 %v6279, %v6447
  %6449 = vmatmul.bf16.gmra.mxu0 %v2751
  %v6450 = vpop.f32.mrf.mxu0
  %v6451 = vadd.f32 %v6282, %v6450
  %v6452 = vpop.f32.mrf.mxu0
  %v6453 = vadd.f32 %v6284, %v6452
  %6454 = vmatmul.bf16.gmra.mxu0 %v2767
  %v6455 = vpop.f32.mrf.mxu0
  %v6456 = vadd.f32 %v6287, %v6455
  %v6457 = vpop.f32.mrf.mxu0
  %v6458 = vadd.f32 %v6289, %v6457
  %6459 = vmatmul.bf16.gmra.mxu0 %v2783
  %v6460 = vpop.f32.mrf.mxu0
  %v6461 = vadd.f32 %v6292, %v6460
  %v6462 = vpop.f32.mrf.mxu0
  %v6463 = vadd.f32 %v6294, %v6462
  %6464 = vmatmul.bf16.gmra.mxu0 %v2799
  %v6465 = vpop.f32.mrf.mxu0
  %v6466 = vadd.f32 %v6297, %v6465
  %v6467 = vpop.f32.mrf.mxu0
  %v6468 = vadd.f32 %v6299, %v6467
  %6469 = vmatmul.bf16.gmra.mxu0 %v2815
  %v6470 = vpop.f32.mrf.mxu0
  %v6471 = vadd.f32 %v6302, %v6470
  %v6472 = vpop.f32.mrf.mxu0
  %v6473 = vadd.f32 %v6304, %v6472
  %6474 = vmatmul.bf16.gmra.mxu0 %v2831
  %v6475 = vpop.f32.mrf.mxu0
  %v6476 = vadd.f32 %v6307, %v6475
  %v6477 = vpop.f32.mrf.mxu0
  %v6478 = vadd.f32 %v6309, %v6477
  %6479 = vdwg.mxu0
  %6480 = vmatpush.bf16.msra.mxu0 %v3977
  %6481 = vmatpush.bf16.msra.mxu0 %v3976
  %6482 = vmatpush.bf16.msra.mxu0 %v3975
  %6483 = vmatpush.bf16.msra.mxu0 %v3974
  %6484 = vmatpush.bf16.msra.mxu0 %v3973
  %6485 = vmatpush.bf16.msra.mxu0 %v3972
  %6486 = vmatpush.bf16.msra.mxu0 %v3971
  %6487 = vmatpush.bf16.msra.mxu0 %v3970
  %6488 = vmatmul.bf16.gmra.mxu0 %v2336
  %v6489 = vpop.f32.mrf.mxu0
  %v6490 = vadd.f32 %v6321, %v6489
  %v6491 = vpop.f32.mrf.mxu0
  %v6492 = vadd.f32 %v6323, %v6491
  %6493 = vmatmul.bf16.gmra.mxu0 %v2352
  %v6494 = vpop.f32.mrf.mxu0
  %v6495 = vadd.f32 %v6326, %v6494
  %v6496 = vpop.f32.mrf.mxu0
  %v6497 = vadd.f32 %v6328, %v6496
  %6498 = vmatmul.bf16.gmra.mxu0 %v2368
  %v6499 = vpop.f32.mrf.mxu0
  %v6500 = vadd.f32 %v6331, %v6499
  %v6501 = vpop.f32.mrf.mxu0
  %v6502 = vadd.f32 %v6333, %v6501
  %6503 = vmatmul.bf16.gmra.mxu0 %v2384
  %v6504 = vpop.f32.mrf.mxu0
  %v6505 = vadd.f32 %v6336, %v6504
  %v6506 = vpop.f32.mrf.mxu0
  %v6507 = vadd.f32 %v6338, %v6506
  %6508 = vmatmul.bf16.gmra.mxu0 %v2400
  %v6509 = vpop.f32.mrf.mxu0
  %v6510 = vadd.f32 %v6341, %v6509
  %v6511 = vpop.f32.mrf.mxu0
  %v6512 = vadd.f32 %v6343, %v6511
  %6513 = vmatmul.bf16.gmra.mxu0 %v2416
  %v6514 = vpop.f32.mrf.mxu0
  %v6515 = vadd.f32 %v6346, %v6514
  %v6516 = vpop.f32.mrf.mxu0
  %v6517 = vadd.f32 %v6348, %v6516
  %6518 = vmatmul.bf16.gmra.mxu0 %v2432
  %v6519 = vpop.f32.mrf.mxu0
  %v6520 = vadd.f32 %v6351, %v6519
  %v6521 = vpop.f32.mrf.mxu0
  %v6522 = vadd.f32 %v6353, %v6521
  %6523 = vmatmul.bf16.gmra.mxu0 %v2448
  %v6524 = vpop.f32.mrf.mxu0
  %v6525 = vadd.f32 %v6356, %v6524
  %v6526 = vpop.f32.mrf.mxu0
  %v6527 = vadd.f32 %v6358, %v6526
  %6528 = vmatmul.bf16.gmra.mxu0 %v2464
  %v6529 = vpop.f32.mrf.mxu0
  %v6530 = vadd.f32 %v6361, %v6529
  %v6531 = vpop.f32.mrf.mxu0
  %v6532 = vadd.f32 %v6363, %v6531
  %6533 = vmatmul.bf16.gmra.mxu0 %v2480
  %v6534 = vpop.f32.mrf.mxu0
  %v6535 = vadd.f32 %v6366, %v6534
  %v6536 = vpop.f32.mrf.mxu0
  %v6537 = vadd.f32 %v6368, %v6536
  %6538 = vmatmul.bf16.gmra.mxu0 %v2496
  %v6539 = vpop.f32.mrf.mxu0
  %v6540 = vadd.f32 %v6371, %v6539
  %v6541 = vpop.f32.mrf.mxu0
  %v6542 = vadd.f32 %v6373, %v6541
  %6543 = vmatmul.bf16.gmra.mxu0 %v2512
  %v6544 = vpop.f32.mrf.mxu0
  %v6545 = vadd.f32 %v6376, %v6544
  %v6546 = vpop.f32.mrf.mxu0
  %v6547 = vadd.f32 %v6378, %v6546
  %6548 = vmatmul.bf16.gmra.mxu0 %v2528
  %v6549 = vpop.f32.mrf.mxu0
  %v6550 = vadd.f32 %v6381, %v6549
  %v6551 = vpop.f32.mrf.mxu0
  %v6552 = vadd.f32 %v6383, %v6551
  %6553 = vmatmul.bf16.gmra.mxu0 %v2544
  %v6554 = vpop.f32.mrf.mxu0
  %v6555 = vadd.f32 %v6386, %v6554
  %v6556 = vpop.f32.mrf.mxu0
  %v6557 = vadd.f32 %v6388, %v6556
  %6558 = vmatmul.bf16.gmra.mxu0 %v2560
  %v6559 = vpop.f32.mrf.mxu0
  %v6560 = vadd.f32 %v6391, %v6559
  %v6561 = vpop.f32.mrf.mxu0
  %v6562 = vadd.f32 %v6393, %v6561
  %6563 = vmatmul.bf16.gmra.mxu0 %v2576
  %v6564 = vpop.f32.mrf.mxu0
  %v6565 = vadd.f32 %v6396, %v6564
  %v6566 = vpop.f32.mrf.mxu0
  %v6567 = vadd.f32 %v6398, %v6566
  %6568 = vmatmul.bf16.gmra.mxu0 %v2592
  %v6569 = vpop.f32.mrf.mxu0
  %v6570 = vadd.f32 %v6401, %v6569
  %v6571 = vpop.f32.mrf.mxu0
  %v6572 = vadd.f32 %v6403, %v6571
  %6573 = vmatmul.bf16.gmra.mxu0 %v2608
  %v6574 = vpop.f32.mrf.mxu0
  %v6575 = vadd.f32 %v6406, %v6574
  %v6576 = vpop.f32.mrf.mxu0
  %v6577 = vadd.f32 %v6408, %v6576
  %6578 = vmatmul.bf16.gmra.mxu0 %v2624
  %v6579 = vpop.f32.mrf.mxu0
  %v6580 = vadd.f32 %v6411, %v6579
  %v6581 = vpop.f32.mrf.mxu0
  %v6582 = vadd.f32 %v6413, %v6581
  %6583 = vmatmul.bf16.gmra.mxu0 %v2640
  %v6584 = vpop.f32.mrf.mxu0
  %v6585 = vadd.f32 %v6416, %v6584
  %v6586 = vpop.f32.mrf.mxu0
  %v6587 = vadd.f32 %v6418, %v6586
  %6588 = vmatmul.bf16.gmra.mxu0 %v2656
  %v6589 = vpop.f32.mrf.mxu0
  %v6590 = vadd.f32 %v6421, %v6589
  %v6591 = vpop.f32.mrf.mxu0
  %v6592 = vadd.f32 %v6423, %v6591
  %6593 = vmatmul.bf16.gmra.mxu0 %v2672
  %v6594 = vpop.f32.mrf.mxu0
  %v6595 = vadd.f32 %v6426, %v6594
  %v6596 = vpop.f32.mrf.mxu0
  %v6597 = vadd.f32 %v6428, %v6596
  %6598 = vmatmul.bf16.gmra.mxu0 %v2688
  %v6599 = vpop.f32.mrf.mxu0
  %v6600 = vadd.f32 %v6431, %v6599
  %v6601 = vpop.f32.mrf.mxu0
  %v6602 = vadd.f32 %v6433, %v6601
  %6603 = vmatmul.bf16.gmra.mxu0 %v2704
  %v6604 = vpop.f32.mrf.mxu0
  %v6605 = vadd.f32 %v6436, %v6604
  %v6606 = vpop.f32.mrf.mxu0
  %v6607 = vadd.f32 %v6438, %v6606
  %6608 = vmatmul.bf16.gmra.mxu0 %v2720
  %v6609 = vpop.f32.mrf.mxu0
  %v6610 = vadd.f32 %v6441, %v6609
  %v6611 = vpop.f32.mrf.mxu0
  %v6612 = vadd.f32 %v6443, %v6611
  %6613 = vmatmul.bf16.gmra.mxu0 %v2736
  %v6614 = vpop.f32.mrf.mxu0
  %v6615 = vadd.f32 %v6446, %v6614
  %v6616 = vpop.f32.mrf.mxu0
  %v6617 = vadd.f32 %v6448, %v6616
  %6618 = vmatmul.bf16.gmra.mxu0 %v2752
  %v6619 = vpop.f32.mrf.mxu0
  %v6620 = vadd.f32 %v6451, %v6619
  %v6621 = vpop.f32.mrf.mxu0
  %v6622 = vadd.f32 %v6453, %v6621
  %6623 = vmatmul.bf16.gmra.mxu0 %v2768
  %v6624 = vpop.f32.mrf.mxu0
  %v6625 = vadd.f32 %v6456, %v6624
  %v6626 = vpop.f32.mrf.mxu0
  %v6627 = vadd.f32 %v6458, %v6626
  %6628 = vmatmul.bf16.gmra.mxu0 %v2784
  %v6629 = vpop.f32.mrf.mxu0
  %v6630 = vadd.f32 %v6461, %v6629
  %v6631 = vpop.f32.mrf.mxu0
  %v6632 = vadd.f32 %v6463, %v6631
  %6633 = vmatmul.bf16.gmra.mxu0 %v2800
  %v6634 = vpop.f32.mrf.mxu0
  %v6635 = vadd.f32 %v6466, %v6634
  %v6636 = vpop.f32.mrf.mxu0
  %v6637 = vadd.f32 %v6468, %v6636
  %6638 = vmatmul.bf16.gmra.mxu0 %v2816
  %v6639 = vpop.f32.mrf.mxu0
  %v6640 = vadd.f32 %v6471, %v6639
  %v6641 = vpop.f32.mrf.mxu0
  %v6642 = vadd.f32 %v6473, %v6641
  %6643 = vmatmul.bf16.gmra.mxu0 %v2832
  %v6644 = vpop.f32.mrf.mxu0
  %v6645 = vadd.f32 %v6476, %v6644
  %v6646 = vpop.f32.mrf.mxu0
  %v6647 = vadd.f32 %v6478, %v6646
  %6648 = vdwg.mxu0
  %6649 = vmatpush.bf16.msra.mxu0 %v3985
  %6650 = vmatpush.bf16.msra.mxu0 %v3984
  %6651 = vmatpush.bf16.msra.mxu0 %v3983
  %6652 = vmatpush.bf16.msra.mxu0 %v3982
  %6653 = vmatpush.bf16.msra.mxu0 %v3981
  %6654 = vmatpush.bf16.msra.mxu0 %v3980
  %6655 = vmatpush.bf16.msra.mxu0 %v3979
  %6656 = vmatpush.bf16.msra.mxu0 %v3978
  %6657 = vmatmul.bf16.gmra.mxu0 %v2337
  %v6658 = vpop.f32.mrf.mxu0
  %v6659 = vadd.f32 %v6490, %v6658
  %v6660 = vpop.f32.mrf.mxu0
  %v6661 = vadd.f32 %v6492, %v6660
  %6662 = vmatmul.bf16.gmra.mxu0 %v2353
  %v6663 = vpop.f32.mrf.mxu0
  %v6664 = vadd.f32 %v6495, %v6663
  %v6665 = vpop.f32.mrf.mxu0
  %v6666 = vadd.f32 %v6497, %v6665
  %6667 = vmatmul.bf16.gmra.mxu0 %v2369
  %v6668 = vpop.f32.mrf.mxu0
  %v6669 = vadd.f32 %v6500, %v6668
  %v6670 = vpop.f32.mrf.mxu0
  %v6671 = vadd.f32 %v6502, %v6670
  %6672 = vmatmul.bf16.gmra.mxu0 %v2385
  %v6673 = vpop.f32.mrf.mxu0
  %v6674 = vadd.f32 %v6505, %v6673
  %v6675 = vpop.f32.mrf.mxu0
  %v6676 = vadd.f32 %v6507, %v6675
  %6677 = vmatmul.bf16.gmra.mxu0 %v2401
  %v6678 = vpop.f32.mrf.mxu0
  %v6679 = vadd.f32 %v6510, %v6678
  %v6680 = vpop.f32.mrf.mxu0
  %v6681 = vadd.f32 %v6512, %v6680
  %6682 = vmatmul.bf16.gmra.mxu0 %v2417
  %v6683 = vpop.f32.mrf.mxu0
  %v6684 = vadd.f32 %v6515, %v6683
  %v6685 = vpop.f32.mrf.mxu0
  %v6686 = vadd.f32 %v6517, %v6685
  %6687 = vmatmul.bf16.gmra.mxu0 %v2433
  %v6688 = vpop.f32.mrf.mxu0
  %v6689 = vadd.f32 %v6520, %v6688
  %v6690 = vpop.f32.mrf.mxu0
  %v6691 = vadd.f32 %v6522, %v6690
  %6692 = vmatmul.bf16.gmra.mxu0 %v2449
  %v6693 = vpop.f32.mrf.mxu0
  %v6694 = vadd.f32 %v6525, %v6693
  %v6695 = vpop.f32.mrf.mxu0
  %v6696 = vadd.f32 %v6527, %v6695
  %6697 = vmatmul.bf16.gmra.mxu0 %v2465
  %v6698 = vpop.f32.mrf.mxu0
  %v6699 = vadd.f32 %v6530, %v6698
  %v6700 = vpop.f32.mrf.mxu0
  %v6701 = vadd.f32 %v6532, %v6700
  %6702 = vmatmul.bf16.gmra.mxu0 %v2481
  %v6703 = vpop.f32.mrf.mxu0
  %v6704 = vadd.f32 %v6535, %v6703
  %v6705 = vpop.f32.mrf.mxu0
  %v6706 = vadd.f32 %v6537, %v6705
  %6707 = vmatmul.bf16.gmra.mxu0 %v2497
  %v6708 = vpop.f32.mrf.mxu0
  %v6709 = vadd.f32 %v6540, %v6708
  %v6710 = vpop.f32.mrf.mxu0
  %v6711 = vadd.f32 %v6542, %v6710
  %6712 = vmatmul.bf16.gmra.mxu0 %v2513
  %v6713 = vpop.f32.mrf.mxu0
  %v6714 = vadd.f32 %v6545, %v6713
  %v6715 = vpop.f32.mrf.mxu0
  %v6716 = vadd.f32 %v6547, %v6715
  %6717 = vmatmul.bf16.gmra.mxu0 %v2529
  %v6718 = vpop.f32.mrf.mxu0
  %v6719 = vadd.f32 %v6550, %v6718
  %v6720 = vpop.f32.mrf.mxu0
  %v6721 = vadd.f32 %v6552, %v6720
  %6722 = vmatmul.bf16.gmra.mxu0 %v2545
  %v6723 = vpop.f32.mrf.mxu0
  %v6724 = vadd.f32 %v6555, %v6723
  %v6725 = vpop.f32.mrf.mxu0
  %v6726 = vadd.f32 %v6557, %v6725
  %6727 = vmatmul.bf16.gmra.mxu0 %v2561
  %v6728 = vpop.f32.mrf.mxu0
  %v6729 = vadd.f32 %v6560, %v6728
  %v6730 = vpop.f32.mrf.mxu0
  %v6731 = vadd.f32 %v6562, %v6730
  %6732 = vmatmul.bf16.gmra.mxu0 %v2577
  %v6733 = vpop.f32.mrf.mxu0
  %v6734 = vadd.f32 %v6565, %v6733
  %v6735 = vpop.f32.mrf.mxu0
  %v6736 = vadd.f32 %v6567, %v6735
  %6737 = vmatmul.bf16.gmra.mxu0 %v2593
  %v6738 = vpop.f32.mrf.mxu0
  %v6739 = vadd.f32 %v6570, %v6738
  %v6740 = vpop.f32.mrf.mxu0
  %v6741 = vadd.f32 %v6572, %v6740
  %6742 = vmatmul.bf16.gmra.mxu0 %v2609
  %v6743 = vpop.f32.mrf.mxu0
  %v6744 = vadd.f32 %v6575, %v6743
  %v6745 = vpop.f32.mrf.mxu0
  %v6746 = vadd.f32 %v6577, %v6745
  %6747 = vmatmul.bf16.gmra.mxu0 %v2625
  %v6748 = vpop.f32.mrf.mxu0
  %v6749 = vadd.f32 %v6580, %v6748
  %v6750 = vpop.f32.mrf.mxu0
  %v6751 = vadd.f32 %v6582, %v6750
  %6752 = vmatmul.bf16.gmra.mxu0 %v2641
  %v6753 = vpop.f32.mrf.mxu0
  %v6754 = vadd.f32 %v6585, %v6753
  %v6755 = vpop.f32.mrf.mxu0
  %v6756 = vadd.f32 %v6587, %v6755
  %6757 = vmatmul.bf16.gmra.mxu0 %v2657
  %v6758 = vpop.f32.mrf.mxu0
  %v6759 = vadd.f32 %v6590, %v6758
  %v6760 = vpop.f32.mrf.mxu0
  %v6761 = vadd.f32 %v6592, %v6760
  %6762 = vmatmul.bf16.gmra.mxu0 %v2673
  %v6763 = vpop.f32.mrf.mxu0
  %v6764 = vadd.f32 %v6595, %v6763
  %v6765 = vpop.f32.mrf.mxu0
  %v6766 = vadd.f32 %v6597, %v6765
  %6767 = vmatmul.bf16.gmra.mxu0 %v2689
  %v6768 = vpop.f32.mrf.mxu0
  %v6769 = vadd.f32 %v6600, %v6768
  %v6770 = vpop.f32.mrf.mxu0
  %v6771 = vadd.f32 %v6602, %v6770
  %6772 = vmatmul.bf16.gmra.mxu0 %v2705
  %v6773 = vpop.f32.mrf.mxu0
  %v6774 = vadd.f32 %v6605, %v6773
  %v6775 = vpop.f32.mrf.mxu0
  %v6776 = vadd.f32 %v6607, %v6775
  %6777 = vmatmul.bf16.gmra.mxu0 %v2721
  %v6778 = vpop.f32.mrf.mxu0
  %v6779 = vadd.f32 %v6610, %v6778
  %v6780 = vpop.f32.mrf.mxu0
  %v6781 = vadd.f32 %v6612, %v6780
  %6782 = vmatmul.bf16.gmra.mxu0 %v2737
  %v6783 = vpop.f32.mrf.mxu0
  %v6784 = vadd.f32 %v6615, %v6783
  %v6785 = vpop.f32.mrf.mxu0
  %v6786 = vadd.f32 %v6617, %v6785
  %6787 = vmatmul.bf16.gmra.mxu0 %v2753
  %v6788 = vpop.f32.mrf.mxu0
  %v6789 = vadd.f32 %v6620, %v6788
  %v6790 = vpop.f32.mrf.mxu0
  %v6791 = vadd.f32 %v6622, %v6790
  %6792 = vmatmul.bf16.gmra.mxu0 %v2769
  %v6793 = vpop.f32.mrf.mxu0
  %v6794 = vadd.f32 %v6625, %v6793
  %v6795 = vpop.f32.mrf.mxu0
  %v6796 = vadd.f32 %v6627, %v6795
  %6797 = vmatmul.bf16.gmra.mxu0 %v2785
  %v6798 = vpop.f32.mrf.mxu0
  %v6799 = vadd.f32 %v6630, %v6798
  %v6800 = vpop.f32.mrf.mxu0
  %v6801 = vadd.f32 %v6632, %v6800
  %6802 = vmatmul.bf16.gmra.mxu0 %v2801
  %v6803 = vpop.f32.mrf.mxu0
  %v6804 = vadd.f32 %v6635, %v6803
  %v6805 = vpop.f32.mrf.mxu0
  %v6806 = vadd.f32 %v6637, %v6805
  %6807 = vmatmul.bf16.gmra.mxu0 %v2817
  %v6808 = vpop.f32.mrf.mxu0
  %v6809 = vadd.f32 %v6640, %v6808
  %v6810 = vpop.f32.mrf.mxu0
  %v6811 = vadd.f32 %v6642, %v6810
  %6812 = vmatmul.bf16.gmra.mxu0 %v2833
  %v6813 = vpop.f32.mrf.mxu0
  %v6814 = vadd.f32 %v6645, %v6813
  %v6815 = vpop.f32.mrf.mxu0
  %v6816 = vadd.f32 %v6647, %v6815
  %6817 = vdwg.mxu0
  %v6818 = vmax.f32 %v6659, 0.0
  %v6819 = vmax.f32 %v6661, 0.0
  %v6820 = vmax.f32 %v6664, 0.0
  %v6821 = vmax.f32 %v6666, 0.0
  %v6822 = vmax.f32 %v6669, 0.0
  %v6823 = vmax.f32 %v6671, 0.0
  %v6824 = vmax.f32 %v6674, 0.0
  %v6825 = vmax.f32 %v6676, 0.0
  %v6826 = vmax.f32 %v6679, 0.0
  %v6827 = vmax.f32 %v6681, 0.0
  %v6828 = vmax.f32 %v6684, 0.0
  %v6829 = vmax.f32 %v6686, 0.0
  %v6830 = vmax.f32 %v6689, 0.0
  %v6831 = vmax.f32 %v6691, 0.0
  %v6832 = vmax.f32 %v6694, 0.0
  %v6833 = vmax.f32 %v6696, 0.0
  %v6834 = vmax.f32 %v6699, 0.0
  %v6835 = vmax.f32 %v6701, 0.0
  %v6836 = vmax.f32 %v6704, 0.0
  %v6837 = vmax.f32 %v6706, 0.0
  %v6838 = vmax.f32 %v6709, 0.0
  %v6839 = vmax.f32 %v6711, 0.0
  %v6840 = vmax.f32 %v6714, 0.0
  %v6841 = vmax.f32 %v6716, 0.0
  %v6842 = vmax.f32 %v6719, 0.0
  %v6843 = vmax.f32 %v6721, 0.0
  %v6844 = vmax.f32 %v6724, 0.0
  %v6845 = vmax.f32 %v6726, 0.0
  %v6846 = vmax.f32 %v6729, 0.0
  %v6847 = vmax.f32 %v6731, 0.0
  %v6848 = vmax.f32 %v6734, 0.0
  %v6849 = vmax.f32 %v6736, 0.0
  %v6850 = vmax.f32 %v6739, 0.0
  %v6851 = vmax.f32 %v6741, 0.0
  %v6852 = vmax.f32 %v6744, 0.0
  %v6853 = vmax.f32 %v6746, 0.0
  %v6854 = vmax.f32 %v6749, 0.0
  %v6855 = vmax.f32 %v6751, 0.0
  %v6856 = vmax.f32 %v6754, 0.0
  %v6857 = vmax.f32 %v6756, 0.0
  %v6858 = vmax.f32 %v6759, 0.0
  %v6859 = vmax.f32 %v6761, 0.0
  %v6860 = vmax.f32 %v6764, 0.0
  %v6861 = vmax.f32 %v6766, 0.0
  %v6862 = vmax.f32 %v6769, 0.0
  %v6863 = vmax.f32 %v6771, 0.0
  %v6864 = vmax.f32 %v6774, 0.0
  %v6865 = vmax.f32 %v6776, 0.0
  %v6866 = vmax.f32 %v6779, 0.0
  %v6867 = vmax.f32 %v6781, 0.0
  %v6868 = vmax.f32 %v6784, 0.0
  %v6869 = vmax.f32 %v6786, 0.0
  %v6870 = vmax.f32 %v6789, 0.0
  %v6871 = vmax.f32 %v6791, 0.0
  %v6872 = vmax.f32 %v6794, 0.0
  %v6873 = vmax.f32 %v6796, 0.0
  %v6874 = vmax.f32 %v6799, 0.0
  %v6875 = vmax.f32 %v6801, 0.0
  %v6876 = vmax.f32 %v6804, 0.0
  %v6877 = vmax.f32 %v6806, 0.0
  %v6878 = vmax.f32 %v6809, 0.0
  %v6879 = vmax.f32 %v6811, 0.0
  %v6880 = vmax.f32 %v6814, 0.0
  %v6881 = vmax.f32 %v6816, 0.0
  %v6882 = vpack.c.bf16 %v6818, %v6818
  %v6883 = vpack.c.bf16 %v6819, %v6819
  %v6884 = vpack.c.bf16 %v6820, %v6820
  %v6885 = vpack.c.bf16 %v6821, %v6821
  %v6886 = vpack.c.bf16 %v6822, %v6822
  %v6887 = vpack.c.bf16 %v6823, %v6823
  %v6888 = vpack.c.bf16 %v6824, %v6824
  %v6889 = vpack.c.bf16 %v6825, %v6825
  %v6890 = vpack.c.bf16 %v6826, %v6826
  %v6891 = vpack.c.bf16 %v6827, %v6827
  %v6892 = vpack.c.bf16 %v6828, %v6828
  %v6893 = vpack.c.bf16 %v6829, %v6829
  %v6894 = vpack.c.bf16 %v6830, %v6830
  %v6895 = vpack.c.bf16 %v6831, %v6831
  %v6896 = vpack.c.bf16 %v6832, %v6832
  %v6897 = vpack.c.bf16 %v6833, %v6833
  %v6898 = vpack.c.bf16 %v6834, %v6834
  %v6899 = vpack.c.bf16 %v6835, %v6835
  %v6900 = vpack.c.bf16 %v6836, %v6836
  %v6901 = vpack.c.bf16 %v6837, %v6837
  %v6902 = vpack.c.bf16 %v6838, %v6838
  %v6903 = vpack.c.bf16 %v6839, %v6839
  %v6904 = vpack.c.bf16 %v6840, %v6840
  %v6905 = vpack.c.bf16 %v6841, %v6841
  %v6906 = vpack.c.bf16 %v6842, %v6842
  %v6907 = vpack.c.bf16 %v6843, %v6843
  %v6908 = vpack.c.bf16 %v6844, %v6844
  %v6909 = vpack.c.bf16 %v6845, %v6845
  %v6910 = vpack.c.bf16 %v6846, %v6846
  %v6911 = vpack.c.bf16 %v6847, %v6847
  %v6912 = vpack.c.bf16 %v6848, %v6848
  %v6913 = vpack.c.bf16 %v6849, %v6849
  %v6914 = vpack.c.bf16 %v6850, %v6850
  %v6915 = vpack.c.bf16 %v6851, %v6851
  %v6916 = vpack.c.bf16 %v6852, %v6852
  %v6917 = vpack.c.bf16 %v6853, %v6853
  %v6918 = vpack.c.bf16 %v6854, %v6854
  %v6919 = vpack.c.bf16 %v6855, %v6855
  %v6920 = vpack.c.bf16 %v6856, %v6856
  %v6921 = vpack.c.bf16 %v6857, %v6857
  %v6922 = vpack.c.bf16 %v6858, %v6858
  %v6923 = vpack.c.bf16 %v6859, %v6859
  %v6924 = vpack.c.bf16 %v6860, %v6860
  %v6925 = vpack.c.bf16 %v6861, %v6861
  %v6926 = vpack.c.bf16 %v6862, %v6862
  %v6927 = vpack.c.bf16 %v6863, %v6863
  %v6928 = vpack.c.bf16 %v6864, %v6864
  %v6929 = vpack.c.bf16 %v6865, %v6865
  %v6930 = vpack.c.bf16 %v6866, %v6866
  %v6931 = vpack.c.bf16 %v6867, %v6867
  %v6932 = vpack.c.bf16 %v6868, %v6868
  %v6933 = vpack.c.bf16 %v6869, %v6869
  %v6934 = vpack.c.bf16 %v6870, %v6870
  %v6935 = vpack.c.bf16 %v6871, %v6871
  %v6936 = vpack.c.bf16 %v6872, %v6872
  %v6937 = vpack.c.bf16 %v6873, %v6873
  %v6938 = vpack.c.bf16 %v6874, %v6874
  %v6939 = vpack.c.bf16 %v6875, %v6875
  %v6940 = vpack.c.bf16 %v6876, %v6876
  %v6941 = vpack.c.bf16 %v6877, %v6877
  %v6942 = vpack.c.bf16 %v6878, %v6878
  %v6943 = vpack.c.bf16 %v6879, %v6879
  %v6944 = vpack.c.bf16 %v6880, %v6880
  %v6945 = vpack.c.bf16 %v6881, %v6881
  %6946 = vst [vmem:[%s3] sm:$0xf] %v6882
  %6947 = vst [vmem:[%s3 + $0x4] sm:$0xf] %v6883
  %6948 = vst [vmem:[%s3 + $0x8] sm:$0xf] %v6884
  %6949 = vst [vmem:[%s3 + $0xc] sm:$0xf] %v6885
  %6950 = vst [vmem:[%s3 + $0x10] sm:$0xf] %v6886
  %6951 = vst [vmem:[%s3 + $0x14] sm:$0xf] %v6887
  %6952 = vst [vmem:[%s3 + $0x18] sm:$0xf] %v6888
  %6953 = vst [vmem:[%s3 + $0x1c] sm:$0xf] %v6889
  %6954 = vst [vmem:[%s3 + $0x20] sm:$0xf] %v6890
  %6955 = vst [vmem:[%s3 + $0x24] sm:$0xf] %v6891
  %6956 = vst [vmem:[%s3 + $0x28] sm:$0xf] %v6892
  %6957 = vst [vmem:[%s3 + $0x2c] sm:$0xf] %v6893
  %6958 = vst [vmem:[%s3 + $0x30] sm:$0xf] %v6894
  %6959 = vst [vmem:[%s3 + $0x34] sm:$0xf] %v6895
  %6960 = vst [vmem:[%s3 + $0x38] sm:$0xf] %v6896
  %6961 = vst [vmem:[%s3 + $0x3c] sm:$0xf] %v6897
  %6962 = vst [vmem:[%s3 + $0x40] sm:$0xf] %v6898
  %6963 = vst [vmem:[%s3 + $0x44] sm:$0xf] %v6899
  %6964 = vst [vmem:[%s3 + $0x48] sm:$0xf] %v6900
  %6965 = vst [vmem:[%s3 + $0x4c] sm:$0xf] %v6901
  %6966 = vst [vmem:[%s3 + $0x50] sm:$0xf] %v6902
  %6967 = vst [vmem:[%s3 + $0x54] sm:$0xf] %v6903
  %6968 = vst [vmem:[%s3 + $0x58] sm:$0xf] %v6904
  %6969 = vst [vmem:[%s3 + $0x5c] sm:$0xf] %v6905
  %6970 = vst [vmem:[%s3 + $0x60] sm:$0xf] %v6906
  %6971 = vst [vmem:[%s3 + $0x64] sm:$0xf] %v6907
  %6972 = vst [vmem:[%s3 + $0x68] sm:$0xf] %v6908
  %6973 = vst [vmem:[%s3 + $0x6c] sm:$0xf] %v6909
  %6974 = vst [vmem:[%s3 + $0x70] sm:$0xf] %v6910
  %6975 = vst [vmem:[%s3 + $0x74] sm:$0xf] %v6911
  %6976 = vst [vmem:[%s3 + $0x78] sm:$0xf] %v6912
  %6977 = vst [vmem:[%s3 + $0x7c] sm:$0xf] %v6913
  %6978 = vst [vmem:[%s3 + $0x80] sm:$0xf] %v6914
  %6979 = vst [vmem:[%s3 + $0x84] sm:$0xf] %v6915
  %6980 = vst [vmem:[%s3 + $0x88] sm:$0xf] %v6916
  %6981 = vst [vmem:[%s3 + $0x8c] sm:$0xf] %v6917
  %6982 = vst [vmem:[%s3 + $0x90] sm:$0xf] %v6918
  %6983 = vst [vmem:[%s3 + $0x94] sm:$0xf] %v6919
  %6984 = vst [vmem:[%s3 + $0x98] sm:$0xf] %v6920
  %6985 = vst [vmem:[%s3 + $0x9c] sm:$0xf] %v6921
  %6986 = vst [vmem:[%s3 + $0xa0] sm:$0xf] %v6922
  %6987 = vst [vmem:[%s3 + $0xa4] sm:$0xf] %v6923
  %6988 = vst [vmem:[%s3 + $0xa8] sm:$0xf] %v6924
  %6989 = vst [vmem:[%s3 + $0xac] sm:$0xf] %v6925
  %6990 = vst [vmem:[%s3 + $0xb0] sm:$0xf] %v6926
  %6991 = vst [vmem:[%s3 + $0xb4] sm:$0xf] %v6927
  %6992 = vst [vmem:[%s3 + $0xb8] sm:$0xf] %v6928
  %6993 = vst [vmem:[%s3 + $0xbc] sm:$0xf] %v6929
  %6994 = vst [vmem:[%s3 + $0xc0] sm:$0xf] %v6930
  %6995 = vst [vmem:[%s3 + $0xc4] sm:$0xf] %v6931
  %6996 = vst [vmem:[%s3 + $0xc8] sm:$0xf] %v6932
  %6997 = vst [vmem:[%s3 + $0xcc] sm:$0xf] %v6933
  %6998 = vst [vmem:[%s3 + $0xd0] sm:$0xf] %v6934
  %6999 = vst [vmem:[%s3 + $0xd4] sm:$0xf] %v6935
  %7000 = vst [vmem:[%s3 + $0xd8] sm:$0xf] %v6936
  %7001 = vst [vmem:[%s3 + $0xdc] sm:$0xf] %v6937
  %7002 = vst [vmem:[%s3 + $0xe0] sm:$0xf] %v6938
  %7003 = vst [vmem:[%s3 + $0xe4] sm:$0xf] %v6939
  %7004 = vst [vmem:[%s3 + $0xe8] sm:$0xf] %v6940
  %7005 = vst [vmem:[%s3 + $0xec] sm:$0xf] %v6941
  %7006 = vst [vmem:[%s3 + $0xf0] sm:$0xf] %v6942
  %7007 = vst [vmem:[%s3 + $0xf4] sm:$0xf] %v6943
  %7008 = vst [vmem:[%s3 + $0xf8] sm:$0xf] %v6944
  %7009 = vst [vmem:[%s3 + $0xfc] sm:$0xf] %v6945
  // Predicated region
  $region14: #{_lambda_.6} parent=0 // pred_check
    _
  $region15: #{_lambda_.6} parent=0 // pred_check_branch
    %7011 = sbr.rel (0) target = $region17
  $region16: #{_lambda_.6} parent=0 // pred_region
    _
  $region17: #{_lambda_.6} parent=0 // pred_fallthru
    _
  // Predicated region
  $region18: #{_lambda_.6} parent=0 // pred_check
    _
  $region19: #{_lambda_.6} parent=0 // pred_check_branch
    %7013 = sbr.rel (0) target = $region21
  $region20: #{_lambda_.6} parent=0 // pred_region
    _
  $region21: #{_lambda_.6} parent=0 // pred_fallthru
    _

// kernel: _lambda_.7
$region0: #{_lambda_.7}
  #allocation0 [shape = 'u32[]', space=smem, size = 0x4, offset = 0x4, fixed_abs, tag = 'smem constant byte address 0x4 - core index']
  #allocation1 [shape = 'u32[72,128]{1,0:T(1,128)}', space=vmem, size = 0x9000, scoped, tag = 'internal scratch']
  %s0 = inlined_call_operand.vmem [shape: bf16[128,2048], index: 0, kind: input, shape index: {}]
  %s1 = inlined_call_operand.vmem [shape: bf16[2048,128], index: 1, kind: input, shape index: {}]
  %s2 = inlined_call_operand.vmem [shape: f32[1,128], index: 2, kind: input, shape index: {}]
  %s3 = inlined_call_operand.vmem [shape: bf16[128,128], index: 3, kind: output, shape index: {}]
  %s4 = sld [smem:[#allocation0]]
  $region22: #{_lambda_.7} parent=0
    _
  %s6 = ssub.s32 1, %s4
  %s7 = scalar_select 0, %s6, %s4
  // Predicated region
  $region2: #{_lambda_.7} parent=0 // pred_check
    _
  $region3: #{_lambda_.7} parent=0 // pred_check_branch
    %9 = sbr.rel (0) target = $region5
  $region4: #{_lambda_.7} parent=0 // pred_region
    _
  $region5: #{_lambda_.7} parent=0 // pred_fallthru
    _
  // Predicated region
  $region6: #{_lambda_.7} parent=0 // pred_check
    _
  $region7: #{_lambda_.7} parent=0 // pred_check_branch
    %11 = sbr.rel (0) target = $region9
  $region8: #{_lambda_.7} parent=0 // pred_region
    _
  $region9: #{_lambda_.7} parent=0 // pred_fallthru
    _
  // Predicated region
  $region10: #{_lambda_.7} parent=0 // pred_check
    _
  $region11: #{_lambda_.7} parent=0 // pred_check_branch
    %13 = sbr.rel (0) target = $region13
  $region12: #{_lambda_.7} parent=0 // pred_region
    _
  $region13: #{_lambda_.7} parent=0 // pred_fallthru
    _
  %v14 = vld [vmem:[%s0] sm:$0xff]
  %v15 = vld [vmem:[%s0 + $0x8] sm:$0xff]
  %v16 = vld [vmem:[%s0 + $0x10] sm:$0xff]
  %v17 = vld [vmem:[%s0 + $0x18] sm:$0xff]
  %v18 = vld [vmem:[%s0 + $0x20] sm:$0xff]
  %v19 = vld [vmem:[%s0 + $0x28] sm:$0xff]
  %v20 = vld [vmem:[%s0 + $0x30] sm:$0xff]
  %v21 = vld [vmem:[%s0 + $0x38] sm:$0xff]
  %v22 = vld [vmem:[%s0 + $0x40] sm:$0xff]
  %v23 = vld [vmem:[%s0 + $0x48] sm:$0xff]
  %v24 = vld [vmem:[%s0 + $0x50] sm:$0xff]
  %v25 = vld [vmem:[%s0 + $0x58] sm:$0xff]
  %v26 = vld [vmem:[%s0 + $0x60] sm:$0xff]
  %v27 = vld [vmem:[%s0 + $0x68] sm:$0xff]
  %v28 = vld [vmem:[%s0 + $0x70] sm:$0xff]
  %v29 = vld [vmem:[%s0 + $0x78] sm:$0xff]
  %v30 = vld [vmem:[%s0 + $0x80] sm:$0xff]
  %v31 = vld [vmem:[%s0 + $0x88] sm:$0xff]
  %v32 = vld [vmem:[%s0 + $0x90] sm:$0xff]
  %v33 = vld [vmem:[%s0 + $0x98] sm:$0xff]
  %v34 = vld [vmem:[%s0 + $0xa0] sm:$0xff]
  %v35 = vld [vmem:[%s0 + $0xa8] sm:$0xff]
  %v36 = vld [vmem:[%s0 + $0xb0] sm:$0xff]
  %v37 = vld [vmem:[%s0 + $0xb8] sm:$0xff]
  %v38 = vld [vmem:[%s0 + $0xc0] sm:$0xff]
  %v39 = vld [vmem:[%s0 + $0xc8] sm:$0xff]
  %v40 = vld [vmem:[%s0 + $0xd0] sm:$0xff]
  %v41 = vld [vmem:[%s0 + $0xd8] sm:$0xff]
  %v42 = vld [vmem:[%s0 + $0xe0] sm:$0xff]
  %v43 = vld [vmem:[%s0 + $0xe8] sm:$0xff]
  %v44 = vld [vmem:[%s0 + $0xf0] sm:$0xff]
  %v45 = vld [vmem:[%s0 + $0xf8] sm:$0xff]
  %v46 = vld [vmem:[%s0 + $0x100] sm:$0xff]
  %v47 = vld [vmem:[%s0 + $0x108] sm:$0xff]
  %v48 = vld [vmem:[%s0 + $0x110] sm:$0xff]
  %v49 = vld [vmem:[%s0 + $0x118] sm:$0xff]
  %v50 = vld [vmem:[%s0 + $0x120] sm:$0xff]
  %v51 = vld [vmem:[%s0 + $0x128] sm:$0xff]
  %v52 = vld [vmem:[%s0 + $0x130] sm:$0xff]
  %v53 = vld [vmem:[%s0 + $0x138] sm:$0xff]
  %v54 = vld [vmem:[%s0 + $0x140] sm:$0xff]
  %v55 = vld [vmem:[%s0 + $0x148] sm:$0xff]
  %v56 = vld [vmem:[%s0 + $0x150] sm:$0xff]
  %v57 = vld [vmem:[%s0 + $0x158] sm:$0xff]
  %v58 = vld [vmem:[%s0 + $0x160] sm:$0xff]
  %v59 = vld [vmem:[%s0 + $0x168] sm:$0xff]
  %v60 = vld [vmem:[%s0 + $0x170] sm:$0xff]
  %v61 = vld [vmem:[%s0 + $0x178] sm:$0xff]
  %v62 = vld [vmem:[%s0 + $0x180] sm:$0xff]
  %v63 = vld [vmem:[%s0 + $0x188] sm:$0xff]
  %v64 = vld [vmem:[%s0 + $0x190] sm:$0xff]
  %v65 = vld [vmem:[%s0 + $0x198] sm:$0xff]
  %v66 = vld [vmem:[%s0 + $0x1a0] sm:$0xff]
  %v67 = vld [vmem:[%s0 + $0x1a8] sm:$0xff]
  %v68 = vld [vmem:[%s0 + $0x1b0] sm:$0xff]
  %v69 = vld [vmem:[%s0 + $0x1b8] sm:$0xff]
  %v70 = vld [vmem:[%s0 + $0x1c0] sm:$0xff]
  %v71 = vld [vmem:[%s0 + $0x1c8] sm:$0xff]
  %v72 = vld [vmem:[%s0 + $0x1d0] sm:$0xff]
  %v73 = vld [vmem:[%s0 + $0x1d8] sm:$0xff]
  %v74 = vld [vmem:[%s0 + $0x1e0] sm:$0xff]
  %v75 = vld [vmem:[%s0 + $0x1e8] sm:$0xff]
  %v76 = vld [vmem:[%s0 + $0x1f0] sm:$0xff]
  %v77 = vld [vmem:[%s0 + $0x1f8] sm:$0xff]
  %v78 = vld [vmem:[%s0 + $0x200] sm:$0xff]
  %v79 = vld [vmem:[%s0 + $0x208] sm:$0xff]
  %v80 = vld [vmem:[%s0 + $0x210] sm:$0xff]
  %v81 = vld [vmem:[%s0 + $0x218] sm:$0xff]
  %v82 = vld [vmem:[%s0 + $0x220] sm:$0xff]
  %v83 = vld [vmem:[%s0 + $0x228] sm:$0xff]
  %v84 = vld [vmem:[%s0 + $0x230] sm:$0xff]
  %v85 = vld [vmem:[%s0 + $0x238] sm:$0xff]
  %v86 = vld [vmem:[%s0 + $0x240] sm:$0xff]
  %v87 = vld [vmem:[%s0 + $0x248] sm:$0xff]
  %v88 = vld [vmem:[%s0 + $0x250] sm:$0xff]
  %v89 = vld [vmem:[%s0 + $0x258] sm:$0xff]
  %v90 = vld [vmem:[%s0 + $0x260] sm:$0xff]
  %v91 = vld [vmem:[%s0 + $0x268] sm:$0xff]
  %v92 = vld [vmem:[%s0 + $0x270] sm:$0xff]
  %v93 = vld [vmem:[%s0 + $0x278] sm:$0xff]
  %v94 = vld [vmem:[%s0 + $0x280] sm:$0xff]
  %v95 = vld [vmem:[%s0 + $0x288] sm:$0xff]
  %v96 = vld [vmem:[%s0 + $0x290] sm:$0xff]
  %v97 = vld [vmem:[%s0 + $0x298] sm:$0xff]
  %v98 = vld [vmem:[%s0 + $0x2a0] sm:$0xff]
  %v99 = vld [vmem:[%s0 + $0x2a8] sm:$0xff]
  %v100 = vld [vmem:[%s0 + $0x2b0] sm:$0xff]
  %v101 = vld [vmem:[%s0 + $0x2b8] sm:$0xff]
  %v102 = vld [vmem:[%s0 + $0x2c0] sm:$0xff]
  %v103 = vld [vmem:[%s0 + $0x2c8] sm:$0xff]
  %v104 = vld [vmem:[%s0 + $0x2d0] sm:$0xff]
  %v105 = vld [vmem:[%s0 + $0x2d8] sm:$0xff]
  %v106 = vld [vmem:[%s0 + $0x2e0] sm:$0xff]
  %v107 = vld [vmem:[%s0 + $0x2e8] sm:$0xff]
  %v108 = vld [vmem:[%s0 + $0x2f0] sm:$0xff]
  %v109 = vld [vmem:[%s0 + $0x2f8] sm:$0xff]
  %v110 = vld [vmem:[%s0 + $0x300] sm:$0xff]
  %v111 = vld [vmem:[%s0 + $0x308] sm:$0xff]
  %v112 = vld [vmem:[%s0 + $0x310] sm:$0xff]
  %v113 = vld [vmem:[%s0 + $0x318] sm:$0xff]
  %v114 = vld [vmem:[%s0 + $0x320] sm:$0xff]
  %v115 = vld [vmem:[%s0 + $0x328] sm:$0xff]
  %v116 = vld [vmem:[%s0 + $0x330] sm:$0xff]
  %v117 = vld [vmem:[%s0 + $0x338] sm:$0xff]
  %v118 = vld [vmem:[%s0 + $0x340] sm:$0xff]
  %v119 = vld [vmem:[%s0 + $0x348] sm:$0xff]
  %v120 = vld [vmem:[%s0 + $0x350] sm:$0xff]
  %v121 = vld [vmem:[%s0 + $0x358] sm:$0xff]
  %v122 = vld [vmem:[%s0 + $0x360] sm:$0xff]
  %v123 = vld [vmem:[%s0 + $0x368] sm:$0xff]
  %v124 = vld [vmem:[%s0 + $0x370] sm:$0xff]
  %v125 = vld [vmem:[%s0 + $0x378] sm:$0xff]
  %v126 = vld [vmem:[%s0 + $0x380] sm:$0xff]
  %v127 = vld [vmem:[%s0 + $0x388] sm:$0xff]
  %v128 = vld [vmem:[%s0 + $0x390] sm:$0xff]
  %v129 = vld [vmem:[%s0 + $0x398] sm:$0xff]
  %v130 = vld [vmem:[%s0 + $0x3a0] sm:$0xff]
  %v131 = vld [vmem:[%s0 + $0x3a8] sm:$0xff]
  %v132 = vld [vmem:[%s0 + $0x3b0] sm:$0xff]
  %v133 = vld [vmem:[%s0 + $0x3b8] sm:$0xff]
  %v134 = vld [vmem:[%s0 + $0x3c0] sm:$0xff]
  %v135 = vld [vmem:[%s0 + $0x3c8] sm:$0xff]
  %v136 = vld [vmem:[%s0 + $0x3d0] sm:$0xff]
  %v137 = vld [vmem:[%s0 + $0x3d8] sm:$0xff]
  %v138 = vld [vmem:[%s0 + $0x3e0] sm:$0xff]
  %v139 = vld [vmem:[%s0 + $0x3e8] sm:$0xff]
  %v140 = vld [vmem:[%s0 + $0x3f0] sm:$0xff]
  %v141 = vld [vmem:[%s0 + $0x3f8] sm:$0xff]
  %v142 = vld [vmem:[%s1] sm:$0xf]
  %v143 = vld [vmem:[%s1 + $0x4] sm:$0xf]
  %v144 = vld [vmem:[%s1 + $0x8] sm:$0xf]
  %v145 = vld [vmem:[%s1 + $0xc] sm:$0xf]
  %v146 = vld [vmem:[%s1 + $0x10] sm:$0xf]
  %v147 = vld [vmem:[%s1 + $0x14] sm:$0xf]
  %v148 = vld [vmem:[%s1 + $0x18] sm:$0xf]
  %v149 = vld [vmem:[%s1 + $0x1c] sm:$0xf]
  %v150 = vld [vmem:[%s1 + $0x20] sm:$0xf]
  %v151 = vld [vmem:[%s1 + $0x24] sm:$0xf]
  %v152 = vld [vmem:[%s1 + $0x28] sm:$0xf]
  %v153 = vld [vmem:[%s1 + $0x2c] sm:$0xf]
  %v154 = vld [vmem:[%s1 + $0x30] sm:$0xf]
  %v155 = vld [vmem:[%s1 + $0x34] sm:$0xf]
  %v156 = vld [vmem:[%s1 + $0x38] sm:$0xf]
  %v157 = vld [vmem:[%s1 + $0x3c] sm:$0xf]
  %v158 = vld [vmem:[%s1 + $0x40] sm:$0xf]
  %v159 = vld [vmem:[%s1 + $0x44] sm:$0xf]
  %v160 = vld [vmem:[%s1 + $0x48] sm:$0xf]
  %v161 = vld [vmem:[%s1 + $0x4c] sm:$0xf]
  %v162 = vld [vmem:[%s1 + $0x50] sm:$0xf]
  %v163 = vld [vmem:[%s1 + $0x54] sm:$0xf]
  %v164 = vld [vmem:[%s1 + $0x58] sm:$0xf]
  %v165 = vld [vmem:[%s1 + $0x5c] sm:$0xf]
  %v166 = vld [vmem:[%s1 + $0x60] sm:$0xf]
  %v167 = vld [vmem:[%s1 + $0x64] sm:$0xf]
  %v168 = vld [vmem:[%s1 + $0x68] sm:$0xf]
  %v169 = vld [vmem:[%s1 + $0x6c] sm:$0xf]
  %v170 = vld [vmem:[%s1 + $0x70] sm:$0xf]
  %v171 = vld [vmem:[%s1 + $0x74] sm:$0xf]
  %v172 = vld [vmem:[%s1 + $0x78] sm:$0xf]
  %v173 = vld [vmem:[%s1 + $0x7c] sm:$0xf]
  %v174 = vld [vmem:[%s1 + $0x80] sm:$0xf]
  %v175 = vld [vmem:[%s1 + $0x84] sm:$0xf]
  %v176 = vld [vmem:[%s1 + $0x88] sm:$0xf]
  %v177 = vld [vmem:[%s1 + $0x8c] sm:$0xf]
  %v178 = vld [vmem:[%s1 + $0x90] sm:$0xf]
  %v179 = vld [vmem:[%s1 + $0x94] sm:$0xf]
  %v180 = vld [vmem:[%s1 + $0x98] sm:$0xf]
  %v181 = vld [vmem:[%s1 + $0x9c] sm:$0xf]
  %v182 = vld [vmem:[%s1 + $0xa0] sm:$0xf]
  %v183 = vld [vmem:[%s1 + $0xa4] sm:$0xf]
  %v184 = vld [vmem:[%s1 + $0xa8] sm:$0xf]
  %v185 = vld [vmem:[%s1 + $0xac] sm:$0xf]
  %v186 = vld [vmem:[%s1 + $0xb0] sm:$0xf]
  %v187 = vld [vmem:[%s1 + $0xb4] sm:$0xf]
  %v188 = vld [vmem:[%s1 + $0xb8] sm:$0xf]
  %v189 = vld [vmem:[%s1 + $0xbc] sm:$0xf]
  %v190 = vld [vmem:[%s1 + $0xc0] sm:$0xf]
  %v191 = vld [vmem:[%s1 + $0xc4] sm:$0xf]
  %v192 = vld [vmem:[%s1 + $0xc8] sm:$0xf]
  %v193 = vld [vmem:[%s1 + $0xcc] sm:$0xf]
  %v194 = vld [vmem:[%s1 + $0xd0] sm:$0xf]
  %v195 = vld [vmem:[%s1 + $0xd4] sm:$0xf]
  %v196 = vld [vmem:[%s1 + $0xd8] sm:$0xf]
  %v197 = vld [vmem:[%s1 + $0xdc] sm:$0xf]
  %v198 = vld [vmem:[%s1 + $0xe0] sm:$0xf]
  %v199 = vld [vmem:[%s1 + $0xe4] sm:$0xf]
  %v200 = vld [vmem:[%s1 + $0xe8] sm:$0xf]
  %v201 = vld [vmem:[%s1 + $0xec] sm:$0xf]
  %v202 = vld [vmem:[%s1 + $0xf0] sm:$0xf]
  %v203 = vld [vmem:[%s1 + $0xf4] sm:$0xf]
  %v204 = vld [vmem:[%s1 + $0xf8] sm:$0xf]
  %v205 = vld [vmem:[%s1 + $0xfc] sm:$0xf]
  %v206 = vld [vmem:[%s1 + $0x100] sm:$0xf]
  %v207 = vld [vmem:[%s1 + $0x104] sm:$0xf]
  %v208 = vld [vmem:[%s1 + $0x108] sm:$0xf]
  %v209 = vld [vmem:[%s1 + $0x10c] sm:$0xf]
  %v210 = vld [vmem:[%s1 + $0x110] sm:$0xf]
  %v211 = vld [vmem:[%s1 + $0x114] sm:$0xf]
  %v212 = vld [vmem:[%s1 + $0x118] sm:$0xf]
  %v213 = vld [vmem:[%s1 + $0x11c] sm:$0xf]
  %v214 = vld [vmem:[%s1 + $0x120] sm:$0xf]
  %v215 = vld [vmem:[%s1 + $0x124] sm:$0xf]
  %v216 = vld [vmem:[%s1 + $0x128] sm:$0xf]
  %v217 = vld [vmem:[%s1 + $0x12c] sm:$0xf]
  %v218 = vld [vmem:[%s1 + $0x130] sm:$0xf]
  %v219 = vld [vmem:[%s1 + $0x134] sm:$0xf]
  %v220 = vld [vmem:[%s1 + $0x138] sm:$0xf]
  %v221 = vld [vmem:[%s1 + $0x13c] sm:$0xf]
  %v222 = vld [vmem:[%s1 + $0x140] sm:$0xf]
  %v223 = vld [vmem:[%s1 + $0x144] sm:$0xf]
  %v224 = vld [vmem:[%s1 + $0x148] sm:$0xf]
  %v225 = vld [vmem:[%s1 + $0x14c] sm:$0xf]
  %v226 = vld [vmem:[%s1 + $0x150] sm:$0xf]
  %v227 = vld [vmem:[%s1 + $0x154] sm:$0xf]
  %v228 = vld [vmem:[%s1 + $0x158] sm:$0xf]
  %v229 = vld [vmem:[%s1 + $0x15c] sm:$0xf]
  %v230 = vld [vmem:[%s1 + $0x160] sm:$0xf]
  %v231 = vld [vmem:[%s1 + $0x164] sm:$0xf]
  %v232 = vld [vmem:[%s1 + $0x168] sm:$0xf]
  %v233 = vld [vmem:[%s1 + $0x16c] sm:$0xf]
  %v234 = vld [vmem:[%s1 + $0x170] sm:$0xf]
  %v235 = vld [vmem:[%s1 + $0x174] sm:$0xf]
  %v236 = vld [vmem:[%s1 + $0x178] sm:$0xf]
  %v237 = vld [vmem:[%s1 + $0x17c] sm:$0xf]
  %v238 = vld [vmem:[%s1 + $0x180] sm:$0xf]
  %v239 = vld [vmem:[%s1 + $0x184] sm:$0xf]
  %v240 = vld [vmem:[%s1 + $0x188] sm:$0xf]
  %v241 = vld [vmem:[%s1 + $0x18c] sm:$0xf]
  %v242 = vld [vmem:[%s1 + $0x190] sm:$0xf]
  %v243 = vld [vmem:[%s1 + $0x194] sm:$0xf]
  %v244 = vld [vmem:[%s1 + $0x198] sm:$0xf]
  %v245 = vld [vmem:[%s1 + $0x19c] sm:$0xf]
  %v246 = vld [vmem:[%s1 + $0x1a0] sm:$0xf]
  %v247 = vld [vmem:[%s1 + $0x1a4] sm:$0xf]
  %v248 = vld [vmem:[%s1 + $0x1a8] sm:$0xf]
  %v249 = vld [vmem:[%s1 + $0x1ac] sm:$0xf]
  %v250 = vld [vmem:[%s1 + $0x1b0] sm:$0xf]
  %v251 = vld [vmem:[%s1 + $0x1b4] sm:$0xf]
  %v252 = vld [vmem:[%s1 + $0x1b8] sm:$0xf]
  %v253 = vld [vmem:[%s1 + $0x1bc] sm:$0xf]
  %v254 = vld [vmem:[%s1 + $0x1c0] sm:$0xf]
  %v255 = vld [vmem:[%s1 + $0x1c4] sm:$0xf]
  %v256 = vld [vmem:[%s1 + $0x1c8] sm:$0xf]
  %v257 = vld [vmem:[%s1 + $0x1cc] sm:$0xf]
  %v258 = vld [vmem:[%s1 + $0x1d0] sm:$0xf]
  %v259 = vld [vmem:[%s1 + $0x1d4] sm:$0xf]
  %v260 = vld [vmem:[%s1 + $0x1d8] sm:$0xf]
  %v261 = vld [vmem:[%s1 + $0x1dc] sm:$0xf]
  %v262 = vld [vmem:[%s1 + $0x1e0] sm:$0xf]
  %v263 = vld [vmem:[%s1 + $0x1e4] sm:$0xf]
  %v264 = vld [vmem:[%s1 + $0x1e8] sm:$0xf]
  %v265 = vld [vmem:[%s1 + $0x1ec] sm:$0xf]
  %v266 = vld [vmem:[%s1 + $0x1f0] sm:$0xf]
  %v267 = vld [vmem:[%s1 + $0x1f4] sm:$0xf]
  %v268 = vld [vmem:[%s1 + $0x1f8] sm:$0xf]
  %v269 = vld [vmem:[%s1 + $0x1fc] sm:$0xf]
  %v270 = vld [vmem:[%s1 + $0x200] sm:$0xf]
  %v271 = vld [vmem:[%s1 + $0x204] sm:$0xf]
  %v272 = vld [vmem:[%s1 + $0x208] sm:$0xf]
  %v273 = vld [vmem:[%s1 + $0x20c] sm:$0xf]
  %v274 = vld [vmem:[%s1 + $0x210] sm:$0xf]
  %v275 = vld [vmem:[%s1 + $0x214] sm:$0xf]
  %v276 = vld [vmem:[%s1 + $0x218] sm:$0xf]
  %v277 = vld [vmem:[%s1 + $0x21c] sm:$0xf]
  %v278 = vld [vmem:[%s1 + $0x220] sm:$0xf]
  %v279 = vld [vmem:[%s1 + $0x224] sm:$0xf]
  %v280 = vld [vmem:[%s1 + $0x228] sm:$0xf]
  %v281 = vld [vmem:[%s1 + $0x22c] sm:$0xf]
  %v282 = vld [vmem:[%s1 + $0x230] sm:$0xf]
  %v283 = vld [vmem:[%s1 + $0x234] sm:$0xf]
  %v284 = vld [vmem:[%s1 + $0x238] sm:$0xf]
  %v285 = vld [vmem:[%s1 + $0x23c] sm:$0xf]
  %v286 = vld [vmem:[%s1 + $0x240] sm:$0xf]
  %v287 = vld [vmem:[%s1 + $0x244] sm:$0xf]
  %v288 = vld [vmem:[%s1 + $0x248] sm:$0xf]
  %v289 = vld [vmem:[%s1 + $0x24c] sm:$0xf]
  %v290 = vld [vmem:[%s1 + $0x250] sm:$0xf]
  %v291 = vld [vmem:[%s1 + $0x254] sm:$0xf]
  %v292 = vld [vmem:[%s1 + $0x258] sm:$0xf]
  %v293 = vld [vmem:[%s1 + $0x25c] sm:$0xf]
  %v294 = vld [vmem:[%s1 + $0x260] sm:$0xf]
  %v295 = vld [vmem:[%s1 + $0x264] sm:$0xf]
  %v296 = vld [vmem:[%s1 + $0x268] sm:$0xf]
  %v297 = vld [vmem:[%s1 + $0x26c] sm:$0xf]
  %v298 = vld [vmem:[%s1 + $0x270] sm:$0xf]
  %v299 = vld [vmem:[%s1 + $0x274] sm:$0xf]
  %v300 = vld [vmem:[%s1 + $0x278] sm:$0xf]
  %v301 = vld [vmem:[%s1 + $0x27c] sm:$0xf]
  %v302 = vld [vmem:[%s1 + $0x280] sm:$0xf]
  %v303 = vld [vmem:[%s1 + $0x284] sm:$0xf]
  %v304 = vld [vmem:[%s1 + $0x288] sm:$0xf]
  %v305 = vld [vmem:[%s1 + $0x28c] sm:$0xf]
  %v306 = vld [vmem:[%s1 + $0x290] sm:$0xf]
  %v307 = vld [vmem:[%s1 + $0x294] sm:$0xf]
  %v308 = vld [vmem:[%s1 + $0x298] sm:$0xf]
  %v309 = vld [vmem:[%s1 + $0x29c] sm:$0xf]
  %v310 = vld [vmem:[%s1 + $0x2a0] sm:$0xf]
  %v311 = vld [vmem:[%s1 + $0x2a4] sm:$0xf]
  %v312 = vld [vmem:[%s1 + $0x2a8] sm:$0xf]
  %v313 = vld [vmem:[%s1 + $0x2ac] sm:$0xf]
  %v314 = vld [vmem:[%s1 + $0x2b0] sm:$0xf]
  %v315 = vld [vmem:[%s1 + $0x2b4] sm:$0xf]
  %v316 = vld [vmem:[%s1 + $0x2b8] sm:$0xf]
  %v317 = vld [vmem:[%s1 + $0x2bc] sm:$0xf]
  %v318 = vld [vmem:[%s1 + $0x2c0] sm:$0xf]
  %v319 = vld [vmem:[%s1 + $0x2c4] sm:$0xf]
  %v320 = vld [vmem:[%s1 + $0x2c8] sm:$0xf]
  %v321 = vld [vmem:[%s1 + $0x2cc] sm:$0xf]
  %v322 = vld [vmem:[%s1 + $0x2d0] sm:$0xf]
  %v323 = vld [vmem:[%s1 + $0x2d4] sm:$0xf]
  %v324 = vld [vmem:[%s1 + $0x2d8] sm:$0xf]
  %v325 = vld [vmem:[%s1 + $0x2dc] sm:$0xf]
  %v326 = vld [vmem:[%s1 + $0x2e0] sm:$0xf]
  %v327 = vld [vmem:[%s1 + $0x2e4] sm:$0xf]
  %v328 = vld [vmem:[%s1 + $0x2e8] sm:$0xf]
  %v329 = vld [vmem:[%s1 + $0x2ec] sm:$0xf]
  %v330 = vld [vmem:[%s1 + $0x2f0] sm:$0xf]
  %v331 = vld [vmem:[%s1 + $0x2f4] sm:$0xf]
  %v332 = vld [vmem:[%s1 + $0x2f8] sm:$0xf]
  %v333 = vld [vmem:[%s1 + $0x2fc] sm:$0xf]
  %v334 = vld [vmem:[%s1 + $0x300] sm:$0xf]
  %v335 = vld [vmem:[%s1 + $0x304] sm:$0xf]
  %v336 = vld [vmem:[%s1 + $0x308] sm:$0xf]
  %v337 = vld [vmem:[%s1 + $0x30c] sm:$0xf]
  %v338 = vld [vmem:[%s1 + $0x310] sm:$0xf]
  %v339 = vld [vmem:[%s1 + $0x314] sm:$0xf]
  %v340 = vld [vmem:[%s1 + $0x318] sm:$0xf]
  %v341 = vld [vmem:[%s1 + $0x31c] sm:$0xf]
  %v342 = vld [vmem:[%s1 + $0x320] sm:$0xf]
  %v343 = vld [vmem:[%s1 + $0x324] sm:$0xf]
  %v344 = vld [vmem:[%s1 + $0x328] sm:$0xf]
  %v345 = vld [vmem:[%s1 + $0x32c] sm:$0xf]
  %v346 = vld [vmem:[%s1 + $0x330] sm:$0xf]
  %v347 = vld [vmem:[%s1 + $0x334] sm:$0xf]
  %v348 = vld [vmem:[%s1 + $0x338] sm:$0xf]
  %v349 = vld [vmem:[%s1 + $0x33c] sm:$0xf]
  %v350 = vld [vmem:[%s1 + $0x340] sm:$0xf]
  %v351 = vld [vmem:[%s1 + $0x344] sm:$0xf]
  %v352 = vld [vmem:[%s1 + $0x348] sm:$0xf]
  %v353 = vld [vmem:[%s1 + $0x34c] sm:$0xf]
  %v354 = vld [vmem:[%s1 + $0x350] sm:$0xf]
  %v355 = vld [vmem:[%s1 + $0x354] sm:$0xf]
  %v356 = vld [vmem:[%s1 + $0x358] sm:$0xf]
  %v357 = vld [vmem:[%s1 + $0x35c] sm:$0xf]
  %v358 = vld [vmem:[%s1 + $0x360] sm:$0xf]
  %v359 = vld [vmem:[%s1 + $0x364] sm:$0xf]
  %v360 = vld [vmem:[%s1 + $0x368] sm:$0xf]
  %v361 = vld [vmem:[%s1 + $0x36c] sm:$0xf]
  %v362 = vld [vmem:[%s1 + $0x370] sm:$0xf]
  %v363 = vld [vmem:[%s1 + $0x374] sm:$0xf]
  %v364 = vld [vmem:[%s1 + $0x378] sm:$0xf]
  %v365 = vld [vmem:[%s1 + $0x37c] sm:$0xf]
  %v366 = vld [vmem:[%s1 + $0x380] sm:$0xf]
  %v367 = vld [vmem:[%s1 + $0x384] sm:$0xf]
  %v368 = vld [vmem:[%s1 + $0x388] sm:$0xf]
  %v369 = vld [vmem:[%s1 + $0x38c] sm:$0xf]
  %v370 = vld [vmem:[%s1 + $0x390] sm:$0xf]
  %v371 = vld [vmem:[%s1 + $0x394] sm:$0xf]
  %v372 = vld [vmem:[%s1 + $0x398] sm:$0xf]
  %v373 = vld [vmem:[%s1 + $0x39c] sm:$0xf]
  %v374 = vld [vmem:[%s1 + $0x3a0] sm:$0xf]
  %v375 = vld [vmem:[%s1 + $0x3a4] sm:$0xf]
  %v376 = vld [vmem:[%s1 + $0x3a8] sm:$0xf]
  %v377 = vld [vmem:[%s1 + $0x3ac] sm:$0xf]
  %v378 = vld [vmem:[%s1 + $0x3b0] sm:$0xf]
  %v379 = vld [vmem:[%s1 + $0x3b4] sm:$0xf]
  %v380 = vld [vmem:[%s1 + $0x3b8] sm:$0xf]
  %v381 = vld [vmem:[%s1 + $0x3bc] sm:$0xf]
  %v382 = vld [vmem:[%s1 + $0x3c0] sm:$0xf]
  %v383 = vld [vmem:[%s1 + $0x3c4] sm:$0xf]
  %v384 = vld [vmem:[%s1 + $0x3c8] sm:$0xf]
  %v385 = vld [vmem:[%s1 + $0x3cc] sm:$0xf]
  %v386 = vld [vmem:[%s1 + $0x3d0] sm:$0xf]
  %v387 = vld [vmem:[%s1 + $0x3d4] sm:$0xf]
  %v388 = vld [vmem:[%s1 + $0x3d8] sm:$0xf]
  %v389 = vld [vmem:[%s1 + $0x3dc] sm:$0xf]
  %v390 = vld [vmem:[%s1 + $0x3e0] sm:$0xf]
  %v391 = vld [vmem:[%s1 + $0x3e4] sm:$0xf]
  %v392 = vld [vmem:[%s1 + $0x3e8] sm:$0xf]
  %v393 = vld [vmem:[%s1 + $0x3ec] sm:$0xf]
  %v394 = vld [vmem:[%s1 + $0x3f0] sm:$0xf]
  %v395 = vld [vmem:[%s1 + $0x3f4] sm:$0xf]
  %v396 = vld [vmem:[%s1 + $0x3f8] sm:$0xf]
  %v397 = vld [vmem:[%s1 + $0x3fc] sm:$0xf]
  %v398 = vld [vmem:[%s2] sm:$0x1]
  %v400 = vperm.slane %v398, 0
  %v530 = vunpack.c.l.b16 %v14
  %v531 = vunpack.c.h.b16 %v14
  %v532 = vunpack.c.l.b16 %v15
  %v533 = vunpack.c.h.b16 %v15
  %v534 = vunpack.c.l.b16 %v16
  %v535 = vunpack.c.h.b16 %v16
  %v536 = vunpack.c.l.b16 %v17
  %v537 = vunpack.c.h.b16 %v17
  %v538 = vunpack.c.l.b16 %v18
  %v539 = vunpack.c.h.b16 %v18
  %v540 = vunpack.c.l.b16 %v19
  %v541 = vunpack.c.h.b16 %v19
  %v542 = vunpack.c.l.b16 %v20
  %v543 = vunpack.c.h.b16 %v20
  %v544 = vunpack.c.l.b16 %v21
  %v545 = vunpack.c.h.b16 %v21
  %v546 = vunpack.c.l.b16 %v22
  %v547 = vunpack.c.h.b16 %v22
  %v548 = vunpack.c.l.b16 %v23
  %v549 = vunpack.c.h.b16 %v23
  %v550 = vunpack.c.l.b16 %v24
  %v551 = vunpack.c.h.b16 %v24
  %v552 = vunpack.c.l.b16 %v25
  %v553 = vunpack.c.h.b16 %v25
  %v554 = vunpack.c.l.b16 %v26
  %v555 = vunpack.c.h.b16 %v26
  %v556 = vunpack.c.l.b16 %v27
  %v557 = vunpack.c.h.b16 %v27
  %v558 = vunpack.c.l.b16 %v28
  %v559 = vunpack.c.h.b16 %v28
  %v560 = vunpack.c.l.b16 %v29
  %v561 = vunpack.c.h.b16 %v29
  %v562 = vunpack.c.l.b16 %v30
  %v563 = vunpack.c.h.b16 %v30
  %v564 = vunpack.c.l.b16 %v31
  %v565 = vunpack.c.h.b16 %v31
  %v566 = vunpack.c.l.b16 %v32
  %v567 = vunpack.c.h.b16 %v32
  %v568 = vunpack.c.l.b16 %v33
  %v569 = vunpack.c.h.b16 %v33
  %v570 = vunpack.c.l.b16 %v34
  %v571 = vunpack.c.h.b16 %v34
  %v572 = vunpack.c.l.b16 %v35
  %v573 = vunpack.c.h.b16 %v35
  %v574 = vunpack.c.l.b16 %v36
  %v575 = vunpack.c.h.b16 %v36
  %v576 = vunpack.c.l.b16 %v37
  %v577 = vunpack.c.h.b16 %v37
  %v578 = vunpack.c.l.b16 %v38
  %v579 = vunpack.c.h.b16 %v38
  %v580 = vunpack.c.l.b16 %v39
  %v581 = vunpack.c.h.b16 %v39
  %v582 = vunpack.c.l.b16 %v40
  %v583 = vunpack.c.h.b16 %v40
  %v584 = vunpack.c.l.b16 %v41
  %v585 = vunpack.c.h.b16 %v41
  %v586 = vunpack.c.l.b16 %v42
  %v587 = vunpack.c.h.b16 %v42
  %v588 = vunpack.c.l.b16 %v43
  %v589 = vunpack.c.h.b16 %v43
  %v590 = vunpack.c.l.b16 %v44
  %v591 = vunpack.c.h.b16 %v44
  %v592 = vunpack.c.l.b16 %v45
  %v593 = vunpack.c.h.b16 %v45
  %v594 = vunpack.c.l.b16 %v46
  %v595 = vunpack.c.h.b16 %v46
  %v596 = vunpack.c.l.b16 %v47
  %v597 = vunpack.c.h.b16 %v47
  %v598 = vunpack.c.l.b16 %v48
  %v599 = vunpack.c.h.b16 %v48
  %v600 = vunpack.c.l.b16 %v49
  %v601 = vunpack.c.h.b16 %v49
  %v602 = vunpack.c.l.b16 %v50
  %v603 = vunpack.c.h.b16 %v50
  %v604 = vunpack.c.l.b16 %v51
  %v605 = vunpack.c.h.b16 %v51
  %v606 = vunpack.c.l.b16 %v52
  %v607 = vunpack.c.h.b16 %v52
  %v608 = vunpack.c.l.b16 %v53
  %v609 = vunpack.c.h.b16 %v53
  %v610 = vunpack.c.l.b16 %v54
  %v611 = vunpack.c.h.b16 %v54
  %v612 = vunpack.c.l.b16 %v55
  %v613 = vunpack.c.h.b16 %v55
  %v614 = vunpack.c.l.b16 %v56
  %v615 = vunpack.c.h.b16 %v56
  %v616 = vunpack.c.l.b16 %v57
  %v617 = vunpack.c.h.b16 %v57
  %v618 = vunpack.c.l.b16 %v58
  %v619 = vunpack.c.h.b16 %v58
  %v620 = vunpack.c.l.b16 %v59
  %v621 = vunpack.c.h.b16 %v59
  %v622 = vunpack.c.l.b16 %v60
  %v623 = vunpack.c.h.b16 %v60
  %v624 = vunpack.c.l.b16 %v61
  %v625 = vunpack.c.h.b16 %v61
  %v626 = vunpack.c.l.b16 %v62
  %v627 = vunpack.c.h.b16 %v62
  %v628 = vunpack.c.l.b16 %v63
  %v629 = vunpack.c.h.b16 %v63
  %v630 = vunpack.c.l.b16 %v64
  %v631 = vunpack.c.h.b16 %v64
  %v632 = vunpack.c.l.b16 %v65
  %v633 = vunpack.c.h.b16 %v65
  %v634 = vunpack.c.l.b16 %v66
  %v635 = vunpack.c.h.b16 %v66
  %v636 = vunpack.c.l.b16 %v67
  %v637 = vunpack.c.h.b16 %v67
  %v638 = vunpack.c.l.b16 %v68
  %v639 = vunpack.c.h.b16 %v68
  %v640 = vunpack.c.l.b16 %v69
  %v641 = vunpack.c.h.b16 %v69
  %v642 = vunpack.c.l.b16 %v70
  %v643 = vunpack.c.h.b16 %v70
  %v644 = vunpack.c.l.b16 %v71
  %v645 = vunpack.c.h.b16 %v71
  %v646 = vunpack.c.l.b16 %v72
  %v647 = vunpack.c.h.b16 %v72
  %v648 = vunpack.c.l.b16 %v73
  %v649 = vunpack.c.h.b16 %v73
  %v650 = vunpack.c.l.b16 %v74
  %v651 = vunpack.c.h.b16 %v74
  %v652 = vunpack.c.l.b16 %v75
  %v653 = vunpack.c.h.b16 %v75
  %v654 = vunpack.c.l.b16 %v76
  %v655 = vunpack.c.h.b16 %v76
  %v656 = vunpack.c.l.b16 %v77
  %v657 = vunpack.c.h.b16 %v77
  %v658 = vunpack.c.l.b16 %v78
  %v659 = vunpack.c.h.b16 %v78
  %v660 = vunpack.c.l.b16 %v79
  %v661 = vunpack.c.h.b16 %v79
  %v662 = vunpack.c.l.b16 %v80
  %v663 = vunpack.c.h.b16 %v80
  %v664 = vunpack.c.l.b16 %v81
  %v665 = vunpack.c.h.b16 %v81
  %v666 = vunpack.c.l.b16 %v82
  %v667 = vunpack.c.h.b16 %v82
  %v668 = vunpack.c.l.b16 %v83
  %v669 = vunpack.c.h.b16 %v83
  %v670 = vunpack.c.l.b16 %v84
  %v671 = vunpack.c.h.b16 %v84
  %v672 = vunpack.c.l.b16 %v85
  %v673 = vunpack.c.h.b16 %v85
  %v674 = vunpack.c.l.b16 %v86
  %v675 = vunpack.c.h.b16 %v86
  %v676 = vunpack.c.l.b16 %v87
  %v677 = vunpack.c.h.b16 %v87
  %v678 = vunpack.c.l.b16 %v88
  %v679 = vunpack.c.h.b16 %v88
  %v680 = vunpack.c.l.b16 %v89
  %v681 = vunpack.c.h.b16 %v89
  %v682 = vunpack.c.l.b16 %v90
  %v683 = vunpack.c.h.b16 %v90
  %v684 = vunpack.c.l.b16 %v91
  %v685 = vunpack.c.h.b16 %v91
  %v686 = vunpack.c.l.b16 %v92
  %v687 = vunpack.c.h.b16 %v92
  %v688 = vunpack.c.l.b16 %v93
  %v689 = vunpack.c.h.b16 %v93
  %v690 = vunpack.c.l.b16 %v94
  %v691 = vunpack.c.h.b16 %v94
  %v692 = vunpack.c.l.b16 %v95
  %v693 = vunpack.c.h.b16 %v95
  %v694 = vunpack.c.l.b16 %v96
  %v695 = vunpack.c.h.b16 %v96
  %v696 = vunpack.c.l.b16 %v97
  %v697 = vunpack.c.h.b16 %v97
  %v698 = vunpack.c.l.b16 %v98
  %v699 = vunpack.c.h.b16 %v98
  %v700 = vunpack.c.l.b16 %v99
  %v701 = vunpack.c.h.b16 %v99
  %v702 = vunpack.c.l.b16 %v100
  %v703 = vunpack.c.h.b16 %v100
  %v704 = vunpack.c.l.b16 %v101
  %v705 = vunpack.c.h.b16 %v101
  %v706 = vunpack.c.l.b16 %v102
  %v707 = vunpack.c.h.b16 %v102
  %v708 = vunpack.c.l.b16 %v103
  %v709 = vunpack.c.h.b16 %v103
  %v710 = vunpack.c.l.b16 %v104
  %v711 = vunpack.c.h.b16 %v104
  %v712 = vunpack.c.l.b16 %v105
  %v713 = vunpack.c.h.b16 %v105
  %v714 = vunpack.c.l.b16 %v106
  %v715 = vunpack.c.h.b16 %v106
  %v716 = vunpack.c.l.b16 %v107
  %v717 = vunpack.c.h.b16 %v107
  %v718 = vunpack.c.l.b16 %v108
  %v719 = vunpack.c.h.b16 %v108
  %v720 = vunpack.c.l.b16 %v109
  %v721 = vunpack.c.h.b16 %v109
  %v722 = vunpack.c.l.b16 %v110
  %v723 = vunpack.c.h.b16 %v110
  %v724 = vunpack.c.l.b16 %v111
  %v725 = vunpack.c.h.b16 %v111
  %v726 = vunpack.c.l.b16 %v112
  %v727 = vunpack.c.h.b16 %v112
  %v728 = vunpack.c.l.b16 %v113
  %v729 = vunpack.c.h.b16 %v113
  %v730 = vunpack.c.l.b16 %v114
  %v731 = vunpack.c.h.b16 %v114
  %v732 = vunpack.c.l.b16 %v115
  %v733 = vunpack.c.h.b16 %v115
  %v734 = vunpack.c.l.b16 %v116
  %v735 = vunpack.c.h.b16 %v116
  %v736 = vunpack.c.l.b16 %v117
  %v737 = vunpack.c.h.b16 %v117
  %v738 = vunpack.c.l.b16 %v118
  %v739 = vunpack.c.h.b16 %v118
  %v740 = vunpack.c.l.b16 %v119
  %v741 = vunpack.c.h.b16 %v119
  %v742 = vunpack.c.l.b16 %v120
  %v743 = vunpack.c.h.b16 %v120
  %v744 = vunpack.c.l.b16 %v121
  %v745 = vunpack.c.h.b16 %v121
  %v746 = vunpack.c.l.b16 %v122
  %v747 = vunpack.c.h.b16 %v122
  %v748 = vunpack.c.l.b16 %v123
  %v749 = vunpack.c.h.b16 %v123
  %v750 = vunpack.c.l.b16 %v124
  %v751 = vunpack.c.h.b16 %v124
  %v752 = vunpack.c.l.b16 %v125
  %v753 = vunpack.c.h.b16 %v125
  %v754 = vunpack.c.l.b16 %v126
  %v755 = vunpack.c.h.b16 %v126
  %v756 = vunpack.c.l.b16 %v127
  %v757 = vunpack.c.h.b16 %v127
  %v758 = vunpack.c.l.b16 %v128
  %v759 = vunpack.c.h.b16 %v128
  %v760 = vunpack.c.l.b16 %v129
  %v761 = vunpack.c.h.b16 %v129
  %v762 = vunpack.c.l.b16 %v130
  %v763 = vunpack.c.h.b16 %v130
  %v764 = vunpack.c.l.b16 %v131
  %v765 = vunpack.c.h.b16 %v131
  %v766 = vunpack.c.l.b16 %v132
  %v767 = vunpack.c.h.b16 %v132
  %v768 = vunpack.c.l.b16 %v133
  %v769 = vunpack.c.h.b16 %v133
  %v770 = vunpack.c.l.b16 %v134
  %v771 = vunpack.c.h.b16 %v134
  %v772 = vunpack.c.l.b16 %v135
  %v773 = vunpack.c.h.b16 %v135
  %v774 = vunpack.c.l.b16 %v136
  %v775 = vunpack.c.h.b16 %v136
  %v776 = vunpack.c.l.b16 %v137
  %v777 = vunpack.c.h.b16 %v137
  %v778 = vunpack.c.l.b16 %v138
  %v779 = vunpack.c.h.b16 %v138
  %v780 = vunpack.c.l.b16 %v139
  %v781 = vunpack.c.h.b16 %v139
  %v782 = vunpack.c.l.b16 %v140
  %v783 = vunpack.c.h.b16 %v140
  %v784 = vunpack.c.l.b16 %v141
  %v785 = vunpack.c.h.b16 %v141
  %v786 = vpack.c.b16 %v546, %v530
  %v787 = vpack.c.b16 %v547, %v531
  %v788 = vpack.c.b16 %v548, %v532
  %v789 = vpack.c.b16 %v549, %v533
  %v790 = vpack.c.b16 %v550, %v534
  %v791 = vpack.c.b16 %v551, %v535
  %v792 = vpack.c.b16 %v552, %v536
  %v793 = vpack.c.b16 %v553, %v537
  %v794 = vpack.c.b16 %v554, %v538
  %v795 = vpack.c.b16 %v555, %v539
  %v796 = vpack.c.b16 %v556, %v540
  %v797 = vpack.c.b16 %v557, %v541
  %v798 = vpack.c.b16 %v558, %v542
  %v799 = vpack.c.b16 %v559, %v543
  %v800 = vpack.c.b16 %v560, %v544
  %v801 = vpack.c.b16 %v561, %v545
  %v802 = vpack.c.b16 %v578, %v562
  %v803 = vpack.c.b16 %v579, %v563
  %v804 = vpack.c.b16 %v580, %v564
  %v805 = vpack.c.b16 %v581, %v565
  %v806 = vpack.c.b16 %v582, %v566
  %v807 = vpack.c.b16 %v583, %v567
  %v808 = vpack.c.b16 %v584, %v568
  %v809 = vpack.c.b16 %v585, %v569
  %v810 = vpack.c.b16 %v586, %v570
  %v811 = vpack.c.b16 %v587, %v571
  %v812 = vpack.c.b16 %v588, %v572
  %v813 = vpack.c.b16 %v589, %v573
  %v814 = vpack.c.b16 %v590, %v574
  %v815 = vpack.c.b16 %v591, %v575
  %v816 = vpack.c.b16 %v592, %v576
  %v817 = vpack.c.b16 %v593, %v577
  %v818 = vpack.c.b16 %v610, %v594
  %v819 = vpack.c.b16 %v611, %v595
  %v820 = vpack.c.b16 %v612, %v596
  %v821 = vpack.c.b16 %v613, %v597
  %v822 = vpack.c.b16 %v614, %v598
  %v823 = vpack.c.b16 %v615, %v599
  %v824 = vpack.c.b16 %v616, %v600
  %v825 = vpack.c.b16 %v617, %v601
  %v826 = vpack.c.b16 %v618, %v602
  %v827 = vpack.c.b16 %v619, %v603
  %v828 = vpack.c.b16 %v620, %v604
  %v829 = vpack.c.b16 %v621, %v605
  %v830 = vpack.c.b16 %v622, %v606
  %v831 = vpack.c.b16 %v623, %v607
  %v832 = vpack.c.b16 %v624, %v608
  %v833 = vpack.c.b16 %v625, %v609
  %v834 = vpack.c.b16 %v642, %v626
  %v835 = vpack.c.b16 %v643, %v627
  %v836 = vpack.c.b16 %v644, %v628
  %v837 = vpack.c.b16 %v645, %v629
  %v838 = vpack.c.b16 %v646, %v630
  %v839 = vpack.c.b16 %v647, %v631
  %v840 = vpack.c.b16 %v648, %v632
  %v841 = vpack.c.b16 %v649, %v633
  %v842 = vpack.c.b16 %v650, %v634
  %v843 = vpack.c.b16 %v651, %v635
  %v844 = vpack.c.b16 %v652, %v636
  %v845 = vpack.c.b16 %v653, %v637
  %v846 = vpack.c.b16 %v654, %v638
  %v847 = vpack.c.b16 %v655, %v639
  %v848 = vpack.c.b16 %v656, %v640
  %v849 = vpack.c.b16 %v657, %v641
  %v850 = vpack.c.b16 %v674, %v658
  %v851 = vpack.c.b16 %v675, %v659
  %v852 = vpack.c.b16 %v676, %v660
  %v853 = vpack.c.b16 %v677, %v661
  %v854 = vpack.c.b16 %v678, %v662
  %v855 = vpack.c.b16 %v679, %v663
  %v856 = vpack.c.b16 %v680, %v664
  %v857 = vpack.c.b16 %v681, %v665
  %v858 = vpack.c.b16 %v682, %v666
  %v859 = vpack.c.b16 %v683, %v667
  %v860 = vpack.c.b16 %v684, %v668
  %v861 = vpack.c.b16 %v685, %v669
  %v862 = vpack.c.b16 %v686, %v670
  %v863 = vpack.c.b16 %v687, %v671
  %v864 = vpack.c.b16 %v688, %v672
  %v865 = vpack.c.b16 %v689, %v673
  %v866 = vpack.c.b16 %v706, %v690
  %v867 = vpack.c.b16 %v707, %v691
  %v868 = vpack.c.b16 %v708, %v692
  %v869 = vpack.c.b16 %v709, %v693
  %v870 = vpack.c.b16 %v710, %v694
  %v871 = vpack.c.b16 %v711, %v695
  %v872 = vpack.c.b16 %v712, %v696
  %v873 = vpack.c.b16 %v713, %v697
  %v874 = vpack.c.b16 %v714, %v698
  %v875 = vpack.c.b16 %v715, %v699
  %v876 = vpack.c.b16 %v716, %v700
  %v877 = vpack.c.b16 %v717, %v701
  %v878 = vpack.c.b16 %v718, %v702
  %v879 = vpack.c.b16 %v719, %v703
  %v880 = vpack.c.b16 %v720, %v704
  %v881 = vpack.c.b16 %v721, %v705
  %v882 = vpack.c.b16 %v738, %v722
  %v883 = vpack.c.b16 %v739, %v723
  %v884 = vpack.c.b16 %v740, %v724
  %v885 = vpack.c.b16 %v741, %v725
  %v886 = vpack.c.b16 %v742, %v726
  %v887 = vpack.c.b16 %v743, %v727
  %v888 = vpack.c.b16 %v744, %v728
  %v889 = vpack.c.b16 %v745, %v729
  %v890 = vpack.c.b16 %v746, %v730
  %v891 = vpack.c.b16 %v747, %v731
  %v892 = vpack.c.b16 %v748, %v732
  %v893 = vpack.c.b16 %v749, %v733
  %v894 = vpack.c.b16 %v750, %v734
  %v895 = vpack.c.b16 %v751, %v735
  %v896 = vpack.c.b16 %v752, %v736
  %v897 = vpack.c.b16 %v753, %v737
  %v898 = vpack.c.b16 %v770, %v754
  %v899 = vpack.c.b16 %v771, %v755
  %v900 = vpack.c.b16 %v772, %v756
  %v901 = vpack.c.b16 %v773, %v757
  %v902 = vpack.c.b16 %v774, %v758
  %v903 = vpack.c.b16 %v775, %v759
  %v904 = vpack.c.b16 %v776, %v760
  %v905 = vpack.c.b16 %v777, %v761
  %v906 = vpack.c.b16 %v778, %v762
  %v907 = vpack.c.b16 %v779, %v763
  %v908 = vpack.c.b16 %v780, %v764
  %v909 = vpack.c.b16 %v781, %v765
  %v910 = vpack.c.b16 %v782, %v766
  %v911 = vpack.c.b16 %v783, %v767
  %v912 = vpack.c.b16 %v784, %v768
  %v913 = vpack.c.b16 %v785, %v769
  %v1298 = vunpack.c.l.b16 %v142
  %v1299 = vunpack.c.l.b16 %v143
  %v1300 = vunpack.c.l.b16 %v144
  %v1301 = vunpack.c.l.b16 %v145
  %v1302 = vunpack.c.l.b16 %v146
  %v1303 = vunpack.c.l.b16 %v147
  %v1304 = vunpack.c.l.b16 %v148
  %v1305 = vunpack.c.l.b16 %v149
  %v1306 = vunpack.c.l.b16 %v150
  %v1307 = vunpack.c.l.b16 %v151
  %v1308 = vunpack.c.l.b16 %v152
  %v1309 = vunpack.c.l.b16 %v153
  %v1310 = vunpack.c.l.b16 %v154
  %v1311 = vunpack.c.l.b16 %v155
  %v1312 = vunpack.c.l.b16 %v156
  %v1313 = vunpack.c.l.b16 %v157
  %v1314 = vunpack.c.l.b16 %v158
  %v1315 = vunpack.c.l.b16 %v159
  %v1316 = vunpack.c.l.b16 %v160
  %v1317 = vunpack.c.l.b16 %v161
  %v1318 = vunpack.c.l.b16 %v162
  %v1319 = vunpack.c.l.b16 %v163
  %v1320 = vunpack.c.l.b16 %v164
  %v1321 = vunpack.c.l.b16 %v165
  %v1322 = vunpack.c.l.b16 %v166
  %v1323 = vunpack.c.l.b16 %v167
  %v1324 = vunpack.c.l.b16 %v168
  %v1325 = vunpack.c.l.b16 %v169
  %v1326 = vunpack.c.l.b16 %v170
  %v1327 = vunpack.c.l.b16 %v171
  %v1328 = vunpack.c.l.b16 %v172
  %v1329 = vunpack.c.l.b16 %v173
  %v1330 = vunpack.c.l.b16 %v174
  %v1331 = vunpack.c.l.b16 %v175
  %v1332 = vunpack.c.l.b16 %v176
  %v1333 = vunpack.c.l.b16 %v177
  %v1334 = vunpack.c.l.b16 %v178
  %v1335 = vunpack.c.l.b16 %v179
  %v1336 = vunpack.c.l.b16 %v180
  %v1337 = vunpack.c.l.b16 %v181
  %v1338 = vunpack.c.l.b16 %v182
  %v1339 = vunpack.c.l.b16 %v183
  %v1340 = vunpack.c.l.b16 %v184
  %v1341 = vunpack.c.l.b16 %v185
  %v1342 = vunpack.c.l.b16 %v186
  %v1343 = vunpack.c.l.b16 %v187
  %v1344 = vunpack.c.l.b16 %v188
  %v1345 = vunpack.c.l.b16 %v189
  %v1346 = vunpack.c.l.b16 %v190
  %v1347 = vunpack.c.l.b16 %v191
  %v1348 = vunpack.c.l.b16 %v192
  %v1349 = vunpack.c.l.b16 %v193
  %v1350 = vunpack.c.l.b16 %v194
  %v1351 = vunpack.c.l.b16 %v195
  %v1352 = vunpack.c.l.b16 %v196
  %v1353 = vunpack.c.l.b16 %v197
  %v1354 = vunpack.c.l.b16 %v198
  %v1355 = vunpack.c.l.b16 %v199
  %v1356 = vunpack.c.l.b16 %v200
  %v1357 = vunpack.c.l.b16 %v201
  %v1358 = vunpack.c.l.b16 %v202
  %v1359 = vunpack.c.l.b16 %v203
  %v1360 = vunpack.c.l.b16 %v204
  %v1361 = vunpack.c.l.b16 %v205
  %v1362 = vunpack.c.l.b16 %v206
  %v1363 = vunpack.c.l.b16 %v207
  %v1364 = vunpack.c.l.b16 %v208
  %v1365 = vunpack.c.l.b16 %v209
  %v1366 = vunpack.c.l.b16 %v210
  %v1367 = vunpack.c.l.b16 %v211
  %v1368 = vunpack.c.l.b16 %v212
  %v1369 = vunpack.c.l.b16 %v213
  %v1370 = vunpack.c.l.b16 %v214
  %v1371 = vunpack.c.l.b16 %v215
  %v1372 = vunpack.c.l.b16 %v216
  %v1373 = vunpack.c.l.b16 %v217
  %v1374 = vunpack.c.l.b16 %v218
  %v1375 = vunpack.c.l.b16 %v219
  %v1376 = vunpack.c.l.b16 %v220
  %v1377 = vunpack.c.l.b16 %v221
  %v1378 = vunpack.c.l.b16 %v222
  %v1379 = vunpack.c.l.b16 %v223
  %v1380 = vunpack.c.l.b16 %v224
  %v1381 = vunpack.c.l.b16 %v225
  %v1382 = vunpack.c.l.b16 %v226
  %v1383 = vunpack.c.l.b16 %v227
  %v1384 = vunpack.c.l.b16 %v228
  %v1385 = vunpack.c.l.b16 %v229
  %v1386 = vunpack.c.l.b16 %v230
  %v1387 = vunpack.c.l.b16 %v231
  %v1388 = vunpack.c.l.b16 %v232
  %v1389 = vunpack.c.l.b16 %v233
  %v1390 = vunpack.c.l.b16 %v234
  %v1391 = vunpack.c.l.b16 %v235
  %v1392 = vunpack.c.l.b16 %v236
  %v1393 = vunpack.c.l.b16 %v237
  %v1394 = vunpack.c.l.b16 %v238
  %v1395 = vunpack.c.l.b16 %v239
  %v1396 = vunpack.c.l.b16 %v240
  %v1397 = vunpack.c.l.b16 %v241
  %v1398 = vunpack.c.l.b16 %v242
  %v1399 = vunpack.c.l.b16 %v243
  %v1400 = vunpack.c.l.b16 %v244
  %v1401 = vunpack.c.l.b16 %v245
  %v1402 = vunpack.c.l.b16 %v246
  %v1403 = vunpack.c.l.b16 %v247
  %v1404 = vunpack.c.l.b16 %v248
  %v1405 = vunpack.c.l.b16 %v249
  %v1406 = vunpack.c.l.b16 %v250
  %v1407 = vunpack.c.l.b16 %v251
  %v1408 = vunpack.c.l.b16 %v252
  %v1409 = vunpack.c.l.b16 %v253
  %v1410 = vunpack.c.l.b16 %v254
  %v1411 = vunpack.c.l.b16 %v255
  %v1412 = vunpack.c.l.b16 %v256
  %v1413 = vunpack.c.l.b16 %v257
  %v1414 = vunpack.c.l.b16 %v258
  %v1415 = vunpack.c.l.b16 %v259
  %v1416 = vunpack.c.l.b16 %v260
  %v1417 = vunpack.c.l.b16 %v261
  %v1418 = vunpack.c.l.b16 %v262
  %v1419 = vunpack.c.l.b16 %v263
  %v1420 = vunpack.c.l.b16 %v264
  %v1421 = vunpack.c.l.b16 %v265
  %v1422 = vunpack.c.l.b16 %v266
  %v1423 = vunpack.c.l.b16 %v267
  %v1424 = vunpack.c.l.b16 %v268
  %v1425 = vunpack.c.l.b16 %v269
  %v1426 = vunpack.c.l.b16 %v270
  %v1427 = vunpack.c.l.b16 %v271
  %v1428 = vunpack.c.l.b16 %v272
  %v1429 = vunpack.c.l.b16 %v273
  %v1430 = vunpack.c.l.b16 %v274
  %v1431 = vunpack.c.l.b16 %v275
  %v1432 = vunpack.c.l.b16 %v276
  %v1433 = vunpack.c.l.b16 %v277
  %v1434 = vunpack.c.l.b16 %v278
  %v1435 = vunpack.c.l.b16 %v279
  %v1436 = vunpack.c.l.b16 %v280
  %v1437 = vunpack.c.l.b16 %v281
  %v1438 = vunpack.c.l.b16 %v282
  %v1439 = vunpack.c.l.b16 %v283
  %v1440 = vunpack.c.l.b16 %v284
  %v1441 = vunpack.c.l.b16 %v285
  %v1442 = vunpack.c.l.b16 %v286
  %v1443 = vunpack.c.l.b16 %v287
  %v1444 = vunpack.c.l.b16 %v288
  %v1445 = vunpack.c.l.b16 %v289
  %v1446 = vunpack.c.l.b16 %v290
  %v1447 = vunpack.c.l.b16 %v291
  %v1448 = vunpack.c.l.b16 %v292
  %v1449 = vunpack.c.l.b16 %v293
  %v1450 = vunpack.c.l.b16 %v294
  %v1451 = vunpack.c.l.b16 %v295
  %v1452 = vunpack.c.l.b16 %v296
  %v1453 = vunpack.c.l.b16 %v297
  %v1454 = vunpack.c.l.b16 %v298
  %v1455 = vunpack.c.l.b16 %v299
  %v1456 = vunpack.c.l.b16 %v300
  %v1457 = vunpack.c.l.b16 %v301
  %v1458 = vunpack.c.l.b16 %v302
  %v1459 = vunpack.c.l.b16 %v303
  %v1460 = vunpack.c.l.b16 %v304
  %v1461 = vunpack.c.l.b16 %v305
  %v1462 = vunpack.c.l.b16 %v306
  %v1463 = vunpack.c.l.b16 %v307
  %v1464 = vunpack.c.l.b16 %v308
  %v1465 = vunpack.c.l.b16 %v309
  %v1466 = vunpack.c.l.b16 %v310
  %v1467 = vunpack.c.l.b16 %v311
  %v1468 = vunpack.c.l.b16 %v312
  %v1469 = vunpack.c.l.b16 %v313
  %v1470 = vunpack.c.l.b16 %v314
  %v1471 = vunpack.c.l.b16 %v315
  %v1472 = vunpack.c.l.b16 %v316
  %v1473 = vunpack.c.l.b16 %v317
  %v1474 = vunpack.c.l.b16 %v318
  %v1475 = vunpack.c.l.b16 %v319
  %v1476 = vunpack.c.l.b16 %v320
  %v1477 = vunpack.c.l.b16 %v321
  %v1478 = vunpack.c.l.b16 %v322
  %v1479 = vunpack.c.l.b16 %v323
  %v1480 = vunpack.c.l.b16 %v324
  %v1481 = vunpack.c.l.b16 %v325
  %v1482 = vunpack.c.l.b16 %v326
  %v1483 = vunpack.c.l.b16 %v327
  %v1484 = vunpack.c.l.b16 %v328
  %v1485 = vunpack.c.l.b16 %v329
  %v1486 = vunpack.c.l.b16 %v330
  %v1487 = vunpack.c.l.b16 %v331
  %v1488 = vunpack.c.l.b16 %v332
  %v1489 = vunpack.c.l.b16 %v333
  %v1490 = vunpack.c.l.b16 %v334
  %v1491 = vunpack.c.l.b16 %v335
  %v1492 = vunpack.c.l.b16 %v336
  %v1493 = vunpack.c.l.b16 %v337
  %v1494 = vunpack.c.l.b16 %v338
  %v1495 = vunpack.c.l.b16 %v339
  %v1496 = vunpack.c.l.b16 %v340
  %v1497 = vunpack.c.l.b16 %v341
  %v1498 = vunpack.c.l.b16 %v342
  %v1499 = vunpack.c.l.b16 %v343
  %v1500 = vunpack.c.l.b16 %v344
  %v1501 = vunpack.c.l.b16 %v345
  %v1502 = vunpack.c.l.b16 %v346
  %v1503 = vunpack.c.l.b16 %v347
  %v1504 = vunpack.c.l.b16 %v348
  %v1505 = vunpack.c.l.b16 %v349
  %v1506 = vunpack.c.l.b16 %v350
  %v1507 = vunpack.c.l.b16 %v351
  %v1508 = vunpack.c.l.b16 %v352
  %v1509 = vunpack.c.l.b16 %v353
  %v1510 = vunpack.c.l.b16 %v354
  %v1511 = vunpack.c.l.b16 %v355
  %v1512 = vunpack.c.l.b16 %v356
  %v1513 = vunpack.c.l.b16 %v357
  %v1514 = vunpack.c.l.b16 %v358
  %v1515 = vunpack.c.l.b16 %v359
  %v1516 = vunpack.c.l.b16 %v360
  %v1517 = vunpack.c.l.b16 %v361
  %v1518 = vunpack.c.l.b16 %v362
  %v1519 = vunpack.c.l.b16 %v363
  %v1520 = vunpack.c.l.b16 %v364
  %v1521 = vunpack.c.l.b16 %v365
  %v1522 = vunpack.c.l.b16 %v366
  %v1523 = vunpack.c.l.b16 %v367
  %v1524 = vunpack.c.l.b16 %v368
  %v1525 = vunpack.c.l.b16 %v369
  %v1526 = vunpack.c.l.b16 %v370
  %v1527 = vunpack.c.l.b16 %v371
  %v1528 = vunpack.c.l.b16 %v372
  %v1529 = vunpack.c.l.b16 %v373
  %v1530 = vunpack.c.l.b16 %v374
  %v1531 = vunpack.c.l.b16 %v375
  %v1532 = vunpack.c.l.b16 %v376
  %v1533 = vunpack.c.l.b16 %v377
  %v1534 = vunpack.c.l.b16 %v378
  %v1535 = vunpack.c.l.b16 %v379
  %v1536 = vunpack.c.l.b16 %v380
  %v1537 = vunpack.c.l.b16 %v381
  %v1538 = vunpack.c.l.b16 %v382
  %v1539 = vunpack.c.l.b16 %v383
  %v1540 = vunpack.c.l.b16 %v384
  %v1541 = vunpack.c.l.b16 %v385
  %v1542 = vunpack.c.l.b16 %v386
  %v1543 = vunpack.c.l.b16 %v387
  %v1544 = vunpack.c.l.b16 %v388
  %v1545 = vunpack.c.l.b16 %v389
  %v1546 = vunpack.c.l.b16 %v390
  %v1547 = vunpack.c.l.b16 %v391
  %v1548 = vunpack.c.l.b16 %v392
  %v1549 = vunpack.c.l.b16 %v393
  %v1550 = vunpack.c.l.b16 %v394
  %v1551 = vunpack.c.l.b16 %v395
  %v1552 = vunpack.c.l.b16 %v396
  %v1553 = vunpack.c.l.b16 %v397
  %v1554 = vpack.c.b16 %v1299, %v1298
  %v1555 = vpack.c.b16 %v1301, %v1300
  %v1556 = vpack.c.b16 %v1303, %v1302
  %v1557 = vpack.c.b16 %v1305, %v1304
  %v1558 = vpack.c.b16 %v1307, %v1306
  %v1559 = vpack.c.b16 %v1309, %v1308
  %v1560 = vpack.c.b16 %v1311, %v1310
  %v1561 = vpack.c.b16 %v1313, %v1312
  %v1562 = vpack.c.b16 %v1315, %v1314
  %v1563 = vpack.c.b16 %v1317, %v1316
  %v1564 = vpack.c.b16 %v1319, %v1318
  %v1565 = vpack.c.b16 %v1321, %v1320
  %v1566 = vpack.c.b16 %v1323, %v1322
  %v1567 = vpack.c.b16 %v1325, %v1324
  %v1568 = vpack.c.b16 %v1327, %v1326
  %v1569 = vpack.c.b16 %v1329, %v1328
  %v1570 = vpack.c.b16 %v1331, %v1330
  %v1571 = vpack.c.b16 %v1333, %v1332
  %v1572 = vpack.c.b16 %v1335, %v1334
  %v1573 = vpack.c.b16 %v1337, %v1336
  %v1574 = vpack.c.b16 %v1339, %v1338
  %v1575 = vpack.c.b16 %v1341, %v1340
  %v1576 = vpack.c.b16 %v1343, %v1342
  %v1577 = vpack.c.b16 %v1345, %v1344
  %v1578 = vpack.c.b16 %v1347, %v1346
  %v1579 = vpack.c.b16 %v1349, %v1348
  %v1580 = vpack.c.b16 %v1351, %v1350
  %v1581 = vpack.c.b16 %v1353, %v1352
  %v1582 = vpack.c.b16 %v1355, %v1354
  %v1583 = vpack.c.b16 %v1357, %v1356
  %v1584 = vpack.c.b16 %v1359, %v1358
  %v1585 = vpack.c.b16 %v1361, %v1360
  %v1586 = vpack.c.b16 %v1363, %v1362
  %v1587 = vpack.c.b16 %v1365, %v1364
  %v1588 = vpack.c.b16 %v1367, %v1366
  %v1589 = vpack.c.b16 %v1369, %v1368
  %v1590 = vpack.c.b16 %v1371, %v1370
  %v1591 = vpack.c.b16 %v1373, %v1372
  %v1592 = vpack.c.b16 %v1375, %v1374
  %v1593 = vpack.c.b16 %v1377, %v1376
  %v1594 = vpack.c.b16 %v1379, %v1378
  %v1595 = vpack.c.b16 %v1381, %v1380
  %v1596 = vpack.c.b16 %v1383, %v1382
  %v1597 = vpack.c.b16 %v1385, %v1384
  %v1598 = vpack.c.b16 %v1387, %v1386
  %v1599 = vpack.c.b16 %v1389, %v1388
  %v1600 = vpack.c.b16 %v1391, %v1390
  %v1601 = vpack.c.b16 %v1393, %v1392
  %v1602 = vpack.c.b16 %v1395, %v1394
  %v1603 = vpack.c.b16 %v1397, %v1396
  %v1604 = vpack.c.b16 %v1399, %v1398
  %v1605 = vpack.c.b16 %v1401, %v1400
  %v1606 = vpack.c.b16 %v1403, %v1402
  %v1607 = vpack.c.b16 %v1405, %v1404
  %v1608 = vpack.c.b16 %v1407, %v1406
  %v1609 = vpack.c.b16 %v1409, %v1408
  %v1610 = vpack.c.b16 %v1411, %v1410
  %v1611 = vpack.c.b16 %v1413, %v1412
  %v1612 = vpack.c.b16 %v1415, %v1414
  %v1613 = vpack.c.b16 %v1417, %v1416
  %v1614 = vpack.c.b16 %v1419, %v1418
  %v1615 = vpack.c.b16 %v1421, %v1420
  %v1616 = vpack.c.b16 %v1423, %v1422
  %v1617 = vpack.c.b16 %v1425, %v1424
  %v1618 = vpack.c.b16 %v1427, %v1426
  %v1619 = vpack.c.b16 %v1429, %v1428
  %v1620 = vpack.c.b16 %v1431, %v1430
  %v1621 = vpack.c.b16 %v1433, %v1432
  %v1622 = vpack.c.b16 %v1435, %v1434
  %v1623 = vpack.c.b16 %v1437, %v1436
  %v1624 = vpack.c.b16 %v1439, %v1438
  %v1625 = vpack.c.b16 %v1441, %v1440
  %v1626 = vpack.c.b16 %v1443, %v1442
  %v1627 = vpack.c.b16 %v1445, %v1444
  %v1628 = vpack.c.b16 %v1447, %v1446
  %v1629 = vpack.c.b16 %v1449, %v1448
  %v1630 = vpack.c.b16 %v1451, %v1450
  %v1631 = vpack.c.b16 %v1453, %v1452
  %v1632 = vpack.c.b16 %v1455, %v1454
  %v1633 = vpack.c.b16 %v1457, %v1456
  %v1634 = vpack.c.b16 %v1459, %v1458
  %v1635 = vpack.c.b16 %v1461, %v1460
  %v1636 = vpack.c.b16 %v1463, %v1462
  %v1637 = vpack.c.b16 %v1465, %v1464
  %v1638 = vpack.c.b16 %v1467, %v1466
  %v1639 = vpack.c.b16 %v1469, %v1468
  %v1640 = vpack.c.b16 %v1471, %v1470
  %v1641 = vpack.c.b16 %v1473, %v1472
  %v1642 = vpack.c.b16 %v1475, %v1474
  %v1643 = vpack.c.b16 %v1477, %v1476
  %v1644 = vpack.c.b16 %v1479, %v1478
  %v1645 = vpack.c.b16 %v1481, %v1480
  %v1646 = vpack.c.b16 %v1483, %v1482
  %v1647 = vpack.c.b16 %v1485, %v1484
  %v1648 = vpack.c.b16 %v1487, %v1486
  %v1649 = vpack.c.b16 %v1489, %v1488
  %v1650 = vpack.c.b16 %v1491, %v1490
  %v1651 = vpack.c.b16 %v1493, %v1492
  %v1652 = vpack.c.b16 %v1495, %v1494
  %v1653 = vpack.c.b16 %v1497, %v1496
  %v1654 = vpack.c.b16 %v1499, %v1498
  %v1655 = vpack.c.b16 %v1501, %v1500
  %v1656 = vpack.c.b16 %v1503, %v1502
  %v1657 = vpack.c.b16 %v1505, %v1504
  %v1658 = vpack.c.b16 %v1507, %v1506
  %v1659 = vpack.c.b16 %v1509, %v1508
  %v1660 = vpack.c.b16 %v1511, %v1510
  %v1661 = vpack.c.b16 %v1513, %v1512
  %v1662 = vpack.c.b16 %v1515, %v1514
  %v1663 = vpack.c.b16 %v1517, %v1516
  %v1664 = vpack.c.b16 %v1519, %v1518
  %v1665 = vpack.c.b16 %v1521, %v1520
  %v1666 = vpack.c.b16 %v1523, %v1522
  %v1667 = vpack.c.b16 %v1525, %v1524
  %v1668 = vpack.c.b16 %v1527, %v1526
  %v1669 = vpack.c.b16 %v1529, %v1528
  %v1670 = vpack.c.b16 %v1531, %v1530
  %v1671 = vpack.c.b16 %v1533, %v1532
  %v1672 = vpack.c.b16 %v1535, %v1534
  %v1673 = vpack.c.b16 %v1537, %v1536
  %v1674 = vpack.c.b16 %v1539, %v1538
  %v1675 = vpack.c.b16 %v1541, %v1540
  %v1676 = vpack.c.b16 %v1543, %v1542
  %v1677 = vpack.c.b16 %v1545, %v1544
  %v1678 = vpack.c.b16 %v1547, %v1546
  %v1679 = vpack.c.b16 %v1549, %v1548
  %v1680 = vpack.c.b16 %v1551, %v1550
  %v1681 = vpack.c.b16 %v1553, %v1552
  %1810 = vmatpush.bf16.msra.mxu0 %v1561
  %1811 = vmatpush.bf16.msra.mxu0 %v1560
  %1812 = vmatpush.bf16.msra.mxu0 %v1559
  %1813 = vmatpush.bf16.msra.mxu0 %v1558
  %1814 = vmatpush.bf16.msra.mxu0 %v1557
  %1815 = vmatpush.bf16.msra.mxu0 %v1556
  %1816 = vmatpush.bf16.msra.mxu0 %v1555
  %1817 = vmatpush.bf16.msra.mxu0 %v1554
  %1818 = vmatmul.bf16.gmra.mxu0 %v786
  %v1819 = vpop.f32.mrf.mxu0
  %v1820 = vadd.f32 %v400, %v1819
  %v1821 = vpop.f32.mrf.mxu0
  %v1822 = vadd.f32 %v400, %v1821
  %1823 = vmatmul.bf16.gmra.mxu0 %v802
  %v1824 = vpop.f32.mrf.mxu0
  %v1825 = vadd.f32 %v400, %v1824
  %v1826 = vpop.f32.mrf.mxu0
  %v1827 = vadd.f32 %v400, %v1826
  %1828 = vmatmul.bf16.gmra.mxu0 %v818
  %v1829 = vpop.f32.mrf.mxu0
  %v1830 = vadd.f32 %v400, %v1829
  %v1831 = vpop.f32.mrf.mxu0
  %v1832 = vadd.f32 %v400, %v1831
  %1833 = vmatmul.bf16.gmra.mxu0 %v834
  %v1834 = vpop.f32.mrf.mxu0
  %v1835 = vadd.f32 %v400, %v1834
  %v1836 = vpop.f32.mrf.mxu0
  %v1837 = vadd.f32 %v400, %v1836
  %1838 = vmatmul.bf16.gmra.mxu0 %v850
  %v1839 = vpop.f32.mrf.mxu0
  %v1840 = vadd.f32 %v400, %v1839
  %v1841 = vpop.f32.mrf.mxu0
  %v1842 = vadd.f32 %v400, %v1841
  %1843 = vmatmul.bf16.gmra.mxu0 %v866
  %v1844 = vpop.f32.mrf.mxu0
  %v1845 = vadd.f32 %v400, %v1844
  %v1846 = vpop.f32.mrf.mxu0
  %v1847 = vadd.f32 %v400, %v1846
  %1848 = vmatmul.bf16.gmra.mxu0 %v882
  %v1849 = vpop.f32.mrf.mxu0
  %v1850 = vadd.f32 %v400, %v1849
  %v1851 = vpop.f32.mrf.mxu0
  %v1852 = vadd.f32 %v400, %v1851
  %1853 = vmatmul.bf16.gmra.mxu0 %v898
  %v1854 = vpop.f32.mrf.mxu0
  %v1855 = vadd.f32 %v400, %v1854
  %v1856 = vpop.f32.mrf.mxu0
  %v1857 = vadd.f32 %v400, %v1856
  %1858 = vdwg.mxu0
  %1859 = vmatpush.bf16.msra.mxu0 %v1569
  %1860 = vmatpush.bf16.msra.mxu0 %v1568
  %1861 = vmatpush.bf16.msra.mxu0 %v1567
  %1862 = vmatpush.bf16.msra.mxu0 %v1566
  %1863 = vmatpush.bf16.msra.mxu0 %v1565
  %1864 = vmatpush.bf16.msra.mxu0 %v1564
  %1865 = vmatpush.bf16.msra.mxu0 %v1563
  %1866 = vmatpush.bf16.msra.mxu0 %v1562
  %1867 = vmatmul.bf16.gmra.mxu0 %v787
  %v1868 = vpop.f32.mrf.mxu0
  %v1869 = vadd.f32 %v1820, %v1868
  %v1870 = vpop.f32.mrf.mxu0
  %v1871 = vadd.f32 %v1822, %v1870
  %1872 = vmatmul.bf16.gmra.mxu0 %v803
  %v1873 = vpop.f32.mrf.mxu0
  %v1874 = vadd.f32 %v1825, %v1873
  %v1875 = vpop.f32.mrf.mxu0
  %v1876 = vadd.f32 %v1827, %v1875
  %1877 = vmatmul.bf16.gmra.mxu0 %v819
  %v1878 = vpop.f32.mrf.mxu0
  %v1879 = vadd.f32 %v1830, %v1878
  %v1880 = vpop.f32.mrf.mxu0
  %v1881 = vadd.f32 %v1832, %v1880
  %1882 = vmatmul.bf16.gmra.mxu0 %v835
  %v1883 = vpop.f32.mrf.mxu0
  %v1884 = vadd.f32 %v1835, %v1883
  %v1885 = vpop.f32.mrf.mxu0
  %v1886 = vadd.f32 %v1837, %v1885
  %1887 = vmatmul.bf16.gmra.mxu0 %v851
  %v1888 = vpop.f32.mrf.mxu0
  %v1889 = vadd.f32 %v1840, %v1888
  %v1890 = vpop.f32.mrf.mxu0
  %v1891 = vadd.f32 %v1842, %v1890
  %1892 = vmatmul.bf16.gmra.mxu0 %v867
  %v1893 = vpop.f32.mrf.mxu0
  %v1894 = vadd.f32 %v1845, %v1893
  %v1895 = vpop.f32.mrf.mxu0
  %v1896 = vadd.f32 %v1847, %v1895
  %1897 = vmatmul.bf16.gmra.mxu0 %v883
  %v1898 = vpop.f32.mrf.mxu0
  %v1899 = vadd.f32 %v1850, %v1898
  %v1900 = vpop.f32.mrf.mxu0
  %v1901 = vadd.f32 %v1852, %v1900
  %1902 = vmatmul.bf16.gmra.mxu0 %v899
  %v1903 = vpop.f32.mrf.mxu0
  %v1904 = vadd.f32 %v1855, %v1903
  %v1905 = vpop.f32.mrf.mxu0
  %v1906 = vadd.f32 %v1857, %v1905
  %1907 = vdwg.mxu0
  %1908 = vmatpush.bf16.msra.mxu0 %v1577
  %1909 = vmatpush.bf16.msra.mxu0 %v1576
  %1910 = vmatpush.bf16.msra.mxu0 %v1575
  %1911 = vmatpush.bf16.msra.mxu0 %v1574
  %1912 = vmatpush.bf16.msra.mxu0 %v1573
  %1913 = vmatpush.bf16.msra.mxu0 %v1572
  %1914 = vmatpush.bf16.msra.mxu0 %v1571
  %1915 = vmatpush.bf16.msra.mxu0 %v1570
  %1916 = vmatmul.bf16.gmra.mxu0 %v788
  %v1917 = vpop.f32.mrf.mxu0
  %v1918 = vadd.f32 %v1869, %v1917
  %v1919 = vpop.f32.mrf.mxu0
  %v1920 = vadd.f32 %v1871, %v1919
  %1921 = vmatmul.bf16.gmra.mxu0 %v804
  %v1922 = vpop.f32.mrf.mxu0
  %v1923 = vadd.f32 %v1874, %v1922
  %v1924 = vpop.f32.mrf.mxu0
  %v1925 = vadd.f32 %v1876, %v1924
  %1926 = vmatmul.bf16.gmra.mxu0 %v820
  %v1927 = vpop.f32.mrf.mxu0
  %v1928 = vadd.f32 %v1879, %v1927
  %v1929 = vpop.f32.mrf.mxu0
  %v1930 = vadd.f32 %v1881, %v1929
  %1931 = vmatmul.bf16.gmra.mxu0 %v836
  %v1932 = vpop.f32.mrf.mxu0
  %v1933 = vadd.f32 %v1884, %v1932
  %v1934 = vpop.f32.mrf.mxu0
  %v1935 = vadd.f32 %v1886, %v1934
  %1936 = vmatmul.bf16.gmra.mxu0 %v852
  %v1937 = vpop.f32.mrf.mxu0
  %v1938 = vadd.f32 %v1889, %v1937
  %v1939 = vpop.f32.mrf.mxu0
  %v1940 = vadd.f32 %v1891, %v1939
  %1941 = vmatmul.bf16.gmra.mxu0 %v868
  %v1942 = vpop.f32.mrf.mxu0
  %v1943 = vadd.f32 %v1894, %v1942
  %v1944 = vpop.f32.mrf.mxu0
  %v1945 = vadd.f32 %v1896, %v1944
  %1946 = vmatmul.bf16.gmra.mxu0 %v884
  %v1947 = vpop.f32.mrf.mxu0
  %v1948 = vadd.f32 %v1899, %v1947
  %v1949 = vpop.f32.mrf.mxu0
  %v1950 = vadd.f32 %v1901, %v1949
  %1951 = vmatmul.bf16.gmra.mxu0 %v900
  %v1952 = vpop.f32.mrf.mxu0
  %v1953 = vadd.f32 %v1904, %v1952
  %v1954 = vpop.f32.mrf.mxu0
  %v1955 = vadd.f32 %v1906, %v1954
  %1956 = vdwg.mxu0
  %1957 = vmatpush.bf16.msra.mxu0 %v1585
  %1958 = vmatpush.bf16.msra.mxu0 %v1584
  %1959 = vmatpush.bf16.msra.mxu0 %v1583
  %1960 = vmatpush.bf16.msra.mxu0 %v1582
  %1961 = vmatpush.bf16.msra.mxu0 %v1581
  %1962 = vmatpush.bf16.msra.mxu0 %v1580
  %1963 = vmatpush.bf16.msra.mxu0 %v1579
  %1964 = vmatpush.bf16.msra.mxu0 %v1578
  %1965 = vmatmul.bf16.gmra.mxu0 %v789
  %v1966 = vpop.f32.mrf.mxu0
  %v1967 = vadd.f32 %v1918, %v1966
  %v1968 = vpop.f32.mrf.mxu0
  %v1969 = vadd.f32 %v1920, %v1968
  %1970 = vmatmul.bf16.gmra.mxu0 %v805
  %v1971 = vpop.f32.mrf.mxu0
  %v1972 = vadd.f32 %v1923, %v1971
  %v1973 = vpop.f32.mrf.mxu0
  %v1974 = vadd.f32 %v1925, %v1973
  %1975 = vmatmul.bf16.gmra.mxu0 %v821
  %v1976 = vpop.f32.mrf.mxu0
  %v1977 = vadd.f32 %v1928, %v1976
  %v1978 = vpop.f32.mrf.mxu0
  %v1979 = vadd.f32 %v1930, %v1978
  %1980 = vmatmul.bf16.gmra.mxu0 %v837
  %v1981 = vpop.f32.mrf.mxu0
  %v1982 = vadd.f32 %v1933, %v1981
  %v1983 = vpop.f32.mrf.mxu0
  %v1984 = vadd.f32 %v1935, %v1983
  %1985 = vmatmul.bf16.gmra.mxu0 %v853
  %v1986 = vpop.f32.mrf.mxu0
  %v1987 = vadd.f32 %v1938, %v1986
  %v1988 = vpop.f32.mrf.mxu0
  %v1989 = vadd.f32 %v1940, %v1988
  %1990 = vmatmul.bf16.gmra.mxu0 %v869
  %v1991 = vpop.f32.mrf.mxu0
  %v1992 = vadd.f32 %v1943, %v1991
  %v1993 = vpop.f32.mrf.mxu0
  %v1994 = vadd.f32 %v1945, %v1993
  %1995 = vmatmul.bf16.gmra.mxu0 %v885
  %v1996 = vpop.f32.mrf.mxu0
  %v1997 = vadd.f32 %v1948, %v1996
  %v1998 = vpop.f32.mrf.mxu0
  %v1999 = vadd.f32 %v1950, %v1998
  %2000 = vmatmul.bf16.gmra.mxu0 %v901
  %v2001 = vpop.f32.mrf.mxu0
  %v2002 = vadd.f32 %v1953, %v2001
  %v2003 = vpop.f32.mrf.mxu0
  %v2004 = vadd.f32 %v1955, %v2003
  %2005 = vdwg.mxu0
  %2006 = vmatpush.bf16.msra.mxu0 %v1593
  %2007 = vmatpush.bf16.msra.mxu0 %v1592
  %2008 = vmatpush.bf16.msra.mxu0 %v1591
  %2009 = vmatpush.bf16.msra.mxu0 %v1590
  %2010 = vmatpush.bf16.msra.mxu0 %v1589
  %2011 = vmatpush.bf16.msra.mxu0 %v1588
  %2012 = vmatpush.bf16.msra.mxu0 %v1587
  %2013 = vmatpush.bf16.msra.mxu0 %v1586
  %2014 = vmatmul.bf16.gmra.mxu0 %v790
  %v2015 = vpop.f32.mrf.mxu0
  %v2016 = vadd.f32 %v1967, %v2015
  %v2017 = vpop.f32.mrf.mxu0
  %v2018 = vadd.f32 %v1969, %v2017
  %2019 = vmatmul.bf16.gmra.mxu0 %v806
  %v2020 = vpop.f32.mrf.mxu0
  %v2021 = vadd.f32 %v1972, %v2020
  %v2022 = vpop.f32.mrf.mxu0
  %v2023 = vadd.f32 %v1974, %v2022
  %2024 = vmatmul.bf16.gmra.mxu0 %v822
  %v2025 = vpop.f32.mrf.mxu0
  %v2026 = vadd.f32 %v1977, %v2025
  %v2027 = vpop.f32.mrf.mxu0
  %v2028 = vadd.f32 %v1979, %v2027
  %2029 = vmatmul.bf16.gmra.mxu0 %v838
  %v2030 = vpop.f32.mrf.mxu0
  %v2031 = vadd.f32 %v1982, %v2030
  %v2032 = vpop.f32.mrf.mxu0
  %v2033 = vadd.f32 %v1984, %v2032
  %2034 = vmatmul.bf16.gmra.mxu0 %v854
  %v2035 = vpop.f32.mrf.mxu0
  %v2036 = vadd.f32 %v1987, %v2035
  %v2037 = vpop.f32.mrf.mxu0
  %v2038 = vadd.f32 %v1989, %v2037
  %2039 = vmatmul.bf16.gmra.mxu0 %v870
  %v2040 = vpop.f32.mrf.mxu0
  %v2041 = vadd.f32 %v1992, %v2040
  %v2042 = vpop.f32.mrf.mxu0
  %v2043 = vadd.f32 %v1994, %v2042
  %2044 = vmatmul.bf16.gmra.mxu0 %v886
  %v2045 = vpop.f32.mrf.mxu0
  %v2046 = vadd.f32 %v1997, %v2045
  %v2047 = vpop.f32.mrf.mxu0
  %v2048 = vadd.f32 %v1999, %v2047
  %2049 = vmatmul.bf16.gmra.mxu0 %v902
  %v2050 = vpop.f32.mrf.mxu0
  %v2051 = vadd.f32 %v2002, %v2050
  %v2052 = vpop.f32.mrf.mxu0
  %v2053 = vadd.f32 %v2004, %v2052
  %2054 = vdwg.mxu0
  %2055 = vmatpush.bf16.msra.mxu0 %v1601
  %2056 = vmatpush.bf16.msra.mxu0 %v1600
  %2057 = vmatpush.bf16.msra.mxu0 %v1599
  %2058 = vmatpush.bf16.msra.mxu0 %v1598
  %2059 = vmatpush.bf16.msra.mxu0 %v1597
  %2060 = vmatpush.bf16.msra.mxu0 %v1596
  %2061 = vmatpush.bf16.msra.mxu0 %v1595
  %2062 = vmatpush.bf16.msra.mxu0 %v1594
  %2063 = vmatmul.bf16.gmra.mxu0 %v791
  %v2064 = vpop.f32.mrf.mxu0
  %v2065 = vadd.f32 %v2016, %v2064
  %v2066 = vpop.f32.mrf.mxu0
  %v2067 = vadd.f32 %v2018, %v2066
  %2068 = vmatmul.bf16.gmra.mxu0 %v807
  %v2069 = vpop.f32.mrf.mxu0
  %v2070 = vadd.f32 %v2021, %v2069
  %v2071 = vpop.f32.mrf.mxu0
  %v2072 = vadd.f32 %v2023, %v2071
  %2073 = vmatmul.bf16.gmra.mxu0 %v823
  %v2074 = vpop.f32.mrf.mxu0
  %v2075 = vadd.f32 %v2026, %v2074
  %v2076 = vpop.f32.mrf.mxu0
  %v2077 = vadd.f32 %v2028, %v2076
  %2078 = vmatmul.bf16.gmra.mxu0 %v839
  %v2079 = vpop.f32.mrf.mxu0
  %v2080 = vadd.f32 %v2031, %v2079
  %v2081 = vpop.f32.mrf.mxu0
  %v2082 = vadd.f32 %v2033, %v2081
  %2083 = vmatmul.bf16.gmra.mxu0 %v855
  %v2084 = vpop.f32.mrf.mxu0
  %v2085 = vadd.f32 %v2036, %v2084
  %v2086 = vpop.f32.mrf.mxu0
  %v2087 = vadd.f32 %v2038, %v2086
  %2088 = vmatmul.bf16.gmra.mxu0 %v871
  %v2089 = vpop.f32.mrf.mxu0
  %v2090 = vadd.f32 %v2041, %v2089
  %v2091 = vpop.f32.mrf.mxu0
  %v2092 = vadd.f32 %v2043, %v2091
  %2093 = vmatmul.bf16.gmra.mxu0 %v887
  %v2094 = vpop.f32.mrf.mxu0
  %v2095 = vadd.f32 %v2046, %v2094
  %v2096 = vpop.f32.mrf.mxu0
  %v2097 = vadd.f32 %v2048, %v2096
  %2098 = vmatmul.bf16.gmra.mxu0 %v903
  %v2099 = vpop.f32.mrf.mxu0
  %v2100 = vadd.f32 %v2051, %v2099
  %v2101 = vpop.f32.mrf.mxu0
  %v2102 = vadd.f32 %v2053, %v2101
  %2103 = vdwg.mxu0
  %2104 = vmatpush.bf16.msra.mxu0 %v1609
  %2105 = vmatpush.bf16.msra.mxu0 %v1608
  %2106 = vmatpush.bf16.msra.mxu0 %v1607
  %2107 = vmatpush.bf16.msra.mxu0 %v1606
  %2108 = vmatpush.bf16.msra.mxu0 %v1605
  %2109 = vmatpush.bf16.msra.mxu0 %v1604
  %2110 = vmatpush.bf16.msra.mxu0 %v1603
  %2111 = vmatpush.bf16.msra.mxu0 %v1602
  %2112 = vmatmul.bf16.gmra.mxu0 %v792
  %v2113 = vpop.f32.mrf.mxu0
  %v2114 = vadd.f32 %v2065, %v2113
  %v2115 = vpop.f32.mrf.mxu0
  %v2116 = vadd.f32 %v2067, %v2115
  %2117 = vmatmul.bf16.gmra.mxu0 %v808
  %v2118 = vpop.f32.mrf.mxu0
  %v2119 = vadd.f32 %v2070, %v2118
  %v2120 = vpop.f32.mrf.mxu0
  %v2121 = vadd.f32 %v2072, %v2120
  %2122 = vmatmul.bf16.gmra.mxu0 %v824
  %v2123 = vpop.f32.mrf.mxu0
  %v2124 = vadd.f32 %v2075, %v2123
  %v2125 = vpop.f32.mrf.mxu0
  %v2126 = vadd.f32 %v2077, %v2125
  %2127 = vmatmul.bf16.gmra.mxu0 %v840
  %v2128 = vpop.f32.mrf.mxu0
  %v2129 = vadd.f32 %v2080, %v2128
  %v2130 = vpop.f32.mrf.mxu0
  %v2131 = vadd.f32 %v2082, %v2130
  %2132 = vmatmul.bf16.gmra.mxu0 %v856
  %v2133 = vpop.f32.mrf.mxu0
  %v2134 = vadd.f32 %v2085, %v2133
  %v2135 = vpop.f32.mrf.mxu0
  %v2136 = vadd.f32 %v2087, %v2135
  %2137 = vmatmul.bf16.gmra.mxu0 %v872
  %v2138 = vpop.f32.mrf.mxu0
  %v2139 = vadd.f32 %v2090, %v2138
  %v2140 = vpop.f32.mrf.mxu0
  %v2141 = vadd.f32 %v2092, %v2140
  %2142 = vmatmul.bf16.gmra.mxu0 %v888
  %v2143 = vpop.f32.mrf.mxu0
  %v2144 = vadd.f32 %v2095, %v2143
  %v2145 = vpop.f32.mrf.mxu0
  %v2146 = vadd.f32 %v2097, %v2145
  %2147 = vmatmul.bf16.gmra.mxu0 %v904
  %v2148 = vpop.f32.mrf.mxu0
  %v2149 = vadd.f32 %v2100, %v2148
  %v2150 = vpop.f32.mrf.mxu0
  %v2151 = vadd.f32 %v2102, %v2150
  %2152 = vdwg.mxu0
  %2153 = vmatpush.bf16.msra.mxu0 %v1617
  %2154 = vmatpush.bf16.msra.mxu0 %v1616
  %2155 = vmatpush.bf16.msra.mxu0 %v1615
  %2156 = vmatpush.bf16.msra.mxu0 %v1614
  %2157 = vmatpush.bf16.msra.mxu0 %v1613
  %2158 = vmatpush.bf16.msra.mxu0 %v1612
  %2159 = vmatpush.bf16.msra.mxu0 %v1611
  %2160 = vmatpush.bf16.msra.mxu0 %v1610
  %2161 = vmatmul.bf16.gmra.mxu0 %v793
  %v2162 = vpop.f32.mrf.mxu0
  %v2163 = vadd.f32 %v2114, %v2162
  %v2164 = vpop.f32.mrf.mxu0
  %v2165 = vadd.f32 %v2116, %v2164
  %2166 = vmatmul.bf16.gmra.mxu0 %v809
  %v2167 = vpop.f32.mrf.mxu0
  %v2168 = vadd.f32 %v2119, %v2167
  %v2169 = vpop.f32.mrf.mxu0
  %v2170 = vadd.f32 %v2121, %v2169
  %2171 = vmatmul.bf16.gmra.mxu0 %v825
  %v2172 = vpop.f32.mrf.mxu0
  %v2173 = vadd.f32 %v2124, %v2172
  %v2174 = vpop.f32.mrf.mxu0
  %v2175 = vadd.f32 %v2126, %v2174
  %2176 = vmatmul.bf16.gmra.mxu0 %v841
  %v2177 = vpop.f32.mrf.mxu0
  %v2178 = vadd.f32 %v2129, %v2177
  %v2179 = vpop.f32.mrf.mxu0
  %v2180 = vadd.f32 %v2131, %v2179
  %2181 = vmatmul.bf16.gmra.mxu0 %v857
  %v2182 = vpop.f32.mrf.mxu0
  %v2183 = vadd.f32 %v2134, %v2182
  %v2184 = vpop.f32.mrf.mxu0
  %v2185 = vadd.f32 %v2136, %v2184
  %2186 = vmatmul.bf16.gmra.mxu0 %v873
  %v2187 = vpop.f32.mrf.mxu0
  %v2188 = vadd.f32 %v2139, %v2187
  %v2189 = vpop.f32.mrf.mxu0
  %v2190 = vadd.f32 %v2141, %v2189
  %2191 = vmatmul.bf16.gmra.mxu0 %v889
  %v2192 = vpop.f32.mrf.mxu0
  %v2193 = vadd.f32 %v2144, %v2192
  %v2194 = vpop.f32.mrf.mxu0
  %v2195 = vadd.f32 %v2146, %v2194
  %2196 = vmatmul.bf16.gmra.mxu0 %v905
  %v2197 = vpop.f32.mrf.mxu0
  %v2198 = vadd.f32 %v2149, %v2197
  %v2199 = vpop.f32.mrf.mxu0
  %v2200 = vadd.f32 %v2151, %v2199
  %2201 = vdwg.mxu0
  %2202 = vmatpush.bf16.msra.mxu0 %v1625
  %2203 = vmatpush.bf16.msra.mxu0 %v1624
  %2204 = vmatpush.bf16.msra.mxu0 %v1623
  %2205 = vmatpush.bf16.msra.mxu0 %v1622
  %2206 = vmatpush.bf16.msra.mxu0 %v1621
  %2207 = vmatpush.bf16.msra.mxu0 %v1620
  %2208 = vmatpush.bf16.msra.mxu0 %v1619
  %2209 = vmatpush.bf16.msra.mxu0 %v1618
  %2210 = vmatmul.bf16.gmra.mxu0 %v794
  %v2211 = vpop.f32.mrf.mxu0
  %v2212 = vadd.f32 %v2163, %v2211
  %v2213 = vpop.f32.mrf.mxu0
  %v2214 = vadd.f32 %v2165, %v2213
  %2215 = vmatmul.bf16.gmra.mxu0 %v810
  %v2216 = vpop.f32.mrf.mxu0
  %v2217 = vadd.f32 %v2168, %v2216
  %v2218 = vpop.f32.mrf.mxu0
  %v2219 = vadd.f32 %v2170, %v2218
  %2220 = vmatmul.bf16.gmra.mxu0 %v826
  %v2221 = vpop.f32.mrf.mxu0
  %v2222 = vadd.f32 %v2173, %v2221
  %v2223 = vpop.f32.mrf.mxu0
  %v2224 = vadd.f32 %v2175, %v2223
  %2225 = vmatmul.bf16.gmra.mxu0 %v842
  %v2226 = vpop.f32.mrf.mxu0
  %v2227 = vadd.f32 %v2178, %v2226
  %v2228 = vpop.f32.mrf.mxu0
  %v2229 = vadd.f32 %v2180, %v2228
  %2230 = vmatmul.bf16.gmra.mxu0 %v858
  %v2231 = vpop.f32.mrf.mxu0
  %v2232 = vadd.f32 %v2183, %v2231
  %v2233 = vpop.f32.mrf.mxu0
  %v2234 = vadd.f32 %v2185, %v2233
  %2235 = vmatmul.bf16.gmra.mxu0 %v874
  %v2236 = vpop.f32.mrf.mxu0
  %v2237 = vadd.f32 %v2188, %v2236
  %v2238 = vpop.f32.mrf.mxu0
  %v2239 = vadd.f32 %v2190, %v2238
  %2240 = vmatmul.bf16.gmra.mxu0 %v890
  %v2241 = vpop.f32.mrf.mxu0
  %v2242 = vadd.f32 %v2193, %v2241
  %v2243 = vpop.f32.mrf.mxu0
  %v2244 = vadd.f32 %v2195, %v2243
  %2245 = vmatmul.bf16.gmra.mxu0 %v906
  %v2246 = vpop.f32.mrf.mxu0
  %v2247 = vadd.f32 %v2198, %v2246
  %v2248 = vpop.f32.mrf.mxu0
  %v2249 = vadd.f32 %v2200, %v2248
  %2250 = vdwg.mxu0
  %2251 = vmatpush.bf16.msra.mxu0 %v1633
  %2252 = vmatpush.bf16.msra.mxu0 %v1632
  %2253 = vmatpush.bf16.msra.mxu0 %v1631
  %2254 = vmatpush.bf16.msra.mxu0 %v1630
  %2255 = vmatpush.bf16.msra.mxu0 %v1629
  %2256 = vmatpush.bf16.msra.mxu0 %v1628
  %2257 = vmatpush.bf16.msra.mxu0 %v1627
  %2258 = vmatpush.bf16.msra.mxu0 %v1626
  %2259 = vmatmul.bf16.gmra.mxu0 %v795
  %v2260 = vpop.f32.mrf.mxu0
  %v2261 = vadd.f32 %v2212, %v2260
  %v2262 = vpop.f32.mrf.mxu0
  %v2263 = vadd.f32 %v2214, %v2262
  %2264 = vmatmul.bf16.gmra.mxu0 %v811
  %v2265 = vpop.f32.mrf.mxu0
  %v2266 = vadd.f32 %v2217, %v2265
  %v2267 = vpop.f32.mrf.mxu0
  %v2268 = vadd.f32 %v2219, %v2267
  %2269 = vmatmul.bf16.gmra.mxu0 %v827
  %v2270 = vpop.f32.mrf.mxu0
  %v2271 = vadd.f32 %v2222, %v2270
  %v2272 = vpop.f32.mrf.mxu0
  %v2273 = vadd.f32 %v2224, %v2272
  %2274 = vmatmul.bf16.gmra.mxu0 %v843
  %v2275 = vpop.f32.mrf.mxu0
  %v2276 = vadd.f32 %v2227, %v2275
  %v2277 = vpop.f32.mrf.mxu0
  %v2278 = vadd.f32 %v2229, %v2277
  %2279 = vmatmul.bf16.gmra.mxu0 %v859
  %v2280 = vpop.f32.mrf.mxu0
  %v2281 = vadd.f32 %v2232, %v2280
  %v2282 = vpop.f32.mrf.mxu0
  %v2283 = vadd.f32 %v2234, %v2282
  %2284 = vmatmul.bf16.gmra.mxu0 %v875
  %v2285 = vpop.f32.mrf.mxu0
  %v2286 = vadd.f32 %v2237, %v2285
  %v2287 = vpop.f32.mrf.mxu0
  %v2288 = vadd.f32 %v2239, %v2287
  %2289 = vmatmul.bf16.gmra.mxu0 %v891
  %v2290 = vpop.f32.mrf.mxu0
  %v2291 = vadd.f32 %v2242, %v2290
  %v2292 = vpop.f32.mrf.mxu0
  %v2293 = vadd.f32 %v2244, %v2292
  %2294 = vmatmul.bf16.gmra.mxu0 %v907
  %v2295 = vpop.f32.mrf.mxu0
  %v2296 = vadd.f32 %v2247, %v2295
  %v2297 = vpop.f32.mrf.mxu0
  %v2298 = vadd.f32 %v2249, %v2297
  %2299 = vdwg.mxu0
  %2300 = vmatpush.bf16.msra.mxu0 %v1641
  %2301 = vmatpush.bf16.msra.mxu0 %v1640
  %2302 = vmatpush.bf16.msra.mxu0 %v1639
  %2303 = vmatpush.bf16.msra.mxu0 %v1638
  %2304 = vmatpush.bf16.msra.mxu0 %v1637
  %2305 = vmatpush.bf16.msra.mxu0 %v1636
  %2306 = vmatpush.bf16.msra.mxu0 %v1635
  %2307 = vmatpush.bf16.msra.mxu0 %v1634
  %2308 = vmatmul.bf16.gmra.mxu0 %v796
  %v2309 = vpop.f32.mrf.mxu0
  %v2310 = vadd.f32 %v2261, %v2309
  %v2311 = vpop.f32.mrf.mxu0
  %v2312 = vadd.f32 %v2263, %v2311
  %2313 = vmatmul.bf16.gmra.mxu0 %v812
  %v2314 = vpop.f32.mrf.mxu0
  %v2315 = vadd.f32 %v2266, %v2314
  %v2316 = vpop.f32.mrf.mxu0
  %v2317 = vadd.f32 %v2268, %v2316
  %2318 = vmatmul.bf16.gmra.mxu0 %v828
  %v2319 = vpop.f32.mrf.mxu0
  %v2320 = vadd.f32 %v2271, %v2319
  %v2321 = vpop.f32.mrf.mxu0
  %v2322 = vadd.f32 %v2273, %v2321
  %2323 = vmatmul.bf16.gmra.mxu0 %v844
  %v2324 = vpop.f32.mrf.mxu0
  %v2325 = vadd.f32 %v2276, %v2324
  %v2326 = vpop.f32.mrf.mxu0
  %v2327 = vadd.f32 %v2278, %v2326
  %2328 = vmatmul.bf16.gmra.mxu0 %v860
  %v2329 = vpop.f32.mrf.mxu0
  %v2330 = vadd.f32 %v2281, %v2329
  %v2331 = vpop.f32.mrf.mxu0
  %v2332 = vadd.f32 %v2283, %v2331
  %2333 = vmatmul.bf16.gmra.mxu0 %v876
  %v2334 = vpop.f32.mrf.mxu0
  %v2335 = vadd.f32 %v2286, %v2334
  %v2336 = vpop.f32.mrf.mxu0
  %v2337 = vadd.f32 %v2288, %v2336
  %2338 = vmatmul.bf16.gmra.mxu0 %v892
  %v2339 = vpop.f32.mrf.mxu0
  %v2340 = vadd.f32 %v2291, %v2339
  %v2341 = vpop.f32.mrf.mxu0
  %v2342 = vadd.f32 %v2293, %v2341
  %2343 = vmatmul.bf16.gmra.mxu0 %v908
  %v2344 = vpop.f32.mrf.mxu0
  %v2345 = vadd.f32 %v2296, %v2344
  %v2346 = vpop.f32.mrf.mxu0
  %v2347 = vadd.f32 %v2298, %v2346
  %2348 = vdwg.mxu0
  %2349 = vmatpush.bf16.msra.mxu0 %v1649
  %2350 = vmatpush.bf16.msra.mxu0 %v1648
  %2351 = vmatpush.bf16.msra.mxu0 %v1647
  %2352 = vmatpush.bf16.msra.mxu0 %v1646
  %2353 = vmatpush.bf16.msra.mxu0 %v1645
  %2354 = vmatpush.bf16.msra.mxu0 %v1644
  %2355 = vmatpush.bf16.msra.mxu0 %v1643
  %2356 = vmatpush.bf16.msra.mxu0 %v1642
  %2357 = vmatmul.bf16.gmra.mxu0 %v797
  %v2358 = vpop.f32.mrf.mxu0
  %v2359 = vadd.f32 %v2310, %v2358
  %v2360 = vpop.f32.mrf.mxu0
  %v2361 = vadd.f32 %v2312, %v2360
  %2362 = vmatmul.bf16.gmra.mxu0 %v813
  %v2363 = vpop.f32.mrf.mxu0
  %v2364 = vadd.f32 %v2315, %v2363
  %v2365 = vpop.f32.mrf.mxu0
  %v2366 = vadd.f32 %v2317, %v2365
  %2367 = vmatmul.bf16.gmra.mxu0 %v829
  %v2368 = vpop.f32.mrf.mxu0
  %v2369 = vadd.f32 %v2320, %v2368
  %v2370 = vpop.f32.mrf.mxu0
  %v2371 = vadd.f32 %v2322, %v2370
  %2372 = vmatmul.bf16.gmra.mxu0 %v845
  %v2373 = vpop.f32.mrf.mxu0
  %v2374 = vadd.f32 %v2325, %v2373
  %v2375 = vpop.f32.mrf.mxu0
  %v2376 = vadd.f32 %v2327, %v2375
  %2377 = vmatmul.bf16.gmra.mxu0 %v861
  %v2378 = vpop.f32.mrf.mxu0
  %v2379 = vadd.f32 %v2330, %v2378
  %v2380 = vpop.f32.mrf.mxu0
  %v2381 = vadd.f32 %v2332, %v2380
  %2382 = vmatmul.bf16.gmra.mxu0 %v877
  %v2383 = vpop.f32.mrf.mxu0
  %v2384 = vadd.f32 %v2335, %v2383
  %v2385 = vpop.f32.mrf.mxu0
  %v2386 = vadd.f32 %v2337, %v2385
  %2387 = vmatmul.bf16.gmra.mxu0 %v893
  %v2388 = vpop.f32.mrf.mxu0
  %v2389 = vadd.f32 %v2340, %v2388
  %v2390 = vpop.f32.mrf.mxu0
  %v2391 = vadd.f32 %v2342, %v2390
  %2392 = vmatmul.bf16.gmra.mxu0 %v909
  %v2393 = vpop.f32.mrf.mxu0
  %v2394 = vadd.f32 %v2345, %v2393
  %v2395 = vpop.f32.mrf.mxu0
  %v2396 = vadd.f32 %v2347, %v2395
  %2397 = vdwg.mxu0
  %2398 = vmatpush.bf16.msra.mxu0 %v1657
  %2399 = vmatpush.bf16.msra.mxu0 %v1656
  %2400 = vmatpush.bf16.msra.mxu0 %v1655
  %2401 = vmatpush.bf16.msra.mxu0 %v1654
  %2402 = vmatpush.bf16.msra.mxu0 %v1653
  %2403 = vmatpush.bf16.msra.mxu0 %v1652
  %2404 = vmatpush.bf16.msra.mxu0 %v1651
  %2405 = vmatpush.bf16.msra.mxu0 %v1650
  %2406 = vmatmul.bf16.gmra.mxu0 %v798
  %v2407 = vpop.f32.mrf.mxu0
  %v2408 = vadd.f32 %v2359, %v2407
  %v2409 = vpop.f32.mrf.mxu0
  %v2410 = vadd.f32 %v2361, %v2409
  %2411 = vmatmul.bf16.gmra.mxu0 %v814
  %v2412 = vpop.f32.mrf.mxu0
  %v2413 = vadd.f32 %v2364, %v2412
  %v2414 = vpop.f32.mrf.mxu0
  %v2415 = vadd.f32 %v2366, %v2414
  %2416 = vmatmul.bf16.gmra.mxu0 %v830
  %v2417 = vpop.f32.mrf.mxu0
  %v2418 = vadd.f32 %v2369, %v2417
  %v2419 = vpop.f32.mrf.mxu0
  %v2420 = vadd.f32 %v2371, %v2419
  %2421 = vmatmul.bf16.gmra.mxu0 %v846
  %v2422 = vpop.f32.mrf.mxu0
  %v2423 = vadd.f32 %v2374, %v2422
  %v2424 = vpop.f32.mrf.mxu0
  %v2425 = vadd.f32 %v2376, %v2424
  %2426 = vmatmul.bf16.gmra.mxu0 %v862
  %v2427 = vpop.f32.mrf.mxu0
  %v2428 = vadd.f32 %v2379, %v2427
  %v2429 = vpop.f32.mrf.mxu0
  %v2430 = vadd.f32 %v2381, %v2429
  %2431 = vmatmul.bf16.gmra.mxu0 %v878
  %v2432 = vpop.f32.mrf.mxu0
  %v2433 = vadd.f32 %v2384, %v2432
  %v2434 = vpop.f32.mrf.mxu0
  %v2435 = vadd.f32 %v2386, %v2434
  %2436 = vmatmul.bf16.gmra.mxu0 %v894
  %v2437 = vpop.f32.mrf.mxu0
  %v2438 = vadd.f32 %v2389, %v2437
  %v2439 = vpop.f32.mrf.mxu0
  %v2440 = vadd.f32 %v2391, %v2439
  %2441 = vmatmul.bf16.gmra.mxu0 %v910
  %v2442 = vpop.f32.mrf.mxu0
  %v2443 = vadd.f32 %v2394, %v2442
  %v2444 = vpop.f32.mrf.mxu0
  %v2445 = vadd.f32 %v2396, %v2444
  %2446 = vdwg.mxu0
  %2447 = vmatpush.bf16.msra.mxu0 %v1665
  %2448 = vmatpush.bf16.msra.mxu0 %v1664
  %2449 = vmatpush.bf16.msra.mxu0 %v1663
  %2450 = vmatpush.bf16.msra.mxu0 %v1662
  %2451 = vmatpush.bf16.msra.mxu0 %v1661
  %2452 = vmatpush.bf16.msra.mxu0 %v1660
  %2453 = vmatpush.bf16.msra.mxu0 %v1659
  %2454 = vmatpush.bf16.msra.mxu0 %v1658
  %2455 = vmatmul.bf16.gmra.mxu0 %v799
  %v2456 = vpop.f32.mrf.mxu0
  %v2457 = vadd.f32 %v2408, %v2456
  %v2458 = vpop.f32.mrf.mxu0
  %v2459 = vadd.f32 %v2410, %v2458
  %2460 = vmatmul.bf16.gmra.mxu0 %v815
  %v2461 = vpop.f32.mrf.mxu0
  %v2462 = vadd.f32 %v2413, %v2461
  %v2463 = vpop.f32.mrf.mxu0
  %v2464 = vadd.f32 %v2415, %v2463
  %2465 = vmatmul.bf16.gmra.mxu0 %v831
  %v2466 = vpop.f32.mrf.mxu0
  %v2467 = vadd.f32 %v2418, %v2466
  %v2468 = vpop.f32.mrf.mxu0
  %v2469 = vadd.f32 %v2420, %v2468
  %2470 = vmatmul.bf16.gmra.mxu0 %v847
  %v2471 = vpop.f32.mrf.mxu0
  %v2472 = vadd.f32 %v2423, %v2471
  %v2473 = vpop.f32.mrf.mxu0
  %v2474 = vadd.f32 %v2425, %v2473
  %2475 = vmatmul.bf16.gmra.mxu0 %v863
  %v2476 = vpop.f32.mrf.mxu0
  %v2477 = vadd.f32 %v2428, %v2476
  %v2478 = vpop.f32.mrf.mxu0
  %v2479 = vadd.f32 %v2430, %v2478
  %2480 = vmatmul.bf16.gmra.mxu0 %v879
  %v2481 = vpop.f32.mrf.mxu0
  %v2482 = vadd.f32 %v2433, %v2481
  %v2483 = vpop.f32.mrf.mxu0
  %v2484 = vadd.f32 %v2435, %v2483
  %2485 = vmatmul.bf16.gmra.mxu0 %v895
  %v2486 = vpop.f32.mrf.mxu0
  %v2487 = vadd.f32 %v2438, %v2486
  %v2488 = vpop.f32.mrf.mxu0
  %v2489 = vadd.f32 %v2440, %v2488
  %2490 = vmatmul.bf16.gmra.mxu0 %v911
  %v2491 = vpop.f32.mrf.mxu0
  %v2492 = vadd.f32 %v2443, %v2491
  %v2493 = vpop.f32.mrf.mxu0
  %v2494 = vadd.f32 %v2445, %v2493
  %2495 = vdwg.mxu0
  %2496 = vmatpush.bf16.msra.mxu0 %v1673
  %2497 = vmatpush.bf16.msra.mxu0 %v1672
  %2498 = vmatpush.bf16.msra.mxu0 %v1671
  %2499 = vmatpush.bf16.msra.mxu0 %v1670
  %2500 = vmatpush.bf16.msra.mxu0 %v1669
  %2501 = vmatpush.bf16.msra.mxu0 %v1668
  %2502 = vmatpush.bf16.msra.mxu0 %v1667
  %2503 = vmatpush.bf16.msra.mxu0 %v1666
  %2504 = vmatmul.bf16.gmra.mxu0 %v800
  %v2505 = vpop.f32.mrf.mxu0
  %v2506 = vadd.f32 %v2457, %v2505
  %v2507 = vpop.f32.mrf.mxu0
  %v2508 = vadd.f32 %v2459, %v2507
  %2509 = vmatmul.bf16.gmra.mxu0 %v816
  %v2510 = vpop.f32.mrf.mxu0
  %v2511 = vadd.f32 %v2462, %v2510
  %v2512 = vpop.f32.mrf.mxu0
  %v2513 = vadd.f32 %v2464, %v2512
  %2514 = vmatmul.bf16.gmra.mxu0 %v832
  %v2515 = vpop.f32.mrf.mxu0
  %v2516 = vadd.f32 %v2467, %v2515
  %v2517 = vpop.f32.mrf.mxu0
  %v2518 = vadd.f32 %v2469, %v2517
  %2519 = vmatmul.bf16.gmra.mxu0 %v848
  %v2520 = vpop.f32.mrf.mxu0
  %v2521 = vadd.f32 %v2472, %v2520
  %v2522 = vpop.f32.mrf.mxu0
  %v2523 = vadd.f32 %v2474, %v2522
  %2524 = vmatmul.bf16.gmra.mxu0 %v864
  %v2525 = vpop.f32.mrf.mxu0
  %v2526 = vadd.f32 %v2477, %v2525
  %v2527 = vpop.f32.mrf.mxu0
  %v2528 = vadd.f32 %v2479, %v2527
  %2529 = vmatmul.bf16.gmra.mxu0 %v880
  %v2530 = vpop.f32.mrf.mxu0
  %v2531 = vadd.f32 %v2482, %v2530
  %v2532 = vpop.f32.mrf.mxu0
  %v2533 = vadd.f32 %v2484, %v2532
  %2534 = vmatmul.bf16.gmra.mxu0 %v896
  %v2535 = vpop.f32.mrf.mxu0
  %v2536 = vadd.f32 %v2487, %v2535
  %v2537 = vpop.f32.mrf.mxu0
  %v2538 = vadd.f32 %v2489, %v2537
  %2539 = vmatmul.bf16.gmra.mxu0 %v912
  %v2540 = vpop.f32.mrf.mxu0
  %v2541 = vadd.f32 %v2492, %v2540
  %v2542 = vpop.f32.mrf.mxu0
  %v2543 = vadd.f32 %v2494, %v2542
  %2544 = vdwg.mxu0
  %2545 = vmatpush.bf16.msra.mxu0 %v1681
  %2546 = vmatpush.bf16.msra.mxu0 %v1680
  %2547 = vmatpush.bf16.msra.mxu0 %v1679
  %2548 = vmatpush.bf16.msra.mxu0 %v1678
  %2549 = vmatpush.bf16.msra.mxu0 %v1677
  %2550 = vmatpush.bf16.msra.mxu0 %v1676
  %2551 = vmatpush.bf16.msra.mxu0 %v1675
  %2552 = vmatpush.bf16.msra.mxu0 %v1674
  %2553 = vmatmul.bf16.gmra.mxu0 %v801
  %v2554 = vpop.f32.mrf.mxu0
  %v2555 = vadd.f32 %v2506, %v2554
  %v2556 = vpop.f32.mrf.mxu0
  %v2557 = vadd.f32 %v2508, %v2556
  %2558 = vmatmul.bf16.gmra.mxu0 %v817
  %v2559 = vpop.f32.mrf.mxu0
  %v2560 = vadd.f32 %v2511, %v2559
  %v2561 = vpop.f32.mrf.mxu0
  %v2562 = vadd.f32 %v2513, %v2561
  %2563 = vmatmul.bf16.gmra.mxu0 %v833
  %v2564 = vpop.f32.mrf.mxu0
  %v2565 = vadd.f32 %v2516, %v2564
  %v2566 = vpop.f32.mrf.mxu0
  %v2567 = vadd.f32 %v2518, %v2566
  %2568 = vmatmul.bf16.gmra.mxu0 %v849
  %v2569 = vpop.f32.mrf.mxu0
  %v2570 = vadd.f32 %v2521, %v2569
  %v2571 = vpop.f32.mrf.mxu0
  %v2572 = vadd.f32 %v2523, %v2571
  %2573 = vmatmul.bf16.gmra.mxu0 %v865
  %v2574 = vpop.f32.mrf.mxu0
  %v2575 = vadd.f32 %v2526, %v2574
  %v2576 = vpop.f32.mrf.mxu0
  %v2577 = vadd.f32 %v2528, %v2576
  %2578 = vmatmul.bf16.gmra.mxu0 %v881
  %v2579 = vpop.f32.mrf.mxu0
  %v2580 = vadd.f32 %v2531, %v2579
  %v2581 = vpop.f32.mrf.mxu0
  %v2582 = vadd.f32 %v2533, %v2581
  %2583 = vmatmul.bf16.gmra.mxu0 %v897
  %v2584 = vpop.f32.mrf.mxu0
  %v2585 = vadd.f32 %v2536, %v2584
  %v2586 = vpop.f32.mrf.mxu0
  %v2587 = vadd.f32 %v2538, %v2586
  %2588 = vmatmul.bf16.gmra.mxu0 %v913
  %v2589 = vpop.f32.mrf.mxu0
  %v2590 = vadd.f32 %v2541, %v2589
  %v2591 = vpop.f32.mrf.mxu0
  %v2592 = vadd.f32 %v2543, %v2591
  %2593 = vdwg.mxu0
  %v2594 = vmax.f32 %v2555, 0.0
  %v2595 = vmax.f32 %v2557, 0.0
  %v2596 = vmax.f32 %v2560, 0.0
  %v2597 = vmax.f32 %v2562, 0.0
  %v2598 = vmax.f32 %v2565, 0.0
  %v2599 = vmax.f32 %v2567, 0.0
  %v2600 = vmax.f32 %v2570, 0.0
  %v2601 = vmax.f32 %v2572, 0.0
  %v2602 = vmax.f32 %v2575, 0.0
  %v2603 = vmax.f32 %v2577, 0.0
  %v2604 = vmax.f32 %v2580, 0.0
  %v2605 = vmax.f32 %v2582, 0.0
  %v2606 = vmax.f32 %v2585, 0.0
  %v2607 = vmax.f32 %v2587, 0.0
  %v2608 = vmax.f32 %v2590, 0.0
  %v2609 = vmax.f32 %v2592, 0.0
  %v2610 = vpack.c.bf16 %v2594, %v2594
  %v2611 = vpack.c.bf16 %v2595, %v2595
  %v2612 = vpack.c.bf16 %v2596, %v2596
  %v2613 = vpack.c.bf16 %v2597, %v2597
  %v2614 = vpack.c.bf16 %v2598, %v2598
  %v2615 = vpack.c.bf16 %v2599, %v2599
  %v2616 = vpack.c.bf16 %v2600, %v2600
  %v2617 = vpack.c.bf16 %v2601, %v2601
  %v2618 = vpack.c.bf16 %v2602, %v2602
  %v2619 = vpack.c.bf16 %v2603, %v2603
  %v2620 = vpack.c.bf16 %v2604, %v2604
  %v2621 = vpack.c.bf16 %v2605, %v2605
  %v2622 = vpack.c.bf16 %v2606, %v2606
  %v2623 = vpack.c.bf16 %v2607, %v2607
  %v2624 = vpack.c.bf16 %v2608, %v2608
  %v2625 = vpack.c.bf16 %v2609, %v2609
  %2626 = vst [vmem:[%s3] sm:$0xf] %v2610
  %2627 = vst [vmem:[%s3 + $0x4] sm:$0xf] %v2611
  %2628 = vst [vmem:[%s3 + $0x8] sm:$0xf] %v2612
  %2629 = vst [vmem:[%s3 + $0xc] sm:$0xf] %v2613
  %2630 = vst [vmem:[%s3 + $0x10] sm:$0xf] %v2614
  %2631 = vst [vmem:[%s3 + $0x14] sm:$0xf] %v2615
  %2632 = vst [vmem:[%s3 + $0x18] sm:$0xf] %v2616
  %2633 = vst [vmem:[%s3 + $0x1c] sm:$0xf] %v2617
  %2634 = vst [vmem:[%s3 + $0x20] sm:$0xf] %v2618
  %2635 = vst [vmem:[%s3 + $0x24] sm:$0xf] %v2619
  %2636 = vst [vmem:[%s3 + $0x28] sm:$0xf] %v2620
  %2637 = vst [vmem:[%s3 + $0x2c] sm:$0xf] %v2621
  %2638 = vst [vmem:[%s3 + $0x30] sm:$0xf] %v2622
  %2639 = vst [vmem:[%s3 + $0x34] sm:$0xf] %v2623
  %2640 = vst [vmem:[%s3 + $0x38] sm:$0xf] %v2624
  %2641 = vst [vmem:[%s3 + $0x3c] sm:$0xf] %v2625
  // Predicated region
  $region14: #{_lambda_.7} parent=0 // pred_check
    _
  $region15: #{_lambda_.7} parent=0 // pred_check_branch
    %2643 = sbr.rel (0) target = $region17
  $region16: #{_lambda_.7} parent=0 // pred_region
    _
  $region17: #{_lambda_.7} parent=0 // pred_fallthru
    _
  // Predicated region
  $region18: #{_lambda_.7} parent=0 // pred_check
    _
  $region19: #{_lambda_.7} parent=0 // pred_check_branch
    %2645 = sbr.rel (0) target = $region21
  $region20: #{_lambda_.7} parent=0 // pred_region
    _
  $region21: #{_lambda_.7} parent=0 // pred_fallthru
    _

// kernel: _lambda_.8
$region0: #{_lambda_.8}
  #allocation0 [shape = 'u32[]', space=smem, size = 0x4, offset = 0x4, fixed_abs, tag = 'smem constant byte address 0x4 - core index']
  #allocation1 [shape = 'u32[72,128]{1,0:T(1,128)}', space=vmem, size = 0x9000, scoped, tag = 'internal scratch']
  %s0 = inlined_call_operand.vmem [shape: bf16[32,2048], index: 0, kind: input, shape index: {}]
  %s1 = inlined_call_operand.vmem [shape: bf16[2048,128], index: 1, kind: input, shape index: {}]
  %s2 = inlined_call_operand.vmem [shape: f32[1,128], index: 2, kind: input, shape index: {}]
  %s3 = inlined_call_operand.vmem [shape: bf16[32,128], index: 3, kind: output, shape index: {}]
  %s4 = sld [smem:[#allocation0]]
  $region22: #{_lambda_.8} parent=0
    _
  %s6 = ssub.s32 1, %s4
  %s7 = scalar_select 0, %s6, %s4
  // Predicated region
  $region2: #{_lambda_.8} parent=0 // pred_check
    _
  $region3: #{_lambda_.8} parent=0 // pred_check_branch
    %9 = sbr.rel (0) target = $region5
  $region4: #{_lambda_.8} parent=0 // pred_region
    _
  $region5: #{_lambda_.8} parent=0 // pred_fallthru
    _
  // Predicated region
  $region6: #{_lambda_.8} parent=0 // pred_check
    _
  $region7: #{_lambda_.8} parent=0 // pred_check_branch
    %11 = sbr.rel (0) target = $region9
  $region8: #{_lambda_.8} parent=0 // pred_region
    _
  $region9: #{_lambda_.8} parent=0 // pred_fallthru
    _
  // Predicated region
  $region10: #{_lambda_.8} parent=0 // pred_check
    _
  $region11: #{_lambda_.8} parent=0 // pred_check_branch
    %13 = sbr.rel (0) target = $region13
  $region12: #{_lambda_.8} parent=0 // pred_region
    _
  $region13: #{_lambda_.8} parent=0 // pred_fallthru
    _
  %v14 = vld [vmem:[%s0] sm:$0xff]
  %v15 = vld [vmem:[%s0 + $0x8] sm:$0xff]
  %v16 = vld [vmem:[%s0 + $0x10] sm:$0xff]
  %v17 = vld [vmem:[%s0 + $0x18] sm:$0xff]
  %v18 = vld [vmem:[%s0 + $0x20] sm:$0xff]
  %v19 = vld [vmem:[%s0 + $0x28] sm:$0xff]
  %v20 = vld [vmem:[%s0 + $0x30] sm:$0xff]
  %v21 = vld [vmem:[%s0 + $0x38] sm:$0xff]
  %v22 = vld [vmem:[%s0 + $0x40] sm:$0xff]
  %v23 = vld [vmem:[%s0 + $0x48] sm:$0xff]
  %v24 = vld [vmem:[%s0 + $0x50] sm:$0xff]
  %v25 = vld [vmem:[%s0 + $0x58] sm:$0xff]
  %v26 = vld [vmem:[%s0 + $0x60] sm:$0xff]
  %v27 = vld [vmem:[%s0 + $0x68] sm:$0xff]
  %v28 = vld [vmem:[%s0 + $0x70] sm:$0xff]
  %v29 = vld [vmem:[%s0 + $0x78] sm:$0xff]
  %v30 = vld [vmem:[%s0 + $0x80] sm:$0xff]
  %v31 = vld [vmem:[%s0 + $0x88] sm:$0xff]
  %v32 = vld [vmem:[%s0 + $0x90] sm:$0xff]
  %v33 = vld [vmem:[%s0 + $0x98] sm:$0xff]
  %v34 = vld [vmem:[%s0 + $0xa0] sm:$0xff]
  %v35 = vld [vmem:[%s0 + $0xa8] sm:$0xff]
  %v36 = vld [vmem:[%s0 + $0xb0] sm:$0xff]
  %v37 = vld [vmem:[%s0 + $0xb8] sm:$0xff]
  %v38 = vld [vmem:[%s0 + $0xc0] sm:$0xff]
  %v39 = vld [vmem:[%s0 + $0xc8] sm:$0xff]
  %v40 = vld [vmem:[%s0 + $0xd0] sm:$0xff]
  %v41 = vld [vmem:[%s0 + $0xd8] sm:$0xff]
  %v42 = vld [vmem:[%s0 + $0xe0] sm:$0xff]
  %v43 = vld [vmem:[%s0 + $0xe8] sm:$0xff]
  %v44 = vld [vmem:[%s0 + $0xf0] sm:$0xff]
  %v45 = vld [vmem:[%s0 + $0xf8] sm:$0xff]
  %v46 = vld [vmem:[%s1] sm:$0xf]
  %v47 = vld [vmem:[%s1 + $0x4] sm:$0xf]
  %v48 = vld [vmem:[%s1 + $0x8] sm:$0xf]
  %v49 = vld [vmem:[%s1 + $0xc] sm:$0xf]
  %v50 = vld [vmem:[%s1 + $0x10] sm:$0xf]
  %v51 = vld [vmem:[%s1 + $0x14] sm:$0xf]
  %v52 = vld [vmem:[%s1 + $0x18] sm:$0xf]
  %v53 = vld [vmem:[%s1 + $0x1c] sm:$0xf]
  %v54 = vld [vmem:[%s1 + $0x20] sm:$0xf]
  %v55 = vld [vmem:[%s1 + $0x24] sm:$0xf]
  %v56 = vld [vmem:[%s1 + $0x28] sm:$0xf]
  %v57 = vld [vmem:[%s1 + $0x2c] sm:$0xf]
  %v58 = vld [vmem:[%s1 + $0x30] sm:$0xf]
  %v59 = vld [vmem:[%s1 + $0x34] sm:$0xf]
  %v60 = vld [vmem:[%s1 + $0x38] sm:$0xf]
  %v61 = vld [vmem:[%s1 + $0x3c] sm:$0xf]
  %v62 = vld [vmem:[%s1 + $0x40] sm:$0xf]
  %v63 = vld [vmem:[%s1 + $0x44] sm:$0xf]
  %v64 = vld [vmem:[%s1 + $0x48] sm:$0xf]
  %v65 = vld [vmem:[%s1 + $0x4c] sm:$0xf]
  %v66 = vld [vmem:[%s1 + $0x50] sm:$0xf]
  %v67 = vld [vmem:[%s1 + $0x54] sm:$0xf]
  %v68 = vld [vmem:[%s1 + $0x58] sm:$0xf]
  %v69 = vld [vmem:[%s1 + $0x5c] sm:$0xf]
  %v70 = vld [vmem:[%s1 + $0x60] sm:$0xf]
  %v71 = vld [vmem:[%s1 + $0x64] sm:$0xf]
  %v72 = vld [vmem:[%s1 + $0x68] sm:$0xf]
  %v73 = vld [vmem:[%s1 + $0x6c] sm:$0xf]
  %v74 = vld [vmem:[%s1 + $0x70] sm:$0xf]
  %v75 = vld [vmem:[%s1 + $0x74] sm:$0xf]
  %v76 = vld [vmem:[%s1 + $0x78] sm:$0xf]
  %v77 = vld [vmem:[%s1 + $0x7c] sm:$0xf]
  %v78 = vld [vmem:[%s1 + $0x80] sm:$0xf]
  %v79 = vld [vmem:[%s1 + $0x84] sm:$0xf]
  %v80 = vld [vmem:[%s1 + $0x88] sm:$0xf]
  %v81 = vld [vmem:[%s1 + $0x8c] sm:$0xf]
  %v82 = vld [vmem:[%s1 + $0x90] sm:$0xf]
  %v83 = vld [vmem:[%s1 + $0x94] sm:$0xf]
  %v84 = vld [vmem:[%s1 + $0x98] sm:$0xf]
  %v85 = vld [vmem:[%s1 + $0x9c] sm:$0xf]
  %v86 = vld [vmem:[%s1 + $0xa0] sm:$0xf]
  %v87 = vld [vmem:[%s1 + $0xa4] sm:$0xf]
  %v88 = vld [vmem:[%s1 + $0xa8] sm:$0xf]
  %v89 = vld [vmem:[%s1 + $0xac] sm:$0xf]
  %v90 = vld [vmem:[%s1 + $0xb0] sm:$0xf]
  %v91 = vld [vmem:[%s1 + $0xb4] sm:$0xf]
  %v92 = vld [vmem:[%s1 + $0xb8] sm:$0xf]
  %v93 = vld [vmem:[%s1 + $0xbc] sm:$0xf]
  %v94 = vld [vmem:[%s1 + $0xc0] sm:$0xf]
  %v95 = vld [vmem:[%s1 + $0xc4] sm:$0xf]
  %v96 = vld [vmem:[%s1 + $0xc8] sm:$0xf]
  %v97 = vld [vmem:[%s1 + $0xcc] sm:$0xf]
  %v98 = vld [vmem:[%s1 + $0xd0] sm:$0xf]
  %v99 = vld [vmem:[%s1 + $0xd4] sm:$0xf]
  %v100 = vld [vmem:[%s1 + $0xd8] sm:$0xf]
  %v101 = vld [vmem:[%s1 + $0xdc] sm:$0xf]
  %v102 = vld [vmem:[%s1 + $0xe0] sm:$0xf]
  %v103 = vld [vmem:[%s1 + $0xe4] sm:$0xf]
  %v104 = vld [vmem:[%s1 + $0xe8] sm:$0xf]
  %v105 = vld [vmem:[%s1 + $0xec] sm:$0xf]
  %v106 = vld [vmem:[%s1 + $0xf0] sm:$0xf]
  %v107 = vld [vmem:[%s1 + $0xf4] sm:$0xf]
  %v108 = vld [vmem:[%s1 + $0xf8] sm:$0xf]
  %v109 = vld [vmem:[%s1 + $0xfc] sm:$0xf]
  %v110 = vld [vmem:[%s1 + $0x100] sm:$0xf]
  %v111 = vld [vmem:[%s1 + $0x104] sm:$0xf]
  %v112 = vld [vmem:[%s1 + $0x108] sm:$0xf]
  %v113 = vld [vmem:[%s1 + $0x10c] sm:$0xf]
  %v114 = vld [vmem:[%s1 + $0x110] sm:$0xf]
  %v115 = vld [vmem:[%s1 + $0x114] sm:$0xf]
  %v116 = vld [vmem:[%s1 + $0x118] sm:$0xf]
  %v117 = vld [vmem:[%s1 + $0x11c] sm:$0xf]
  %v118 = vld [vmem:[%s1 + $0x120] sm:$0xf]
  %v119 = vld [vmem:[%s1 + $0x124] sm:$0xf]
  %v120 = vld [vmem:[%s1 + $0x128] sm:$0xf]
  %v121 = vld [vmem:[%s1 + $0x12c] sm:$0xf]
  %v122 = vld [vmem:[%s1 + $0x130] sm:$0xf]
  %v123 = vld [vmem:[%s1 + $0x134] sm:$0xf]
  %v124 = vld [vmem:[%s1 + $0x138] sm:$0xf]
  %v125 = vld [vmem:[%s1 + $0x13c] sm:$0xf]
  %v126 = vld [vmem:[%s1 + $0x140] sm:$0xf]
  %v127 = vld [vmem:[%s1 + $0x144] sm:$0xf]
  %v128 = vld [vmem:[%s1 + $0x148] sm:$0xf]
  %v129 = vld [vmem:[%s1 + $0x14c] sm:$0xf]
  %v130 = vld [vmem:[%s1 + $0x150] sm:$0xf]
  %v131 = vld [vmem:[%s1 + $0x154] sm:$0xf]
  %v132 = vld [vmem:[%s1 + $0x158] sm:$0xf]
  %v133 = vld [vmem:[%s1 + $0x15c] sm:$0xf]
  %v134 = vld [vmem:[%s1 + $0x160] sm:$0xf]
  %v135 = vld [vmem:[%s1 + $0x164] sm:$0xf]
  %v136 = vld [vmem:[%s1 + $0x168] sm:$0xf]
  %v137 = vld [vmem:[%s1 + $0x16c] sm:$0xf]
  %v138 = vld [vmem:[%s1 + $0x170] sm:$0xf]
  %v139 = vld [vmem:[%s1 + $0x174] sm:$0xf]
  %v140 = vld [vmem:[%s1 + $0x178] sm:$0xf]
  %v141 = vld [vmem:[%s1 + $0x17c] sm:$0xf]
  %v142 = vld [vmem:[%s1 + $0x180] sm:$0xf]
  %v143 = vld [vmem:[%s1 + $0x184] sm:$0xf]
  %v144 = vld [vmem:[%s1 + $0x188] sm:$0xf]
  %v145 = vld [vmem:[%s1 + $0x18c] sm:$0xf]
  %v146 = vld [vmem:[%s1 + $0x190] sm:$0xf]
  %v147 = vld [vmem:[%s1 + $0x194] sm:$0xf]
  %v148 = vld [vmem:[%s1 + $0x198] sm:$0xf]
  %v149 = vld [vmem:[%s1 + $0x19c] sm:$0xf]
  %v150 = vld [vmem:[%s1 + $0x1a0] sm:$0xf]
  %v151 = vld [vmem:[%s1 + $0x1a4] sm:$0xf]
  %v152 = vld [vmem:[%s1 + $0x1a8] sm:$0xf]
  %v153 = vld [vmem:[%s1 + $0x1ac] sm:$0xf]
  %v154 = vld [vmem:[%s1 + $0x1b0] sm:$0xf]
  %v155 = vld [vmem:[%s1 + $0x1b4] sm:$0xf]
  %v156 = vld [vmem:[%s1 + $0x1b8] sm:$0xf]
  %v157 = vld [vmem:[%s1 + $0x1bc] sm:$0xf]
  %v158 = vld [vmem:[%s1 + $0x1c0] sm:$0xf]
  %v159 = vld [vmem:[%s1 + $0x1c4] sm:$0xf]
  %v160 = vld [vmem:[%s1 + $0x1c8] sm:$0xf]
  %v161 = vld [vmem:[%s1 + $0x1cc] sm:$0xf]
  %v162 = vld [vmem:[%s1 + $0x1d0] sm:$0xf]
  %v163 = vld [vmem:[%s1 + $0x1d4] sm:$0xf]
  %v164 = vld [vmem:[%s1 + $0x1d8] sm:$0xf]
  %v165 = vld [vmem:[%s1 + $0x1dc] sm:$0xf]
  %v166 = vld [vmem:[%s1 + $0x1e0] sm:$0xf]
  %v167 = vld [vmem:[%s1 + $0x1e4] sm:$0xf]
  %v168 = vld [vmem:[%s1 + $0x1e8] sm:$0xf]
  %v169 = vld [vmem:[%s1 + $0x1ec] sm:$0xf]
  %v170 = vld [vmem:[%s1 + $0x1f0] sm:$0xf]
  %v171 = vld [vmem:[%s1 + $0x1f4] sm:$0xf]
  %v172 = vld [vmem:[%s1 + $0x1f8] sm:$0xf]
  %v173 = vld [vmem:[%s1 + $0x1fc] sm:$0xf]
  %v174 = vld [vmem:[%s1 + $0x200] sm:$0xf]
  %v175 = vld [vmem:[%s1 + $0x204] sm:$0xf]
  %v176 = vld [vmem:[%s1 + $0x208] sm:$0xf]
  %v177 = vld [vmem:[%s1 + $0x20c] sm:$0xf]
  %v178 = vld [vmem:[%s1 + $0x210] sm:$0xf]
  %v179 = vld [vmem:[%s1 + $0x214] sm:$0xf]
  %v180 = vld [vmem:[%s1 + $0x218] sm:$0xf]
  %v181 = vld [vmem:[%s1 + $0x21c] sm:$0xf]
  %v182 = vld [vmem:[%s1 + $0x220] sm:$0xf]
  %v183 = vld [vmem:[%s1 + $0x224] sm:$0xf]
  %v184 = vld [vmem:[%s1 + $0x228] sm:$0xf]
  %v185 = vld [vmem:[%s1 + $0x22c] sm:$0xf]
  %v186 = vld [vmem:[%s1 + $0x230] sm:$0xf]
  %v187 = vld [vmem:[%s1 + $0x234] sm:$0xf]
  %v188 = vld [vmem:[%s1 + $0x238] sm:$0xf]
  %v189 = vld [vmem:[%s1 + $0x23c] sm:$0xf]
  %v190 = vld [vmem:[%s1 + $0x240] sm:$0xf]
  %v191 = vld [vmem:[%s1 + $0x244] sm:$0xf]
  %v192 = vld [vmem:[%s1 + $0x248] sm:$0xf]
  %v193 = vld [vmem:[%s1 + $0x24c] sm:$0xf]
  %v194 = vld [vmem:[%s1 + $0x250] sm:$0xf]
  %v195 = vld [vmem:[%s1 + $0x254] sm:$0xf]
  %v196 = vld [vmem:[%s1 + $0x258] sm:$0xf]
  %v197 = vld [vmem:[%s1 + $0x25c] sm:$0xf]
  %v198 = vld [vmem:[%s1 + $0x260] sm:$0xf]
  %v199 = vld [vmem:[%s1 + $0x264] sm:$0xf]
  %v200 = vld [vmem:[%s1 + $0x268] sm:$0xf]
  %v201 = vld [vmem:[%s1 + $0x26c] sm:$0xf]
  %v202 = vld [vmem:[%s1 + $0x270] sm:$0xf]
  %v203 = vld [vmem:[%s1 + $0x274] sm:$0xf]
  %v204 = vld [vmem:[%s1 + $0x278] sm:$0xf]
  %v205 = vld [vmem:[%s1 + $0x27c] sm:$0xf]
  %v206 = vld [vmem:[%s1 + $0x280] sm:$0xf]
  %v207 = vld [vmem:[%s1 + $0x284] sm:$0xf]
  %v208 = vld [vmem:[%s1 + $0x288] sm:$0xf]
  %v209 = vld [vmem:[%s1 + $0x28c] sm:$0xf]
  %v210 = vld [vmem:[%s1 + $0x290] sm:$0xf]
  %v211 = vld [vmem:[%s1 + $0x294] sm:$0xf]
  %v212 = vld [vmem:[%s1 + $0x298] sm:$0xf]
  %v213 = vld [vmem:[%s1 + $0x29c] sm:$0xf]
  %v214 = vld [vmem:[%s1 + $0x2a0] sm:$0xf]
  %v215 = vld [vmem:[%s1 + $0x2a4] sm:$0xf]
  %v216 = vld [vmem:[%s1 + $0x2a8] sm:$0xf]
  %v217 = vld [vmem:[%s1 + $0x2ac] sm:$0xf]
  %v218 = vld [vmem:[%s1 + $0x2b0] sm:$0xf]
  %v219 = vld [vmem:[%s1 + $0x2b4] sm:$0xf]
  %v220 = vld [vmem:[%s1 + $0x2b8] sm:$0xf]
  %v221 = vld [vmem:[%s1 + $0x2bc] sm:$0xf]
  %v222 = vld [vmem:[%s1 + $0x2c0] sm:$0xf]
  %v223 = vld [vmem:[%s1 + $0x2c4] sm:$0xf]
  %v224 = vld [vmem:[%s1 + $0x2c8] sm:$0xf]
  %v225 = vld [vmem:[%s1 + $0x2cc] sm:$0xf]
  %v226 = vld [vmem:[%s1 + $0x2d0] sm:$0xf]
  %v227 = vld [vmem:[%s1 + $0x2d4] sm:$0xf]
  %v228 = vld [vmem:[%s1 + $0x2d8] sm:$0xf]
  %v229 = vld [vmem:[%s1 + $0x2dc] sm:$0xf]
  %v230 = vld [vmem:[%s1 + $0x2e0] sm:$0xf]
  %v231 = vld [vmem:[%s1 + $0x2e4] sm:$0xf]
  %v232 = vld [vmem:[%s1 + $0x2e8] sm:$0xf]
  %v233 = vld [vmem:[%s1 + $0x2ec] sm:$0xf]
  %v234 = vld [vmem:[%s1 + $0x2f0] sm:$0xf]
  %v235 = vld [vmem:[%s1 + $0x2f4] sm:$0xf]
  %v236 = vld [vmem:[%s1 + $0x2f8] sm:$0xf]
  %v237 = vld [vmem:[%s1 + $0x2fc] sm:$0xf]
  %v238 = vld [vmem:[%s1 + $0x300] sm:$0xf]
  %v239 = vld [vmem:[%s1 + $0x304] sm:$0xf]
  %v240 = vld [vmem:[%s1 + $0x308] sm:$0xf]
  %v241 = vld [vmem:[%s1 + $0x30c] sm:$0xf]
  %v242 = vld [vmem:[%s1 + $0x310] sm:$0xf]
  %v243 = vld [vmem:[%s1 + $0x314] sm:$0xf]
  %v244 = vld [vmem:[%s1 + $0x318] sm:$0xf]
  %v245 = vld [vmem:[%s1 + $0x31c] sm:$0xf]
  %v246 = vld [vmem:[%s1 + $0x320] sm:$0xf]
  %v247 = vld [vmem:[%s1 + $0x324] sm:$0xf]
  %v248 = vld [vmem:[%s1 + $0x328] sm:$0xf]
  %v249 = vld [vmem:[%s1 + $0x32c] sm:$0xf]
  %v250 = vld [vmem:[%s1 + $0x330] sm:$0xf]
  %v251 = vld [vmem:[%s1 + $0x334] sm:$0xf]
  %v252 = vld [vmem:[%s1 + $0x338] sm:$0xf]
  %v253 = vld [vmem:[%s1 + $0x33c] sm:$0xf]
  %v254 = vld [vmem:[%s1 + $0x340] sm:$0xf]
  %v255 = vld [vmem:[%s1 + $0x344] sm:$0xf]
  %v256 = vld [vmem:[%s1 + $0x348] sm:$0xf]
  %v257 = vld [vmem:[%s1 + $0x34c] sm:$0xf]
  %v258 = vld [vmem:[%s1 + $0x350] sm:$0xf]
  %v259 = vld [vmem:[%s1 + $0x354] sm:$0xf]
  %v260 = vld [vmem:[%s1 + $0x358] sm:$0xf]
  %v261 = vld [vmem:[%s1 + $0x35c] sm:$0xf]
  %v262 = vld [vmem:[%s1 + $0x360] sm:$0xf]
  %v263 = vld [vmem:[%s1 + $0x364] sm:$0xf]
  %v264 = vld [vmem:[%s1 + $0x368] sm:$0xf]
  %v265 = vld [vmem:[%s1 + $0x36c] sm:$0xf]
  %v266 = vld [vmem:[%s1 + $0x370] sm:$0xf]
  %v267 = vld [vmem:[%s1 + $0x374] sm:$0xf]
  %v268 = vld [vmem:[%s1 + $0x378] sm:$0xf]
  %v269 = vld [vmem:[%s1 + $0x37c] sm:$0xf]
  %v270 = vld [vmem:[%s1 + $0x380] sm:$0xf]
  %v271 = vld [vmem:[%s1 + $0x384] sm:$0xf]
  %v272 = vld [vmem:[%s1 + $0x388] sm:$0xf]
  %v273 = vld [vmem:[%s1 + $0x38c] sm:$0xf]
  %v274 = vld [vmem:[%s1 + $0x390] sm:$0xf]
  %v275 = vld [vmem:[%s1 + $0x394] sm:$0xf]
  %v276 = vld [vmem:[%s1 + $0x398] sm:$0xf]
  %v277 = vld [vmem:[%s1 + $0x39c] sm:$0xf]
  %v278 = vld [vmem:[%s1 + $0x3a0] sm:$0xf]
  %v279 = vld [vmem:[%s1 + $0x3a4] sm:$0xf]
  %v280 = vld [vmem:[%s1 + $0x3a8] sm:$0xf]
  %v281 = vld [vmem:[%s1 + $0x3ac] sm:$0xf]
  %v282 = vld [vmem:[%s1 + $0x3b0] sm:$0xf]
  %v283 = vld [vmem:[%s1 + $0x3b4] sm:$0xf]
  %v284 = vld [vmem:[%s1 + $0x3b8] sm:$0xf]
  %v285 = vld [vmem:[%s1 + $0x3bc] sm:$0xf]
  %v286 = vld [vmem:[%s1 + $0x3c0] sm:$0xf]
  %v287 = vld [vmem:[%s1 + $0x3c4] sm:$0xf]
  %v288 = vld [vmem:[%s1 + $0x3c8] sm:$0xf]
  %v289 = vld [vmem:[%s1 + $0x3cc] sm:$0xf]
  %v290 = vld [vmem:[%s1 + $0x3d0] sm:$0xf]
  %v291 = vld [vmem:[%s1 + $0x3d4] sm:$0xf]
  %v292 = vld [vmem:[%s1 + $0x3d8] sm:$0xf]
  %v293 = vld [vmem:[%s1 + $0x3dc] sm:$0xf]
  %v294 = vld [vmem:[%s1 + $0x3e0] sm:$0xf]
  %v295 = vld [vmem:[%s1 + $0x3e4] sm:$0xf]
  %v296 = vld [vmem:[%s1 + $0x3e8] sm:$0xf]
  %v297 = vld [vmem:[%s1 + $0x3ec] sm:$0xf]
  %v298 = vld [vmem:[%s1 + $0x3f0] sm:$0xf]
  %v299 = vld [vmem:[%s1 + $0x3f4] sm:$0xf]
  %v300 = vld [vmem:[%s1 + $0x3f8] sm:$0xf]
  %v301 = vld [vmem:[%s1 + $0x3fc] sm:$0xf]
  %v302 = vld [vmem:[%s2] sm:$0x1]
  %v304 = vperm.slane %v302, 0
  %v338 = vunpack.c.l.b16 %v14
  %v339 = vunpack.c.h.b16 %v14
  %v340 = vunpack.c.l.b16 %v15
  %v341 = vunpack.c.h.b16 %v15
  %v342 = vunpack.c.l.b16 %v16
  %v343 = vunpack.c.h.b16 %v16
  %v344 = vunpack.c.l.b16 %v17
  %v345 = vunpack.c.h.b16 %v17
  %v346 = vunpack.c.l.b16 %v18
  %v347 = vunpack.c.h.b16 %v18
  %v348 = vunpack.c.l.b16 %v19
  %v349 = vunpack.c.h.b16 %v19
  %v350 = vunpack.c.l.b16 %v20
  %v351 = vunpack.c.h.b16 %v20
  %v352 = vunpack.c.l.b16 %v21
  %v353 = vunpack.c.h.b16 %v21
  %v354 = vunpack.c.l.b16 %v22
  %v355 = vunpack.c.h.b16 %v22
  %v356 = vunpack.c.l.b16 %v23
  %v357 = vunpack.c.h.b16 %v23
  %v358 = vunpack.c.l.b16 %v24
  %v359 = vunpack.c.h.b16 %v24
  %v360 = vunpack.c.l.b16 %v25
  %v361 = vunpack.c.h.b16 %v25
  %v362 = vunpack.c.l.b16 %v26
  %v363 = vunpack.c.h.b16 %v26
  %v364 = vunpack.c.l.b16 %v27
  %v365 = vunpack.c.h.b16 %v27
  %v366 = vunpack.c.l.b16 %v28
  %v367 = vunpack.c.h.b16 %v28
  %v368 = vunpack.c.l.b16 %v29
  %v369 = vunpack.c.h.b16 %v29
  %v370 = vunpack.c.l.b16 %v30
  %v371 = vunpack.c.h.b16 %v30
  %v372 = vunpack.c.l.b16 %v31
  %v373 = vunpack.c.h.b16 %v31
  %v374 = vunpack.c.l.b16 %v32
  %v375 = vunpack.c.h.b16 %v32
  %v376 = vunpack.c.l.b16 %v33
  %v377 = vunpack.c.h.b16 %v33
  %v378 = vunpack.c.l.b16 %v34
  %v379 = vunpack.c.h.b16 %v34
  %v380 = vunpack.c.l.b16 %v35
  %v381 = vunpack.c.h.b16 %v35
  %v382 = vunpack.c.l.b16 %v36
  %v383 = vunpack.c.h.b16 %v36
  %v384 = vunpack.c.l.b16 %v37
  %v385 = vunpack.c.h.b16 %v37
  %v386 = vunpack.c.l.b16 %v38
  %v387 = vunpack.c.h.b16 %v38
  %v388 = vunpack.c.l.b16 %v39
  %v389 = vunpack.c.h.b16 %v39
  %v390 = vunpack.c.l.b16 %v40
  %v391 = vunpack.c.h.b16 %v40
  %v392 = vunpack.c.l.b16 %v41
  %v393 = vunpack.c.h.b16 %v41
  %v394 = vunpack.c.l.b16 %v42
  %v395 = vunpack.c.h.b16 %v42
  %v396 = vunpack.c.l.b16 %v43
  %v397 = vunpack.c.h.b16 %v43
  %v398 = vunpack.c.l.b16 %v44
  %v399 = vunpack.c.h.b16 %v44
  %v400 = vunpack.c.l.b16 %v45
  %v401 = vunpack.c.h.b16 %v45
  %v402 = vpack.c.b16 %v354, %v338
  %v403 = vpack.c.b16 %v355, %v339
  %v404 = vpack.c.b16 %v356, %v340
  %v405 = vpack.c.b16 %v357, %v341
  %v406 = vpack.c.b16 %v358, %v342
  %v407 = vpack.c.b16 %v359, %v343
  %v408 = vpack.c.b16 %v360, %v344
  %v409 = vpack.c.b16 %v361, %v345
  %v410 = vpack.c.b16 %v362, %v346
  %v411 = vpack.c.b16 %v363, %v347
  %v412 = vpack.c.b16 %v364, %v348
  %v413 = vpack.c.b16 %v365, %v349
  %v414 = vpack.c.b16 %v366, %v350
  %v415 = vpack.c.b16 %v367, %v351
  %v416 = vpack.c.b16 %v368, %v352
  %v417 = vpack.c.b16 %v369, %v353
  %v418 = vpack.c.b16 %v386, %v370
  %v419 = vpack.c.b16 %v387, %v371
  %v420 = vpack.c.b16 %v388, %v372
  %v421 = vpack.c.b16 %v389, %v373
  %v422 = vpack.c.b16 %v390, %v374
  %v423 = vpack.c.b16 %v391, %v375
  %v424 = vpack.c.b16 %v392, %v376
  %v425 = vpack.c.b16 %v393, %v377
  %v426 = vpack.c.b16 %v394, %v378
  %v427 = vpack.c.b16 %v395, %v379
  %v428 = vpack.c.b16 %v396, %v380
  %v429 = vpack.c.b16 %v397, %v381
  %v430 = vpack.c.b16 %v398, %v382
  %v431 = vpack.c.b16 %v399, %v383
  %v432 = vpack.c.b16 %v400, %v384
  %v433 = vpack.c.b16 %v401, %v385
  %v722 = vunpack.c.l.b16 %v46
  %v723 = vunpack.c.l.b16 %v47
  %v724 = vunpack.c.l.b16 %v48
  %v725 = vunpack.c.l.b16 %v49
  %v726 = vunpack.c.l.b16 %v50
  %v727 = vunpack.c.l.b16 %v51
  %v728 = vunpack.c.l.b16 %v52
  %v729 = vunpack.c.l.b16 %v53
  %v730 = vunpack.c.l.b16 %v54
  %v731 = vunpack.c.l.b16 %v55
  %v732 = vunpack.c.l.b16 %v56
  %v733 = vunpack.c.l.b16 %v57
  %v734 = vunpack.c.l.b16 %v58
  %v735 = vunpack.c.l.b16 %v59
  %v736 = vunpack.c.l.b16 %v60
  %v737 = vunpack.c.l.b16 %v61
  %v738 = vunpack.c.l.b16 %v62
  %v739 = vunpack.c.l.b16 %v63
  %v740 = vunpack.c.l.b16 %v64
  %v741 = vunpack.c.l.b16 %v65
  %v742 = vunpack.c.l.b16 %v66
  %v743 = vunpack.c.l.b16 %v67
  %v744 = vunpack.c.l.b16 %v68
  %v745 = vunpack.c.l.b16 %v69
  %v746 = vunpack.c.l.b16 %v70
  %v747 = vunpack.c.l.b16 %v71
  %v748 = vunpack.c.l.b16 %v72
  %v749 = vunpack.c.l.b16 %v73
  %v750 = vunpack.c.l.b16 %v74
  %v751 = vunpack.c.l.b16 %v75
  %v752 = vunpack.c.l.b16 %v76
  %v753 = vunpack.c.l.b16 %v77
  %v754 = vunpack.c.l.b16 %v78
  %v755 = vunpack.c.l.b16 %v79
  %v756 = vunpack.c.l.b16 %v80
  %v757 = vunpack.c.l.b16 %v81
  %v758 = vunpack.c.l.b16 %v82
  %v759 = vunpack.c.l.b16 %v83
  %v760 = vunpack.c.l.b16 %v84
  %v761 = vunpack.c.l.b16 %v85
  %v762 = vunpack.c.l.b16 %v86
  %v763 = vunpack.c.l.b16 %v87
  %v764 = vunpack.c.l.b16 %v88
  %v765 = vunpack.c.l.b16 %v89
  %v766 = vunpack.c.l.b16 %v90
  %v767 = vunpack.c.l.b16 %v91
  %v768 = vunpack.c.l.b16 %v92
  %v769 = vunpack.c.l.b16 %v93
  %v770 = vunpack.c.l.b16 %v94
  %v771 = vunpack.c.l.b16 %v95
  %v772 = vunpack.c.l.b16 %v96
  %v773 = vunpack.c.l.b16 %v97
  %v774 = vunpack.c.l.b16 %v98
  %v775 = vunpack.c.l.b16 %v99
  %v776 = vunpack.c.l.b16 %v100
  %v777 = vunpack.c.l.b16 %v101
  %v778 = vunpack.c.l.b16 %v102
  %v779 = vunpack.c.l.b16 %v103
  %v780 = vunpack.c.l.b16 %v104
  %v781 = vunpack.c.l.b16 %v105
  %v782 = vunpack.c.l.b16 %v106
  %v783 = vunpack.c.l.b16 %v107
  %v784 = vunpack.c.l.b16 %v108
  %v785 = vunpack.c.l.b16 %v109
  %v786 = vunpack.c.l.b16 %v110
  %v787 = vunpack.c.l.b16 %v111
  %v788 = vunpack.c.l.b16 %v112
  %v789 = vunpack.c.l.b16 %v113
  %v790 = vunpack.c.l.b16 %v114
  %v791 = vunpack.c.l.b16 %v115
  %v792 = vunpack.c.l.b16 %v116
  %v793 = vunpack.c.l.b16 %v117
  %v794 = vunpack.c.l.b16 %v118
  %v795 = vunpack.c.l.b16 %v119
  %v796 = vunpack.c.l.b16 %v120
  %v797 = vunpack.c.l.b16 %v121
  %v798 = vunpack.c.l.b16 %v122
  %v799 = vunpack.c.l.b16 %v123
  %v800 = vunpack.c.l.b16 %v124
  %v801 = vunpack.c.l.b16 %v125
  %v802 = vunpack.c.l.b16 %v126
  %v803 = vunpack.c.l.b16 %v127
  %v804 = vunpack.c.l.b16 %v128
  %v805 = vunpack.c.l.b16 %v129
  %v806 = vunpack.c.l.b16 %v130
  %v807 = vunpack.c.l.b16 %v131
  %v808 = vunpack.c.l.b16 %v132
  %v809 = vunpack.c.l.b16 %v133
  %v810 = vunpack.c.l.b16 %v134
  %v811 = vunpack.c.l.b16 %v135
  %v812 = vunpack.c.l.b16 %v136
  %v813 = vunpack.c.l.b16 %v137
  %v814 = vunpack.c.l.b16 %v138
  %v815 = vunpack.c.l.b16 %v139
  %v816 = vunpack.c.l.b16 %v140
  %v817 = vunpack.c.l.b16 %v141
  %v818 = vunpack.c.l.b16 %v142
  %v819 = vunpack.c.l.b16 %v143
  %v820 = vunpack.c.l.b16 %v144
  %v821 = vunpack.c.l.b16 %v145
  %v822 = vunpack.c.l.b16 %v146
  %v823 = vunpack.c.l.b16 %v147
  %v824 = vunpack.c.l.b16 %v148
  %v825 = vunpack.c.l.b16 %v149
  %v826 = vunpack.c.l.b16 %v150
  %v827 = vunpack.c.l.b16 %v151
  %v828 = vunpack.c.l.b16 %v152
  %v829 = vunpack.c.l.b16 %v153
  %v830 = vunpack.c.l.b16 %v154
  %v831 = vunpack.c.l.b16 %v155
  %v832 = vunpack.c.l.b16 %v156
  %v833 = vunpack.c.l.b16 %v157
  %v834 = vunpack.c.l.b16 %v158
  %v835 = vunpack.c.l.b16 %v159
  %v836 = vunpack.c.l.b16 %v160
  %v837 = vunpack.c.l.b16 %v161
  %v838 = vunpack.c.l.b16 %v162
  %v839 = vunpack.c.l.b16 %v163
  %v840 = vunpack.c.l.b16 %v164
  %v841 = vunpack.c.l.b16 %v165
  %v842 = vunpack.c.l.b16 %v166
  %v843 = vunpack.c.l.b16 %v167
  %v844 = vunpack.c.l.b16 %v168
  %v845 = vunpack.c.l.b16 %v169
  %v846 = vunpack.c.l.b16 %v170
  %v847 = vunpack.c.l.b16 %v171
  %v848 = vunpack.c.l.b16 %v172
  %v849 = vunpack.c.l.b16 %v173
  %v850 = vunpack.c.l.b16 %v174
  %v851 = vunpack.c.l.b16 %v175
  %v852 = vunpack.c.l.b16 %v176
  %v853 = vunpack.c.l.b16 %v177
  %v854 = vunpack.c.l.b16 %v178
  %v855 = vunpack.c.l.b16 %v179
  %v856 = vunpack.c.l.b16 %v180
  %v857 = vunpack.c.l.b16 %v181
  %v858 = vunpack.c.l.b16 %v182
  %v859 = vunpack.c.l.b16 %v183
  %v860 = vunpack.c.l.b16 %v184
  %v861 = vunpack.c.l.b16 %v185
  %v862 = vunpack.c.l.b16 %v186
  %v863 = vunpack.c.l.b16 %v187
  %v864 = vunpack.c.l.b16 %v188
  %v865 = vunpack.c.l.b16 %v189
  %v866 = vunpack.c.l.b16 %v190
  %v867 = vunpack.c.l.b16 %v191
  %v868 = vunpack.c.l.b16 %v192
  %v869 = vunpack.c.l.b16 %v193
  %v870 = vunpack.c.l.b16 %v194
  %v871 = vunpack.c.l.b16 %v195
  %v872 = vunpack.c.l.b16 %v196
  %v873 = vunpack.c.l.b16 %v197
  %v874 = vunpack.c.l.b16 %v198
  %v875 = vunpack.c.l.b16 %v199
  %v876 = vunpack.c.l.b16 %v200
  %v877 = vunpack.c.l.b16 %v201
  %v878 = vunpack.c.l.b16 %v202
  %v879 = vunpack.c.l.b16 %v203
  %v880 = vunpack.c.l.b16 %v204
  %v881 = vunpack.c.l.b16 %v205
  %v882 = vunpack.c.l.b16 %v206
  %v883 = vunpack.c.l.b16 %v207
  %v884 = vunpack.c.l.b16 %v208
  %v885 = vunpack.c.l.b16 %v209
  %v886 = vunpack.c.l.b16 %v210
  %v887 = vunpack.c.l.b16 %v211
  %v888 = vunpack.c.l.b16 %v212
  %v889 = vunpack.c.l.b16 %v213
  %v890 = vunpack.c.l.b16 %v214
  %v891 = vunpack.c.l.b16 %v215
  %v892 = vunpack.c.l.b16 %v216
  %v893 = vunpack.c.l.b16 %v217
  %v894 = vunpack.c.l.b16 %v218
  %v895 = vunpack.c.l.b16 %v219
  %v896 = vunpack.c.l.b16 %v220
  %v897 = vunpack.c.l.b16 %v221
  %v898 = vunpack.c.l.b16 %v222
  %v899 = vunpack.c.l.b16 %v223
  %v900 = vunpack.c.l.b16 %v224
  %v901 = vunpack.c.l.b16 %v225
  %v902 = vunpack.c.l.b16 %v226
  %v903 = vunpack.c.l.b16 %v227
  %v904 = vunpack.c.l.b16 %v228
  %v905 = vunpack.c.l.b16 %v229
  %v906 = vunpack.c.l.b16 %v230
  %v907 = vunpack.c.l.b16 %v231
  %v908 = vunpack.c.l.b16 %v232
  %v909 = vunpack.c.l.b16 %v233
  %v910 = vunpack.c.l.b16 %v234
  %v911 = vunpack.c.l.b16 %v235
  %v912 = vunpack.c.l.b16 %v236
  %v913 = vunpack.c.l.b16 %v237
  %v914 = vunpack.c.l.b16 %v238
  %v915 = vunpack.c.l.b16 %v239
  %v916 = vunpack.c.l.b16 %v240
  %v917 = vunpack.c.l.b16 %v241
  %v918 = vunpack.c.l.b16 %v242
  %v919 = vunpack.c.l.b16 %v243
  %v920 = vunpack.c.l.b16 %v244
  %v921 = vunpack.c.l.b16 %v245
  %v922 = vunpack.c.l.b16 %v246
  %v923 = vunpack.c.l.b16 %v247
  %v924 = vunpack.c.l.b16 %v248
  %v925 = vunpack.c.l.b16 %v249
  %v926 = vunpack.c.l.b16 %v250
  %v927 = vunpack.c.l.b16 %v251
  %v928 = vunpack.c.l.b16 %v252
  %v929 = vunpack.c.l.b16 %v253
  %v930 = vunpack.c.l.b16 %v254
  %v931 = vunpack.c.l.b16 %v255
  %v932 = vunpack.c.l.b16 %v256
  %v933 = vunpack.c.l.b16 %v257
  %v934 = vunpack.c.l.b16 %v258
  %v935 = vunpack.c.l.b16 %v259
  %v936 = vunpack.c.l.b16 %v260
  %v937 = vunpack.c.l.b16 %v261
  %v938 = vunpack.c.l.b16 %v262
  %v939 = vunpack.c.l.b16 %v263
  %v940 = vunpack.c.l.b16 %v264
  %v941 = vunpack.c.l.b16 %v265
  %v942 = vunpack.c.l.b16 %v266
  %v943 = vunpack.c.l.b16 %v267
  %v944 = vunpack.c.l.b16 %v268
  %v945 = vunpack.c.l.b16 %v269
  %v946 = vunpack.c.l.b16 %v270
  %v947 = vunpack.c.l.b16 %v271
  %v948 = vunpack.c.l.b16 %v272
  %v949 = vunpack.c.l.b16 %v273
  %v950 = vunpack.c.l.b16 %v274
  %v951 = vunpack.c.l.b16 %v275
  %v952 = vunpack.c.l.b16 %v276
  %v953 = vunpack.c.l.b16 %v277
  %v954 = vunpack.c.l.b16 %v278
  %v955 = vunpack.c.l.b16 %v279
  %v956 = vunpack.c.l.b16 %v280
  %v957 = vunpack.c.l.b16 %v281
  %v958 = vunpack.c.l.b16 %v282
  %v959 = vunpack.c.l.b16 %v283
  %v960 = vunpack.c.l.b16 %v284
  %v961 = vunpack.c.l.b16 %v285
  %v962 = vunpack.c.l.b16 %v286
  %v963 = vunpack.c.l.b16 %v287
  %v964 = vunpack.c.l.b16 %v288
  %v965 = vunpack.c.l.b16 %v289
  %v966 = vunpack.c.l.b16 %v290
  %v967 = vunpack.c.l.b16 %v291
  %v968 = vunpack.c.l.b16 %v292
  %v969 = vunpack.c.l.b16 %v293
  %v970 = vunpack.c.l.b16 %v294
  %v971 = vunpack.c.l.b16 %v295
  %v972 = vunpack.c.l.b16 %v296
  %v973 = vunpack.c.l.b16 %v297
  %v974 = vunpack.c.l.b16 %v298
  %v975 = vunpack.c.l.b16 %v299
  %v976 = vunpack.c.l.b16 %v300
  %v977 = vunpack.c.l.b16 %v301
  %v978 = vpack.c.b16 %v723, %v722
  %v979 = vpack.c.b16 %v725, %v724
  %v980 = vpack.c.b16 %v727, %v726
  %v981 = vpack.c.b16 %v729, %v728
  %v982 = vpack.c.b16 %v731, %v730
  %v983 = vpack.c.b16 %v733, %v732
  %v984 = vpack.c.b16 %v735, %v734
  %v985 = vpack.c.b16 %v737, %v736
  %v986 = vpack.c.b16 %v739, %v738
  %v987 = vpack.c.b16 %v741, %v740
  %v988 = vpack.c.b16 %v743, %v742
  %v989 = vpack.c.b16 %v745, %v744
  %v990 = vpack.c.b16 %v747, %v746
  %v991 = vpack.c.b16 %v749, %v748
  %v992 = vpack.c.b16 %v751, %v750
  %v993 = vpack.c.b16 %v753, %v752
  %v994 = vpack.c.b16 %v755, %v754
  %v995 = vpack.c.b16 %v757, %v756
  %v996 = vpack.c.b16 %v759, %v758
  %v997 = vpack.c.b16 %v761, %v760
  %v998 = vpack.c.b16 %v763, %v762
  %v999 = vpack.c.b16 %v765, %v764
  %v1000 = vpack.c.b16 %v767, %v766
  %v1001 = vpack.c.b16 %v769, %v768
  %v1002 = vpack.c.b16 %v771, %v770
  %v1003 = vpack.c.b16 %v773, %v772
  %v1004 = vpack.c.b16 %v775, %v774
  %v1005 = vpack.c.b16 %v777, %v776
  %v1006 = vpack.c.b16 %v779, %v778
  %v1007 = vpack.c.b16 %v781, %v780
  %v1008 = vpack.c.b16 %v783, %v782
  %v1009 = vpack.c.b16 %v785, %v784
  %v1010 = vpack.c.b16 %v787, %v786
  %v1011 = vpack.c.b16 %v789, %v788
  %v1012 = vpack.c.b16 %v791, %v790
  %v1013 = vpack.c.b16 %v793, %v792
  %v1014 = vpack.c.b16 %v795, %v794
  %v1015 = vpack.c.b16 %v797, %v796
  %v1016 = vpack.c.b16 %v799, %v798
  %v1017 = vpack.c.b16 %v801, %v800
  %v1018 = vpack.c.b16 %v803, %v802
  %v1019 = vpack.c.b16 %v805, %v804
  %v1020 = vpack.c.b16 %v807, %v806
  %v1021 = vpack.c.b16 %v809, %v808
  %v1022 = vpack.c.b16 %v811, %v810
  %v1023 = vpack.c.b16 %v813, %v812
  %v1024 = vpack.c.b16 %v815, %v814
  %v1025 = vpack.c.b16 %v817, %v816
  %v1026 = vpack.c.b16 %v819, %v818
  %v1027 = vpack.c.b16 %v821, %v820
  %v1028 = vpack.c.b16 %v823, %v822
  %v1029 = vpack.c.b16 %v825, %v824
  %v1030 = vpack.c.b16 %v827, %v826
  %v1031 = vpack.c.b16 %v829, %v828
  %v1032 = vpack.c.b16 %v831, %v830
  %v1033 = vpack.c.b16 %v833, %v832
  %v1034 = vpack.c.b16 %v835, %v834
  %v1035 = vpack.c.b16 %v837, %v836
  %v1036 = vpack.c.b16 %v839, %v838
  %v1037 = vpack.c.b16 %v841, %v840
  %v1038 = vpack.c.b16 %v843, %v842
  %v1039 = vpack.c.b16 %v845, %v844
  %v1040 = vpack.c.b16 %v847, %v846
  %v1041 = vpack.c.b16 %v849, %v848
  %v1042 = vpack.c.b16 %v851, %v850
  %v1043 = vpack.c.b16 %v853, %v852
  %v1044 = vpack.c.b16 %v855, %v854
  %v1045 = vpack.c.b16 %v857, %v856
  %v1046 = vpack.c.b16 %v859, %v858
  %v1047 = vpack.c.b16 %v861, %v860
  %v1048 = vpack.c.b16 %v863, %v862
  %v1049 = vpack.c.b16 %v865, %v864
  %v1050 = vpack.c.b16 %v867, %v866
  %v1051 = vpack.c.b16 %v869, %v868
  %v1052 = vpack.c.b16 %v871, %v870
  %v1053 = vpack.c.b16 %v873, %v872
  %v1054 = vpack.c.b16 %v875, %v874
  %v1055 = vpack.c.b16 %v877, %v876
  %v1056 = vpack.c.b16 %v879, %v878
  %v1057 = vpack.c.b16 %v881, %v880
  %v1058 = vpack.c.b16 %v883, %v882
  %v1059 = vpack.c.b16 %v885, %v884
  %v1060 = vpack.c.b16 %v887, %v886
  %v1061 = vpack.c.b16 %v889, %v888
  %v1062 = vpack.c.b16 %v891, %v890
  %v1063 = vpack.c.b16 %v893, %v892
  %v1064 = vpack.c.b16 %v895, %v894
  %v1065 = vpack.c.b16 %v897, %v896
  %v1066 = vpack.c.b16 %v899, %v898
  %v1067 = vpack.c.b16 %v901, %v900
  %v1068 = vpack.c.b16 %v903, %v902
  %v1069 = vpack.c.b16 %v905, %v904
  %v1070 = vpack.c.b16 %v907, %v906
  %v1071 = vpack.c.b16 %v909, %v908
  %v1072 = vpack.c.b16 %v911, %v910
  %v1073 = vpack.c.b16 %v913, %v912
  %v1074 = vpack.c.b16 %v915, %v914
  %v1075 = vpack.c.b16 %v917, %v916
  %v1076 = vpack.c.b16 %v919, %v918
  %v1077 = vpack.c.b16 %v921, %v920
  %v1078 = vpack.c.b16 %v923, %v922
  %v1079 = vpack.c.b16 %v925, %v924
  %v1080 = vpack.c.b16 %v927, %v926
  %v1081 = vpack.c.b16 %v929, %v928
  %v1082 = vpack.c.b16 %v931, %v930
  %v1083 = vpack.c.b16 %v933, %v932
  %v1084 = vpack.c.b16 %v935, %v934
  %v1085 = vpack.c.b16 %v937, %v936
  %v1086 = vpack.c.b16 %v939, %v938
  %v1087 = vpack.c.b16 %v941, %v940
  %v1088 = vpack.c.b16 %v943, %v942
  %v1089 = vpack.c.b16 %v945, %v944
  %v1090 = vpack.c.b16 %v947, %v946
  %v1091 = vpack.c.b16 %v949, %v948
  %v1092 = vpack.c.b16 %v951, %v950
  %v1093 = vpack.c.b16 %v953, %v952
  %v1094 = vpack.c.b16 %v955, %v954
  %v1095 = vpack.c.b16 %v957, %v956
  %v1096 = vpack.c.b16 %v959, %v958
  %v1097 = vpack.c.b16 %v961, %v960
  %v1098 = vpack.c.b16 %v963, %v962
  %v1099 = vpack.c.b16 %v965, %v964
  %v1100 = vpack.c.b16 %v967, %v966
  %v1101 = vpack.c.b16 %v969, %v968
  %v1102 = vpack.c.b16 %v971, %v970
  %v1103 = vpack.c.b16 %v973, %v972
  %v1104 = vpack.c.b16 %v975, %v974
  %v1105 = vpack.c.b16 %v977, %v976
  %1234 = vmatpush.bf16.msra.mxu0 %v985
  %1235 = vmatpush.bf16.msra.mxu0 %v984
  %1236 = vmatpush.bf16.msra.mxu0 %v983
  %1237 = vmatpush.bf16.msra.mxu0 %v982
  %1238 = vmatpush.bf16.msra.mxu0 %v981
  %1239 = vmatpush.bf16.msra.mxu0 %v980
  %1240 = vmatpush.bf16.msra.mxu0 %v979
  %1241 = vmatpush.bf16.msra.mxu0 %v978
  %1242 = vmatmul.bf16.gmra.mxu0 %v402
  %v1243 = vpop.f32.mrf.mxu0
  %v1244 = vadd.f32 %v304, %v1243
  %v1245 = vpop.f32.mrf.mxu0
  %v1246 = vadd.f32 %v304, %v1245
  %1247 = vmatmul.bf16.gmra.mxu0 %v418
  %v1248 = vpop.f32.mrf.mxu0
  %v1249 = vadd.f32 %v304, %v1248
  %v1250 = vpop.f32.mrf.mxu0
  %v1251 = vadd.f32 %v304, %v1250
  %1252 = vdwg.mxu0
  %1253 = vmatpush.bf16.msra.mxu0 %v993
  %1254 = vmatpush.bf16.msra.mxu0 %v992
  %1255 = vmatpush.bf16.msra.mxu0 %v991
  %1256 = vmatpush.bf16.msra.mxu0 %v990
  %1257 = vmatpush.bf16.msra.mxu0 %v989
  %1258 = vmatpush.bf16.msra.mxu0 %v988
  %1259 = vmatpush.bf16.msra.mxu0 %v987
  %1260 = vmatpush.bf16.msra.mxu0 %v986
  %1261 = vmatmul.bf16.gmra.mxu0 %v403
  %v1262 = vpop.f32.mrf.mxu0
  %v1263 = vadd.f32 %v1244, %v1262
  %v1264 = vpop.f32.mrf.mxu0
  %v1265 = vadd.f32 %v1246, %v1264
  %1266 = vmatmul.bf16.gmra.mxu0 %v419
  %v1267 = vpop.f32.mrf.mxu0
  %v1268 = vadd.f32 %v1249, %v1267
  %v1269 = vpop.f32.mrf.mxu0
  %v1270 = vadd.f32 %v1251, %v1269
  %1271 = vdwg.mxu0
  %1272 = vmatpush.bf16.msra.mxu0 %v1001
  %1273 = vmatpush.bf16.msra.mxu0 %v1000
  %1274 = vmatpush.bf16.msra.mxu0 %v999
  %1275 = vmatpush.bf16.msra.mxu0 %v998
  %1276 = vmatpush.bf16.msra.mxu0 %v997
  %1277 = vmatpush.bf16.msra.mxu0 %v996
  %1278 = vmatpush.bf16.msra.mxu0 %v995
  %1279 = vmatpush.bf16.msra.mxu0 %v994
  %1280 = vmatmul.bf16.gmra.mxu0 %v404
  %v1281 = vpop.f32.mrf.mxu0
  %v1282 = vadd.f32 %v1263, %v1281
  %v1283 = vpop.f32.mrf.mxu0
  %v1284 = vadd.f32 %v1265, %v1283
  %1285 = vmatmul.bf16.gmra.mxu0 %v420
  %v1286 = vpop.f32.mrf.mxu0
  %v1287 = vadd.f32 %v1268, %v1286
  %v1288 = vpop.f32.mrf.mxu0
  %v1289 = vadd.f32 %v1270, %v1288
  %1290 = vdwg.mxu0
  %1291 = vmatpush.bf16.msra.mxu0 %v1009
  %1292 = vmatpush.bf16.msra.mxu0 %v1008
  %1293 = vmatpush.bf16.msra.mxu0 %v1007
  %1294 = vmatpush.bf16.msra.mxu0 %v1006
  %1295 = vmatpush.bf16.msra.mxu0 %v1005
  %1296 = vmatpush.bf16.msra.mxu0 %v1004
  %1297 = vmatpush.bf16.msra.mxu0 %v1003
  %1298 = vmatpush.bf16.msra.mxu0 %v1002
  %1299 = vmatmul.bf16.gmra.mxu0 %v405
  %v1300 = vpop.f32.mrf.mxu0
  %v1301 = vadd.f32 %v1282, %v1300
  %v1302 = vpop.f32.mrf.mxu0
  %v1303 = vadd.f32 %v1284, %v1302
  %1304 = vmatmul.bf16.gmra.mxu0 %v421
  %v1305 = vpop.f32.mrf.mxu0
  %v1306 = vadd.f32 %v1287, %v1305
  %v1307 = vpop.f32.mrf.mxu0
  %v1308 = vadd.f32 %v1289, %v1307
  %1309 = vdwg.mxu0
  %1310 = vmatpush.bf16.msra.mxu0 %v1017
  %1311 = vmatpush.bf16.msra.mxu0 %v1016
  %1312 = vmatpush.bf16.msra.mxu0 %v1015
  %1313 = vmatpush.bf16.msra.mxu0 %v1014
  %1314 = vmatpush.bf16.msra.mxu0 %v1013
  %1315 = vmatpush.bf16.msra.mxu0 %v1012
  %1316 = vmatpush.bf16.msra.mxu0 %v1011
  %1317 = vmatpush.bf16.msra.mxu0 %v1010
  %1318 = vmatmul.bf16.gmra.mxu0 %v406
  %v1319 = vpop.f32.mrf.mxu0
  %v1320 = vadd.f32 %v1301, %v1319
  %v1321 = vpop.f32.mrf.mxu0
  %v1322 = vadd.f32 %v1303, %v1321
  %1323 = vmatmul.bf16.gmra.mxu0 %v422
  %v1324 = vpop.f32.mrf.mxu0
  %v1325 = vadd.f32 %v1306, %v1324
  %v1326 = vpop.f32.mrf.mxu0
  %v1327 = vadd.f32 %v1308, %v1326
  %1328 = vdwg.mxu0
  %1329 = vmatpush.bf16.msra.mxu0 %v1025
  %1330 = vmatpush.bf16.msra.mxu0 %v1024
  %1331 = vmatpush.bf16.msra.mxu0 %v1023
  %1332 = vmatpush.bf16.msra.mxu0 %v1022
  %1333 = vmatpush.bf16.msra.mxu0 %v1021
  %1334 = vmatpush.bf16.msra.mxu0 %v1020
  %1335 = vmatpush.bf16.msra.mxu0 %v1019
  %1336 = vmatpush.bf16.msra.mxu0 %v1018
  %1337 = vmatmul.bf16.gmra.mxu0 %v407
  %v1338 = vpop.f32.mrf.mxu0
  %v1339 = vadd.f32 %v1320, %v1338
  %v1340 = vpop.f32.mrf.mxu0
  %v1341 = vadd.f32 %v1322, %v1340
  %1342 = vmatmul.bf16.gmra.mxu0 %v423
  %v1343 = vpop.f32.mrf.mxu0
  %v1344 = vadd.f32 %v1325, %v1343
  %v1345 = vpop.f32.mrf.mxu0
  %v1346 = vadd.f32 %v1327, %v1345
  %1347 = vdwg.mxu0
  %1348 = vmatpush.bf16.msra.mxu0 %v1033
  %1349 = vmatpush.bf16.msra.mxu0 %v1032
  %1350 = vmatpush.bf16.msra.mxu0 %v1031
  %1351 = vmatpush.bf16.msra.mxu0 %v1030
  %1352 = vmatpush.bf16.msra.mxu0 %v1029
  %1353 = vmatpush.bf16.msra.mxu0 %v1028
  %1354 = vmatpush.bf16.msra.mxu0 %v1027
  %1355 = vmatpush.bf16.msra.mxu0 %v1026
  %1356 = vmatmul.bf16.gmra.mxu0 %v408
  %v1357 = vpop.f32.mrf.mxu0
  %v1358 = vadd.f32 %v1339, %v1357
  %v1359 = vpop.f32.mrf.mxu0
  %v1360 = vadd.f32 %v1341, %v1359
  %1361 = vmatmul.bf16.gmra.mxu0 %v424
  %v1362 = vpop.f32.mrf.mxu0
  %v1363 = vadd.f32 %v1344, %v1362
  %v1364 = vpop.f32.mrf.mxu0
  %v1365 = vadd.f32 %v1346, %v1364
  %1366 = vdwg.mxu0
  %1367 = vmatpush.bf16.msra.mxu0 %v1041
  %1368 = vmatpush.bf16.msra.mxu0 %v1040
  %1369 = vmatpush.bf16.msra.mxu0 %v1039
  %1370 = vmatpush.bf16.msra.mxu0 %v1038
  %1371 = vmatpush.bf16.msra.mxu0 %v1037
  %1372 = vmatpush.bf16.msra.mxu0 %v1036
  %1373 = vmatpush.bf16.msra.mxu0 %v1035
  %1374 = vmatpush.bf16.msra.mxu0 %v1034
  %1375 = vmatmul.bf16.gmra.mxu0 %v409
  %v1376 = vpop.f32.mrf.mxu0
  %v1377 = vadd.f32 %v1358, %v1376
  %v1378 = vpop.f32.mrf.mxu0
  %v1379 = vadd.f32 %v1360, %v1378
  %1380 = vmatmul.bf16.gmra.mxu0 %v425
  %v1381 = vpop.f32.mrf.mxu0
  %v1382 = vadd.f32 %v1363, %v1381
  %v1383 = vpop.f32.mrf.mxu0
  %v1384 = vadd.f32 %v1365, %v1383
  %1385 = vdwg.mxu0
  %1386 = vmatpush.bf16.msra.mxu0 %v1049
  %1387 = vmatpush.bf16.msra.mxu0 %v1048
  %1388 = vmatpush.bf16.msra.mxu0 %v1047
  %1389 = vmatpush.bf16.msra.mxu0 %v1046
  %1390 = vmatpush.bf16.msra.mxu0 %v1045
  %1391 = vmatpush.bf16.msra.mxu0 %v1044
  %1392 = vmatpush.bf16.msra.mxu0 %v1043
  %1393 = vmatpush.bf16.msra.mxu0 %v1042
  %1394 = vmatmul.bf16.gmra.mxu0 %v410
  %v1395 = vpop.f32.mrf.mxu0
  %v1396 = vadd.f32 %v1377, %v1395
  %v1397 = vpop.f32.mrf.mxu0
  %v1398 = vadd.f32 %v1379, %v1397
  %1399 = vmatmul.bf16.gmra.mxu0 %v426
  %v1400 = vpop.f32.mrf.mxu0
  %v1401 = vadd.f32 %v1382, %v1400
  %v1402 = vpop.f32.mrf.mxu0
  %v1403 = vadd.f32 %v1384, %v1402
  %1404 = vdwg.mxu0
  %1405 = vmatpush.bf16.msra.mxu0 %v1057
  %1406 = vmatpush.bf16.msra.mxu0 %v1056
  %1407 = vmatpush.bf16.msra.mxu0 %v1055
  %1408 = vmatpush.bf16.msra.mxu0 %v1054
  %1409 = vmatpush.bf16.msra.mxu0 %v1053
  %1410 = vmatpush.bf16.msra.mxu0 %v1052
  %1411 = vmatpush.bf16.msra.mxu0 %v1051
  %1412 = vmatpush.bf16.msra.mxu0 %v1050
  %1413 = vmatmul.bf16.gmra.mxu0 %v411
  %v1414 = vpop.f32.mrf.mxu0
  %v1415 = vadd.f32 %v1396, %v1414
  %v1416 = vpop.f32.mrf.mxu0
  %v1417 = vadd.f32 %v1398, %v1416
  %1418 = vmatmul.bf16.gmra.mxu0 %v427
  %v1419 = vpop.f32.mrf.mxu0
  %v1420 = vadd.f32 %v1401, %v1419
  %v1421 = vpop.f32.mrf.mxu0
  %v1422 = vadd.f32 %v1403, %v1421
  %1423 = vdwg.mxu0
  %1424 = vmatpush.bf16.msra.mxu0 %v1065
  %1425 = vmatpush.bf16.msra.mxu0 %v1064
  %1426 = vmatpush.bf16.msra.mxu0 %v1063
  %1427 = vmatpush.bf16.msra.mxu0 %v1062
  %1428 = vmatpush.bf16.msra.mxu0 %v1061
  %1429 = vmatpush.bf16.msra.mxu0 %v1060
  %1430 = vmatpush.bf16.msra.mxu0 %v1059
  %1431 = vmatpush.bf16.msra.mxu0 %v1058
  %1432 = vmatmul.bf16.gmra.mxu0 %v412
  %v1433 = vpop.f32.mrf.mxu0
  %v1434 = vadd.f32 %v1415, %v1433
  %v1435 = vpop.f32.mrf.mxu0
  %v1436 = vadd.f32 %v1417, %v1435
  %1437 = vmatmul.bf16.gmra.mxu0 %v428
  %v1438 = vpop.f32.mrf.mxu0
  %v1439 = vadd.f32 %v1420, %v1438
  %v1440 = vpop.f32.mrf.mxu0
  %v1441 = vadd.f32 %v1422, %v1440
  %1442 = vdwg.mxu0
  %1443 = vmatpush.bf16.msra.mxu0 %v1073
  %1444 = vmatpush.bf16.msra.mxu0 %v1072
  %1445 = vmatpush.bf16.msra.mxu0 %v1071
  %1446 = vmatpush.bf16.msra.mxu0 %v1070
  %1447 = vmatpush.bf16.msra.mxu0 %v1069
  %1448 = vmatpush.bf16.msra.mxu0 %v1068
  %1449 = vmatpush.bf16.msra.mxu0 %v1067
  %1450 = vmatpush.bf16.msra.mxu0 %v1066
  %1451 = vmatmul.bf16.gmra.mxu0 %v413
  %v1452 = vpop.f32.mrf.mxu0
  %v1453 = vadd.f32 %v1434, %v1452
  %v1454 = vpop.f32.mrf.mxu0
  %v1455 = vadd.f32 %v1436, %v1454
  %1456 = vmatmul.bf16.gmra.mxu0 %v429
  %v1457 = vpop.f32.mrf.mxu0
  %v1458 = vadd.f32 %v1439, %v1457
  %v1459 = vpop.f32.mrf.mxu0
  %v1460 = vadd.f32 %v1441, %v1459
  %1461 = vdwg.mxu0
  %1462 = vmatpush.bf16.msra.mxu0 %v1081
  %1463 = vmatpush.bf16.msra.mxu0 %v1080
  %1464 = vmatpush.bf16.msra.mxu0 %v1079
  %1465 = vmatpush.bf16.msra.mxu0 %v1078
  %1466 = vmatpush.bf16.msra.mxu0 %v1077
  %1467 = vmatpush.bf16.msra.mxu0 %v1076
  %1468 = vmatpush.bf16.msra.mxu0 %v1075
  %1469 = vmatpush.bf16.msra.mxu0 %v1074
  %1470 = vmatmul.bf16.gmra.mxu0 %v414
  %v1471 = vpop.f32.mrf.mxu0
  %v1472 = vadd.f32 %v1453, %v1471
  %v1473 = vpop.f32.mrf.mxu0
  %v1474 = vadd.f32 %v1455, %v1473
  %1475 = vmatmul.bf16.gmra.mxu0 %v430
  %v1476 = vpop.f32.mrf.mxu0
  %v1477 = vadd.f32 %v1458, %v1476
  %v1478 = vpop.f32.mrf.mxu0
  %v1479 = vadd.f32 %v1460, %v1478
  %1480 = vdwg.mxu0
  %1481 = vmatpush.bf16.msra.mxu0 %v1089
  %1482 = vmatpush.bf16.msra.mxu0 %v1088
  %1483 = vmatpush.bf16.msra.mxu0 %v1087
  %1484 = vmatpush.bf16.msra.mxu0 %v1086
  %1485 = vmatpush.bf16.msra.mxu0 %v1085
  %1486 = vmatpush.bf16.msra.mxu0 %v1084
  %1487 = vmatpush.bf16.msra.mxu0 %v1083
  %1488 = vmatpush.bf16.msra.mxu0 %v1082
  %1489 = vmatmul.bf16.gmra.mxu0 %v415
  %v1490 = vpop.f32.mrf.mxu0
  %v1491 = vadd.f32 %v1472, %v1490
  %v1492 = vpop.f32.mrf.mxu0
  %v1493 = vadd.f32 %v1474, %v1492
  %1494 = vmatmul.bf16.gmra.mxu0 %v431
  %v1495 = vpop.f32.mrf.mxu0
  %v1496 = vadd.f32 %v1477, %v1495
  %v1497 = vpop.f32.mrf.mxu0
  %v1498 = vadd.f32 %v1479, %v1497
  %1499 = vdwg.mxu0
  %1500 = vmatpush.bf16.msra.mxu0 %v1097
  %1501 = vmatpush.bf16.msra.mxu0 %v1096
  %1502 = vmatpush.bf16.msra.mxu0 %v1095
  %1503 = vmatpush.bf16.msra.mxu0 %v1094
  %1504 = vmatpush.bf16.msra.mxu0 %v1093
  %1505 = vmatpush.bf16.msra.mxu0 %v1092
  %1506 = vmatpush.bf16.msra.mxu0 %v1091
  %1507 = vmatpush.bf16.msra.mxu0 %v1090
  %1508 = vmatmul.bf16.gmra.mxu0 %v416
  %v1509 = vpop.f32.mrf.mxu0
  %v1510 = vadd.f32 %v1491, %v1509
  %v1511 = vpop.f32.mrf.mxu0
  %v1512 = vadd.f32 %v1493, %v1511
  %1513 = vmatmul.bf16.gmra.mxu0 %v432
  %v1514 = vpop.f32.mrf.mxu0
  %v1515 = vadd.f32 %v1496, %v1514
  %v1516 = vpop.f32.mrf.mxu0
  %v1517 = vadd.f32 %v1498, %v1516
  %1518 = vdwg.mxu0
  %1519 = vmatpush.bf16.msra.mxu0 %v1105
  %1520 = vmatpush.bf16.msra.mxu0 %v1104
  %1521 = vmatpush.bf16.msra.mxu0 %v1103
  %1522 = vmatpush.bf16.msra.mxu0 %v1102
  %1523 = vmatpush.bf16.msra.mxu0 %v1101
  %1524 = vmatpush.bf16.msra.mxu0 %v1100
  %1525 = vmatpush.bf16.msra.mxu0 %v1099
  %1526 = vmatpush.bf16.msra.mxu0 %v1098
  %1527 = vmatmul.bf16.gmra.mxu0 %v417
  %v1528 = vpop.f32.mrf.mxu0
  %v1529 = vadd.f32 %v1510, %v1528
  %v1530 = vpop.f32.mrf.mxu0
  %v1531 = vadd.f32 %v1512, %v1530
  %1532 = vmatmul.bf16.gmra.mxu0 %v433
  %v1533 = vpop.f32.mrf.mxu0
  %v1534 = vadd.f32 %v1515, %v1533
  %v1535 = vpop.f32.mrf.mxu0
  %v1536 = vadd.f32 %v1517, %v1535
  %1537 = vdwg.mxu0
  %v1538 = vmax.f32 %v1529, 0.0
  %v1539 = vmax.f32 %v1531, 0.0
  %v1540 = vmax.f32 %v1534, 0.0
  %v1541 = vmax.f32 %v1536, 0.0
  %v1542 = vpack.c.bf16 %v1538, %v1538
  %v1543 = vpack.c.bf16 %v1539, %v1539
  %v1544 = vpack.c.bf16 %v1540, %v1540
  %v1545 = vpack.c.bf16 %v1541, %v1541
  %1546 = vst [vmem:[%s3] sm:$0xf] %v1542
  %1547 = vst [vmem:[%s3 + $0x4] sm:$0xf] %v1543
  %1548 = vst [vmem:[%s3 + $0x8] sm:$0xf] %v1544
  %1549 = vst [vmem:[%s3 + $0xc] sm:$0xf] %v1545
  // Predicated region
  $region14: #{_lambda_.8} parent=0 // pred_check
    _
  $region15: #{_lambda_.8} parent=0 // pred_check_branch
    %1551 = sbr.rel (0) target = $region17
  $region16: #{_lambda_.8} parent=0 // pred_region
    _
  $region17: #{_lambda_.8} parent=0 // pred_fallthru
    _
  // Predicated region
  $region18: #{_lambda_.8} parent=0 // pred_check
    _
  $region19: #{_lambda_.8} parent=0 // pred_check_branch
    %1553 = sbr.rel (0) target = $region21
  $region20: #{_lambda_.8} parent=0 // pred_region
    _
  $region21: #{_lambda_.8} parent=0 // pred_fallthru
    _

// kernel: _lambda_.9
$region0: #{_lambda_.9}
  #allocation0 [shape = 'u32[]', space=smem, size = 0x4, offset = 0x4, fixed_abs, tag = 'smem constant byte address 0x4 - core index']
  #allocation1 [shape = 'u32[72,128]{1,0:T(1,128)}', space=vmem, size = 0x9000, scoped, tag = 'internal scratch']
  %s0 = inlined_call_operand.vmem [shape: bf16[16,2048], index: 0, kind: input, shape index: {}]
  %s1 = inlined_call_operand.vmem [shape: bf16[2048,256], index: 1, kind: input, shape index: {}]
  %s2 = inlined_call_operand.vmem [shape: f32[1,256], index: 2, kind: input, shape index: {}]
  %s3 = inlined_call_operand.vmem [shape: bf16[256,128], index: 3, kind: input, shape index: {}]
  %s4 = inlined_call_operand.vmem [shape: f32[1,128], index: 4, kind: input, shape index: {}]
  %s5 = inlined_call_operand.vmem [shape: f32[16,128], index: 5, kind: output, shape index: {}]
  %s6 = sld [smem:[#allocation0]]
  $region30: #{_lambda_.9} parent=0
    _
  %s8 = ssub.s32 1, %s6
  %s9 = scalar_select 0, %s8, %s6
  // Predicated region
  $region2: #{_lambda_.9} parent=0 // pred_check
    _
  $region3: #{_lambda_.9} parent=0 // pred_check_branch
    %11 = sbr.rel (0) target = $region5
  $region4: #{_lambda_.9} parent=0 // pred_region
    _
  $region5: #{_lambda_.9} parent=0 // pred_fallthru
    _
  // Predicated region
  $region6: #{_lambda_.9} parent=0 // pred_check
    _
  $region7: #{_lambda_.9} parent=0 // pred_check_branch
    %13 = sbr.rel (0) target = $region9
  $region8: #{_lambda_.9} parent=0 // pred_region
    _
  $region9: #{_lambda_.9} parent=0 // pred_fallthru
    _
  // Predicated region
  $region10: #{_lambda_.9} parent=0 // pred_check
    _
  $region11: #{_lambda_.9} parent=0 // pred_check_branch
    %15 = sbr.rel (0) target = $region13
  $region12: #{_lambda_.9} parent=0 // pred_region
    _
  $region13: #{_lambda_.9} parent=0 // pred_fallthru
    _
  // Predicated region
  $region14: #{_lambda_.9} parent=0 // pred_check
    _
  $region15: #{_lambda_.9} parent=0 // pred_check_branch
    %17 = sbr.rel (0) target = $region17
  $region16: #{_lambda_.9} parent=0 // pred_region
    _
  $region17: #{_lambda_.9} parent=0 // pred_fallthru
    _
  // Predicated region
  $region18: #{_lambda_.9} parent=0 // pred_check
    _
  $region19: #{_lambda_.9} parent=0 // pred_check_branch
    %19 = sbr.rel (0) target = $region21
  $region20: #{_lambda_.9} parent=0 // pred_region
    _
  $region21: #{_lambda_.9} parent=0 // pred_fallthru
    _
  %v20 = vld [vmem:[%s0] sm:$0xff]
  %v21 = vld [vmem:[%s0 + $0x8] sm:$0xff]
  %v22 = vld [vmem:[%s0 + $0x10] sm:$0xff]
  %v23 = vld [vmem:[%s0 + $0x18] sm:$0xff]
  %v24 = vld [vmem:[%s0 + $0x20] sm:$0xff]
  %v25 = vld [vmem:[%s0 + $0x28] sm:$0xff]
  %v26 = vld [vmem:[%s0 + $0x30] sm:$0xff]
  %v27 = vld [vmem:[%s0 + $0x38] sm:$0xff]
  %v28 = vld [vmem:[%s0 + $0x40] sm:$0xff]
  %v29 = vld [vmem:[%s0 + $0x48] sm:$0xff]
  %v30 = vld [vmem:[%s0 + $0x50] sm:$0xff]
  %v31 = vld [vmem:[%s0 + $0x58] sm:$0xff]
  %v32 = vld [vmem:[%s0 + $0x60] sm:$0xff]
  %v33 = vld [vmem:[%s0 + $0x68] sm:$0xff]
  %v34 = vld [vmem:[%s0 + $0x70] sm:$0xff]
  %v35 = vld [vmem:[%s0 + $0x78] sm:$0xff]
  %v36 = vld [vmem:[%s1] sm:$0xff]
  %v37 = vld [vmem:[%s1 + $0x8] sm:$0xff]
  %v38 = vld [vmem:[%s1 + $0x10] sm:$0xff]
  %v39 = vld [vmem:[%s1 + $0x18] sm:$0xff]
  %v40 = vld [vmem:[%s1 + $0x20] sm:$0xff]
  %v41 = vld [vmem:[%s1 + $0x28] sm:$0xff]
  %v42 = vld [vmem:[%s1 + $0x30] sm:$0xff]
  %v43 = vld [vmem:[%s1 + $0x38] sm:$0xff]
  %v44 = vld [vmem:[%s1 + $0x40] sm:$0xff]
  %v45 = vld [vmem:[%s1 + $0x48] sm:$0xff]
  %v46 = vld [vmem:[%s1 + $0x50] sm:$0xff]
  %v47 = vld [vmem:[%s1 + $0x58] sm:$0xff]
  %v48 = vld [vmem:[%s1 + $0x60] sm:$0xff]
  %v49 = vld [vmem:[%s1 + $0x68] sm:$0xff]
  %v50 = vld [vmem:[%s1 + $0x70] sm:$0xff]
  %v51 = vld [vmem:[%s1 + $0x78] sm:$0xff]
  %v52 = vld [vmem:[%s1 + $0x80] sm:$0xff]
  %v53 = vld [vmem:[%s1 + $0x88] sm:$0xff]
  %v54 = vld [vmem:[%s1 + $0x90] sm:$0xff]
  %v55 = vld [vmem:[%s1 + $0x98] sm:$0xff]
  %v56 = vld [vmem:[%s1 + $0xa0] sm:$0xff]
  %v57 = vld [vmem:[%s1 + $0xa8] sm:$0xff]
  %v58 = vld [vmem:[%s1 + $0xb0] sm:$0xff]
  %v59 = vld [vmem:[%s1 + $0xb8] sm:$0xff]
  %v60 = vld [vmem:[%s1 + $0xc0] sm:$0xff]
  %v61 = vld [vmem:[%s1 + $0xc8] sm:$0xff]
  %v62 = vld [vmem:[%s1 + $0xd0] sm:$0xff]
  %v63 = vld [vmem:[%s1 + $0xd8] sm:$0xff]
  %v64 = vld [vmem:[%s1 + $0xe0] sm:$0xff]
  %v65 = vld [vmem:[%s1 + $0xe8] sm:$0xff]
  %v66 = vld [vmem:[%s1 + $0xf0] sm:$0xff]
  %v67 = vld [vmem:[%s1 + $0xf8] sm:$0xff]
  %v68 = vld [vmem:[%s1 + $0x100] sm:$0xff]
  %v69 = vld [vmem:[%s1 + $0x108] sm:$0xff]
  %v70 = vld [vmem:[%s1 + $0x110] sm:$0xff]
  %v71 = vld [vmem:[%s1 + $0x118] sm:$0xff]
  %v72 = vld [vmem:[%s1 + $0x120] sm:$0xff]
  %v73 = vld [vmem:[%s1 + $0x128] sm:$0xff]
  %v74 = vld [vmem:[%s1 + $0x130] sm:$0xff]
  %v75 = vld [vmem:[%s1 + $0x138] sm:$0xff]
  %v76 = vld [vmem:[%s1 + $0x140] sm:$0xff]
  %v77 = vld [vmem:[%s1 + $0x148] sm:$0xff]
  %v78 = vld [vmem:[%s1 + $0x150] sm:$0xff]
  %v79 = vld [vmem:[%s1 + $0x158] sm:$0xff]
  %v80 = vld [vmem:[%s1 + $0x160] sm:$0xff]
  %v81 = vld [vmem:[%s1 + $0x168] sm:$0xff]
  %v82 = vld [vmem:[%s1 + $0x170] sm:$0xff]
  %v83 = vld [vmem:[%s1 + $0x178] sm:$0xff]
  %v84 = vld [vmem:[%s1 + $0x180] sm:$0xff]
  %v85 = vld [vmem:[%s1 + $0x188] sm:$0xff]
  %v86 = vld [vmem:[%s1 + $0x190] sm:$0xff]
  %v87 = vld [vmem:[%s1 + $0x198] sm:$0xff]
  %v88 = vld [vmem:[%s1 + $0x1a0] sm:$0xff]
  %v89 = vld [vmem:[%s1 + $0x1a8] sm:$0xff]
  %v90 = vld [vmem:[%s1 + $0x1b0] sm:$0xff]
  %v91 = vld [vmem:[%s1 + $0x1b8] sm:$0xff]
  %v92 = vld [vmem:[%s1 + $0x1c0] sm:$0xff]
  %v93 = vld [vmem:[%s1 + $0x1c8] sm:$0xff]
  %v94 = vld [vmem:[%s1 + $0x1d0] sm:$0xff]
  %v95 = vld [vmem:[%s1 + $0x1d8] sm:$0xff]
  %v96 = vld [vmem:[%s1 + $0x1e0] sm:$0xff]
  %v97 = vld [vmem:[%s1 + $0x1e8] sm:$0xff]
  %v98 = vld [vmem:[%s1 + $0x1f0] sm:$0xff]
  %v99 = vld [vmem:[%s1 + $0x1f8] sm:$0xff]
  %v100 = vld [vmem:[%s1 + $0x200] sm:$0xff]
  %v101 = vld [vmem:[%s1 + $0x208] sm:$0xff]
  %v102 = vld [vmem:[%s1 + $0x210] sm:$0xff]
  %v103 = vld [vmem:[%s1 + $0x218] sm:$0xff]
  %v104 = vld [vmem:[%s1 + $0x220] sm:$0xff]
  %v105 = vld [vmem:[%s1 + $0x228] sm:$0xff]
  %v106 = vld [vmem:[%s1 + $0x230] sm:$0xff]
  %v107 = vld [vmem:[%s1 + $0x238] sm:$0xff]
  %v108 = vld [vmem:[%s1 + $0x240] sm:$0xff]
  %v109 = vld [vmem:[%s1 + $0x248] sm:$0xff]
  %v110 = vld [vmem:[%s1 + $0x250] sm:$0xff]
  %v111 = vld [vmem:[%s1 + $0x258] sm:$0xff]
  %v112 = vld [vmem:[%s1 + $0x260] sm:$0xff]
  %v113 = vld [vmem:[%s1 + $0x268] sm:$0xff]
  %v114 = vld [vmem:[%s1 + $0x270] sm:$0xff]
  %v115 = vld [vmem:[%s1 + $0x278] sm:$0xff]
  %v116 = vld [vmem:[%s1 + $0x280] sm:$0xff]
  %v117 = vld [vmem:[%s1 + $0x288] sm:$0xff]
  %v118 = vld [vmem:[%s1 + $0x290] sm:$0xff]
  %v119 = vld [vmem:[%s1 + $0x298] sm:$0xff]
  %v120 = vld [vmem:[%s1 + $0x2a0] sm:$0xff]
  %v121 = vld [vmem:[%s1 + $0x2a8] sm:$0xff]
  %v122 = vld [vmem:[%s1 + $0x2b0] sm:$0xff]
  %v123 = vld [vmem:[%s1 + $0x2b8] sm:$0xff]
  %v124 = vld [vmem:[%s1 + $0x2c0] sm:$0xff]
  %v125 = vld [vmem:[%s1 + $0x2c8] sm:$0xff]
  %v126 = vld [vmem:[%s1 + $0x2d0] sm:$0xff]
  %v127 = vld [vmem:[%s1 + $0x2d8] sm:$0xff]
  %v128 = vld [vmem:[%s1 + $0x2e0] sm:$0xff]
  %v129 = vld [vmem:[%s1 + $0x2e8] sm:$0xff]
  %v130 = vld [vmem:[%s1 + $0x2f0] sm:$0xff]
  %v131 = vld [vmem:[%s1 + $0x2f8] sm:$0xff]
  %v132 = vld [vmem:[%s1 + $0x300] sm:$0xff]
  %v133 = vld [vmem:[%s1 + $0x308] sm:$0xff]
  %v134 = vld [vmem:[%s1 + $0x310] sm:$0xff]
  %v135 = vld [vmem:[%s1 + $0x318] sm:$0xff]
  %v136 = vld [vmem:[%s1 + $0x320] sm:$0xff]
  %v137 = vld [vmem:[%s1 + $0x328] sm:$0xff]
  %v138 = vld [vmem:[%s1 + $0x330] sm:$0xff]
  %v139 = vld [vmem:[%s1 + $0x338] sm:$0xff]
  %v140 = vld [vmem:[%s1 + $0x340] sm:$0xff]
  %v141 = vld [vmem:[%s1 + $0x348] sm:$0xff]
  %v142 = vld [vmem:[%s1 + $0x350] sm:$0xff]
  %v143 = vld [vmem:[%s1 + $0x358] sm:$0xff]
  %v144 = vld [vmem:[%s1 + $0x360] sm:$0xff]
  %v145 = vld [vmem:[%s1 + $0x368] sm:$0xff]
  %v146 = vld [vmem:[%s1 + $0x370] sm:$0xff]
  %v147 = vld [vmem:[%s1 + $0x378] sm:$0xff]
  %v148 = vld [vmem:[%s1 + $0x380] sm:$0xff]
  %v149 = vld [vmem:[%s1 + $0x388] sm:$0xff]
  %v150 = vld [vmem:[%s1 + $0x390] sm:$0xff]
  %v151 = vld [vmem:[%s1 + $0x398] sm:$0xff]
  %v152 = vld [vmem:[%s1 + $0x3a0] sm:$0xff]
  %v153 = vld [vmem:[%s1 + $0x3a8] sm:$0xff]
  %v154 = vld [vmem:[%s1 + $0x3b0] sm:$0xff]
  %v155 = vld [vmem:[%s1 + $0x3b8] sm:$0xff]
  %v156 = vld [vmem:[%s1 + $0x3c0] sm:$0xff]
  %v157 = vld [vmem:[%s1 + $0x3c8] sm:$0xff]
  %v158 = vld [vmem:[%s1 + $0x3d0] sm:$0xff]
  %v159 = vld [vmem:[%s1 + $0x3d8] sm:$0xff]
  %v160 = vld [vmem:[%s1 + $0x3e0] sm:$0xff]
  %v161 = vld [vmem:[%s1 + $0x3e8] sm:$0xff]
  %v162 = vld [vmem:[%s1 + $0x3f0] sm:$0xff]
  %v163 = vld [vmem:[%s1 + $0x3f8] sm:$0xff]
  %v164 = vld [vmem:[%s1 + $0x400] sm:$0xff]
  %v165 = vld [vmem:[%s1 + $0x408] sm:$0xff]
  %v166 = vld [vmem:[%s1 + $0x410] sm:$0xff]
  %v167 = vld [vmem:[%s1 + $0x418] sm:$0xff]
  %v168 = vld [vmem:[%s1 + $0x420] sm:$0xff]
  %v169 = vld [vmem:[%s1 + $0x428] sm:$0xff]
  %v170 = vld [vmem:[%s1 + $0x430] sm:$0xff]
  %v171 = vld [vmem:[%s1 + $0x438] sm:$0xff]
  %v172 = vld [vmem:[%s1 + $0x440] sm:$0xff]
  %v173 = vld [vmem:[%s1 + $0x448] sm:$0xff]
  %v174 = vld [vmem:[%s1 + $0x450] sm:$0xff]
  %v175 = vld [vmem:[%s1 + $0x458] sm:$0xff]
  %v176 = vld [vmem:[%s1 + $0x460] sm:$0xff]
  %v177 = vld [vmem:[%s1 + $0x468] sm:$0xff]
  %v178 = vld [vmem:[%s1 + $0x470] sm:$0xff]
  %v179 = vld [vmem:[%s1 + $0x478] sm:$0xff]
  %v180 = vld [vmem:[%s1 + $0x480] sm:$0xff]
  %v181 = vld [vmem:[%s1 + $0x488] sm:$0xff]
  %v182 = vld [vmem:[%s1 + $0x490] sm:$0xff]
  %v183 = vld [vmem:[%s1 + $0x498] sm:$0xff]
  %v184 = vld [vmem:[%s1 + $0x4a0] sm:$0xff]
  %v185 = vld [vmem:[%s1 + $0x4a8] sm:$0xff]
  %v186 = vld [vmem:[%s1 + $0x4b0] sm:$0xff]
  %v187 = vld [vmem:[%s1 + $0x4b8] sm:$0xff]
  %v188 = vld [vmem:[%s1 + $0x4c0] sm:$0xff]
  %v189 = vld [vmem:[%s1 + $0x4c8] sm:$0xff]
  %v190 = vld [vmem:[%s1 + $0x4d0] sm:$0xff]
  %v191 = vld [vmem:[%s1 + $0x4d8] sm:$0xff]
  %v192 = vld [vmem:[%s1 + $0x4e0] sm:$0xff]
  %v193 = vld [vmem:[%s1 + $0x4e8] sm:$0xff]
  %v194 = vld [vmem:[%s1 + $0x4f0] sm:$0xff]
  %v195 = vld [vmem:[%s1 + $0x4f8] sm:$0xff]
  %v196 = vld [vmem:[%s1 + $0x500] sm:$0xff]
  %v197 = vld [vmem:[%s1 + $0x508] sm:$0xff]
  %v198 = vld [vmem:[%s1 + $0x510] sm:$0xff]
  %v199 = vld [vmem:[%s1 + $0x518] sm:$0xff]
  %v200 = vld [vmem:[%s1 + $0x520] sm:$0xff]
  %v201 = vld [vmem:[%s1 + $0x528] sm:$0xff]
  %v202 = vld [vmem:[%s1 + $0x530] sm:$0xff]
  %v203 = vld [vmem:[%s1 + $0x538] sm:$0xff]
  %v204 = vld [vmem:[%s1 + $0x540] sm:$0xff]
  %v205 = vld [vmem:[%s1 + $0x548] sm:$0xff]
  %v206 = vld [vmem:[%s1 + $0x550] sm:$0xff]
  %v207 = vld [vmem:[%s1 + $0x558] sm:$0xff]
  %v208 = vld [vmem:[%s1 + $0x560] sm:$0xff]
  %v209 = vld [vmem:[%s1 + $0x568] sm:$0xff]
  %v210 = vld [vmem:[%s1 + $0x570] sm:$0xff]
  %v211 = vld [vmem:[%s1 + $0x578] sm:$0xff]
  %v212 = vld [vmem:[%s1 + $0x580] sm:$0xff]
  %v213 = vld [vmem:[%s1 + $0x588] sm:$0xff]
  %v214 = vld [vmem:[%s1 + $0x590] sm:$0xff]
  %v215 = vld [vmem:[%s1 + $0x598] sm:$0xff]
  %v216 = vld [vmem:[%s1 + $0x5a0] sm:$0xff]
  %v217 = vld [vmem:[%s1 + $0x5a8] sm:$0xff]
  %v218 = vld [vmem:[%s1 + $0x5b0] sm:$0xff]
  %v219 = vld [vmem:[%s1 + $0x5b8] sm:$0xff]
  %v220 = vld [vmem:[%s1 + $0x5c0] sm:$0xff]
  %v221 = vld [vmem:[%s1 + $0x5c8] sm:$0xff]
  %v222 = vld [vmem:[%s1 + $0x5d0] sm:$0xff]
  %v223 = vld [vmem:[%s1 + $0x5d8] sm:$0xff]
  %v224 = vld [vmem:[%s1 + $0x5e0] sm:$0xff]
  %v225 = vld [vmem:[%s1 + $0x5e8] sm:$0xff]
  %v226 = vld [vmem:[%s1 + $0x5f0] sm:$0xff]
  %v227 = vld [vmem:[%s1 + $0x5f8] sm:$0xff]
  %v228 = vld [vmem:[%s1 + $0x600] sm:$0xff]
  %v229 = vld [vmem:[%s1 + $0x608] sm:$0xff]
  %v230 = vld [vmem:[%s1 + $0x610] sm:$0xff]
  %v231 = vld [vmem:[%s1 + $0x618] sm:$0xff]
  %v232 = vld [vmem:[%s1 + $0x620] sm:$0xff]
  %v233 = vld [vmem:[%s1 + $0x628] sm:$0xff]
  %v234 = vld [vmem:[%s1 + $0x630] sm:$0xff]
  %v235 = vld [vmem:[%s1 + $0x638] sm:$0xff]
  %v236 = vld [vmem:[%s1 + $0x640] sm:$0xff]
  %v237 = vld [vmem:[%s1 + $0x648] sm:$0xff]
  %v238 = vld [vmem:[%s1 + $0x650] sm:$0xff]
  %v239 = vld [vmem:[%s1 + $0x658] sm:$0xff]
  %v240 = vld [vmem:[%s1 + $0x660] sm:$0xff]
  %v241 = vld [vmem:[%s1 + $0x668] sm:$0xff]
  %v242 = vld [vmem:[%s1 + $0x670] sm:$0xff]
  %v243 = vld [vmem:[%s1 + $0x678] sm:$0xff]
  %v244 = vld [vmem:[%s1 + $0x680] sm:$0xff]
  %v245 = vld [vmem:[%s1 + $0x688] sm:$0xff]
  %v246 = vld [vmem:[%s1 + $0x690] sm:$0xff]
  %v247 = vld [vmem:[%s1 + $0x698] sm:$0xff]
  %v248 = vld [vmem:[%s1 + $0x6a0] sm:$0xff]
  %v249 = vld [vmem:[%s1 + $0x6a8] sm:$0xff]
  %v250 = vld [vmem:[%s1 + $0x6b0] sm:$0xff]
  %v251 = vld [vmem:[%s1 + $0x6b8] sm:$0xff]
  %v252 = vld [vmem:[%s1 + $0x6c0] sm:$0xff]
  %v253 = vld [vmem:[%s1 + $0x6c8] sm:$0xff]
  %v254 = vld [vmem:[%s1 + $0x6d0] sm:$0xff]
  %v255 = vld [vmem:[%s1 + $0x6d8] sm:$0xff]
  %v256 = vld [vmem:[%s1 + $0x6e0] sm:$0xff]
  %v257 = vld [vmem:[%s1 + $0x6e8] sm:$0xff]
  %v258 = vld [vmem:[%s1 + $0x6f0] sm:$0xff]
  %v259 = vld [vmem:[%s1 + $0x6f8] sm:$0xff]
  %v260 = vld [vmem:[%s1 + $0x700] sm:$0xff]
  %v261 = vld [vmem:[%s1 + $0x708] sm:$0xff]
  %v262 = vld [vmem:[%s1 + $0x710] sm:$0xff]
  %v263 = vld [vmem:[%s1 + $0x718] sm:$0xff]
  %v264 = vld [vmem:[%s1 + $0x720] sm:$0xff]
  %v265 = vld [vmem:[%s1 + $0x728] sm:$0xff]
  %v266 = vld [vmem:[%s1 + $0x730] sm:$0xff]
  %v267 = vld [vmem:[%s1 + $0x738] sm:$0xff]
  %v268 = vld [vmem:[%s1 + $0x740] sm:$0xff]
  %v269 = vld [vmem:[%s1 + $0x748] sm:$0xff]
  %v270 = vld [vmem:[%s1 + $0x750] sm:$0xff]
  %v271 = vld [vmem:[%s1 + $0x758] sm:$0xff]
  %v272 = vld [vmem:[%s1 + $0x760] sm:$0xff]
  %v273 = vld [vmem:[%s1 + $0x768] sm:$0xff]
  %v274 = vld [vmem:[%s1 + $0x770] sm:$0xff]
  %v275 = vld [vmem:[%s1 + $0x778] sm:$0xff]
  %v276 = vld [vmem:[%s1 + $0x780] sm:$0xff]
  %v277 = vld [vmem:[%s1 + $0x788] sm:$0xff]
  %v278 = vld [vmem:[%s1 + $0x790] sm:$0xff]
  %v279 = vld [vmem:[%s1 + $0x798] sm:$0xff]
  %v280 = vld [vmem:[%s1 + $0x7a0] sm:$0xff]
  %v281 = vld [vmem:[%s1 + $0x7a8] sm:$0xff]
  %v282 = vld [vmem:[%s1 + $0x7b0] sm:$0xff]
  %v283 = vld [vmem:[%s1 + $0x7b8] sm:$0xff]
  %v284 = vld [vmem:[%s1 + $0x7c0] sm:$0xff]
  %v285 = vld [vmem:[%s1 + $0x7c8] sm:$0xff]
  %v286 = vld [vmem:[%s1 + $0x7d0] sm:$0xff]
  %v287 = vld [vmem:[%s1 + $0x7d8] sm:$0xff]
  %v288 = vld [vmem:[%s1 + $0x7e0] sm:$0xff]
  %v289 = vld [vmem:[%s1 + $0x7e8] sm:$0xff]
  %v290 = vld [vmem:[%s1 + $0x7f0] sm:$0xff]
  %v291 = vld [vmem:[%s1 + $0x7f8] sm:$0xff]
  %v292 = vld [vmem:[%s2] sm:$0x3]
  %v294 = vperm.slane %v292, 0
  %v295 = vperm.slane %v292, 1
  %v314 = vunpack.c.l.b16 %v20
  %v315 = vunpack.c.h.b16 %v20
  %v316 = vunpack.c.l.b16 %v21
  %v317 = vunpack.c.h.b16 %v21
  %v318 = vunpack.c.l.b16 %v22
  %v319 = vunpack.c.h.b16 %v22
  %v320 = vunpack.c.l.b16 %v23
  %v321 = vunpack.c.h.b16 %v23
  %v322 = vunpack.c.l.b16 %v24
  %v323 = vunpack.c.h.b16 %v24
  %v324 = vunpack.c.l.b16 %v25
  %v325 = vunpack.c.h.b16 %v25
  %v326 = vunpack.c.l.b16 %v26
  %v327 = vunpack.c.h.b16 %v26
  %v328 = vunpack.c.l.b16 %v27
  %v329 = vunpack.c.h.b16 %v27
  %v330 = vunpack.c.l.b16 %v28
  %v331 = vunpack.c.h.b16 %v28
  %v332 = vunpack.c.l.b16 %v29
  %v333 = vunpack.c.h.b16 %v29
  %v334 = vunpack.c.l.b16 %v30
  %v335 = vunpack.c.h.b16 %v30
  %v336 = vunpack.c.l.b16 %v31
  %v337 = vunpack.c.h.b16 %v31
  %v338 = vunpack.c.l.b16 %v32
  %v339 = vunpack.c.h.b16 %v32
  %v340 = vunpack.c.l.b16 %v33
  %v341 = vunpack.c.h.b16 %v33
  %v342 = vunpack.c.l.b16 %v34
  %v343 = vunpack.c.h.b16 %v34
  %v344 = vunpack.c.l.b16 %v35
  %v345 = vunpack.c.h.b16 %v35
  %v346 = vpack.c.b16 %v330, %v314
  %v347 = vpack.c.b16 %v331, %v315
  %v348 = vpack.c.b16 %v332, %v316
  %v349 = vpack.c.b16 %v333, %v317
  %v350 = vpack.c.b16 %v334, %v318
  %v351 = vpack.c.b16 %v335, %v319
  %v352 = vpack.c.b16 %v336, %v320
  %v353 = vpack.c.b16 %v337, %v321
  %v354 = vpack.c.b16 %v338, %v322
  %v355 = vpack.c.b16 %v339, %v323
  %v356 = vpack.c.b16 %v340, %v324
  %v357 = vpack.c.b16 %v341, %v325
  %v358 = vpack.c.b16 %v342, %v326
  %v359 = vpack.c.b16 %v343, %v327
  %v360 = vpack.c.b16 %v344, %v328
  %v361 = vpack.c.b16 %v345, %v329
  %v634 = vunpack.c.l.b16 %v36
  %v635 = vunpack.c.h.b16 %v36
  %v636 = vunpack.c.l.b16 %v37
  %v637 = vunpack.c.h.b16 %v37
  %v638 = vunpack.c.l.b16 %v38
  %v639 = vunpack.c.h.b16 %v38
  %v640 = vunpack.c.l.b16 %v39
  %v641 = vunpack.c.h.b16 %v39
  %v642 = vunpack.c.l.b16 %v40
  %v643 = vunpack.c.h.b16 %v40
  %v644 = vunpack.c.l.b16 %v41
  %v645 = vunpack.c.h.b16 %v41
  %v646 = vunpack.c.l.b16 %v42
  %v647 = vunpack.c.h.b16 %v42
  %v648 = vunpack.c.l.b16 %v43
  %v649 = vunpack.c.h.b16 %v43
  %v650 = vunpack.c.l.b16 %v44
  %v651 = vunpack.c.h.b16 %v44
  %v652 = vunpack.c.l.b16 %v45
  %v653 = vunpack.c.h.b16 %v45
  %v654 = vunpack.c.l.b16 %v46
  %v655 = vunpack.c.h.b16 %v46
  %v656 = vunpack.c.l.b16 %v47
  %v657 = vunpack.c.h.b16 %v47
  %v658 = vunpack.c.l.b16 %v48
  %v659 = vunpack.c.h.b16 %v48
  %v660 = vunpack.c.l.b16 %v49
  %v661 = vunpack.c.h.b16 %v49
  %v662 = vunpack.c.l.b16 %v50
  %v663 = vunpack.c.h.b16 %v50
  %v664 = vunpack.c.l.b16 %v51
  %v665 = vunpack.c.h.b16 %v51
  %v666 = vunpack.c.l.b16 %v52
  %v667 = vunpack.c.h.b16 %v52
  %v668 = vunpack.c.l.b16 %v53
  %v669 = vunpack.c.h.b16 %v53
  %v670 = vunpack.c.l.b16 %v54
  %v671 = vunpack.c.h.b16 %v54
  %v672 = vunpack.c.l.b16 %v55
  %v673 = vunpack.c.h.b16 %v55
  %v674 = vunpack.c.l.b16 %v56
  %v675 = vunpack.c.h.b16 %v56
  %v676 = vunpack.c.l.b16 %v57
  %v677 = vunpack.c.h.b16 %v57
  %v678 = vunpack.c.l.b16 %v58
  %v679 = vunpack.c.h.b16 %v58
  %v680 = vunpack.c.l.b16 %v59
  %v681 = vunpack.c.h.b16 %v59
  %v682 = vunpack.c.l.b16 %v60
  %v683 = vunpack.c.h.b16 %v60
  %v684 = vunpack.c.l.b16 %v61
  %v685 = vunpack.c.h.b16 %v61
  %v686 = vunpack.c.l.b16 %v62
  %v687 = vunpack.c.h.b16 %v62
  %v688 = vunpack.c.l.b16 %v63
  %v689 = vunpack.c.h.b16 %v63
  %v690 = vunpack.c.l.b16 %v64
  %v691 = vunpack.c.h.b16 %v64
  %v692 = vunpack.c.l.b16 %v65
  %v693 = vunpack.c.h.b16 %v65
  %v694 = vunpack.c.l.b16 %v66
  %v695 = vunpack.c.h.b16 %v66
  %v696 = vunpack.c.l.b16 %v67
  %v697 = vunpack.c.h.b16 %v67
  %v698 = vunpack.c.l.b16 %v68
  %v699 = vunpack.c.h.b16 %v68
  %v700 = vunpack.c.l.b16 %v69
  %v701 = vunpack.c.h.b16 %v69
  %v702 = vunpack.c.l.b16 %v70
  %v703 = vunpack.c.h.b16 %v70
  %v704 = vunpack.c.l.b16 %v71
  %v705 = vunpack.c.h.b16 %v71
  %v706 = vunpack.c.l.b16 %v72
  %v707 = vunpack.c.h.b16 %v72
  %v708 = vunpack.c.l.b16 %v73
  %v709 = vunpack.c.h.b16 %v73
  %v710 = vunpack.c.l.b16 %v74
  %v711 = vunpack.c.h.b16 %v74
  %v712 = vunpack.c.l.b16 %v75
  %v713 = vunpack.c.h.b16 %v75
  %v714 = vunpack.c.l.b16 %v76
  %v715 = vunpack.c.h.b16 %v76
  %v716 = vunpack.c.l.b16 %v77
  %v717 = vunpack.c.h.b16 %v77
  %v718 = vunpack.c.l.b16 %v78
  %v719 = vunpack.c.h.b16 %v78
  %v720 = vunpack.c.l.b16 %v79
  %v721 = vunpack.c.h.b16 %v79
  %v722 = vunpack.c.l.b16 %v80
  %v723 = vunpack.c.h.b16 %v80
  %v724 = vunpack.c.l.b16 %v81
  %v725 = vunpack.c.h.b16 %v81
  %v726 = vunpack.c.l.b16 %v82
  %v727 = vunpack.c.h.b16 %v82
  %v728 = vunpack.c.l.b16 %v83
  %v729 = vunpack.c.h.b16 %v83
  %v730 = vunpack.c.l.b16 %v84
  %v731 = vunpack.c.h.b16 %v84
  %v732 = vunpack.c.l.b16 %v85
  %v733 = vunpack.c.h.b16 %v85
  %v734 = vunpack.c.l.b16 %v86
  %v735 = vunpack.c.h.b16 %v86
  %v736 = vunpack.c.l.b16 %v87
  %v737 = vunpack.c.h.b16 %v87
  %v738 = vunpack.c.l.b16 %v88
  %v739 = vunpack.c.h.b16 %v88
  %v740 = vunpack.c.l.b16 %v89
  %v741 = vunpack.c.h.b16 %v89
  %v742 = vunpack.c.l.b16 %v90
  %v743 = vunpack.c.h.b16 %v90
  %v744 = vunpack.c.l.b16 %v91
  %v745 = vunpack.c.h.b16 %v91
  %v746 = vunpack.c.l.b16 %v92
  %v747 = vunpack.c.h.b16 %v92
  %v748 = vunpack.c.l.b16 %v93
  %v749 = vunpack.c.h.b16 %v93
  %v750 = vunpack.c.l.b16 %v94
  %v751 = vunpack.c.h.b16 %v94
  %v752 = vunpack.c.l.b16 %v95
  %v753 = vunpack.c.h.b16 %v95
  %v754 = vunpack.c.l.b16 %v96
  %v755 = vunpack.c.h.b16 %v96
  %v756 = vunpack.c.l.b16 %v97
  %v757 = vunpack.c.h.b16 %v97
  %v758 = vunpack.c.l.b16 %v98
  %v759 = vunpack.c.h.b16 %v98
  %v760 = vunpack.c.l.b16 %v99
  %v761 = vunpack.c.h.b16 %v99
  %v762 = vunpack.c.l.b16 %v100
  %v763 = vunpack.c.h.b16 %v100
  %v764 = vunpack.c.l.b16 %v101
  %v765 = vunpack.c.h.b16 %v101
  %v766 = vunpack.c.l.b16 %v102
  %v767 = vunpack.c.h.b16 %v102
  %v768 = vunpack.c.l.b16 %v103
  %v769 = vunpack.c.h.b16 %v103
  %v770 = vunpack.c.l.b16 %v104
  %v771 = vunpack.c.h.b16 %v104
  %v772 = vunpack.c.l.b16 %v105
  %v773 = vunpack.c.h.b16 %v105
  %v774 = vunpack.c.l.b16 %v106
  %v775 = vunpack.c.h.b16 %v106
  %v776 = vunpack.c.l.b16 %v107
  %v777 = vunpack.c.h.b16 %v107
  %v778 = vunpack.c.l.b16 %v108
  %v779 = vunpack.c.h.b16 %v108
  %v780 = vunpack.c.l.b16 %v109
  %v781 = vunpack.c.h.b16 %v109
  %v782 = vunpack.c.l.b16 %v110
  %v783 = vunpack.c.h.b16 %v110
  %v784 = vunpack.c.l.b16 %v111
  %v785 = vunpack.c.h.b16 %v111
  %v786 = vunpack.c.l.b16 %v112
  %v787 = vunpack.c.h.b16 %v112
  %v788 = vunpack.c.l.b16 %v113
  %v789 = vunpack.c.h.b16 %v113
  %v790 = vunpack.c.l.b16 %v114
  %v791 = vunpack.c.h.b16 %v114
  %v792 = vunpack.c.l.b16 %v115
  %v793 = vunpack.c.h.b16 %v115
  %v794 = vunpack.c.l.b16 %v116
  %v795 = vunpack.c.h.b16 %v116
  %v796 = vunpack.c.l.b16 %v117
  %v797 = vunpack.c.h.b16 %v117
  %v798 = vunpack.c.l.b16 %v118
  %v799 = vunpack.c.h.b16 %v118
  %v800 = vunpack.c.l.b16 %v119
  %v801 = vunpack.c.h.b16 %v119
  %v802 = vunpack.c.l.b16 %v120
  %v803 = vunpack.c.h.b16 %v120
  %v804 = vunpack.c.l.b16 %v121
  %v805 = vunpack.c.h.b16 %v121
  %v806 = vunpack.c.l.b16 %v122
  %v807 = vunpack.c.h.b16 %v122
  %v808 = vunpack.c.l.b16 %v123
  %v809 = vunpack.c.h.b16 %v123
  %v810 = vunpack.c.l.b16 %v124
  %v811 = vunpack.c.h.b16 %v124
  %v812 = vunpack.c.l.b16 %v125
  %v813 = vunpack.c.h.b16 %v125
  %v814 = vunpack.c.l.b16 %v126
  %v815 = vunpack.c.h.b16 %v126
  %v816 = vunpack.c.l.b16 %v127
  %v817 = vunpack.c.h.b16 %v127
  %v818 = vunpack.c.l.b16 %v128
  %v819 = vunpack.c.h.b16 %v128
  %v820 = vunpack.c.l.b16 %v129
  %v821 = vunpack.c.h.b16 %v129
  %v822 = vunpack.c.l.b16 %v130
  %v823 = vunpack.c.h.b16 %v130
  %v824 = vunpack.c.l.b16 %v131
  %v825 = vunpack.c.h.b16 %v131
  %v826 = vunpack.c.l.b16 %v132
  %v827 = vunpack.c.h.b16 %v132
  %v828 = vunpack.c.l.b16 %v133
  %v829 = vunpack.c.h.b16 %v133
  %v830 = vunpack.c.l.b16 %v134
  %v831 = vunpack.c.h.b16 %v134
  %v832 = vunpack.c.l.b16 %v135
  %v833 = vunpack.c.h.b16 %v135
  %v834 = vunpack.c.l.b16 %v136
  %v835 = vunpack.c.h.b16 %v136
  %v836 = vunpack.c.l.b16 %v137
  %v837 = vunpack.c.h.b16 %v137
  %v838 = vunpack.c.l.b16 %v138
  %v839 = vunpack.c.h.b16 %v138
  %v840 = vunpack.c.l.b16 %v139
  %v841 = vunpack.c.h.b16 %v139
  %v842 = vunpack.c.l.b16 %v140
  %v843 = vunpack.c.h.b16 %v140
  %v844 = vunpack.c.l.b16 %v141
  %v845 = vunpack.c.h.b16 %v141
  %v846 = vunpack.c.l.b16 %v142
  %v847 = vunpack.c.h.b16 %v142
  %v848 = vunpack.c.l.b16 %v143
  %v849 = vunpack.c.h.b16 %v143
  %v850 = vunpack.c.l.b16 %v144
  %v851 = vunpack.c.h.b16 %v144
  %v852 = vunpack.c.l.b16 %v145
  %v853 = vunpack.c.h.b16 %v145
  %v854 = vunpack.c.l.b16 %v146
  %v855 = vunpack.c.h.b16 %v146
  %v856 = vunpack.c.l.b16 %v147
  %v857 = vunpack.c.h.b16 %v147
  %v858 = vunpack.c.l.b16 %v148
  %v859 = vunpack.c.h.b16 %v148
  %v860 = vunpack.c.l.b16 %v149
  %v861 = vunpack.c.h.b16 %v149
  %v862 = vunpack.c.l.b16 %v150
  %v863 = vunpack.c.h.b16 %v150
  %v864 = vunpack.c.l.b16 %v151
  %v865 = vunpack.c.h.b16 %v151
  %v866 = vunpack.c.l.b16 %v152
  %v867 = vunpack.c.h.b16 %v152
  %v868 = vunpack.c.l.b16 %v153
  %v869 = vunpack.c.h.b16 %v153
  %v870 = vunpack.c.l.b16 %v154
  %v871 = vunpack.c.h.b16 %v154
  %v872 = vunpack.c.l.b16 %v155
  %v873 = vunpack.c.h.b16 %v155
  %v874 = vunpack.c.l.b16 %v156
  %v875 = vunpack.c.h.b16 %v156
  %v876 = vunpack.c.l.b16 %v157
  %v877 = vunpack.c.h.b16 %v157
  %v878 = vunpack.c.l.b16 %v158
  %v879 = vunpack.c.h.b16 %v158
  %v880 = vunpack.c.l.b16 %v159
  %v881 = vunpack.c.h.b16 %v159
  %v882 = vunpack.c.l.b16 %v160
  %v883 = vunpack.c.h.b16 %v160
  %v884 = vunpack.c.l.b16 %v161
  %v885 = vunpack.c.h.b16 %v161
  %v886 = vunpack.c.l.b16 %v162
  %v887 = vunpack.c.h.b16 %v162
  %v888 = vunpack.c.l.b16 %v163
  %v889 = vunpack.c.h.b16 %v163
  %v890 = vunpack.c.l.b16 %v164
  %v891 = vunpack.c.h.b16 %v164
  %v892 = vunpack.c.l.b16 %v165
  %v893 = vunpack.c.h.b16 %v165
  %v894 = vunpack.c.l.b16 %v166
  %v895 = vunpack.c.h.b16 %v166
  %v896 = vunpack.c.l.b16 %v167
  %v897 = vunpack.c.h.b16 %v167
  %v898 = vunpack.c.l.b16 %v168
  %v899 = vunpack.c.h.b16 %v168
  %v900 = vunpack.c.l.b16 %v169
  %v901 = vunpack.c.h.b16 %v169
  %v902 = vunpack.c.l.b16 %v170
  %v903 = vunpack.c.h.b16 %v170
  %v904 = vunpack.c.l.b16 %v171
  %v905 = vunpack.c.h.b16 %v171
  %v906 = vunpack.c.l.b16 %v172
  %v907 = vunpack.c.h.b16 %v172
  %v908 = vunpack.c.l.b16 %v173
  %v909 = vunpack.c.h.b16 %v173
  %v910 = vunpack.c.l.b16 %v174
  %v911 = vunpack.c.h.b16 %v174
  %v912 = vunpack.c.l.b16 %v175
  %v913 = vunpack.c.h.b16 %v175
  %v914 = vunpack.c.l.b16 %v176
  %v915 = vunpack.c.h.b16 %v176
  %v916 = vunpack.c.l.b16 %v177
  %v917 = vunpack.c.h.b16 %v177
  %v918 = vunpack.c.l.b16 %v178
  %v919 = vunpack.c.h.b16 %v178
  %v920 = vunpack.c.l.b16 %v179
  %v921 = vunpack.c.h.b16 %v179
  %v922 = vunpack.c.l.b16 %v180
  %v923 = vunpack.c.h.b16 %v180
  %v924 = vunpack.c.l.b16 %v181
  %v925 = vunpack.c.h.b16 %v181
  %v926 = vunpack.c.l.b16 %v182
  %v927 = vunpack.c.h.b16 %v182
  %v928 = vunpack.c.l.b16 %v183
  %v929 = vunpack.c.h.b16 %v183
  %v930 = vunpack.c.l.b16 %v184
  %v931 = vunpack.c.h.b16 %v184
  %v932 = vunpack.c.l.b16 %v185
  %v933 = vunpack.c.h.b16 %v185
  %v934 = vunpack.c.l.b16 %v186
  %v935 = vunpack.c.h.b16 %v186
  %v936 = vunpack.c.l.b16 %v187
  %v937 = vunpack.c.h.b16 %v187
  %v938 = vunpack.c.l.b16 %v188
  %v939 = vunpack.c.h.b16 %v188
  %v940 = vunpack.c.l.b16 %v189
  %v941 = vunpack.c.h.b16 %v189
  %v942 = vunpack.c.l.b16 %v190
  %v943 = vunpack.c.h.b16 %v190
  %v944 = vunpack.c.l.b16 %v191
  %v945 = vunpack.c.h.b16 %v191
  %v946 = vunpack.c.l.b16 %v192
  %v947 = vunpack.c.h.b16 %v192
  %v948 = vunpack.c.l.b16 %v193
  %v949 = vunpack.c.h.b16 %v193
  %v950 = vunpack.c.l.b16 %v194
  %v951 = vunpack.c.h.b16 %v194
  %v952 = vunpack.c.l.b16 %v195
  %v953 = vunpack.c.h.b16 %v195
  %v954 = vunpack.c.l.b16 %v196
  %v955 = vunpack.c.h.b16 %v196
  %v956 = vunpack.c.l.b16 %v197
  %v957 = vunpack.c.h.b16 %v197
  %v958 = vunpack.c.l.b16 %v198
  %v959 = vunpack.c.h.b16 %v198
  %v960 = vunpack.c.l.b16 %v199
  %v961 = vunpack.c.h.b16 %v199
  %v962 = vunpack.c.l.b16 %v200
  %v963 = vunpack.c.h.b16 %v200
  %v964 = vunpack.c.l.b16 %v201
  %v965 = vunpack.c.h.b16 %v201
  %v966 = vunpack.c.l.b16 %v202
  %v967 = vunpack.c.h.b16 %v202
  %v968 = vunpack.c.l.b16 %v203
  %v969 = vunpack.c.h.b16 %v203
  %v970 = vunpack.c.l.b16 %v204
  %v971 = vunpack.c.h.b16 %v204
  %v972 = vunpack.c.l.b16 %v205
  %v973 = vunpack.c.h.b16 %v205
  %v974 = vunpack.c.l.b16 %v206
  %v975 = vunpack.c.h.b16 %v206
  %v976 = vunpack.c.l.b16 %v207
  %v977 = vunpack.c.h.b16 %v207
  %v978 = vunpack.c.l.b16 %v208
  %v979 = vunpack.c.h.b16 %v208
  %v980 = vunpack.c.l.b16 %v209
  %v981 = vunpack.c.h.b16 %v209
  %v982 = vunpack.c.l.b16 %v210
  %v983 = vunpack.c.h.b16 %v210
  %v984 = vunpack.c.l.b16 %v211
  %v985 = vunpack.c.h.b16 %v211
  %v986 = vunpack.c.l.b16 %v212
  %v987 = vunpack.c.h.b16 %v212
  %v988 = vunpack.c.l.b16 %v213
  %v989 = vunpack.c.h.b16 %v213
  %v990 = vunpack.c.l.b16 %v214
  %v991 = vunpack.c.h.b16 %v214
  %v992 = vunpack.c.l.b16 %v215
  %v993 = vunpack.c.h.b16 %v215
  %v994 = vunpack.c.l.b16 %v216
  %v995 = vunpack.c.h.b16 %v216
  %v996 = vunpack.c.l.b16 %v217
  %v997 = vunpack.c.h.b16 %v217
  %v998 = vunpack.c.l.b16 %v218
  %v999 = vunpack.c.h.b16 %v218
  %v1000 = vunpack.c.l.b16 %v219
  %v1001 = vunpack.c.h.b16 %v219
  %v1002 = vunpack.c.l.b16 %v220
  %v1003 = vunpack.c.h.b16 %v220
  %v1004 = vunpack.c.l.b16 %v221
  %v1005 = vunpack.c.h.b16 %v221
  %v1006 = vunpack.c.l.b16 %v222
  %v1007 = vunpack.c.h.b16 %v222
  %v1008 = vunpack.c.l.b16 %v223
  %v1009 = vunpack.c.h.b16 %v223
  %v1010 = vunpack.c.l.b16 %v224
  %v1011 = vunpack.c.h.b16 %v224
  %v1012 = vunpack.c.l.b16 %v225
  %v1013 = vunpack.c.h.b16 %v225
  %v1014 = vunpack.c.l.b16 %v226
  %v1015 = vunpack.c.h.b16 %v226
  %v1016 = vunpack.c.l.b16 %v227
  %v1017 = vunpack.c.h.b16 %v227
  %v1018 = vunpack.c.l.b16 %v228
  %v1019 = vunpack.c.h.b16 %v228
  %v1020 = vunpack.c.l.b16 %v229
  %v1021 = vunpack.c.h.b16 %v229
  %v1022 = vunpack.c.l.b16 %v230
  %v1023 = vunpack.c.h.b16 %v230
  %v1024 = vunpack.c.l.b16 %v231
  %v1025 = vunpack.c.h.b16 %v231
  %v1026 = vunpack.c.l.b16 %v232
  %v1027 = vunpack.c.h.b16 %v232
  %v1028 = vunpack.c.l.b16 %v233
  %v1029 = vunpack.c.h.b16 %v233
  %v1030 = vunpack.c.l.b16 %v234
  %v1031 = vunpack.c.h.b16 %v234
  %v1032 = vunpack.c.l.b16 %v235
  %v1033 = vunpack.c.h.b16 %v235
  %v1034 = vunpack.c.l.b16 %v236
  %v1035 = vunpack.c.h.b16 %v236
  %v1036 = vunpack.c.l.b16 %v237
  %v1037 = vunpack.c.h.b16 %v237
  %v1038 = vunpack.c.l.b16 %v238
  %v1039 = vunpack.c.h.b16 %v238
  %v1040 = vunpack.c.l.b16 %v239
  %v1041 = vunpack.c.h.b16 %v239
  %v1042 = vunpack.c.l.b16 %v240
  %v1043 = vunpack.c.h.b16 %v240
  %v1044 = vunpack.c.l.b16 %v241
  %v1045 = vunpack.c.h.b16 %v241
  %v1046 = vunpack.c.l.b16 %v242
  %v1047 = vunpack.c.h.b16 %v242
  %v1048 = vunpack.c.l.b16 %v243
  %v1049 = vunpack.c.h.b16 %v243
  %v1050 = vunpack.c.l.b16 %v244
  %v1051 = vunpack.c.h.b16 %v244
  %v1052 = vunpack.c.l.b16 %v245
  %v1053 = vunpack.c.h.b16 %v245
  %v1054 = vunpack.c.l.b16 %v246
  %v1055 = vunpack.c.h.b16 %v246
  %v1056 = vunpack.c.l.b16 %v247
  %v1057 = vunpack.c.h.b16 %v247
  %v1058 = vunpack.c.l.b16 %v248
  %v1059 = vunpack.c.h.b16 %v248
  %v1060 = vunpack.c.l.b16 %v249
  %v1061 = vunpack.c.h.b16 %v249
  %v1062 = vunpack.c.l.b16 %v250
  %v1063 = vunpack.c.h.b16 %v250
  %v1064 = vunpack.c.l.b16 %v251
  %v1065 = vunpack.c.h.b16 %v251
  %v1066 = vunpack.c.l.b16 %v252
  %v1067 = vunpack.c.h.b16 %v252
  %v1068 = vunpack.c.l.b16 %v253
  %v1069 = vunpack.c.h.b16 %v253
  %v1070 = vunpack.c.l.b16 %v254
  %v1071 = vunpack.c.h.b16 %v254
  %v1072 = vunpack.c.l.b16 %v255
  %v1073 = vunpack.c.h.b16 %v255
  %v1074 = vunpack.c.l.b16 %v256
  %v1075 = vunpack.c.h.b16 %v256
  %v1076 = vunpack.c.l.b16 %v257
  %v1077 = vunpack.c.h.b16 %v257
  %v1078 = vunpack.c.l.b16 %v258
  %v1079 = vunpack.c.h.b16 %v258
  %v1080 = vunpack.c.l.b16 %v259
  %v1081 = vunpack.c.h.b16 %v259
  %v1082 = vunpack.c.l.b16 %v260
  %v1083 = vunpack.c.h.b16 %v260
  %v1084 = vunpack.c.l.b16 %v261
  %v1085 = vunpack.c.h.b16 %v261
  %v1086 = vunpack.c.l.b16 %v262
  %v1087 = vunpack.c.h.b16 %v262
  %v1088 = vunpack.c.l.b16 %v263
  %v1089 = vunpack.c.h.b16 %v263
  %v1090 = vunpack.c.l.b16 %v264
  %v1091 = vunpack.c.h.b16 %v264
  %v1092 = vunpack.c.l.b16 %v265
  %v1093 = vunpack.c.h.b16 %v265
  %v1094 = vunpack.c.l.b16 %v266
  %v1095 = vunpack.c.h.b16 %v266
  %v1096 = vunpack.c.l.b16 %v267
  %v1097 = vunpack.c.h.b16 %v267
  %v1098 = vunpack.c.l.b16 %v268
  %v1099 = vunpack.c.h.b16 %v268
  %v1100 = vunpack.c.l.b16 %v269
  %v1101 = vunpack.c.h.b16 %v269
  %v1102 = vunpack.c.l.b16 %v270
  %v1103 = vunpack.c.h.b16 %v270
  %v1104 = vunpack.c.l.b16 %v271
  %v1105 = vunpack.c.h.b16 %v271
  %v1106 = vunpack.c.l.b16 %v272
  %v1107 = vunpack.c.h.b16 %v272
  %v1108 = vunpack.c.l.b16 %v273
  %v1109 = vunpack.c.h.b16 %v273
  %v1110 = vunpack.c.l.b16 %v274
  %v1111 = vunpack.c.h.b16 %v274
  %v1112 = vunpack.c.l.b16 %v275
  %v1113 = vunpack.c.h.b16 %v275
  %v1114 = vunpack.c.l.b16 %v276
  %v1115 = vunpack.c.h.b16 %v276
  %v1116 = vunpack.c.l.b16 %v277
  %v1117 = vunpack.c.h.b16 %v277
  %v1118 = vunpack.c.l.b16 %v278
  %v1119 = vunpack.c.h.b16 %v278
  %v1120 = vunpack.c.l.b16 %v279
  %v1121 = vunpack.c.h.b16 %v279
  %v1122 = vunpack.c.l.b16 %v280
  %v1123 = vunpack.c.h.b16 %v280
  %v1124 = vunpack.c.l.b16 %v281
  %v1125 = vunpack.c.h.b16 %v281
  %v1126 = vunpack.c.l.b16 %v282
  %v1127 = vunpack.c.h.b16 %v282
  %v1128 = vunpack.c.l.b16 %v283
  %v1129 = vunpack.c.h.b16 %v283
  %v1130 = vunpack.c.l.b16 %v284
  %v1131 = vunpack.c.h.b16 %v284
  %v1132 = vunpack.c.l.b16 %v285
  %v1133 = vunpack.c.h.b16 %v285
  %v1134 = vunpack.c.l.b16 %v286
  %v1135 = vunpack.c.h.b16 %v286
  %v1136 = vunpack.c.l.b16 %v287
  %v1137 = vunpack.c.h.b16 %v287
  %v1138 = vunpack.c.l.b16 %v288
  %v1139 = vunpack.c.h.b16 %v288
  %v1140 = vunpack.c.l.b16 %v289
  %v1141 = vunpack.c.h.b16 %v289
  %v1142 = vunpack.c.l.b16 %v290
  %v1143 = vunpack.c.h.b16 %v290
  %v1144 = vunpack.c.l.b16 %v291
  %v1145 = vunpack.c.h.b16 %v291
  %v1146 = vpack.c.b16 %v636, %v634
  %v1147 = vpack.c.b16 %v637, %v635
  %v1148 = vpack.c.b16 %v640, %v638
  %v1149 = vpack.c.b16 %v641, %v639
  %v1150 = vpack.c.b16 %v644, %v642
  %v1151 = vpack.c.b16 %v645, %v643
  %v1152 = vpack.c.b16 %v648, %v646
  %v1153 = vpack.c.b16 %v649, %v647
  %v1154 = vpack.c.b16 %v652, %v650
  %v1155 = vpack.c.b16 %v653, %v651
  %v1156 = vpack.c.b16 %v656, %v654
  %v1157 = vpack.c.b16 %v657, %v655
  %v1158 = vpack.c.b16 %v660, %v658
  %v1159 = vpack.c.b16 %v661, %v659
  %v1160 = vpack.c.b16 %v664, %v662
  %v1161 = vpack.c.b16 %v665, %v663
  %v1162 = vpack.c.b16 %v668, %v666
  %v1163 = vpack.c.b16 %v669, %v667
  %v1164 = vpack.c.b16 %v672, %v670
  %v1165 = vpack.c.b16 %v673, %v671
  %v1166 = vpack.c.b16 %v676, %v674
  %v1167 = vpack.c.b16 %v677, %v675
  %v1168 = vpack.c.b16 %v680, %v678
  %v1169 = vpack.c.b16 %v681, %v679
  %v1170 = vpack.c.b16 %v684, %v682
  %v1171 = vpack.c.b16 %v685, %v683
  %v1172 = vpack.c.b16 %v688, %v686
  %v1173 = vpack.c.b16 %v689, %v687
  %v1174 = vpack.c.b16 %v692, %v690
  %v1175 = vpack.c.b16 %v693, %v691
  %v1176 = vpack.c.b16 %v696, %v694
  %v1177 = vpack.c.b16 %v697, %v695
  %v1178 = vpack.c.b16 %v700, %v698
  %v1179 = vpack.c.b16 %v701, %v699
  %v1180 = vpack.c.b16 %v704, %v702
  %v1181 = vpack.c.b16 %v705, %v703
  %v1182 = vpack.c.b16 %v708, %v706
  %v1183 = vpack.c.b16 %v709, %v707
  %v1184 = vpack.c.b16 %v712, %v710
  %v1185 = vpack.c.b16 %v713, %v711
  %v1186 = vpack.c.b16 %v716, %v714
  %v1187 = vpack.c.b16 %v717, %v715
  %v1188 = vpack.c.b16 %v720, %v718
  %v1189 = vpack.c.b16 %v721, %v719
  %v1190 = vpack.c.b16 %v724, %v722
  %v1191 = vpack.c.b16 %v725, %v723
  %v1192 = vpack.c.b16 %v728, %v726
  %v1193 = vpack.c.b16 %v729, %v727
  %v1194 = vpack.c.b16 %v732, %v730
  %v1195 = vpack.c.b16 %v733, %v731
  %v1196 = vpack.c.b16 %v736, %v734
  %v1197 = vpack.c.b16 %v737, %v735
  %v1198 = vpack.c.b16 %v740, %v738
  %v1199 = vpack.c.b16 %v741, %v739
  %v1200 = vpack.c.b16 %v744, %v742
  %v1201 = vpack.c.b16 %v745, %v743
  %v1202 = vpack.c.b16 %v748, %v746
  %v1203 = vpack.c.b16 %v749, %v747
  %v1204 = vpack.c.b16 %v752, %v750
  %v1205 = vpack.c.b16 %v753, %v751
  %v1206 = vpack.c.b16 %v756, %v754
  %v1207 = vpack.c.b16 %v757, %v755
  %v1208 = vpack.c.b16 %v760, %v758
  %v1209 = vpack.c.b16 %v761, %v759
  %v1210 = vpack.c.b16 %v764, %v762
  %v1211 = vpack.c.b16 %v765, %v763
  %v1212 = vpack.c.b16 %v768, %v766
  %v1213 = vpack.c.b16 %v769, %v767
  %v1214 = vpack.c.b16 %v772, %v770
  %v1215 = vpack.c.b16 %v773, %v771
  %v1216 = vpack.c.b16 %v776, %v774
  %v1217 = vpack.c.b16 %v777, %v775
  %v1218 = vpack.c.b16 %v780, %v778
  %v1219 = vpack.c.b16 %v781, %v779
  %v1220 = vpack.c.b16 %v784, %v782
  %v1221 = vpack.c.b16 %v785, %v783
  %v1222 = vpack.c.b16 %v788, %v786
  %v1223 = vpack.c.b16 %v789, %v787
  %v1224 = vpack.c.b16 %v792, %v790
  %v1225 = vpack.c.b16 %v793, %v791
  %v1226 = vpack.c.b16 %v796, %v794
  %v1227 = vpack.c.b16 %v797, %v795
  %v1228 = vpack.c.b16 %v800, %v798
  %v1229 = vpack.c.b16 %v801, %v799
  %v1230 = vpack.c.b16 %v804, %v802
  %v1231 = vpack.c.b16 %v805, %v803
  %v1232 = vpack.c.b16 %v808, %v806
  %v1233 = vpack.c.b16 %v809, %v807
  %v1234 = vpack.c.b16 %v812, %v810
  %v1235 = vpack.c.b16 %v813, %v811
  %v1236 = vpack.c.b16 %v816, %v814
  %v1237 = vpack.c.b16 %v817, %v815
  %v1238 = vpack.c.b16 %v820, %v818
  %v1239 = vpack.c.b16 %v821, %v819
  %v1240 = vpack.c.b16 %v824, %v822
  %v1241 = vpack.c.b16 %v825, %v823
  %v1242 = vpack.c.b16 %v828, %v826
  %v1243 = vpack.c.b16 %v829, %v827
  %v1244 = vpack.c.b16 %v832, %v830
  %v1245 = vpack.c.b16 %v833, %v831
  %v1246 = vpack.c.b16 %v836, %v834
  %v1247 = vpack.c.b16 %v837, %v835
  %v1248 = vpack.c.b16 %v840, %v838
  %v1249 = vpack.c.b16 %v841, %v839
  %v1250 = vpack.c.b16 %v844, %v842
  %v1251 = vpack.c.b16 %v845, %v843
  %v1252 = vpack.c.b16 %v848, %v846
  %v1253 = vpack.c.b16 %v849, %v847
  %v1254 = vpack.c.b16 %v852, %v850
  %v1255 = vpack.c.b16 %v853, %v851
  %v1256 = vpack.c.b16 %v856, %v854
  %v1257 = vpack.c.b16 %v857, %v855
  %v1258 = vpack.c.b16 %v860, %v858
  %v1259 = vpack.c.b16 %v861, %v859
  %v1260 = vpack.c.b16 %v864, %v862
  %v1261 = vpack.c.b16 %v865, %v863
  %v1262 = vpack.c.b16 %v868, %v866
  %v1263 = vpack.c.b16 %v869, %v867
  %v1264 = vpack.c.b16 %v872, %v870
  %v1265 = vpack.c.b16 %v873, %v871
  %v1266 = vpack.c.b16 %v876, %v874
  %v1267 = vpack.c.b16 %v877, %v875
  %v1268 = vpack.c.b16 %v880, %v878
  %v1269 = vpack.c.b16 %v881, %v879
  %v1270 = vpack.c.b16 %v884, %v882
  %v1271 = vpack.c.b16 %v885, %v883
  %v1272 = vpack.c.b16 %v888, %v886
  %v1273 = vpack.c.b16 %v889, %v887
  %v1274 = vpack.c.b16 %v892, %v890
  %v1275 = vpack.c.b16 %v893, %v891
  %v1276 = vpack.c.b16 %v896, %v894
  %v1277 = vpack.c.b16 %v897, %v895
  %v1278 = vpack.c.b16 %v900, %v898
  %v1279 = vpack.c.b16 %v901, %v899
  %v1280 = vpack.c.b16 %v904, %v902
  %v1281 = vpack.c.b16 %v905, %v903
  %v1282 = vpack.c.b16 %v908, %v906
  %v1283 = vpack.c.b16 %v909, %v907
  %v1284 = vpack.c.b16 %v912, %v910
  %v1285 = vpack.c.b16 %v913, %v911
  %v1286 = vpack.c.b16 %v916, %v914
  %v1287 = vpack.c.b16 %v917, %v915
  %v1288 = vpack.c.b16 %v920, %v918
  %v1289 = vpack.c.b16 %v921, %v919
  %v1290 = vpack.c.b16 %v924, %v922
  %v1291 = vpack.c.b16 %v925, %v923
  %v1292 = vpack.c.b16 %v928, %v926
  %v1293 = vpack.c.b16 %v929, %v927
  %v1294 = vpack.c.b16 %v932, %v930
  %v1295 = vpack.c.b16 %v933, %v931
  %v1296 = vpack.c.b16 %v936, %v934
  %v1297 = vpack.c.b16 %v937, %v935
  %v1298 = vpack.c.b16 %v940, %v938
  %v1299 = vpack.c.b16 %v941, %v939
  %v1300 = vpack.c.b16 %v944, %v942
  %v1301 = vpack.c.b16 %v945, %v943
  %v1302 = vpack.c.b16 %v948, %v946
  %v1303 = vpack.c.b16 %v949, %v947
  %v1304 = vpack.c.b16 %v952, %v950
  %v1305 = vpack.c.b16 %v953, %v951
  %v1306 = vpack.c.b16 %v956, %v954
  %v1307 = vpack.c.b16 %v957, %v955
  %v1308 = vpack.c.b16 %v960, %v958
  %v1309 = vpack.c.b16 %v961, %v959
  %v1310 = vpack.c.b16 %v964, %v962
  %v1311 = vpack.c.b16 %v965, %v963
  %v1312 = vpack.c.b16 %v968, %v966
  %v1313 = vpack.c.b16 %v969, %v967
  %v1314 = vpack.c.b16 %v972, %v970
  %v1315 = vpack.c.b16 %v973, %v971
  %v1316 = vpack.c.b16 %v976, %v974
  %v1317 = vpack.c.b16 %v977, %v975
  %v1318 = vpack.c.b16 %v980, %v978
  %v1319 = vpack.c.b16 %v981, %v979
  %v1320 = vpack.c.b16 %v984, %v982
  %v1321 = vpack.c.b16 %v985, %v983
  %v1322 = vpack.c.b16 %v988, %v986
  %v1323 = vpack.c.b16 %v989, %v987
  %v1324 = vpack.c.b16 %v992, %v990
  %v1325 = vpack.c.b16 %v993, %v991
  %v1326 = vpack.c.b16 %v996, %v994
  %v1327 = vpack.c.b16 %v997, %v995
  %v1328 = vpack.c.b16 %v1000, %v998
  %v1329 = vpack.c.b16 %v1001, %v999
  %v1330 = vpack.c.b16 %v1004, %v1002
  %v1331 = vpack.c.b16 %v1005, %v1003
  %v1332 = vpack.c.b16 %v1008, %v1006
  %v1333 = vpack.c.b16 %v1009, %v1007
  %v1334 = vpack.c.b16 %v1012, %v1010
  %v1335 = vpack.c.b16 %v1013, %v1011
  %v1336 = vpack.c.b16 %v1016, %v1014
  %v1337 = vpack.c.b16 %v1017, %v1015
  %v1338 = vpack.c.b16 %v1020, %v1018
  %v1339 = vpack.c.b16 %v1021, %v1019
  %v1340 = vpack.c.b16 %v1024, %v1022
  %v1341 = vpack.c.b16 %v1025, %v1023
  %v1342 = vpack.c.b16 %v1028, %v1026
  %v1343 = vpack.c.b16 %v1029, %v1027
  %v1344 = vpack.c.b16 %v1032, %v1030
  %v1345 = vpack.c.b16 %v1033, %v1031
  %v1346 = vpack.c.b16 %v1036, %v1034
  %v1347 = vpack.c.b16 %v1037, %v1035
  %v1348 = vpack.c.b16 %v1040, %v1038
  %v1349 = vpack.c.b16 %v1041, %v1039
  %v1350 = vpack.c.b16 %v1044, %v1042
  %v1351 = vpack.c.b16 %v1045, %v1043
  %v1352 = vpack.c.b16 %v1048, %v1046
  %v1353 = vpack.c.b16 %v1049, %v1047
  %v1354 = vpack.c.b16 %v1052, %v1050
  %v1355 = vpack.c.b16 %v1053, %v1051
  %v1356 = vpack.c.b16 %v1056, %v1054
  %v1357 = vpack.c.b16 %v1057, %v1055
  %v1358 = vpack.c.b16 %v1060, %v1058
  %v1359 = vpack.c.b16 %v1061, %v1059
  %v1360 = vpack.c.b16 %v1064, %v1062
  %v1361 = vpack.c.b16 %v1065, %v1063
  %v1362 = vpack.c.b16 %v1068, %v1066
  %v1363 = vpack.c.b16 %v1069, %v1067
  %v1364 = vpack.c.b16 %v1072, %v1070
  %v1365 = vpack.c.b16 %v1073, %v1071
  %v1366 = vpack.c.b16 %v1076, %v1074
  %v1367 = vpack.c.b16 %v1077, %v1075
  %v1368 = vpack.c.b16 %v1080, %v1078
  %v1369 = vpack.c.b16 %v1081, %v1079
  %v1370 = vpack.c.b16 %v1084, %v1082
  %v1371 = vpack.c.b16 %v1085, %v1083
  %v1372 = vpack.c.b16 %v1088, %v1086
  %v1373 = vpack.c.b16 %v1089, %v1087
  %v1374 = vpack.c.b16 %v1092, %v1090
  %v1375 = vpack.c.b16 %v1093, %v1091
  %v1376 = vpack.c.b16 %v1096, %v1094
  %v1377 = vpack.c.b16 %v1097, %v1095
  %v1378 = vpack.c.b16 %v1100, %v1098
  %v1379 = vpack.c.b16 %v1101, %v1099
  %v1380 = vpack.c.b16 %v1104, %v1102
  %v1381 = vpack.c.b16 %v1105, %v1103
  %v1382 = vpack.c.b16 %v1108, %v1106
  %v1383 = vpack.c.b16 %v1109, %v1107
  %v1384 = vpack.c.b16 %v1112, %v1110
  %v1385 = vpack.c.b16 %v1113, %v1111
  %v1386 = vpack.c.b16 %v1116, %v1114
  %v1387 = vpack.c.b16 %v1117, %v1115
  %v1388 = vpack.c.b16 %v1120, %v1118
  %v1389 = vpack.c.b16 %v1121, %v1119
  %v1390 = vpack.c.b16 %v1124, %v1122
  %v1391 = vpack.c.b16 %v1125, %v1123
  %v1392 = vpack.c.b16 %v1128, %v1126
  %v1393 = vpack.c.b16 %v1129, %v1127
  %v1394 = vpack.c.b16 %v1132, %v1130
  %v1395 = vpack.c.b16 %v1133, %v1131
  %v1396 = vpack.c.b16 %v1136, %v1134
  %v1397 = vpack.c.b16 %v1137, %v1135
  %v1398 = vpack.c.b16 %v1140, %v1138
  %v1399 = vpack.c.b16 %v1141, %v1139
  %v1400 = vpack.c.b16 %v1144, %v1142
  %v1401 = vpack.c.b16 %v1145, %v1143
  %1658 = vmatpush.bf16.msra.mxu0 %v1160
  %1659 = vmatpush.bf16.msra.mxu0 %v1158
  %1660 = vmatpush.bf16.msra.mxu0 %v1156
  %1661 = vmatpush.bf16.msra.mxu0 %v1154
  %1662 = vmatpush.bf16.msra.mxu0 %v1152
  %1663 = vmatpush.bf16.msra.mxu0 %v1150
  %1664 = vmatpush.bf16.msra.mxu0 %v1148
  %1665 = vmatpush.bf16.msra.mxu0 %v1146
  %1666 = vmatmul.bf16.gmra.mxu0 %v346
  %v1667 = vpop.f32.mrf.mxu0
  %v1668 = vadd.f32 %v294, %v1667
  %v1669 = vpop.f32.mrf.mxu0
  %v1670 = vadd.f32 %v294, %v1669
  %1671 = vdwg.mxu0
  %1672 = vmatpush.bf16.msra.mxu0 %v1176
  %1673 = vmatpush.bf16.msra.mxu0 %v1174
  %1674 = vmatpush.bf16.msra.mxu0 %v1172
  %1675 = vmatpush.bf16.msra.mxu0 %v1170
  %1676 = vmatpush.bf16.msra.mxu0 %v1168
  %1677 = vmatpush.bf16.msra.mxu0 %v1166
  %1678 = vmatpush.bf16.msra.mxu0 %v1164
  %1679 = vmatpush.bf16.msra.mxu0 %v1162
  %1680 = vmatmul.bf16.gmra.mxu0 %v347
  %v1681 = vpop.f32.mrf.mxu0
  %v1682 = vadd.f32 %v1668, %v1681
  %v1683 = vpop.f32.mrf.mxu0
  %v1684 = vadd.f32 %v1670, %v1683
  %1685 = vdwg.mxu0
  %1686 = vmatpush.bf16.msra.mxu0 %v1192
  %1687 = vmatpush.bf16.msra.mxu0 %v1190
  %1688 = vmatpush.bf16.msra.mxu0 %v1188
  %1689 = vmatpush.bf16.msra.mxu0 %v1186
  %1690 = vmatpush.bf16.msra.mxu0 %v1184
  %1691 = vmatpush.bf16.msra.mxu0 %v1182
  %1692 = vmatpush.bf16.msra.mxu0 %v1180
  %1693 = vmatpush.bf16.msra.mxu0 %v1178
  %1694 = vmatmul.bf16.gmra.mxu0 %v348
  %v1695 = vpop.f32.mrf.mxu0
  %v1696 = vadd.f32 %v1682, %v1695
  %v1697 = vpop.f32.mrf.mxu0
  %v1698 = vadd.f32 %v1684, %v1697
  %1699 = vdwg.mxu0
  %1700 = vmatpush.bf16.msra.mxu0 %v1208
  %1701 = vmatpush.bf16.msra.mxu0 %v1206
  %1702 = vmatpush.bf16.msra.mxu0 %v1204
  %1703 = vmatpush.bf16.msra.mxu0 %v1202
  %1704 = vmatpush.bf16.msra.mxu0 %v1200
  %1705 = vmatpush.bf16.msra.mxu0 %v1198
  %1706 = vmatpush.bf16.msra.mxu0 %v1196
  %1707 = vmatpush.bf16.msra.mxu0 %v1194
  %1708 = vmatmul.bf16.gmra.mxu0 %v349
  %v1709 = vpop.f32.mrf.mxu0
  %v1710 = vadd.f32 %v1696, %v1709
  %v1711 = vpop.f32.mrf.mxu0
  %v1712 = vadd.f32 %v1698, %v1711
  %1713 = vdwg.mxu0
  %1714 = vmatpush.bf16.msra.mxu0 %v1224
  %1715 = vmatpush.bf16.msra.mxu0 %v1222
  %1716 = vmatpush.bf16.msra.mxu0 %v1220
  %1717 = vmatpush.bf16.msra.mxu0 %v1218
  %1718 = vmatpush.bf16.msra.mxu0 %v1216
  %1719 = vmatpush.bf16.msra.mxu0 %v1214
  %1720 = vmatpush.bf16.msra.mxu0 %v1212
  %1721 = vmatpush.bf16.msra.mxu0 %v1210
  %1722 = vmatmul.bf16.gmra.mxu0 %v350
  %v1723 = vpop.f32.mrf.mxu0
  %v1724 = vadd.f32 %v1710, %v1723
  %v1725 = vpop.f32.mrf.mxu0
  %v1726 = vadd.f32 %v1712, %v1725
  %1727 = vdwg.mxu0
  %1728 = vmatpush.bf16.msra.mxu0 %v1240
  %1729 = vmatpush.bf16.msra.mxu0 %v1238
  %1730 = vmatpush.bf16.msra.mxu0 %v1236
  %1731 = vmatpush.bf16.msra.mxu0 %v1234
  %1732 = vmatpush.bf16.msra.mxu0 %v1232
  %1733 = vmatpush.bf16.msra.mxu0 %v1230
  %1734 = vmatpush.bf16.msra.mxu0 %v1228
  %1735 = vmatpush.bf16.msra.mxu0 %v1226
  %1736 = vmatmul.bf16.gmra.mxu0 %v351
  %v1737 = vpop.f32.mrf.mxu0
  %v1738 = vadd.f32 %v1724, %v1737
  %v1739 = vpop.f32.mrf.mxu0
  %v1740 = vadd.f32 %v1726, %v1739
  %1741 = vdwg.mxu0
  %1742 = vmatpush.bf16.msra.mxu0 %v1256
  %1743 = vmatpush.bf16.msra.mxu0 %v1254
  %1744 = vmatpush.bf16.msra.mxu0 %v1252
  %1745 = vmatpush.bf16.msra.mxu0 %v1250
  %1746 = vmatpush.bf16.msra.mxu0 %v1248
  %1747 = vmatpush.bf16.msra.mxu0 %v1246
  %1748 = vmatpush.bf16.msra.mxu0 %v1244
  %1749 = vmatpush.bf16.msra.mxu0 %v1242
  %1750 = vmatmul.bf16.gmra.mxu0 %v352
  %v1751 = vpop.f32.mrf.mxu0
  %v1752 = vadd.f32 %v1738, %v1751
  %v1753 = vpop.f32.mrf.mxu0
  %v1754 = vadd.f32 %v1740, %v1753
  %1755 = vdwg.mxu0
  %1756 = vmatpush.bf16.msra.mxu0 %v1272
  %1757 = vmatpush.bf16.msra.mxu0 %v1270
  %1758 = vmatpush.bf16.msra.mxu0 %v1268
  %1759 = vmatpush.bf16.msra.mxu0 %v1266
  %1760 = vmatpush.bf16.msra.mxu0 %v1264
  %1761 = vmatpush.bf16.msra.mxu0 %v1262
  %1762 = vmatpush.bf16.msra.mxu0 %v1260
  %1763 = vmatpush.bf16.msra.mxu0 %v1258
  %1764 = vmatmul.bf16.gmra.mxu0 %v353
  %v1765 = vpop.f32.mrf.mxu0
  %v1766 = vadd.f32 %v1752, %v1765
  %v1767 = vpop.f32.mrf.mxu0
  %v1768 = vadd.f32 %v1754, %v1767
  %1769 = vdwg.mxu0
  %1770 = vmatpush.bf16.msra.mxu0 %v1288
  %1771 = vmatpush.bf16.msra.mxu0 %v1286
  %1772 = vmatpush.bf16.msra.mxu0 %v1284
  %1773 = vmatpush.bf16.msra.mxu0 %v1282
  %1774 = vmatpush.bf16.msra.mxu0 %v1280
  %1775 = vmatpush.bf16.msra.mxu0 %v1278
  %1776 = vmatpush.bf16.msra.mxu0 %v1276
  %1777 = vmatpush.bf16.msra.mxu0 %v1274
  %1778 = vmatmul.bf16.gmra.mxu0 %v354
  %v1779 = vpop.f32.mrf.mxu0
  %v1780 = vadd.f32 %v1766, %v1779
  %v1781 = vpop.f32.mrf.mxu0
  %v1782 = vadd.f32 %v1768, %v1781
  %1783 = vdwg.mxu0
  %1784 = vmatpush.bf16.msra.mxu0 %v1304
  %1785 = vmatpush.bf16.msra.mxu0 %v1302
  %1786 = vmatpush.bf16.msra.mxu0 %v1300
  %1787 = vmatpush.bf16.msra.mxu0 %v1298
  %1788 = vmatpush.bf16.msra.mxu0 %v1296
  %1789 = vmatpush.bf16.msra.mxu0 %v1294
  %1790 = vmatpush.bf16.msra.mxu0 %v1292
  %1791 = vmatpush.bf16.msra.mxu0 %v1290
  %1792 = vmatmul.bf16.gmra.mxu0 %v355
  %v1793 = vpop.f32.mrf.mxu0
  %v1794 = vadd.f32 %v1780, %v1793
  %v1795 = vpop.f32.mrf.mxu0
  %v1796 = vadd.f32 %v1782, %v1795
  %1797 = vdwg.mxu0
  %1798 = vmatpush.bf16.msra.mxu0 %v1320
  %1799 = vmatpush.bf16.msra.mxu0 %v1318
  %1800 = vmatpush.bf16.msra.mxu0 %v1316
  %1801 = vmatpush.bf16.msra.mxu0 %v1314
  %1802 = vmatpush.bf16.msra.mxu0 %v1312
  %1803 = vmatpush.bf16.msra.mxu0 %v1310
  %1804 = vmatpush.bf16.msra.mxu0 %v1308
  %1805 = vmatpush.bf16.msra.mxu0 %v1306
  %1806 = vmatmul.bf16.gmra.mxu0 %v356
  %v1807 = vpop.f32.mrf.mxu0
  %v1808 = vadd.f32 %v1794, %v1807
  %v1809 = vpop.f32.mrf.mxu0
  %v1810 = vadd.f32 %v1796, %v1809
  %1811 = vdwg.mxu0
  %1812 = vmatpush.bf16.msra.mxu0 %v1336
  %1813 = vmatpush.bf16.msra.mxu0 %v1334
  %1814 = vmatpush.bf16.msra.mxu0 %v1332
  %1815 = vmatpush.bf16.msra.mxu0 %v1330
  %1816 = vmatpush.bf16.msra.mxu0 %v1328
  %1817 = vmatpush.bf16.msra.mxu0 %v1326
  %1818 = vmatpush.bf16.msra.mxu0 %v1324
  %1819 = vmatpush.bf16.msra.mxu0 %v1322
  %1820 = vmatmul.bf16.gmra.mxu0 %v357
  %v1821 = vpop.f32.mrf.mxu0
  %v1822 = vadd.f32 %v1808, %v1821
  %v1823 = vpop.f32.mrf.mxu0
  %v1824 = vadd.f32 %v1810, %v1823
  %1825 = vdwg.mxu0
  %1826 = vmatpush.bf16.msra.mxu0 %v1352
  %1827 = vmatpush.bf16.msra.mxu0 %v1350
  %1828 = vmatpush.bf16.msra.mxu0 %v1348
  %1829 = vmatpush.bf16.msra.mxu0 %v1346
  %1830 = vmatpush.bf16.msra.mxu0 %v1344
  %1831 = vmatpush.bf16.msra.mxu0 %v1342
  %1832 = vmatpush.bf16.msra.mxu0 %v1340
  %1833 = vmatpush.bf16.msra.mxu0 %v1338
  %1834 = vmatmul.bf16.gmra.mxu0 %v358
  %v1835 = vpop.f32.mrf.mxu0
  %v1836 = vadd.f32 %v1822, %v1835
  %v1837 = vpop.f32.mrf.mxu0
  %v1838 = vadd.f32 %v1824, %v1837
  %1839 = vdwg.mxu0
  %1840 = vmatpush.bf16.msra.mxu0 %v1368
  %1841 = vmatpush.bf16.msra.mxu0 %v1366
  %1842 = vmatpush.bf16.msra.mxu0 %v1364
  %1843 = vmatpush.bf16.msra.mxu0 %v1362
  %1844 = vmatpush.bf16.msra.mxu0 %v1360
  %1845 = vmatpush.bf16.msra.mxu0 %v1358
  %1846 = vmatpush.bf16.msra.mxu0 %v1356
  %1847 = vmatpush.bf16.msra.mxu0 %v1354
  %1848 = vmatmul.bf16.gmra.mxu0 %v359
  %v1849 = vpop.f32.mrf.mxu0
  %v1850 = vadd.f32 %v1836, %v1849
  %v1851 = vpop.f32.mrf.mxu0
  %v1852 = vadd.f32 %v1838, %v1851
  %1853 = vdwg.mxu0
  %1854 = vmatpush.bf16.msra.mxu0 %v1384
  %1855 = vmatpush.bf16.msra.mxu0 %v1382
  %1856 = vmatpush.bf16.msra.mxu0 %v1380
  %1857 = vmatpush.bf16.msra.mxu0 %v1378
  %1858 = vmatpush.bf16.msra.mxu0 %v1376
  %1859 = vmatpush.bf16.msra.mxu0 %v1374
  %1860 = vmatpush.bf16.msra.mxu0 %v1372
  %1861 = vmatpush.bf16.msra.mxu0 %v1370
  %1862 = vmatmul.bf16.gmra.mxu0 %v360
  %v1863 = vpop.f32.mrf.mxu0
  %v1864 = vadd.f32 %v1850, %v1863
  %v1865 = vpop.f32.mrf.mxu0
  %v1866 = vadd.f32 %v1852, %v1865
  %1867 = vdwg.mxu0
  %1868 = vmatpush.bf16.msra.mxu0 %v1400
  %1869 = vmatpush.bf16.msra.mxu0 %v1398
  %1870 = vmatpush.bf16.msra.mxu0 %v1396
  %1871 = vmatpush.bf16.msra.mxu0 %v1394
  %1872 = vmatpush.bf16.msra.mxu0 %v1392
  %1873 = vmatpush.bf16.msra.mxu0 %v1390
  %1874 = vmatpush.bf16.msra.mxu0 %v1388
  %1875 = vmatpush.bf16.msra.mxu0 %v1386
  %1876 = vmatmul.bf16.gmra.mxu0 %v361
  %v1877 = vpop.f32.mrf.mxu0
  %v1878 = vadd.f32 %v1864, %v1877
  %v1879 = vpop.f32.mrf.mxu0
  %v1880 = vadd.f32 %v1866, %v1879
  %1881 = vdwg.mxu0
  %1882 = vmatpush.bf16.msra.mxu0 %v1161
  %1883 = vmatpush.bf16.msra.mxu0 %v1159
  %1884 = vmatpush.bf16.msra.mxu0 %v1157
  %1885 = vmatpush.bf16.msra.mxu0 %v1155
  %1886 = vmatpush.bf16.msra.mxu0 %v1153
  %1887 = vmatpush.bf16.msra.mxu0 %v1151
  %1888 = vmatpush.bf16.msra.mxu0 %v1149
  %1889 = vmatpush.bf16.msra.mxu0 %v1147
  %1890 = vmatmul.bf16.gmra.mxu0 %v346
  %v1891 = vpop.f32.mrf.mxu0
  %v1892 = vadd.f32 %v295, %v1891
  %v1893 = vpop.f32.mrf.mxu0
  %v1894 = vadd.f32 %v295, %v1893
  %1895 = vdwg.mxu0
  %1896 = vmatpush.bf16.msra.mxu0 %v1177
  %1897 = vmatpush.bf16.msra.mxu0 %v1175
  %1898 = vmatpush.bf16.msra.mxu0 %v1173
  %1899 = vmatpush.bf16.msra.mxu0 %v1171
  %1900 = vmatpush.bf16.msra.mxu0 %v1169
  %1901 = vmatpush.bf16.msra.mxu0 %v1167
  %1902 = vmatpush.bf16.msra.mxu0 %v1165
  %1903 = vmatpush.bf16.msra.mxu0 %v1163
  %1904 = vmatmul.bf16.gmra.mxu0 %v347
  %v1905 = vpop.f32.mrf.mxu0
  %v1906 = vadd.f32 %v1892, %v1905
  %v1907 = vpop.f32.mrf.mxu0
  %v1908 = vadd.f32 %v1894, %v1907
  %1909 = vdwg.mxu0
  %1910 = vmatpush.bf16.msra.mxu0 %v1193
  %1911 = vmatpush.bf16.msra.mxu0 %v1191
  %1912 = vmatpush.bf16.msra.mxu0 %v1189
  %1913 = vmatpush.bf16.msra.mxu0 %v1187
  %1914 = vmatpush.bf16.msra.mxu0 %v1185
  %1915 = vmatpush.bf16.msra.mxu0 %v1183
  %1916 = vmatpush.bf16.msra.mxu0 %v1181
  %1917 = vmatpush.bf16.msra.mxu0 %v1179
  %1918 = vmatmul.bf16.gmra.mxu0 %v348
  %v1919 = vpop.f32.mrf.mxu0
  %v1920 = vadd.f32 %v1906, %v1919
  %v1921 = vpop.f32.mrf.mxu0
  %v1922 = vadd.f32 %v1908, %v1921
  %1923 = vdwg.mxu0
  %1924 = vmatpush.bf16.msra.mxu0 %v1209
  %1925 = vmatpush.bf16.msra.mxu0 %v1207
  %1926 = vmatpush.bf16.msra.mxu0 %v1205
  %1927 = vmatpush.bf16.msra.mxu0 %v1203
  %1928 = vmatpush.bf16.msra.mxu0 %v1201
  %1929 = vmatpush.bf16.msra.mxu0 %v1199
  %1930 = vmatpush.bf16.msra.mxu0 %v1197
  %1931 = vmatpush.bf16.msra.mxu0 %v1195
  %1932 = vmatmul.bf16.gmra.mxu0 %v349
  %v1933 = vpop.f32.mrf.mxu0
  %v1934 = vadd.f32 %v1920, %v1933
  %v1935 = vpop.f32.mrf.mxu0
  %v1936 = vadd.f32 %v1922, %v1935
  %1937 = vdwg.mxu0
  %1938 = vmatpush.bf16.msra.mxu0 %v1225
  %1939 = vmatpush.bf16.msra.mxu0 %v1223
  %1940 = vmatpush.bf16.msra.mxu0 %v1221
  %1941 = vmatpush.bf16.msra.mxu0 %v1219
  %1942 = vmatpush.bf16.msra.mxu0 %v1217
  %1943 = vmatpush.bf16.msra.mxu0 %v1215
  %1944 = vmatpush.bf16.msra.mxu0 %v1213
  %1945 = vmatpush.bf16.msra.mxu0 %v1211
  %1946 = vmatmul.bf16.gmra.mxu0 %v350
  %v1947 = vpop.f32.mrf.mxu0
  %v1948 = vadd.f32 %v1934, %v1947
  %v1949 = vpop.f32.mrf.mxu0
  %v1950 = vadd.f32 %v1936, %v1949
  %1951 = vdwg.mxu0
  %1952 = vmatpush.bf16.msra.mxu0 %v1241
  %1953 = vmatpush.bf16.msra.mxu0 %v1239
  %1954 = vmatpush.bf16.msra.mxu0 %v1237
  %1955 = vmatpush.bf16.msra.mxu0 %v1235
  %1956 = vmatpush.bf16.msra.mxu0 %v1233
  %1957 = vmatpush.bf16.msra.mxu0 %v1231
  %1958 = vmatpush.bf16.msra.mxu0 %v1229
  %1959 = vmatpush.bf16.msra.mxu0 %v1227
  %1960 = vmatmul.bf16.gmra.mxu0 %v351
  %v1961 = vpop.f32.mrf.mxu0
  %v1962 = vadd.f32 %v1948, %v1961
  %v1963 = vpop.f32.mrf.mxu0
  %v1964 = vadd.f32 %v1950, %v1963
  %1965 = vdwg.mxu0
  %1966 = vmatpush.bf16.msra.mxu0 %v1257
  %1967 = vmatpush.bf16.msra.mxu0 %v1255
  %1968 = vmatpush.bf16.msra.mxu0 %v1253
  %1969 = vmatpush.bf16.msra.mxu0 %v1251
  %1970 = vmatpush.bf16.msra.mxu0 %v1249
  %1971 = vmatpush.bf16.msra.mxu0 %v1247
  %1972 = vmatpush.bf16.msra.mxu0 %v1245
  %1973 = vmatpush.bf16.msra.mxu0 %v1243
  %1974 = vmatmul.bf16.gmra.mxu0 %v352
  %v1975 = vpop.f32.mrf.mxu0
  %v1976 = vadd.f32 %v1962, %v1975
  %v1977 = vpop.f32.mrf.mxu0
  %v1978 = vadd.f32 %v1964, %v1977
  %1979 = vdwg.mxu0
  %1980 = vmatpush.bf16.msra.mxu0 %v1273
  %1981 = vmatpush.bf16.msra.mxu0 %v1271
  %1982 = vmatpush.bf16.msra.mxu0 %v1269
  %1983 = vmatpush.bf16.msra.mxu0 %v1267
  %1984 = vmatpush.bf16.msra.mxu0 %v1265
  %1985 = vmatpush.bf16.msra.mxu0 %v1263
  %1986 = vmatpush.bf16.msra.mxu0 %v1261
  %1987 = vmatpush.bf16.msra.mxu0 %v1259
  %1988 = vmatmul.bf16.gmra.mxu0 %v353
  %v1989 = vpop.f32.mrf.mxu0
  %v1990 = vadd.f32 %v1976, %v1989
  %v1991 = vpop.f32.mrf.mxu0
  %v1992 = vadd.f32 %v1978, %v1991
  %1993 = vdwg.mxu0
  %1994 = vmatpush.bf16.msra.mxu0 %v1289
  %1995 = vmatpush.bf16.msra.mxu0 %v1287
  %1996 = vmatpush.bf16.msra.mxu0 %v1285
  %1997 = vmatpush.bf16.msra.mxu0 %v1283
  %1998 = vmatpush.bf16.msra.mxu0 %v1281
  %1999 = vmatpush.bf16.msra.mxu0 %v1279
  %2000 = vmatpush.bf16.msra.mxu0 %v1277
  %2001 = vmatpush.bf16.msra.mxu0 %v1275
  %2002 = vmatmul.bf16.gmra.mxu0 %v354
  %v2003 = vpop.f32.mrf.mxu0
  %v2004 = vadd.f32 %v1990, %v2003
  %v2005 = vpop.f32.mrf.mxu0
  %v2006 = vadd.f32 %v1992, %v2005
  %2007 = vdwg.mxu0
  %2008 = vmatpush.bf16.msra.mxu0 %v1305
  %2009 = vmatpush.bf16.msra.mxu0 %v1303
  %2010 = vmatpush.bf16.msra.mxu0 %v1301
  %2011 = vmatpush.bf16.msra.mxu0 %v1299
  %2012 = vmatpush.bf16.msra.mxu0 %v1297
  %2013 = vmatpush.bf16.msra.mxu0 %v1295
  %2014 = vmatpush.bf16.msra.mxu0 %v1293
  %2015 = vmatpush.bf16.msra.mxu0 %v1291
  %2016 = vmatmul.bf16.gmra.mxu0 %v355
  %v2017 = vpop.f32.mrf.mxu0
  %v2018 = vadd.f32 %v2004, %v2017
  %v2019 = vpop.f32.mrf.mxu0
  %v2020 = vadd.f32 %v2006, %v2019
  %2021 = vdwg.mxu0
  %2022 = vmatpush.bf16.msra.mxu0 %v1321
  %2023 = vmatpush.bf16.msra.mxu0 %v1319
  %2024 = vmatpush.bf16.msra.mxu0 %v1317
  %2025 = vmatpush.bf16.msra.mxu0 %v1315
  %2026 = vmatpush.bf16.msra.mxu0 %v1313
  %2027 = vmatpush.bf16.msra.mxu0 %v1311
  %2028 = vmatpush.bf16.msra.mxu0 %v1309
  %2029 = vmatpush.bf16.msra.mxu0 %v1307
  %2030 = vmatmul.bf16.gmra.mxu0 %v356
  %v2031 = vpop.f32.mrf.mxu0
  %v2032 = vadd.f32 %v2018, %v2031
  %v2033 = vpop.f32.mrf.mxu0
  %v2034 = vadd.f32 %v2020, %v2033
  %2035 = vdwg.mxu0
  %2036 = vmatpush.bf16.msra.mxu0 %v1337
  %2037 = vmatpush.bf16.msra.mxu0 %v1335
  %2038 = vmatpush.bf16.msra.mxu0 %v1333
  %2039 = vmatpush.bf16.msra.mxu0 %v1331
  %2040 = vmatpush.bf16.msra.mxu0 %v1329
  %2041 = vmatpush.bf16.msra.mxu0 %v1327
  %2042 = vmatpush.bf16.msra.mxu0 %v1325
  %2043 = vmatpush.bf16.msra.mxu0 %v1323
  %2044 = vmatmul.bf16.gmra.mxu0 %v357
  %v2045 = vpop.f32.mrf.mxu0
  %v2046 = vadd.f32 %v2032, %v2045
  %v2047 = vpop.f32.mrf.mxu0
  %v2048 = vadd.f32 %v2034, %v2047
  %2049 = vdwg.mxu0
  %2050 = vmatpush.bf16.msra.mxu0 %v1353
  %2051 = vmatpush.bf16.msra.mxu0 %v1351
  %2052 = vmatpush.bf16.msra.mxu0 %v1349
  %2053 = vmatpush.bf16.msra.mxu0 %v1347
  %2054 = vmatpush.bf16.msra.mxu0 %v1345
  %2055 = vmatpush.bf16.msra.mxu0 %v1343
  %2056 = vmatpush.bf16.msra.mxu0 %v1341
  %2057 = vmatpush.bf16.msra.mxu0 %v1339
  %2058 = vmatmul.bf16.gmra.mxu0 %v358
  %v2059 = vpop.f32.mrf.mxu0
  %v2060 = vadd.f32 %v2046, %v2059
  %v2061 = vpop.f32.mrf.mxu0
  %v2062 = vadd.f32 %v2048, %v2061
  %2063 = vdwg.mxu0
  %2064 = vmatpush.bf16.msra.mxu0 %v1369
  %2065 = vmatpush.bf16.msra.mxu0 %v1367
  %2066 = vmatpush.bf16.msra.mxu0 %v1365
  %2067 = vmatpush.bf16.msra.mxu0 %v1363
  %2068 = vmatpush.bf16.msra.mxu0 %v1361
  %2069 = vmatpush.bf16.msra.mxu0 %v1359
  %2070 = vmatpush.bf16.msra.mxu0 %v1357
  %2071 = vmatpush.bf16.msra.mxu0 %v1355
  %2072 = vmatmul.bf16.gmra.mxu0 %v359
  %v2073 = vpop.f32.mrf.mxu0
  %v2074 = vadd.f32 %v2060, %v2073
  %v2075 = vpop.f32.mrf.mxu0
  %v2076 = vadd.f32 %v2062, %v2075
  %2077 = vdwg.mxu0
  %2078 = vmatpush.bf16.msra.mxu0 %v1385
  %2079 = vmatpush.bf16.msra.mxu0 %v1383
  %2080 = vmatpush.bf16.msra.mxu0 %v1381
  %2081 = vmatpush.bf16.msra.mxu0 %v1379
  %2082 = vmatpush.bf16.msra.mxu0 %v1377
  %2083 = vmatpush.bf16.msra.mxu0 %v1375
  %2084 = vmatpush.bf16.msra.mxu0 %v1373
  %2085 = vmatpush.bf16.msra.mxu0 %v1371
  %2086 = vmatmul.bf16.gmra.mxu0 %v360
  %v2087 = vpop.f32.mrf.mxu0
  %v2088 = vadd.f32 %v2074, %v2087
  %v2089 = vpop.f32.mrf.mxu0
  %v2090 = vadd.f32 %v2076, %v2089
  %2091 = vdwg.mxu0
  %2092 = vmatpush.bf16.msra.mxu0 %v1401
  %2093 = vmatpush.bf16.msra.mxu0 %v1399
  %2094 = vmatpush.bf16.msra.mxu0 %v1397
  %2095 = vmatpush.bf16.msra.mxu0 %v1395
  %2096 = vmatpush.bf16.msra.mxu0 %v1393
  %2097 = vmatpush.bf16.msra.mxu0 %v1391
  %2098 = vmatpush.bf16.msra.mxu0 %v1389
  %2099 = vmatpush.bf16.msra.mxu0 %v1387
  %2100 = vmatmul.bf16.gmra.mxu0 %v361
  %v2101 = vpop.f32.mrf.mxu0
  %v2102 = vadd.f32 %v2088, %v2101
  %v2103 = vpop.f32.mrf.mxu0
  %v2104 = vadd.f32 %v2090, %v2103
  %2105 = vdwg.mxu0
  %v2106 = vmax.f32 %v1878, 0.0
  %v2107 = vmax.f32 %v2102, 0.0
  %v2108 = vmax.f32 %v1880, 0.0
  %v2109 = vmax.f32 %v2104, 0.0
  %v2110 = vpack.c.bf16 %v2108, %v2106
  %v2111 = vpack.c.bf16 %v2109, %v2107
  %v2112 = vld [vmem:[%s3] sm:$0xf]
  %v2113 = vld [vmem:[%s3 + $0x4] sm:$0xf]
  %v2114 = vld [vmem:[%s3 + $0x8] sm:$0xf]
  %v2115 = vld [vmem:[%s3 + $0xc] sm:$0xf]
  %v2116 = vld [vmem:[%s3 + $0x10] sm:$0xf]
  %v2117 = vld [vmem:[%s3 + $0x14] sm:$0xf]
  %v2118 = vld [vmem:[%s3 + $0x18] sm:$0xf]
  %v2119 = vld [vmem:[%s3 + $0x1c] sm:$0xf]
  %v2120 = vld [vmem:[%s3 + $0x20] sm:$0xf]
  %v2121 = vld [vmem:[%s3 + $0x24] sm:$0xf]
  %v2122 = vld [vmem:[%s3 + $0x28] sm:$0xf]
  %v2123 = vld [vmem:[%s3 + $0x2c] sm:$0xf]
  %v2124 = vld [vmem:[%s3 + $0x30] sm:$0xf]
  %v2125 = vld [vmem:[%s3 + $0x34] sm:$0xf]
  %v2126 = vld [vmem:[%s3 + $0x38] sm:$0xf]
  %v2127 = vld [vmem:[%s3 + $0x3c] sm:$0xf]
  %v2128 = vld [vmem:[%s3 + $0x40] sm:$0xf]
  %v2129 = vld [vmem:[%s3 + $0x44] sm:$0xf]
  %v2130 = vld [vmem:[%s3 + $0x48] sm:$0xf]
  %v2131 = vld [vmem:[%s3 + $0x4c] sm:$0xf]
  %v2132 = vld [vmem:[%s3 + $0x50] sm:$0xf]
  %v2133 = vld [vmem:[%s3 + $0x54] sm:$0xf]
  %v2134 = vld [vmem:[%s3 + $0x58] sm:$0xf]
  %v2135 = vld [vmem:[%s3 + $0x5c] sm:$0xf]
  %v2136 = vld [vmem:[%s3 + $0x60] sm:$0xf]
  %v2137 = vld [vmem:[%s3 + $0x64] sm:$0xf]
  %v2138 = vld [vmem:[%s3 + $0x68] sm:$0xf]
  %v2139 = vld [vmem:[%s3 + $0x6c] sm:$0xf]
  %v2140 = vld [vmem:[%s3 + $0x70] sm:$0xf]
  %v2141 = vld [vmem:[%s3 + $0x74] sm:$0xf]
  %v2142 = vld [vmem:[%s3 + $0x78] sm:$0xf]
  %v2143 = vld [vmem:[%s3 + $0x7c] sm:$0xf]
  %v2144 = vld [vmem:[%s4] sm:$0x1]
  %v2146 = vperm.slane %v2144, 0
  %v2180 = vunpack.c.l.b16 %v2112
  %v2181 = vunpack.c.l.b16 %v2113
  %v2182 = vunpack.c.l.b16 %v2114
  %v2183 = vunpack.c.l.b16 %v2115
  %v2184 = vunpack.c.l.b16 %v2116
  %v2185 = vunpack.c.l.b16 %v2117
  %v2186 = vunpack.c.l.b16 %v2118
  %v2187 = vunpack.c.l.b16 %v2119
  %v2188 = vunpack.c.l.b16 %v2120
  %v2189 = vunpack.c.l.b16 %v2121
  %v2190 = vunpack.c.l.b16 %v2122
  %v2191 = vunpack.c.l.b16 %v2123
  %v2192 = vunpack.c.l.b16 %v2124
  %v2193 = vunpack.c.l.b16 %v2125
  %v2194 = vunpack.c.l.b16 %v2126
  %v2195 = vunpack.c.l.b16 %v2127
  %v2196 = vunpack.c.l.b16 %v2128
  %v2197 = vunpack.c.l.b16 %v2129
  %v2198 = vunpack.c.l.b16 %v2130
  %v2199 = vunpack.c.l.b16 %v2131
  %v2200 = vunpack.c.l.b16 %v2132
  %v2201 = vunpack.c.l.b16 %v2133
  %v2202 = vunpack.c.l.b16 %v2134
  %v2203 = vunpack.c.l.b16 %v2135
  %v2204 = vunpack.c.l.b16 %v2136
  %v2205 = vunpack.c.l.b16 %v2137
  %v2206 = vunpack.c.l.b16 %v2138
  %v2207 = vunpack.c.l.b16 %v2139
  %v2208 = vunpack.c.l.b16 %v2140
  %v2209 = vunpack.c.l.b16 %v2141
  %v2210 = vunpack.c.l.b16 %v2142
  %v2211 = vunpack.c.l.b16 %v2143
  %v2212 = vpack.c.b16 %v2181, %v2180
  %v2213 = vpack.c.b16 %v2183, %v2182
  %v2214 = vpack.c.b16 %v2185, %v2184
  %v2215 = vpack.c.b16 %v2187, %v2186
  %v2216 = vpack.c.b16 %v2189, %v2188
  %v2217 = vpack.c.b16 %v2191, %v2190
  %v2218 = vpack.c.b16 %v2193, %v2192
  %v2219 = vpack.c.b16 %v2195, %v2194
  %v2220 = vpack.c.b16 %v2197, %v2196
  %v2221 = vpack.c.b16 %v2199, %v2198
  %v2222 = vpack.c.b16 %v2201, %v2200
  %v2223 = vpack.c.b16 %v2203, %v2202
  %v2224 = vpack.c.b16 %v2205, %v2204
  %v2225 = vpack.c.b16 %v2207, %v2206
  %v2226 = vpack.c.b16 %v2209, %v2208
  %v2227 = vpack.c.b16 %v2211, %v2210
  %2244 = vmatpush.bf16.msra.mxu0 %v2219
  %2245 = vmatpush.bf16.msra.mxu0 %v2218
  %2246 = vmatpush.bf16.msra.mxu0 %v2217
  %2247 = vmatpush.bf16.msra.mxu0 %v2216
  %2248 = vmatpush.bf16.msra.mxu0 %v2215
  %2249 = vmatpush.bf16.msra.mxu0 %v2214
  %2250 = vmatpush.bf16.msra.mxu0 %v2213
  %2251 = vmatpush.bf16.msra.mxu0 %v2212
  %2252 = vmatmul.bf16.gmra.mxu0 %v2110
  %v2253 = vpop.f32.mrf.mxu0
  %v2254 = vadd.f32 %v2146, %v2253
  %v2255 = vpop.f32.mrf.mxu0
  %v2256 = vadd.f32 %v2146, %v2255
  %2257 = vdwg.mxu0
  %2258 = vmatpush.bf16.msra.mxu0 %v2227
  %2259 = vmatpush.bf16.msra.mxu0 %v2226
  %2260 = vmatpush.bf16.msra.mxu0 %v2225
  %2261 = vmatpush.bf16.msra.mxu0 %v2224
  %2262 = vmatpush.bf16.msra.mxu0 %v2223
  %2263 = vmatpush.bf16.msra.mxu0 %v2222
  %2264 = vmatpush.bf16.msra.mxu0 %v2221
  %2265 = vmatpush.bf16.msra.mxu0 %v2220
  %2266 = vmatmul.bf16.gmra.mxu0 %v2111
  %v2267 = vpop.f32.mrf.mxu0
  %v2268 = vadd.f32 %v2254, %v2267
  %v2269 = vpop.f32.mrf.mxu0
  %v2270 = vadd.f32 %v2256, %v2269
  %2271 = vdwg.mxu0
  %2272 = vst [vmem:[%s5] sm:$0xff] %v2268
  %2273 = vst [vmem:[%s5 + $0x8] sm:$0xff] %v2270
  // Predicated region
  $region22: #{_lambda_.9} parent=0 // pred_check
    _
  $region23: #{_lambda_.9} parent=0 // pred_check_branch
    %2275 = sbr.rel (0) target = $region25
  $region24: #{_lambda_.9} parent=0 // pred_region
    _
  $region25: #{_lambda_.9} parent=0 // pred_fallthru
    _
  // Predicated region
  $region26: #{_lambda_.9} parent=0 // pred_check
    _
  $region27: #{_lambda_.9} parent=0 // pred_check_branch
    %2277 = sbr.rel (0) target = $region29
  $region28: #{_lambda_.9} parent=0 // pred_region
    _
  $region29: #{_lambda_.9} parent=0 // pred_fallthru
    _

</llo_original>
